<compile_context>
chip_gen: v7x
topology: tpu7x:2x2x1
jax: 0.10.0
libtpu: 0.0.40
codegen_flags: <defaults>
</compile_context>

<pallas_src>
import functools

import jax
import jax.numpy as jnp
from jax.experimental import pallas as pl
from jax.experimental.pallas import tpu as pltpu


ASPP_RATES = (6, 12, 18, 24)


def _round_up(x, m):
    return (x + m - 1) // m * m


# --------------------------------------------------------------------------
# Fused kernel: backbone + all tasks' ASPP heads for one batch element.
# --------------------------------------------------------------------------

def _mtl_fused_kernel(*refs, H, W, R, C, rates, branch_taps):
    """refs = (x, wb, bb, w1[0..nb-1], b1s, w2s, b2s, w3s, b3s, out, fp_sc, col_sc)

    x     : (1, H, W, Cin)        f32   input image tile (NHWC)
    wb    : (Cin, C)              bf16  backbone 1x1 weights
    bb    : (1, C)                f32
    w1[b] : (len(taps_b)*C, THID) bf16  branch-b dilated taps, tasks packed on N
    b1s   : (NB, 1, THID)         f32
    w2s   : (NB, THID, THID)      bf16  block-diagonal over tasks
    b2s   : (NB, 1, THID)         f32
    w3s   : (NB, THID, CP)        bf16  per-task classifiers packed on CP lanes
    b3s   : (NB, 1, CP)           f32
    out   : (1, H, W, CP)         f32   branch-summed packed logits
    fp_sc : (H+2R, W+2R, C)       bf16  zero-padded feature slab (VMEM only)
    col_sc: (H*W, max_taps*C)     bf16  reused im2col scratch
    """
    nb = len(branch_taps)
    x_ref, wb_ref, bb_ref = refs[0], refs[1], refs[2]
    w1_refs = refs[3:3 + nb]
    b1_ref, w2_ref, b2_ref, w3_ref, b3_ref, o_ref, fp_sc, col_sc = refs[3 + nb:]

    Cin = x_ref.shape[-1]
    M = H * W
    CP = o_ref.shape[-1]

    # ---- backbone 1x1 conv + ReLU (fused: features never round-trip HBM) ----
    x2 = x_ref[...].reshape(M, Cin).astype(wb_ref.dtype)
    feats = jnp.dot(x2, wb_ref[...], preferred_element_type=jnp.float32)
    feats = jnp.maximum(feats + bb_ref[...], 0.0).astype(jnp.bfloat16)  # cast ONCE

    # ---- zero-padded bf16 feature slab lives only in VMEM scratch ----
    if R > 0:
        # Re-zero every step (cheap; avoids relying on program_id==0 running on
        # every core when the batch axis is sharded across TensorCores).
        fp_sc[...] = jnp.zeros_like(fp_sc)
    fp_sc[R:R + H, R:R + W, :] = feats.reshape(H, W, C)

    # ---- ASPP branches; all tasks share the im2col and the 128-lane GEMMs ----
    for bidx, (rate, taps) in enumerate(zip(rates, branch_taps)):
        if taps == ((1, 1),):
            # Every non-center tap of this rate falls entirely in the zero pad
            # at this H, W: the dilated 3x3 degenerates to a 1x1 on feats.
            cols = feats                                   # (M, C)
        else:
            # im2col via slice-writes into one reused VMEM scratch:
            # single K = len(taps)*C MXU contraction, bounded live range.
            for t, (kh, kw) in enumerate(taps):
                oh = R + (kh - 1) * rate
                ow = R + (kw - 1) * rate
                col_sc[:, t * C:(t + 1) * C] = (
                    fp_sc[oh:oh + H, ow:ow + W, :].reshape(M, C))
            K = len(taps) * C
            cols = col_sc[...] if K == col_sc.shape[1] else col_sc[:, :K]

        h = jnp.dot(cols, w1_refs[bidx][...], preferred_element_type=jnp.float32)
        h = jnp.maximum(h + b1_ref[bidx], 0.0).astype(jnp.bfloat16)
        h = jnp.dot(h, w2_ref[bidx], preferred_element_type=jnp.float32)
        h = jnp.maximum(h + b2_ref[bidx], 0.0).astype(jnp.bfloat16)
        h = jnp.dot(h, w3_ref[bidx], preferred_element_type=jnp.float32)
        contrib = (h + b3_ref[bidx]).reshape(1, H, W, CP)
        if bidx == 0:                      # branch sum accumulated in the
            o_ref[...] = contrib           # lane-dense output block (VMEM)
        else:
            o_ref[...] = o_ref[...] + contrib


# --------------------------------------------------------------------------
# One-time parameter packing (outside jit)
# --------------------------------------------------------------------------

def pack_params(params, img_hw, cls_num, rates=ASPP_RATES):
    H, W = img_hw
    tasks = tuple(cls_num.keys())
    T = len(tasks)
    cin, feat = params["backbone"]["w"].shape
    hid = params["heads"][tasks[0]][0]["w2"].shape[0]
    thid = T * hid

    # Compile-time tap pruning: a dilated tap whose offset reaches past the
    # image reads only zero padding -> drop its im2col columns and w1 rows.
    branch_taps = tuple(
        tuple((kh, kw) for kh in range(3) for kw in range(3)
              if abs(kh - 1) * r < H and abs(kw - 1) * r < W)
        for r in rates)
    R = 0
    for r, taps in zip(rates, branch_taps):
        for kh, kw in taps:
            R = max(R, abs(kh - 1) * r, abs(kw - 1) * r)

    # Class packing: every task's logits share one lane-dense 128-wide slab.
    cls_off, off = {}, 0
    for task in tasks:
        cls_off[task] = off
        off += cls_num[task]
    CP = _round_up(max(off, 1), 128)

    bf16, f32 = jnp.bfloat16, jnp.float32
    heads = params["heads"]

    w1_list, b1s, w2s, b2s, w3s, b3s = [], [], [], [], [], []
    for bidx, (rate, taps) in enumerate(zip(rates, branch_taps)):
        # GEMM-1: kept taps stacked along K, tasks concatenated along N.
        w1 = jnp.concatenate(
            [jnp.concatenate([heads[t][bidx]["w1"][kh, kw] for kh, kw in taps],
                             axis=0) for t in tasks], axis=1)
        w1_list.append(w1.astype(bf16))
        b1s.append(jnp.concatenate(
            [heads[t][bidx]["b1"] for t in tasks]).reshape(1, thid))
        # GEMM-2: block-diagonal over tasks.
        w2 = jnp.zeros((thid, thid), f32)
        for ti, t in enumerate(tasks):
            w2 = w2.at[ti * hid:(ti + 1) * hid,
                       ti * hid:(ti + 1) * hid].set(heads[t][bidx]["w2"])
        w2s.append(w2.astype(bf16))
        b2s.append(jnp.concatenate(
            [heads[t][bidx]["b2"] for t in tasks]).reshape(1, thid))
        # GEMM-3: task t's classifier occupies its hidden-row block and its
        # class-column slice of the packed 128-lane output.
        w3 = jnp.zeros((thid, CP), f32)
        b3 = jnp.zeros((1, CP), f32)
        for ti, t in enumerate(tasks):
            nc = cls_num[t]
            w3 = w3.at[ti * hid:(ti + 1) * hid,
                       cls_off[t]:cls_off[t] + nc].set(heads[t][bidx]["w3"])
            b3 = b3.at[0, cls_off[t]:cls_off[t] + nc].set(heads[t][bidx]["b3"])
        w3s.append(w3.astype(bf16))
        b3s.append(b3)

    packed = {
        "wb": params["backbone"]["w"].astype(bf16),
        "bb": params["backbone"]["b"].reshape(1, feat).astype(f32),
        "w1": tuple(w1_list),
        "b1": jnp.stack(b1s).astype(f32),
        "w2": jnp.stack(w2s),
        "b2": jnp.stack(b2s).astype(f32),
        "w3": jnp.stack(w3s),
        "b3": jnp.stack(b3s).astype(f32),
    }
    cfg = dict(H=H, W=W, R=R, C=feat, cin=cin, rates=tuple(rates),
               branch_taps=branch_taps, tasks=tasks, cls_num=dict(cls_num),
               cls_off=cls_off, CP=CP, thid=thid, hid=hid)
    return packed, cfg


# --------------------------------------------------------------------------
# Forward
# --------------------------------------------------------------------------

def mtl_forward(x_nchw, packed, *, cfg):
    # QuantStub / DeQuantStub: identity in float eval mode.
    H, W, R, C = cfg["H"], cfg["W"], cfg["R"], cfg["C"]
    rates, branch_taps = cfg["rates"], cfg["branch_taps"]
    CP, thid = cfg["CP"], cfg["thid"]
    nb = len(rates)
    max_taps = max(len(t) for t in branch_taps)

    x = jnp.transpose(x_nchw, (0, 2, 3, 1))                 # NCHW -> NHWC
    N, Hx, Wx, cin = x.shape
    assert (Hx, Wx) == (H, W)

    kernel = functools.partial(_mtl_fused_kernel, H=H, W=W, R=R, C=C,
                               rates=rates, branch_taps=branch_taps)

    in_specs = [pl.BlockSpec((1, H, W, cin), lambda n: (n, 0, 0, 0)),
                pl.BlockSpec((cin, C), lambda n: (0, 0)),
                pl.BlockSpec((1, C), lambda n: (0, 0))]
    for w1 in packed["w1"]:
        in_specs.append(pl.BlockSpec(w1.shape, lambda n: (0, 0)))
    in_specs += [pl.BlockSpec((nb, 1, thid), lambda n: (0, 0, 0)),
                 pl.BlockSpec((nb, thid, thid), lambda n: (0, 0, 0)),
                 pl.BlockSpec((nb, 1, thid), lambda n: (0, 0, 0)),
                 pl.BlockSpec((nb, thid, CP), lambda n: (0, 0, 0)),
                 pl.BlockSpec((nb, 1, CP), lambda n: (0, 0, 0))]

    out = pl.pallas_call(
        kernel,
        out_shape=jax.ShapeDtypeStruct((N, H, W, CP), jnp.float32),
        grid_spec=pltpu.PrefetchScalarGridSpec(
            num_scalar_prefetch=0,
            grid=(N,),
            in_specs=in_specs,
            out_specs=pl.BlockSpec((1, H, W, CP), lambda n: (n, 0, 0, 0)),
            scratch_shapes=[
                pltpu.VMEM((H + 2 * R, W + 2 * R, C), jnp.bfloat16),
                pltpu.VMEM((H * W, max_taps * C), jnp.bfloat16),
            ]),
        compiler_params=pltpu.CompilerParams(
            dimension_semantics=("parallel",)),
    )(x, packed["wb"], packed["bb"], *packed["w1"],
      packed["b1"], packed["w2"], packed["b2"], packed["w3"], packed["b3"])

    outputs = {}
    for task in cfg["tasks"]:
        off, nc = cfg["cls_off"][task], cfg["cls_num"][task]
        outputs[task] = jnp.transpose(out[..., off:off + nc], (0, 3, 1, 2))
    return outputs


# --------------------------------------------------------------------------
# Parameter init (original, unpacked layout)
# --------------------------------------------------------------------------

def init_params(key, in_ch, feature_dim, hidden, cls_num):
    def dense(k, cin, cout, scale=0.05):
        return scale * jax.random.normal(k, (cin, cout), jnp.float32)

    def conv3(k, cin, cout, scale=0.05):
        return scale * jax.random.normal(k, (3, 3, cin, cout), jnp.float32)

    n_keys = 2 + 6 * len(cls_num) * len(ASPP_RATES)
    keys = iter(jax.random.split(key, n_keys))
    params = {
        "backbone": {
            "w": dense(next(keys), in_ch, feature_dim),
            "b": 0.01 * jax.random.normal(next(keys), (feature_dim,), jnp.float32),
        },
        "heads": {},
    }
    for task, num_cls in cls_num.items():
        branches = []
        for _rate in ASPP_RATES:
            branches.append({
                "w1": conv3(next(keys), feature_dim, hidden),
                "b1": 0.01 * jax.random.normal(next(keys), (hidden,), jnp.float32),
                "w2": dense(next(keys), hidden, hidden),
                "b2": 0.01 * jax.random.normal(next(keys), (hidden,), jnp.float32),
                "w3": dense(next(keys), hidden, num_cls),
                "b3": 0.01 * jax.random.normal(next(keys), (num_cls,), jnp.float32),
            })
        params["heads"][task] = branches
    return params


# --------------------------------------------------------------------------
# Pure-JAX reference (same precision policy: bf16 MXU inputs, f32 accumulation)
# --------------------------------------------------------------------------

def mtl_forward_ref(x_nchw, params):
    bf16 = jnp.bfloat16
    x = jnp.transpose(x_nchw, (0, 2, 3, 1))
    bb = params["backbone"]
    feats = jnp.maximum(
        jnp.einsum("nhwc,cd->nhwd", x.astype(bf16), bb["w"].astype(bf16),
                   preferred_element_type=jnp.float32) + bb["b"], 0.0)
    N, H, W, _ = feats.shape
    outputs = {}
    for task, branches in params["heads"].items():
        out = None
        for rate, p in zip(ASPP_RATES, branches):
            xp = jnp.pad(feats, ((0, 0), (rate, rate), (rate, rate), (0, 0)))
            w1b = p["w1"].astype(bf16)
            acc = None
            for kh in range(3):
                for kw in range(3):
                    patch = xp[:, kh * rate:kh * rate + H,
                               kw * rate:kw * rate + W, :].astype(bf16)
                    t = jnp.einsum("nhwc,cd->nhwd", patch, w1b[kh, kw],
                                   preferred_element_type=jnp.float32)
                    acc = t if acc is None else acc + t
            h = jnp.maximum(acc + p["b1"], 0.0).astype(bf16)
            h = jnp.maximum(
                jnp.einsum("nhwc,cd->nhwd", h, p["w2"].astype(bf16),
                           preferred_element_type=jnp.float32) + p["b2"], 0.0
            ).astype(bf16)
            h = jnp.einsum("nhwc,cd->nhwd", h, p["w3"].astype(bf16),
                           preferred_element_type=jnp.float32) + p["b3"]
            out = h if out is None else out + h
        outputs[task] = jnp.transpose(out, (0, 3, 1, 2))
    return outputs


# --------------------------------------------------------------------------

if __name__ == "__main__":
    N, IN_CH, H, W = 2, 4, 16, 16
    FEATURE_DIM = 32
    HIDDEN = 64
    CLS_NUM = {"segment_semantic": 8, "normal": 4}

    key = jax.random.PRNGKey(0)
    kx, kp = jax.random.split(key)
    x = jax.random.normal(kx, (N, IN_CH, H, W), jnp.float32)
    params = init_params(kp, IN_CH, FEATURE_DIM, HIDDEN, CLS_NUM)

    # One-time weight packing, outside the jitted forward.
    packed, cfg = pack_params(params, (H, W), CLS_NUM)

    fwd = jax.jit(functools.partial(mtl_forward, cfg=cfg))
    out = jax.block_until_ready(fwd(x, packed))
    ref = jax.block_until_ready(mtl_forward_ref(x, params))

    for task in CLS_NUM:
        assert out[task].shape == (N, CLS_NUM[task], H, W), out[task].shape
        assert jnp.allclose(out[task], ref[task], rtol=2e-3, atol=2e-3), task

    print("KERNEL_OK")
</pallas_src>

<mosaic_0001>
module attributes {stable_mosaic.version = 11 : i64} {
  func.func @_mtl_fused_kernel(%arg0: i32, %arg1: memref<1x16x16x4xf32, #tpu.memory_space<vmem>>, %arg2: memref<4x32xbf16, #tpu.memory_space<vmem>>, %arg3: memref<1x32xf32, #tpu.memory_space<vmem>>, %arg4: memref<288x128xbf16, #tpu.memory_space<vmem>>, %arg5: memref<288x128xbf16, #tpu.memory_space<vmem>>, %arg6: memref<32x128xbf16, #tpu.memory_space<vmem>>, %arg7: memref<32x128xbf16, #tpu.memory_space<vmem>>, %arg8: memref<4x1x128xf32, #tpu.memory_space<vmem>>, %arg9: memref<4x128x128xbf16, #tpu.memory_space<vmem>>, %arg10: memref<4x1x128xf32, #tpu.memory_space<vmem>>, %arg11: memref<4x128x128xbf16, #tpu.memory_space<vmem>>, %arg12: memref<4x1x128xf32, #tpu.memory_space<vmem>>, %arg13: memref<1x16x16x128xf32, #tpu.memory_space<vmem>>, %arg14: memref<40x40x32xbf16, #tpu.memory_space<vmem>>, %arg15: memref<256x288xbf16, #tpu.memory_space<vmem>>) attributes {dimension_semantics = [#tpu.dimension_semantics<parallel>], iteration_bounds = array<i64: 2>, scalar_prefetch = 0 : i64, scratch_operands = 2 : i64, tpu.core_type = #tpu.core_type<tc>, window_params = [{transform_indices = @transform_0, window_bounds = array<i64: 1, 16, 16, 4>}, {pipeline_mode = #tpu.pipeline_mode<synchronous>, transform_indices = @transform_1, window_bounds = array<i64: 4, 32>}, {pipeline_mode = #tpu.pipeline_mode<synchronous>, transform_indices = @transform_2, window_bounds = array<i64: 1, 32>}, {pipeline_mode = #tpu.pipeline_mode<synchronous>, transform_indices = @transform_3, window_bounds = array<i64: 288, 128>}, {pipeline_mode = #tpu.pipeline_mode<synchronous>, transform_indices = @transform_4, window_bounds = array<i64: 288, 128>}, {pipeline_mode = #tpu.pipeline_mode<synchronous>, transform_indices = @transform_5, window_bounds = array<i64: 32, 128>}, {pipeline_mode = #tpu.pipeline_mode<synchronous>, transform_indices = @transform_6, window_bounds = array<i64: 32, 128>}, {pipeline_mode = #tpu.pipeline_mode<synchronous>, transform_indices = @transform_7, window_bounds = array<i64: 4, 1, 128>}, {pipeline_mode = #tpu.pipeline_mode<synchronous>, transform_indices = @transform_8, window_bounds = array<i64: 4, 128, 128>}, {pipeline_mode = #tpu.pipeline_mode<synchronous>, transform_indices = @transform_9, window_bounds = array<i64: 4, 1, 128>}, {pipeline_mode = #tpu.pipeline_mode<synchronous>, transform_indices = @transform_10, window_bounds = array<i64: 4, 128, 128>}, {pipeline_mode = #tpu.pipeline_mode<synchronous>, transform_indices = @transform_11, window_bounds = array<i64: 4, 1, 128>}, {transform_indices = @transform_12, window_bounds = array<i64: 1, 16, 16, 128>}]} {
    %c0 = arith.constant 0 : index
    %c0_0 = arith.constant 0 : index
    %c0_1 = arith.constant 0 : index
    %c0_2 = arith.constant 0 : index
    %0 = vector.load %arg1[%c0, %c0_0, %c0_1, %c0_2] : memref<1x16x16x4xf32, #tpu.memory_space<vmem>>, vector<1x16x16x4xf32>
    %1 = vector.shape_cast %0 : vector<1x16x16x4xf32> to vector<256x4xf32>
    %2 = arith.truncf %1 : vector<256x4xf32> to vector<256x4xbf16>
    %c0_3 = arith.constant 0 : index
    %c0_4 = arith.constant 0 : index
    %3 = vector.load %arg2[%c0_3, %c0_4] : memref<4x32xbf16, #tpu.memory_space<vmem>>, vector<4x32xbf16>
    %cst = arith.constant dense<0.000000e+00> : vector<256x32xf32>
    %4 = tpu.matmul %2, %3, %cst {dimension_numbers = #tpu.dot_dimension_numbers<[1], [0], [0], [1], [0, 0, 1, 1], [], []>} : vector<256x4xbf16>, vector<4x32xbf16>, vector<256x32xf32> -> vector<256x32xf32>
    %c0_5 = arith.constant 0 : index
    %c0_6 = arith.constant 0 : index
    %5 = vector.load %arg3[%c0_5, %c0_6] : memref<1x32xf32, #tpu.memory_space<vmem>>, vector<1x32xf32>
    %6 = vector.broadcast %5 : vector<1x32xf32> to vector<256x32xf32>
    %7 = arith.addf %4, %6 : vector<256x32xf32>
    %cst_7 = arith.constant 0.000000e+00 : f32
    %8 = vector.broadcast %cst_7 : f32 to vector<256x32xf32>
    %9 = arith.maximumf %7, %8 : vector<256x32xf32>
    %10 = arith.truncf %9 : vector<256x32xf32> to vector<256x32xbf16>
    %cst_8 = arith.constant 0.000000e+00 : bf16
    %11 = vector.broadcast %cst_8 : bf16 to vector<40x40x32xbf16>
    %c0_9 = arith.constant 0 : index
    %c0_10 = arith.constant 0 : index
    %c0_11 = arith.constant 0 : index
    %12 = vector.load %arg14[%c0_9, %c0_10, %c0_11] : memref<40x40x32xbf16, #tpu.memory_space<vmem>>, vector<40x40x32xbf16>
    tpu.vector_store %arg14[%c0_9, %c0_10, %c0_11], %11 {strides = array<i32>} : memref<40x40x32xbf16, #tpu.memory_space<vmem>>, vector<40x40x32xbf16>,
    %13 = vector.shape_cast %10 : vector<256x32xbf16> to vector<16x16x32xbf16>
    %c12 = arith.constant 12 : index
    %c12_12 = arith.constant 12 : index
    %c0_13 = arith.constant 0 : index
    %14 = vector.load %arg14[%c12, %c12_12, %c0_13] : memref<40x40x32xbf16, #tpu.memory_space<vmem>>, vector<16x16x32xbf16>
    tpu.vector_store %arg14[%c12, %c12_12, %c0_13], %13 {strides = array<i32>} : memref<40x40x32xbf16, #tpu.memory_space<vmem>>, vector<16x16x32xbf16>,
    %c6 = arith.constant 6 : index
    %c6_14 = arith.constant 6 : index
    %c0_15 = arith.constant 0 : index
    %15 = vector.load %arg14[%c6, %c6_14, %c0_15] : memref<40x40x32xbf16, #tpu.memory_space<vmem>>, vector<16x16x32xbf16>
    %16 = vector.shape_cast %15 : vector<16x16x32xbf16> to vector<256x32xbf16>
    %c0_16 = arith.constant 0 : index
    %c0_17 = arith.constant 0 : index
    %17 = vector.load %arg15[%c0_16, %c0_17] : memref<256x288xbf16, #tpu.memory_space<vmem>>, vector<256x32xbf16>
    tpu.vector_store %arg15[%c0_16, %c0_17], %16 {strides = array<i32>} : memref<256x288xbf16, #tpu.memory_space<vmem>>, vector<256x32xbf16>,
    %c6_18 = arith.constant 6 : index
    %c12_19 = arith.constant 12 : index
    %c0_20 = arith.constant 0 : index
    %18 = vector.load %arg14[%c6_18, %c12_19, %c0_20] : memref<40x40x32xbf16, #tpu.memory_space<vmem>>, vector<16x16x32xbf16>
    %19 = vector.shape_cast %18 : vector<16x16x32xbf16> to vector<256x32xbf16>
    %c0_21 = arith.constant 0 : index
    %c32 = arith.constant 32 : index
    %20 = vector.load %arg15[%c0_21, %c32] : memref<256x288xbf16, #tpu.memory_space<vmem>>, vector<256x32xbf16>
    tpu.vector_store %arg15[%c0_21, %c32], %19 {strides = array<i32>} : memref<256x288xbf16, #tpu.memory_space<vmem>>, vector<256x32xbf16>,
    %c6_22 = arith.constant 6 : index
    %c18 = arith.constant 18 : index
    %c0_23 = arith.constant 0 : index
    %21 = vector.load %arg14[%c6_22, %c18, %c0_23] : memref<40x40x32xbf16, #tpu.memory_space<vmem>>, vector<16x16x32xbf16>
    %22 = vector.shape_cast %21 : vector<16x16x32xbf16> to vector<256x32xbf16>
    %c0_24 = arith.constant 0 : index
    %c64 = arith.constant 64 : index
    %23 = vector.load %arg15[%c0_24, %c64] : memref<256x288xbf16, #tpu.memory_space<vmem>>, vector<256x32xbf16>
    tpu.vector_store %arg15[%c0_24, %c64], %22 {strides = array<i32>} : memref<256x288xbf16, #tpu.memory_space<vmem>>, vector<256x32xbf16>,
    %c12_25 = arith.constant 12 : index
    %c6_26 = arith.constant 6 : index
    %c0_27 = arith.constant 0 : index
    %24 = vector.load %arg14[%c12_25, %c6_26, %c0_27] : memref<40x40x32xbf16, #tpu.memory_space<vmem>>, vector<16x16x32xbf16>
    %25 = vector.shape_cast %24 : vector<16x16x32xbf16> to vector<256x32xbf16>
    %c0_28 = arith.constant 0 : index
    %c96 = arith.constant 96 : index
    %26 = vector.load %arg15[%c0_28, %c96] : memref<256x288xbf16, #tpu.memory_space<vmem>>, vector<256x32xbf16>
    tpu.vector_store %arg15[%c0_28, %c96], %25 {strides = array<i32>} : memref<256x288xbf16, #tpu.memory_space<vmem>>, vector<256x32xbf16>,
    %c12_29 = arith.constant 12 : index
    %c12_30 = arith.constant 12 : index
    %c0_31 = arith.constant 0 : index
    %27 = vector.load %arg14[%c12_29, %c12_30, %c0_31] : memref<40x40x32xbf16, #tpu.memory_space<vmem>>, vector<16x16x32xbf16>
    %28 = vector.shape_cast %27 : vector<16x16x32xbf16> to vector<256x32xbf16>
    %c0_32 = arith.constant 0 : index
    %c128 = arith.constant 128 : index
    %29 = vector.load %arg15[%c0_32, %c128] : memref<256x288xbf16, #tpu.memory_space<vmem>>, vector<256x32xbf16>
    tpu.vector_store %arg15[%c0_32, %c128], %28 {strides = array<i32>} : memref<256x288xbf16, #tpu.memory_space<vmem>>, vector<256x32xbf16>,
    %c12_33 = arith.constant 12 : index
    %c18_34 = arith.constant 18 : index
    %c0_35 = arith.constant 0 : index
    %30 = vector.load %arg14[%c12_33, %c18_34, %c0_35] : memref<40x40x32xbf16, #tpu.memory_space<vmem>>, vector<16x16x32xbf16>
    %31 = vector.shape_cast %30 : vector<16x16x32xbf16> to vector<256x32xbf16>
    %c0_36 = arith.constant 0 : index
    %c160 = arith.constant 160 : index
    %32 = vector.load %arg15[%c0_36, %c160] : memref<256x288xbf16, #tpu.memory_space<vmem>>, vector<256x32xbf16>
    tpu.vector_store %arg15[%c0_36, %c160], %31 {strides = array<i32>} : memref<256x288xbf16, #tpu.memory_space<vmem>>, vector<256x32xbf16>,
    %c18_37 = arith.constant 18 : index
    %c6_38 = arith.constant 6 : index
    %c0_39 = arith.constant 0 : index
    %33 = vector.load %arg14[%c18_37, %c6_38, %c0_39] : memref<40x40x32xbf16, #tpu.memory_space<vmem>>, vector<16x16x32xbf16>
    %34 = vector.shape_cast %33 : vector<16x16x32xbf16> to vector<256x32xbf16>
    %c0_40 = arith.constant 0 : index
    %c192 = arith.constant 192 : index
    %35 = vector.load %arg15[%c0_40, %c192] : memref<256x288xbf16, #tpu.memory_space<vmem>>, vector<256x32xbf16>
    tpu.vector_store %arg15[%c0_40, %c192], %34 {strides = array<i32>} : memref<256x288xbf16, #tpu.memory_space<vmem>>, vector<256x32xbf16>,
    %c18_41 = arith.constant 18 : index
    %c12_42 = arith.constant 12 : index
    %c0_43 = arith.constant 0 : index
    %36 = vector.load %arg14[%c18_41, %c12_42, %c0_43] : memref<40x40x32xbf16, #tpu.memory_space<vmem>>, vector<16x16x32xbf16>
    %37 = vector.shape_cast %36 : vector<16x16x32xbf16> to vector<256x32xbf16>
    %c0_44 = arith.constant 0 : index
    %c224 = arith.constant 224 : index
    %38 = vector.load %arg15[%c0_44, %c224] : memref<256x288xbf16, #tpu.memory_space<vmem>>, vector<256x32xbf16>
    tpu.vector_store %arg15[%c0_44, %c224], %37 {strides = array<i32>} : memref<256x288xbf16, #tpu.memory_space<vmem>>, vector<256x32xbf16>,
    %c18_45 = arith.constant 18 : index
    %c18_46 = arith.constant 18 : index
    %c0_47 = arith.constant 0 : index
    %39 = vector.load %arg14[%c18_45, %c18_46, %c0_47] : memref<40x40x32xbf16, #tpu.memory_space<vmem>>, vector<16x16x32xbf16>
    %40 = vector.shape_cast %39 : vector<16x16x32xbf16> to vector<256x32xbf16>
    %c0_48 = arith.constant 0 : index
    %c256 = arith.constant 256 : index
    %41 = vector.load %arg15[%c0_48, %c256] : memref<256x288xbf16, #tpu.memory_space<vmem>>, vector<256x32xbf16>
    tpu.vector_store %arg15[%c0_48, %c256], %40 {strides = array<i32>} : memref<256x288xbf16, #tpu.memory_space<vmem>>, vector<256x32xbf16>,
    %c0_49 = arith.constant 0 : index
    %c0_50 = arith.constant 0 : index
    %42 = vector.load %arg15[%c0_49, %c0_50] : memref<256x288xbf16, #tpu.memory_space<vmem>>, vector<256x288xbf16>
    %c0_51 = arith.constant 0 : index
    %c0_52 = arith.constant 0 : index
    %43 = vector.load %arg4[%c0_51, %c0_52] : memref<288x128xbf16, #tpu.memory_space<vmem>>, vector<288x128xbf16>
    %cst_53 = arith.constant dense<0.000000e+00> : vector<256x128xf32>
    %44 = tpu.matmul %42, %43, %cst_53 {dimension_numbers = #tpu.dot_dimension_numbers<[1], [0], [0], [1], [0, 0, 1, 1], [], []>} : vector<256x288xbf16>, vector<288x128xbf16>, vector<256x128xf32> -> vector<256x128xf32>
    %c0_54 = arith.constant 0 : index
    %c0_55 = arith.constant 0 : index
    %c0_56 = arith.constant 0 : index
    %45 = vector.load %arg8[%c0_54, %c0_55, %c0_56] : memref<4x1x128xf32, #tpu.memory_space<vmem>>, vector<1x1x128xf32>
    %46 = vector.shape_cast %45 : vector<1x1x128xf32> to vector<1x128xf32>
    %47 = vector.broadcast %46 : vector<1x128xf32> to vector<256x128xf32>
    %48 = arith.addf %44, %47 : vector<256x128xf32>
    %cst_57 = arith.constant 0.000000e+00 : f32
    %49 = vector.broadcast %cst_57 : f32 to vector<256x128xf32>
    %50 = arith.maximumf %48, %49 : vector<256x128xf32>
    %51 = arith.truncf %50 : vector<256x128xf32> to vector<256x128xbf16>
    %c0_58 = arith.constant 0 : index
    %c0_59 = arith.constant 0 : index
    %c0_60 = arith.constant 0 : index
    %52 = vector.load %arg9[%c0_58, %c0_59, %c0_60] : memref<4x128x128xbf16, #tpu.memory_space<vmem>>, vector<1x128x128xbf16>
    %53 = vector.shape_cast %52 : vector<1x128x128xbf16> to vector<128x128xbf16>
    %cst_61 = arith.constant dense<0.000000e+00> : vector<256x128xf32>
    %54 = tpu.matmul %51, %53, %cst_61 {dimension_numbers = #tpu.dot_dimension_numbers<[1], [0], [0], [1], [0, 0, 1, 1], [], []>} : vector<256x128xbf16>, vector<128x128xbf16>, vector<256x128xf32> -> vector<256x128xf32>
    %c0_62 = arith.constant 0 : index
    %c0_63 = arith.constant 0 : index
    %c0_64 = arith.constant 0 : index
    %55 = vector.load %arg10[%c0_62, %c0_63, %c0_64] : memref<4x1x128xf32, #tpu.memory_space<vmem>>, vector<1x1x128xf32>
    %56 = vector.shape_cast %55 : vector<1x1x128xf32> to vector<1x128xf32>
    %57 = vector.broadcast %56 : vector<1x128xf32> to vector<256x128xf32>
    %58 = arith.addf %54, %57 : vector<256x128xf32>
    %cst_65 = arith.constant 0.000000e+00 : f32
    %59 = vector.broadcast %cst_65 : f32 to vector<256x128xf32>
    %60 = arith.maximumf %58, %59 : vector<256x128xf32>
    %61 = arith.truncf %60 : vector<256x128xf32> to vector<256x128xbf16>
    %c0_66 = arith.constant 0 : index
    %c0_67 = arith.constant 0 : index
    %c0_68 = arith.constant 0 : index
    %62 = vector.load %arg11[%c0_66, %c0_67, %c0_68] : memref<4x128x128xbf16, #tpu.memory_space<vmem>>, vector<1x128x128xbf16>
    %63 = vector.shape_cast %62 : vector<1x128x128xbf16> to vector<128x128xbf16>
    %cst_69 = arith.constant dense<0.000000e+00> : vector<256x128xf32>
    %64 = tpu.matmul %61, %63, %cst_69 {dimension_numbers = #tpu.dot_dimension_numbers<[1], [0], [0], [1], [0, 0, 1, 1], [], []>} : vector<256x128xbf16>, vector<128x128xbf16>, vector<256x128xf32> -> vector<256x128xf32>
    %c0_70 = arith.constant 0 : index
    %c0_71 = arith.constant 0 : index
    %c0_72 = arith.constant 0 : index
    %65 = vector.load %arg12[%c0_70, %c0_71, %c0_72] : memref<4x1x128xf32, #tpu.memory_space<vmem>>, vector<1x1x128xf32>
    %66 = vector.shape_cast %65 : vector<1x1x128xf32> to vector<1x128xf32>
    %67 = vector.broadcast %66 : vector<1x128xf32> to vector<256x128xf32>
    %68 = arith.addf %64, %67 : vector<256x128xf32>
    %69 = vector.shape_cast %68 : vector<256x128xf32> to vector<1x16x16x128xf32>
    %c0_73 = arith.constant 0 : index
    %c0_74 = arith.constant 0 : index
    %c0_75 = arith.constant 0 : index
    %c0_76 = arith.constant 0 : index
    %70 = vector.load %arg13[%c0_73, %c0_74, %c0_75, %c0_76] : memref<1x16x16x128xf32, #tpu.memory_space<vmem>>, vector<1x16x16x128xf32>
    tpu.vector_store %arg13[%c0_73, %c0_74, %c0_75, %c0_76], %69 {strides = array<i32>} : memref<1x16x16x128xf32, #tpu.memory_space<vmem>>, vector<1x16x16x128xf32>,
    %c0_77 = arith.constant 0 : index
    %c0_78 = arith.constant 0 : index
    %c0_79 = arith.constant 0 : index
    %71 = vector.load %arg14[%c0_77, %c0_78, %c0_79] : memref<40x40x32xbf16, #tpu.memory_space<vmem>>, vector<16x16x32xbf16>
    %72 = vector.shape_cast %71 : vector<16x16x32xbf16> to vector<256x32xbf16>
    %c0_80 = arith.constant 0 : index
    %c0_81 = arith.constant 0 : index
    %73 = vector.load %arg15[%c0_80, %c0_81] : memref<256x288xbf16, #tpu.memory_space<vmem>>, vector<256x32xbf16>
    tpu.vector_store %arg15[%c0_80, %c0_81], %72 {strides = array<i32>} : memref<256x288xbf16, #tpu.memory_space<vmem>>, vector<256x32xbf16>,
    %c0_82 = arith.constant 0 : index
    %c12_83 = arith.constant 12 : index
    %c0_84 = arith.constant 0 : index
    %74 = vector.load %arg14[%c0_82, %c12_83, %c0_84] : memref<40x40x32xbf16, #tpu.memory_space<vmem>>, vector<16x16x32xbf16>
    %75 = vector.shape_cast %74 : vector<16x16x32xbf16> to vector<256x32xbf16>
    %c0_85 = arith.constant 0 : index
    %c32_86 = arith.constant 32 : index
    %76 = vector.load %arg15[%c0_85, %c32_86] : memref<256x288xbf16, #tpu.memory_space<vmem>>, vector<256x32xbf16>
    tpu.vector_store %arg15[%c0_85, %c32_86], %75 {strides = array<i32>} : memref<256x288xbf16, #tpu.memory_space<vmem>>, vector<256x32xbf16>,
    %c0_87 = arith.constant 0 : index
    %c24 = arith.constant 24 : index
    %c0_88 = arith.constant 0 : index
    %77 = vector.load %arg14[%c0_87, %c24, %c0_88] : memref<40x40x32xbf16, #tpu.memory_space<vmem>>, vector<16x16x32xbf16>
    %78 = vector.shape_cast %77 : vector<16x16x32xbf16> to vector<256x32xbf16>
    %c0_89 = arith.constant 0 : index
    %c64_90 = arith.constant 64 : index
    %79 = vector.load %arg15[%c0_89, %c64_90] : memref<256x288xbf16, #tpu.memory_space<vmem>>, vector<256x32xbf16>
    tpu.vector_store %arg15[%c0_89, %c64_90], %78 {strides = array<i32>} : memref<256x288xbf16, #tpu.memory_space<vmem>>, vector<256x32xbf16>,
    %c12_91 = arith.constant 12 : index
    %c0_92 = arith.constant 0 : index
    %c0_93 = arith.constant 0 : index
    %80 = vector.load %arg14[%c12_91, %c0_92, %c0_93] : memref<40x40x32xbf16, #tpu.memory_space<vmem>>, vector<16x16x32xbf16>
    %81 = vector.shape_cast %80 : vector<16x16x32xbf16> to vector<256x32xbf16>
    %c0_94 = arith.constant 0 : index
    %c96_95 = arith.constant 96 : index
    %82 = vector.load %arg15[%c0_94, %c96_95] : memref<256x288xbf16, #tpu.memory_space<vmem>>, vector<256x32xbf16>
    tpu.vector_store %arg15[%c0_94, %c96_95], %81 {strides = array<i32>} : memref<256x288xbf16, #tpu.memory_space<vmem>>, vector<256x32xbf16>,
    %c12_96 = arith.constant 12 : index
    %c12_97 = arith.constant 12 : index
    %c0_98 = arith.constant 0 : index
    %83 = vector.load %arg14[%c12_96, %c12_97, %c0_98] : memref<40x40x32xbf16, #tpu.memory_space<vmem>>, vector<16x16x32xbf16>
    %84 = vector.shape_cast %83 : vector<16x16x32xbf16> to vector<256x32xbf16>
    %c0_99 = arith.constant 0 : index
    %c128_100 = arith.constant 128 : index
    %85 = vector.load %arg15[%c0_99, %c128_100] : memref<256x288xbf16, #tpu.memory_space<vmem>>, vector<256x32xbf16>
    tpu.vector_store %arg15[%c0_99, %c128_100], %84 {strides = array<i32>} : memref<256x288xbf16, #tpu.memory_space<vmem>>, vector<256x32xbf16>,
    %c12_101 = arith.constant 12 : index
    %c24_102 = arith.constant 24 : index
    %c0_103 = arith.constant 0 : index
    %86 = vector.load %arg14[%c12_101, %c24_102, %c0_103] : memref<40x40x32xbf16, #tpu.memory_space<vmem>>, vector<16x16x32xbf16>
    %87 = vector.shape_cast %86 : vector<16x16x32xbf16> to vector<256x32xbf16>
    %c0_104 = arith.constant 0 : index
    %c160_105 = arith.constant 160 : index
    %88 = vector.load %arg15[%c0_104, %c160_105] : memref<256x288xbf16, #tpu.memory_space<vmem>>, vector<256x32xbf16>
    tpu.vector_store %arg15[%c0_104, %c160_105], %87 {strides = array<i32>} : memref<256x288xbf16, #tpu.memory_space<vmem>>, vector<256x32xbf16>,
    %c24_106 = arith.constant 24 : index
    %c0_107 = arith.constant 0 : index
    %c0_108 = arith.constant 0 : index
    %89 = vector.load %arg14[%c24_106, %c0_107, %c0_108] : memref<40x40x32xbf16, #tpu.memory_space<vmem>>, vector<16x16x32xbf16>
    %90 = vector.shape_cast %89 : vector<16x16x32xbf16> to vector<256x32xbf16>
    %c0_109 = arith.constant 0 : index
    %c192_110 = arith.constant 192 : index
    %91 = vector.load %arg15[%c0_109, %c192_110] : memref<256x288xbf16, #tpu.memory_space<vmem>>, vector<256x32xbf16>
    tpu.vector_store %arg15[%c0_109, %c192_110], %90 {strides = array<i32>} : memref<256x288xbf16, #tpu.memory_space<vmem>>, vector<256x32xbf16>,
    %c24_111 = arith.constant 24 : index
    %c12_112 = arith.constant 12 : index
    %c0_113 = arith.constant 0 : index
    %92 = vector.load %arg14[%c24_111, %c12_112, %c0_113] : memref<40x40x32xbf16, #tpu.memory_space<vmem>>, vector<16x16x32xbf16>
    %93 = vector.shape_cast %92 : vector<16x16x32xbf16> to vector<256x32xbf16>
    %c0_114 = arith.constant 0 : index
    %c224_115 = arith.constant 224 : index
    %94 = vector.load %arg15[%c0_114, %c224_115] : memref<256x288xbf16, #tpu.memory_space<vmem>>, vector<256x32xbf16>
    tpu.vector_store %arg15[%c0_114, %c224_115], %93 {strides = array<i32>} : memref<256x288xbf16, #tpu.memory_space<vmem>>, vector<256x32xbf16>,
    %c24_116 = arith.constant 24 : index
    %c24_117 = arith.constant 24 : index
    %c0_118 = arith.constant 0 : index
    %95 = vector.load %arg14[%c24_116, %c24_117, %c0_118] : memref<40x40x32xbf16, #tpu.memory_space<vmem>>, vector<16x16x32xbf16>
    %96 = vector.shape_cast %95 : vector<16x16x32xbf16> to vector<256x32xbf16>
    %c0_119 = arith.constant 0 : index
    %c256_120 = arith.constant 256 : index
    %97 = vector.load %arg15[%c0_119, %c256_120] : memref<256x288xbf16, #tpu.memory_space<vmem>>, vector<256x32xbf16>
    tpu.vector_store %arg15[%c0_119, %c256_120], %96 {strides = array<i32>} : memref<256x288xbf16, #tpu.memory_space<vmem>>, vector<256x32xbf16>,
    %c0_121 = arith.constant 0 : index
    %c0_122 = arith.constant 0 : index
    %98 = vector.load %arg15[%c0_121, %c0_122] : memref<256x288xbf16, #tpu.memory_space<vmem>>, vector<256x288xbf16>
    %c0_123 = arith.constant 0 : index
    %c0_124 = arith.constant 0 : index
    %99 = vector.load %arg5[%c0_123, %c0_124] : memref<288x128xbf16, #tpu.memory_space<vmem>>, vector<288x128xbf16>
    %cst_125 = arith.constant dense<0.000000e+00> : vector<256x128xf32>
    %100 = tpu.matmul %98, %99, %cst_125 {dimension_numbers = #tpu.dot_dimension_numbers<[1], [0], [0], [1], [0, 0, 1, 1], [], []>} : vector<256x288xbf16>, vector<288x128xbf16>, vector<256x128xf32> -> vector<256x128xf32>
    %c1 = arith.constant 1 : index
    %c0_126 = arith.constant 0 : index
    %c0_127 = arith.constant 0 : index
    %101 = vector.load %arg8[%c1, %c0_126, %c0_127] : memref<4x1x128xf32, #tpu.memory_space<vmem>>, vector<1x1x128xf32>
    %102 = vector.shape_cast %101 : vector<1x1x128xf32> to vector<1x128xf32>
    %103 = vector.broadcast %102 : vector<1x128xf32> to vector<256x128xf32>
    %104 = arith.addf %100, %103 : vector<256x128xf32>
    %cst_128 = arith.constant 0.000000e+00 : f32
    %105 = vector.broadcast %cst_128 : f32 to vector<256x128xf32>
    %106 = arith.maximumf %104, %105 : vector<256x128xf32>
    %107 = arith.truncf %106 : vector<256x128xf32> to vector<256x128xbf16>
    %c1_129 = arith.constant 1 : index
    %c0_130 = arith.constant 0 : index
    %c0_131 = arith.constant 0 : index
    %108 = vector.load %arg9[%c1_129, %c0_130, %c0_131] : memref<4x128x128xbf16, #tpu.memory_space<vmem>>, vector<1x128x128xbf16>
    %109 = vector.shape_cast %108 : vector<1x128x128xbf16> to vector<128x128xbf16>
    %cst_132 = arith.constant dense<0.000000e+00> : vector<256x128xf32>
    %110 = tpu.matmul %107, %109, %cst_132 {dimension_numbers = #tpu.dot_dimension_numbers<[1], [0], [0], [1], [0, 0, 1, 1], [], []>} : vector<256x128xbf16>, vector<128x128xbf16>, vector<256x128xf32> -> vector<256x128xf32>
    %c1_133 = arith.constant 1 : index
    %c0_134 = arith.constant 0 : index
    %c0_135 = arith.constant 0 : index
    %111 = vector.load %arg10[%c1_133, %c0_134, %c0_135] : memref<4x1x128xf32, #tpu.memory_space<vmem>>, vector<1x1x128xf32>
    %112 = vector.shape_cast %111 : vector<1x1x128xf32> to vector<1x128xf32>
    %113 = vector.broadcast %112 : vector<1x128xf32> to vector<256x128xf32>
    %114 = arith.addf %110, %113 : vector<256x128xf32>
    %cst_136 = arith.constant 0.000000e+00 : f32
    %115 = vector.broadcast %cst_136 : f32 to vector<256x128xf32>
    %116 = arith.maximumf %114, %115 : vector<256x128xf32>
    %117 = arith.truncf %116 : vector<256x128xf32> to vector<256x128xbf16>
    %c1_137 = arith.constant 1 : index
    %c0_138 = arith.constant 0 : index
    %c0_139 = arith.constant 0 : index
    %118 = vector.load %arg11[%c1_137, %c0_138, %c0_139] : memref<4x128x128xbf16, #tpu.memory_space<vmem>>, vector<1x128x128xbf16>
    %119 = vector.shape_cast %118 : vector<1x128x128xbf16> to vector<128x128xbf16>
    %cst_140 = arith.constant dense<0.000000e+00> : vector<256x128xf32>
    %120 = tpu.matmul %117, %119, %cst_140 {dimension_numbers = #tpu.dot_dimension_numbers<[1], [0], [0], [1], [0, 0, 1, 1], [], []>} : vector<256x128xbf16>, vector<128x128xbf16>, vector<256x128xf32> -> vector<256x128xf32>
    %c1_141 = arith.constant 1 : index
    %c0_142 = arith.constant 0 : index
    %c0_143 = arith.constant 0 : index
    %121 = vector.load %arg12[%c1_141, %c0_142, %c0_143] : memref<4x1x128xf32, #tpu.memory_space<vmem>>, vector<1x1x128xf32>
    %122 = vector.shape_cast %121 : vector<1x1x128xf32> to vector<1x128xf32>
    %123 = vector.broadcast %122 : vector<1x128xf32> to vector<256x128xf32>
    %124 = arith.addf %120, %123 : vector<256x128xf32>
    %125 = vector.shape_cast %124 : vector<256x128xf32> to vector<1x16x16x128xf32>
    %c0_144 = arith.constant 0 : index
    %c0_145 = arith.constant 0 : index
    %c0_146 = arith.constant 0 : index
    %c0_147 = arith.constant 0 : index
    %126 = vector.load %arg13[%c0_144, %c0_145, %c0_146, %c0_147] : memref<1x16x16x128xf32, #tpu.memory_space<vmem>>, vector<1x16x16x128xf32>
    %127 = arith.addf %126, %125 : vector<1x16x16x128xf32>
    %c0_148 = arith.constant 0 : index
    %c0_149 = arith.constant 0 : index
    %c0_150 = arith.constant 0 : index
    %c0_151 = arith.constant 0 : index
    %128 = vector.load %arg13[%c0_148, %c0_149, %c0_150, %c0_151] : memref<1x16x16x128xf32, #tpu.memory_space<vmem>>, vector<1x16x16x128xf32>
    tpu.vector_store %arg13[%c0_148, %c0_149, %c0_150, %c0_151], %127 {strides = array<i32>} : memref<1x16x16x128xf32, #tpu.memory_space<vmem>>, vector<1x16x16x128xf32>,
    %c0_152 = arith.constant 0 : index
    %c0_153 = arith.constant 0 : index
    %129 = vector.load %arg6[%c0_152, %c0_153] : memref<32x128xbf16, #tpu.memory_space<vmem>>, vector<32x128xbf16>
    %cst_154 = arith.constant dense<0.000000e+00> : vector<256x128xf32>
    %130 = tpu.matmul %10, %129, %cst_154 {dimension_numbers = #tpu.dot_dimension_numbers<[1], [0], [0], [1], [0, 0, 1, 1], [], []>} : vector<256x32xbf16>, vector<32x128xbf16>, vector<256x128xf32> -> vector<256x128xf32>
    %c2 = arith.constant 2 : index
    %c0_155 = arith.constant 0 : index
    %c0_156 = arith.constant 0 : index
    %131 = vector.load %arg8[%c2, %c0_155, %c0_156] : memref<4x1x128xf32, #tpu.memory_space<vmem>>, vector<1x1x128xf32>
    %132 = vector.shape_cast %131 : vector<1x1x128xf32> to vector<1x128xf32>
    %133 = vector.broadcast %132 : vector<1x128xf32> to vector<256x128xf32>
    %134 = arith.addf %130, %133 : vector<256x128xf32>
    %cst_157 = arith.constant 0.000000e+00 : f32
    %135 = vector.broadcast %cst_157 : f32 to vector<256x128xf32>
    %136 = arith.maximumf %134, %135 : vector<256x128xf32>
    %137 = arith.truncf %136 : vector<256x128xf32> to vector<256x128xbf16>
    %c2_158 = arith.constant 2 : index
    %c0_159 = arith.constant 0 : index
    %c0_160 = arith.constant 0 : index
    %138 = vector.load %arg9[%c2_158, %c0_159, %c0_160] : memref<4x128x128xbf16, #tpu.memory_space<vmem>>, vector<1x128x128xbf16>
    %139 = vector.shape_cast %138 : vector<1x128x128xbf16> to vector<128x128xbf16>
    %cst_161 = arith.constant dense<0.000000e+00> : vector<256x128xf32>
    %140 = tpu.matmul %137, %139, %cst_161 {dimension_numbers = #tpu.dot_dimension_numbers<[1], [0], [0], [1], [0, 0, 1, 1], [], []>} : vector<256x128xbf16>, vector<128x128xbf16>, vector<256x128xf32> -> vector<256x128xf32>
    %c2_162 = arith.constant 2 : index
    %c0_163 = arith.constant 0 : index
    %c0_164 = arith.constant 0 : index
    %141 = vector.load %arg10[%c2_162, %c0_163, %c0_164] : memref<4x1x128xf32, #tpu.memory_space<vmem>>, vector<1x1x128xf32>
    %142 = vector.shape_cast %141 : vector<1x1x128xf32> to vector<1x128xf32>
    %143 = vector.broadcast %142 : vector<1x128xf32> to vector<256x128xf32>
    %144 = arith.addf %140, %143 : vector<256x128xf32>
    %cst_165 = arith.constant 0.000000e+00 : f32
    %145 = vector.broadcast %cst_165 : f32 to vector<256x128xf32>
    %146 = arith.maximumf %144, %145 : vector<256x128xf32>
    %147 = arith.truncf %146 : vector<256x128xf32> to vector<256x128xbf16>
    %c2_166 = arith.constant 2 : index
    %c0_167 = arith.constant 0 : index
    %c0_168 = arith.constant 0 : index
    %148 = vector.load %arg11[%c2_166, %c0_167, %c0_168] : memref<4x128x128xbf16, #tpu.memory_space<vmem>>, vector<1x128x128xbf16>
    %149 = vector.shape_cast %148 : vector<1x128x128xbf16> to vector<128x128xbf16>
    %cst_169 = arith.constant dense<0.000000e+00> : vector<256x128xf32>
    %150 = tpu.matmul %147, %149, %cst_169 {dimension_numbers = #tpu.dot_dimension_numbers<[1], [0], [0], [1], [0, 0, 1, 1], [], []>} : vector<256x128xbf16>, vector<128x128xbf16>, vector<256x128xf32> -> vector<256x128xf32>
    %c2_170 = arith.constant 2 : index
    %c0_171 = arith.constant 0 : index
    %c0_172 = arith.constant 0 : index
    %151 = vector.load %arg12[%c2_170, %c0_171, %c0_172] : memref<4x1x128xf32, #tpu.memory_space<vmem>>, vector<1x1x128xf32>
    %152 = vector.shape_cast %151 : vector<1x1x128xf32> to vector<1x128xf32>
    %153 = vector.broadcast %152 : vector<1x128xf32> to vector<256x128xf32>
    %154 = arith.addf %150, %153 : vector<256x128xf32>
    %155 = vector.shape_cast %154 : vector<256x128xf32> to vector<1x16x16x128xf32>
    %c0_173 = arith.constant 0 : index
    %c0_174 = arith.constant 0 : index
    %c0_175 = arith.constant 0 : index
    %c0_176 = arith.constant 0 : index
    %156 = vector.load %arg13[%c0_173, %c0_174, %c0_175, %c0_176] : memref<1x16x16x128xf32, #tpu.memory_space<vmem>>, vector<1x16x16x128xf32>
    %157 = arith.addf %156, %155 : vector<1x16x16x128xf32>
    %c0_177 = arith.constant 0 : index
    %c0_178 = arith.constant 0 : index
    %c0_179 = arith.constant 0 : index
    %c0_180 = arith.constant 0 : index
    %158 = vector.load %arg13[%c0_177, %c0_178, %c0_179, %c0_180] : memref<1x16x16x128xf32, #tpu.memory_space<vmem>>, vector<1x16x16x128xf32>
    tpu.vector_store %arg13[%c0_177, %c0_178, %c0_179, %c0_180], %157 {strides = array<i32>} : memref<1x16x16x128xf32, #tpu.memory_space<vmem>>, vector<1x16x16x128xf32>,
    %c0_181 = arith.constant 0 : index
    %c0_182 = arith.constant 0 : index
    %159 = vector.load %arg7[%c0_181, %c0_182] : memref<32x128xbf16, #tpu.memory_space<vmem>>, vector<32x128xbf16>
    %cst_183 = arith.constant dense<0.000000e+00> : vector<256x128xf32>
    %160 = tpu.matmul %10, %159, %cst_183 {dimension_numbers = #tpu.dot_dimension_numbers<[1], [0], [0], [1], [0, 0, 1, 1], [], []>} : vector<256x32xbf16>, vector<32x128xbf16>, vector<256x128xf32> -> vector<256x128xf32>
    %c3 = arith.constant 3 : index
    %c0_184 = arith.constant 0 : index
    %c0_185 = arith.constant 0 : index
    %161 = vector.load %arg8[%c3, %c0_184, %c0_185] : memref<4x1x128xf32, #tpu.memory_space<vmem>>, vector<1x1x128xf32>
    %162 = vector.shape_cast %161 : vector<1x1x128xf32> to vector<1x128xf32>
    %163 = vector.broadcast %162 : vector<1x128xf32> to vector<256x128xf32>
    %164 = arith.addf %160, %163 : vector<256x128xf32>
    %cst_186 = arith.constant 0.000000e+00 : f32
    %165 = vector.broadcast %cst_186 : f32 to vector<256x128xf32>
    %166 = arith.maximumf %164, %165 : vector<256x128xf32>
    %167 = arith.truncf %166 : vector<256x128xf32> to vector<256x128xbf16>
    %c3_187 = arith.constant 3 : index
    %c0_188 = arith.constant 0 : index
    %c0_189 = arith.constant 0 : index
    %168 = vector.load %arg9[%c3_187, %c0_188, %c0_189] : memref<4x128x128xbf16, #tpu.memory_space<vmem>>, vector<1x128x128xbf16>
    %169 = vector.shape_cast %168 : vector<1x128x128xbf16> to vector<128x128xbf16>
    %cst_190 = arith.constant dense<0.000000e+00> : vector<256x128xf32>
    %170 = tpu.matmul %167, %169, %cst_190 {dimension_numbers = #tpu.dot_dimension_numbers<[1], [0], [0], [1], [0, 0, 1, 1], [], []>} : vector<256x128xbf16>, vector<128x128xbf16>, vector<256x128xf32> -> vector<256x128xf32>
    %c3_191 = arith.constant 3 : index
    %c0_192 = arith.constant 0 : index
    %c0_193 = arith.constant 0 : index
    %171 = vector.load %arg10[%c3_191, %c0_192, %c0_193] : memref<4x1x128xf32, #tpu.memory_space<vmem>>, vector<1x1x128xf32>
    %172 = vector.shape_cast %171 : vector<1x1x128xf32> to vector<1x128xf32>
    %173 = vector.broadcast %172 : vector<1x128xf32> to vector<256x128xf32>
    %174 = arith.addf %170, %173 : vector<256x128xf32>
    %cst_194 = arith.constant 0.000000e+00 : f32
    %175 = vector.broadcast %cst_194 : f32 to vector<256x128xf32>
    %176 = arith.maximumf %174, %175 : vector<256x128xf32>
    %177 = arith.truncf %176 : vector<256x128xf32> to vector<256x128xbf16>
    %c3_195 = arith.constant 3 : index
    %c0_196 = arith.constant 0 : index
    %c0_197 = arith.constant 0 : index
    %178 = vector.load %arg11[%c3_195, %c0_196, %c0_197] : memref<4x128x128xbf16, #tpu.memory_space<vmem>>, vector<1x128x128xbf16>
    %179 = vector.shape_cast %178 : vector<1x128x128xbf16> to vector<128x128xbf16>
    %cst_198 = arith.constant dense<0.000000e+00> : vector<256x128xf32>
    %180 = tpu.matmul %177, %179, %cst_198 {dimension_numbers = #tpu.dot_dimension_numbers<[1], [0], [0], [1], [0, 0, 1, 1], [], []>} : vector<256x128xbf16>, vector<128x128xbf16>, vector<256x128xf32> -> vector<256x128xf32>
    %c3_199 = arith.constant 3 : index
    %c0_200 = arith.constant 0 : index
    %c0_201 = arith.constant 0 : index
    %181 = vector.load %arg12[%c3_199, %c0_200, %c0_201] : memref<4x1x128xf32, #tpu.memory_space<vmem>>, vector<1x1x128xf32>
    %182 = vector.shape_cast %181 : vector<1x1x128xf32> to vector<1x128xf32>
    %183 = vector.broadcast %182 : vector<1x128xf32> to vector<256x128xf32>
    %184 = arith.addf %180, %183 : vector<256x128xf32>
    %185 = vector.shape_cast %184 : vector<256x128xf32> to vector<1x16x16x128xf32>
    %c0_202 = arith.constant 0 : index
    %c0_203 = arith.constant 0 : index
    %c0_204 = arith.constant 0 : index
    %c0_205 = arith.constant 0 : index
    %186 = vector.load %arg13[%c0_202, %c0_203, %c0_204, %c0_205] : memref<1x16x16x128xf32, #tpu.memory_space<vmem>>, vector<1x16x16x128xf32>
    %187 = arith.addf %186, %185 : vector<1x16x16x128xf32>
    %c0_206 = arith.constant 0 : index
    %c0_207 = arith.constant 0 : index
    %c0_208 = arith.constant 0 : index
    %c0_209 = arith.constant 0 : index
    %188 = vector.load %arg13[%c0_206, %c0_207, %c0_208, %c0_209] : memref<1x16x16x128xf32, #tpu.memory_space<vmem>>, vector<1x16x16x128xf32>
    tpu.vector_store %arg13[%c0_206, %c0_207, %c0_208, %c0_209], %187 {strides = array<i32>} : memref<1x16x16x128xf32, #tpu.memory_space<vmem>>, vector<1x16x16x128xf32>,
    return
  }
  func.func @transform_0(%arg0: i32) -> (i32, i32, i32, i32) {
    %c0_i32 = arith.constant 0 : i32
    %c0_i32_0 = arith.constant 0 : i32
    %c0_i32_1 = arith.constant 0 : i32
    %c0_i32_2 = arith.constant 0 : i32
    return %arg0, %c0_i32, %c0_i32_0, %c0_i32_1 : i32, i32, i32, i32
  }
  func.func @transform_1(%arg0: i32) -> (i32, i32) {
    %c0_i32 = arith.constant 0 : i32
    %c0_i32_0 = arith.constant 0 : i32
    %c0_i32_1 = arith.constant 0 : i32
    return %c0_i32, %c0_i32_0 : i32, i32
  }
  func.func @transform_2(%arg0: i32) -> (i32, i32) {
    %c0_i32 = arith.constant 0 : i32
    %c0_i32_0 = arith.constant 0 : i32
    %c0_i32_1 = arith.constant 0 : i32
    return %c0_i32, %c0_i32_0 : i32, i32
  }
  func.func @transform_3(%arg0: i32) -> (i32, i32) {
    %c0_i32 = arith.constant 0 : i32
    %c0_i32_0 = arith.constant 0 : i32
    %c0_i32_1 = arith.constant 0 : i32
    return %c0_i32, %c0_i32_0 : i32, i32
  }
  func.func @transform_4(%arg0: i32) -> (i32, i32) {
    %c0_i32 = arith.constant 0 : i32
    %c0_i32_0 = arith.constant 0 : i32
    %c0_i32_1 = arith.constant 0 : i32
    return %c0_i32, %c0_i32_0 : i32, i32
  }
  func.func @transform_5(%arg0: i32) -> (i32, i32) {
    %c0_i32 = arith.constant 0 : i32
    %c0_i32_0 = arith.constant 0 : i32
    %c0_i32_1 = arith.constant 0 : i32
    return %c0_i32, %c0_i32_0 : i32, i32
  }
  func.func @transform_6(%arg0: i32) -> (i32, i32) {
    %c0_i32 = arith.constant 0 : i32
    %c0_i32_0 = arith.constant 0 : i32
    %c0_i32_1 = arith.constant 0 : i32
    return %c0_i32, %c0_i32_0 : i32, i32
  }
  func.func @transform_7(%arg0: i32) -> (i32, i32, i32) {
    %c0_i32 = arith.constant 0 : i32
    %c0_i32_0 = arith.constant 0 : i32
    %c0_i32_1 = arith.constant 0 : i32
    %c0_i32_2 = arith.constant 0 : i32
    return %c0_i32, %c0_i32_0, %c0_i32_1 : i32, i32, i32
  }
  func.func @transform_8(%arg0: i32) -> (i32, i32, i32) {
    %c0_i32 = arith.constant 0 : i32
    %c0_i32_0 = arith.constant 0 : i32
    %c0_i32_1 = arith.constant 0 : i32
    %c0_i32_2 = arith.constant 0 : i32
    return %c0_i32, %c0_i32_0, %c0_i32_1 : i32, i32, i32
  }
  func.func @transform_9(%arg0: i32) -> (i32, i32, i32) {
    %c0_i32 = arith.constant 0 : i32
    %c0_i32_0 = arith.constant 0 : i32
    %c0_i32_1 = arith.constant 0 : i32
    %c0_i32_2 = arith.constant 0 : i32
    return %c0_i32, %c0_i32_0, %c0_i32_1 : i32, i32, i32
  }
  func.func @transform_10(%arg0: i32) -> (i32, i32, i32) {
    %c0_i32 = arith.constant 0 : i32
    %c0_i32_0 = arith.constant 0 : i32
    %c0_i32_1 = arith.constant 0 : i32
    %c0_i32_2 = arith.constant 0 : i32
    return %c0_i32, %c0_i32_0, %c0_i32_1 : i32, i32, i32
  }
  func.func @transform_11(%arg0: i32) -> (i32, i32, i32) {
    %c0_i32 = arith.constant 0 : i32
    %c0_i32_0 = arith.constant 0 : i32
    %c0_i32_1 = arith.constant 0 : i32
    %c0_i32_2 = arith.constant 0 : i32
    return %c0_i32, %c0_i32_0, %c0_i32_1 : i32, i32, i32
  }
  func.func @transform_12(%arg0: i32) -> (i32, i32, i32, i32) {
    %c0_i32 = arith.constant 0 : i32
    %c0_i32_0 = arith.constant 0 : i32
    %c0_i32_1 = arith.constant 0 : i32
    %c0_i32_2 = arith.constant 0 : i32
    return %arg0, %c0_i32, %c0_i32_0, %c0_i32_1 : i32, i32, i32, i32
  }
}

</mosaic_0001>

<llo_original>
// kernel: mtl_forward.1
$region0: #{mtl_forward.1}
  #allocation0 [shape = 'u32[]', space=smem, size = 0x4, offset = 0x4, fixed_abs, tag = 'smem constant byte address 0x4 - core index']
  #allocation1 [shape = 'u32[144,128]{1,0:T(1,128)}', space=vmem, size = 0x12000, scoped, tag = 'internal scratch']
  #allocation2 [shape = 'bf16[40,40,32]{2,1,0:T(8,128)(2,1)}', space=vmem, size = 0x64000, scoped, tag = 'scratch operand']
  #allocation3 [shape = 'bf16[256,288]{1,0:T(16,128)(2,1)}', space=vmem, size = 0x30000, scoped, tag = 'scratch operand']
  %s0 = inlined_call_operand.vmem [shape: f32[2,16,16,4], index: 0, kind: input, shape index: {}]
  %s1 = inlined_call_operand.vmem [shape: bf16[4,32], index: 1, kind: input, shape index: {}]
  %s2 = inlined_call_operand.vmem [shape: f32[1,32], index: 2, kind: input, shape index: {}]
  %s3 = inlined_call_operand.vmem [shape: bf16[288,128], index: 3, kind: input, shape index: {}]
  %s4 = inlined_call_operand.hbm [shape: bf16[288,128], index: 4, kind: input, shape index: {}]
  %s5 = inlined_call_operand.hbm [shape: bf16[32,128], index: 5, kind: input, shape index: {}]
  %s6 = inlined_call_operand.hbm [shape: bf16[32,128], index: 6, kind: input, shape index: {}]
  %s7 = inlined_call_operand.hbm [shape: f32[4,1,128], index: 7, kind: input, shape index: {}]
  %s8 = inlined_call_operand.vmem [shape: bf16[4,128,128], index: 8, kind: input, shape index: {}]
  %s9 = inlined_call_operand.hbm [shape: f32[4,1,128], index: 9, kind: input, shape index: {}]
  %s10 = inlined_call_operand.vmem [shape: bf16[4,128,128], index: 10, kind: input, shape index: {}]
  %s11 = inlined_call_operand.hbm [shape: f32[4,1,128], index: 11, kind: input, shape index: {}]
  %s12 = inlined_call_operand.vmem [shape: f32[2,16,16,128], index: 12, kind: output, shape index: {}]
  %s13 = sld [smem:[#allocation0]]
  $region105: #{mtl_forward.1} parent=0
    _
  %s15 = ssub.s32 1, %s13
  %s16 = scalar_select 0, %s15, %s13
  $region1: #{mtl_forward.1} parent=0
    #allocation4 [shape = 'u8[73728]{0}', space=vmem, size = 0x12000, scoped, tag = 'input window, operand 4, single buffered']
    #allocation5 [shape = 's32[2]{0}', space=sflag, size = 0x8, scoped, tag = 'scoped memory for mtl_forward.1']
    #allocation6 [shape = 'u8[8192]{0}', space=vmem, size = 0x2000, scoped, tag = 'input window, operand 5, single buffered']
    #allocation7 [shape = 's32[1]{0}', space=sflag, size = 0x4, scoped, tag = 'scoped memory for mtl_forward.1']
    #allocation8 [shape = 'u8[8192]{0}', space=vmem, size = 0x2000, scoped, tag = 'input window, operand 6, single buffered']
    #allocation9 [shape = 'u8[2048]{0}', space=vmem, size = 0x800, scoped, tag = 'input window, operand 7, single buffered']
    #allocation10 [shape = 's32[1]{0}', space=sflag, size = 0x4, scoped, tag = 'scoped memory for mtl_forward.1']
    #allocation11 [shape = 'u8[2048]{0}', space=vmem, size = 0x800, scoped, tag = 'input window, operand 9, single buffered']
    #allocation12 [shape = 'u8[2048]{0}', space=vmem, size = 0x800, scoped, tag = 'input window, operand 11, single buffered']
    #allocation13 [shape = 's32[1]{0}', space=sflag, size = 0x4, scoped, tag = 'scoped memory for mtl_forward.1']
    %17 = vsyncpa [#allocation5], 0
    %18 = vsyncpa [#allocation7], 0
    %19 = vsyncpa [#allocation10], 0
    %20 = vsyncpa [#allocation13], 0
    loop: start=0, step=1, limit=4
    $region2: #{mtl_forward.1} parent=1 // loop_pre_header
      _
    $region3: #{mtl_forward.1} parent=1 // loop_header
      %s22 = sphi 0, %s26
      %p23 = scmp.ge.s32.totalorder %s22, 4
      %s32 = sphi 0, %s34
      %s35 = sphi 0, %s32
      %s36 = sphi 0, %s35
      %s52 = sphi 0, %s36
      %s56 = sphi 0, %s56
      %s58 = sphi 0, %s56
      %s59 = sphi 0, %s58
      %s73 = sphi 0, %s59
      %s77 = sphi 0, %s77
      %s79 = sphi 0, %s77
      %s80 = sphi 0, %s79
      %s94 = sphi 0, %s80
      %s98 = sphi 0, %s98
      %s100 = sphi 0, %s98
      %s101 = sphi 0, %s100
      %s115 = sphi 0, %s101
      %s119 = sphi 0, %s119
      %s121 = sphi 0, %s119
      %s122 = sphi 0, %s121
      %s136 = sphi 0, %s122
      %s140 = sphi 0, %s140
      %s142 = sphi 0, %s140
      %s143 = sphi 0, %s142
      %s157 = sphi 0, %s143
      %s161 = sphi 0, %s161
      %s163 = sphi 0, %s161
      %s164 = sphi 0, %s163
      %s178 = sphi 0, %s164
      %s182 = sphi 0, %s182
      %s184 = sphi 0, %s182
      %s185 = sphi 0, %s184
      %s199 = sphi 0, %s185
      %s203 = sphi 0, %s203
      %s205 = sphi 0, %s203
      %s206 = sphi 0, %s205
      %s220 = sphi 0, %s206
      %s224 = sphi 0, %s224
      %s226 = sphi 0, %s224
      %s227 = sphi 0, %s226
      %s241 = sphi 0, %s227
      %s245 = sphi 0, %s245
      %s247 = sphi 0, %s245
      %s248 = sphi 0, %s247
      %s262 = sphi 0, %s248
      %s266 = sphi 0, %s266
      %s268 = sphi 0, %s266
      %s269 = sphi 0, %s268
      %s283 = sphi 0, %s269
      %s289 = sphi 0, %s291
      %s292 = sphi 0, %s289
      %s293 = sphi 0, %s292
      %s309 = sphi 0, %s293
    $region4: #{mtl_forward.1} parent=1 // loop_header_branch
      %25 = sbr.rel (%p23) target = $region8
    $region5: #{mtl_forward.1} parent=1 // loop_body
      %s27 = ssub.s32 %s22, 1
      %s28 = ssub.s32 %s22, 2
      %s29 = sadd.s32 %s22, 1
      %s30 = ssub.s32 %s22, %s29
      %p31 = scmp.eq.s32.totalorder %s30, 0
      %s33 = sadd.s32 %s32, 1
      %s34 = scalar_select %p31, %s32, %s33
      %p37 = pneg %p31
      %p38 = scmp.eq.s32.totalorder %s22, 1
      %p39 = por %p37, %p38
      %p40 = scmp.ne.s32.totalorder %s32, %s35
      %p41 = scmp.eq.s32.totalorder %s22, 0
      %p42 = por %p40, %p41
      %p43 = scmp.ne.s32.totalorder %s32, %s35
      %p44 = scmp.eq.s32.totalorder %s27, 1
      %p45 = por %p43, %p44
      %p46 = scmp.ne.s32.totalorder %s35, %s36
      %p47 = scmp.eq.s32.totalorder %s27, 0
      %p48 = por %p46, %p47
      %p49 = scmp.ne.s32.totalorder %s35, %s36
      %p50 = scmp.eq.s32.totalorder %s28, 1
      %p51 = por %p49, %p50
      %p53 = scmp.ne.s32.totalorder %s36, %s52
      %p54 = scmp.eq.s32.totalorder %s28, 0
      %p55 = por %p53, %p54
      %s57 = sadd.s32 %s56, 1
      %p60 = scmp.eq.s32.totalorder %s22, 1
      %p61 = scmp.ne.s32.totalorder %s56, %s58
      %p62 = scmp.eq.s32.totalorder %s22, 0
      %p63 = por %p61, %p62
      %p64 = scmp.ne.s32.totalorder %s56, %s58
      %p65 = scmp.eq.s32.totalorder %s27, 1
      %p66 = por %p64, %p65
      %p67 = scmp.ne.s32.totalorder %s58, %s59
      %p68 = scmp.eq.s32.totalorder %s27, 0
      %p69 = por %p67, %p68
      %p70 = scmp.ne.s32.totalorder %s58, %s59
      %p71 = scmp.eq.s32.totalorder %s28, 1
      %p72 = por %p70, %p71
      %p74 = scmp.ne.s32.totalorder %s59, %s73
      %p75 = scmp.eq.s32.totalorder %s28, 0
      %p76 = por %p74, %p75
      %s78 = sadd.s32 %s77, 1
      %p81 = scmp.eq.s32.totalorder %s22, 1
      %p82 = scmp.ne.s32.totalorder %s77, %s79
      %p83 = scmp.eq.s32.totalorder %s22, 0
      %p84 = por %p82, %p83
      %p85 = scmp.ne.s32.totalorder %s77, %s79
      %p86 = scmp.eq.s32.totalorder %s27, 1
      %p87 = por %p85, %p86
      %p88 = scmp.ne.s32.totalorder %s79, %s80
      %p89 = scmp.eq.s32.totalorder %s27, 0
      %p90 = por %p88, %p89
      %p91 = scmp.ne.s32.totalorder %s79, %s80
      %p92 = scmp.eq.s32.totalorder %s28, 1
      %p93 = por %p91, %p92
      %p95 = scmp.ne.s32.totalorder %s80, %s94
      %p96 = scmp.eq.s32.totalorder %s28, 0
      %p97 = por %p95, %p96
      %s99 = sadd.s32 %s98, 1
      %p102 = scmp.eq.s32.totalorder %s22, 1
      %p103 = scmp.ne.s32.totalorder %s98, %s100
      %p104 = scmp.eq.s32.totalorder %s22, 0
      %p105 = por %p103, %p104
      %p106 = scmp.ne.s32.totalorder %s98, %s100
      %p107 = scmp.eq.s32.totalorder %s27, 1
      %p108 = por %p106, %p107
      %p109 = scmp.ne.s32.totalorder %s100, %s101
      %p110 = scmp.eq.s32.totalorder %s27, 0
      %p111 = por %p109, %p110
      %p112 = scmp.ne.s32.totalorder %s100, %s101
      %p113 = scmp.eq.s32.totalorder %s28, 1
      %p114 = por %p112, %p113
      %p116 = scmp.ne.s32.totalorder %s101, %s115
      %p117 = scmp.eq.s32.totalorder %s28, 0
      %p118 = por %p116, %p117
      %s120 = sadd.s32 %s119, 1
      %p123 = scmp.eq.s32.totalorder %s22, 1
      %p124 = scmp.ne.s32.totalorder %s119, %s121
      %p125 = scmp.eq.s32.totalorder %s22, 0
      %p126 = por %p124, %p125
      %p127 = scmp.ne.s32.totalorder %s119, %s121
      %p128 = scmp.eq.s32.totalorder %s27, 1
      %p129 = por %p127, %p128
      %p130 = scmp.ne.s32.totalorder %s121, %s122
      %p131 = scmp.eq.s32.totalorder %s27, 0
      %p132 = por %p130, %p131
      %p133 = scmp.ne.s32.totalorder %s121, %s122
      %p134 = scmp.eq.s32.totalorder %s28, 1
      %p135 = por %p133, %p134
      %p137 = scmp.ne.s32.totalorder %s122, %s136
      %p138 = scmp.eq.s32.totalorder %s28, 0
      %p139 = por %p137, %p138
      %s141 = sadd.s32 %s140, 1
      %p144 = scmp.eq.s32.totalorder %s22, 1
      %p145 = scmp.ne.s32.totalorder %s140, %s142
      %p146 = scmp.eq.s32.totalorder %s22, 0
      %p147 = por %p145, %p146
      %p148 = scmp.ne.s32.totalorder %s140, %s142
      %p149 = scmp.eq.s32.totalorder %s27, 1
      %p150 = por %p148, %p149
      %p151 = scmp.ne.s32.totalorder %s142, %s143
      %p152 = scmp.eq.s32.totalorder %s27, 0
      %p153 = por %p151, %p152
      %p154 = scmp.ne.s32.totalorder %s142, %s143
      %p155 = scmp.eq.s32.totalorder %s28, 1
      %p156 = por %p154, %p155
      %p158 = scmp.ne.s32.totalorder %s143, %s157
      %p159 = scmp.eq.s32.totalorder %s28, 0
      %p160 = por %p158, %p159
      %s162 = sadd.s32 %s161, 1
      %p165 = scmp.eq.s32.totalorder %s22, 1
      %p166 = scmp.ne.s32.totalorder %s161, %s163
      %p167 = scmp.eq.s32.totalorder %s22, 0
      %p168 = por %p166, %p167
      %p169 = scmp.ne.s32.totalorder %s161, %s163
      %p170 = scmp.eq.s32.totalorder %s27, 1
      %p171 = por %p169, %p170
      %p172 = scmp.ne.s32.totalorder %s163, %s164
      %p173 = scmp.eq.s32.totalorder %s27, 0
      %p174 = por %p172, %p173
      %p175 = scmp.ne.s32.totalorder %s163, %s164
      %p176 = scmp.eq.s32.totalorder %s28, 1
      %p177 = por %p175, %p176
      %p179 = scmp.ne.s32.totalorder %s164, %s178
      %p180 = scmp.eq.s32.totalorder %s28, 0
      %p181 = por %p179, %p180
      %s183 = sadd.s32 %s182, 1
      %p186 = scmp.eq.s32.totalorder %s22, 1
      %p187 = scmp.ne.s32.totalorder %s182, %s184
      %p188 = scmp.eq.s32.totalorder %s22, 0
      %p189 = por %p187, %p188
      %p190 = scmp.ne.s32.totalorder %s182, %s184
      %p191 = scmp.eq.s32.totalorder %s27, 1
      %p192 = por %p190, %p191
      %p193 = scmp.ne.s32.totalorder %s184, %s185
      %p194 = scmp.eq.s32.totalorder %s27, 0
      %p195 = por %p193, %p194
      %p196 = scmp.ne.s32.totalorder %s184, %s185
      %p197 = scmp.eq.s32.totalorder %s28, 1
      %p198 = por %p196, %p197
      %p200 = scmp.ne.s32.totalorder %s185, %s199
      %p201 = scmp.eq.s32.totalorder %s28, 0
      %p202 = por %p200, %p201
      %s204 = sadd.s32 %s203, 1
      %p207 = scmp.eq.s32.totalorder %s22, 1
      %p208 = scmp.ne.s32.totalorder %s203, %s205
      %p209 = scmp.eq.s32.totalorder %s22, 0
      %p210 = por %p208, %p209
      %p211 = scmp.ne.s32.totalorder %s203, %s205
      %p212 = scmp.eq.s32.totalorder %s27, 1
      %p213 = por %p211, %p212
      %p214 = scmp.ne.s32.totalorder %s205, %s206
      %p215 = scmp.eq.s32.totalorder %s27, 0
      %p216 = por %p214, %p215
      %p217 = scmp.ne.s32.totalorder %s205, %s206
      %p218 = scmp.eq.s32.totalorder %s28, 1
      %p219 = por %p217, %p218
      %p221 = scmp.ne.s32.totalorder %s206, %s220
      %p222 = scmp.eq.s32.totalorder %s28, 0
      %p223 = por %p221, %p222
      %s225 = sadd.s32 %s224, 1
      %p228 = scmp.eq.s32.totalorder %s22, 1
      %p229 = scmp.ne.s32.totalorder %s224, %s226
      %p230 = scmp.eq.s32.totalorder %s22, 0
      %p231 = por %p229, %p230
      %p232 = scmp.ne.s32.totalorder %s224, %s226
      %p233 = scmp.eq.s32.totalorder %s27, 1
      %p234 = por %p232, %p233
      %p235 = scmp.ne.s32.totalorder %s226, %s227
      %p236 = scmp.eq.s32.totalorder %s27, 0
      %p237 = por %p235, %p236
      %p238 = scmp.ne.s32.totalorder %s226, %s227
      %p239 = scmp.eq.s32.totalorder %s28, 1
      %p240 = por %p238, %p239
      %p242 = scmp.ne.s32.totalorder %s227, %s241
      %p243 = scmp.eq.s32.totalorder %s28, 0
      %p244 = por %p242, %p243
      %s246 = sadd.s32 %s245, 1
      %p249 = scmp.eq.s32.totalorder %s22, 1
      %p250 = scmp.ne.s32.totalorder %s245, %s247
      %p251 = scmp.eq.s32.totalorder %s22, 0
      %p252 = por %p250, %p251
      %p253 = scmp.ne.s32.totalorder %s245, %s247
      %p254 = scmp.eq.s32.totalorder %s27, 1
      %p255 = por %p253, %p254
      %p256 = scmp.ne.s32.totalorder %s247, %s248
      %p257 = scmp.eq.s32.totalorder %s27, 0
      %p258 = por %p256, %p257
      %p259 = scmp.ne.s32.totalorder %s247, %s248
      %p260 = scmp.eq.s32.totalorder %s28, 1
      %p261 = por %p259, %p260
      %p263 = scmp.ne.s32.totalorder %s248, %s262
      %p264 = scmp.eq.s32.totalorder %s28, 0
      %p265 = por %p263, %p264
      %s267 = sadd.s32 %s266, 1
      %p270 = scmp.eq.s32.totalorder %s22, 1
      %p271 = scmp.ne.s32.totalorder %s266, %s268
      %p272 = scmp.eq.s32.totalorder %s22, 0
      %p273 = por %p271, %p272
      %p274 = scmp.ne.s32.totalorder %s266, %s268
      %p275 = scmp.eq.s32.totalorder %s27, 1
      %p276 = por %p274, %p275
      %p277 = scmp.ne.s32.totalorder %s268, %s269
      %p278 = scmp.eq.s32.totalorder %s27, 0
      %p279 = por %p277, %p278
      %p280 = scmp.ne.s32.totalorder %s268, %s269
      %p281 = scmp.eq.s32.totalorder %s28, 1
      %p282 = por %p280, %p281
      %p284 = scmp.ne.s32.totalorder %s269, %s283
      %p285 = scmp.eq.s32.totalorder %s28, 0
      %p286 = por %p284, %p285
      %s287 = ssub.s32 %s22, %s29
      %p288 = scmp.eq.s32.totalorder %s287, 0
      %s290 = sadd.s32 %s289, 1
      %s291 = scalar_select %p288, %s289, %s290
      %p294 = pneg %p288
      %p295 = scmp.eq.s32.totalorder %s22, 1
      %p296 = por %p294, %p295
      %p297 = scmp.ne.s32.totalorder %s289, %s292
      %p298 = scmp.eq.s32.totalorder %s22, 0
      %p299 = por %p297, %p298
      %p300 = scmp.ne.s32.totalorder %s289, %s292
      %p301 = scmp.eq.s32.totalorder %s27, 1
      %p302 = por %p300, %p301
      %p303 = scmp.ne.s32.totalorder %s292, %s293
      %p304 = scmp.eq.s32.totalorder %s27, 0
      %p305 = por %p303, %p304
      %p306 = scmp.ne.s32.totalorder %s292, %s293
      %p307 = scmp.eq.s32.totalorder %s28, 1
      %p308 = por %p306, %p307
      %p310 = scmp.ne.s32.totalorder %s293, %s309
      %p311 = scmp.eq.s32.totalorder %s28, 0
      %p312 = por %p310, %p311
      %p313 = scmp.le.s32.totalorder 1, %s22
      %p314 = scmp.lt.s32.totalorder %s22, 3
      %p315 = pnand %p313, %p314
      %p316 = pneg %p315
      // Predicated region
      $region9: #{mtl_forward.1} parent=5 // pred_check
        _
      $region10: #{mtl_forward.1} parent=5 // pred_check_branch
        %318 = sbr.rel (%p315) target = $region12
      $region11: #{mtl_forward.1} parent=5 // pred_region
        %s319 = ssub.s32 %s22, 1
        // Predicated region
        $region13: #{mtl_forward.1} parent=11 // pred_check
          %p320 = pneg %p69
        $region14: #{mtl_forward.1} parent=11 // pred_check_branch
          %322 = sbr.rel (%p320) target = $region16
        $region15: #{mtl_forward.1} parent=11 // pred_region
          _
        $region16: #{mtl_forward.1} parent=11 // pred_fallthru
          _
        // Predicated region
        $region17: #{mtl_forward.1} parent=11 // pred_check
          %p323 = pneg %p90
        $region18: #{mtl_forward.1} parent=11 // pred_check_branch
          %325 = sbr.rel (%p323) target = $region20
        $region19: #{mtl_forward.1} parent=11 // pred_region
          _
        $region20: #{mtl_forward.1} parent=11 // pred_fallthru
          _
        // Predicated region
        $region21: #{mtl_forward.1} parent=11 // pred_check
          %p326 = pneg %p111
        $region22: #{mtl_forward.1} parent=11 // pred_check_branch
          %328 = sbr.rel (%p326) target = $region24
        $region23: #{mtl_forward.1} parent=11 // pred_region
          _
        $region24: #{mtl_forward.1} parent=11 // pred_fallthru
          _
        // Predicated region
        $region25: #{mtl_forward.1} parent=11 // pred_check
          %p329 = pneg %p132
        $region26: #{mtl_forward.1} parent=11 // pred_check_branch
          %331 = sbr.rel (%p329) target = $region28
        $region27: #{mtl_forward.1} parent=11 // pred_region
          %s333 = ssub.s32 2304, 2304
          %334 = vsyncadd [#allocation5], %s333
          %s335 = sshll.u32 [#allocation4], 4
          %s336 = int_to_ptr.vmem [resolvable:$true] %s335
          %341 = dma.hbm_to_vmem [thread:$0]  %s4, 2304, %s336, [#allocation5], 64, 64, 4
        $region28: #{mtl_forward.1} parent=11 // pred_fallthru
          _
        // Predicated region
        $region29: #{mtl_forward.1} parent=11 // pred_check
          %p342 = pneg %p153
        $region30: #{mtl_forward.1} parent=11 // pred_check_branch
          %344 = sbr.rel (%p342) target = $region32
        $region31: #{mtl_forward.1} parent=11 // pred_region
          %s346 = ssub.s32 256, 256
          %347 = vsyncadd [#allocation7], %s346
          %s348 = sshll.u32 [#allocation6], 4
          %s349 = int_to_ptr.vmem [resolvable:$true] %s348
          %354 = dma.hbm_to_vmem [thread:$0]  %s5, 256, %s349, [#allocation7], 64, 64, 4
        $region32: #{mtl_forward.1} parent=11 // pred_fallthru
          _
        // Predicated region
        $region33: #{mtl_forward.1} parent=11 // pred_check
          %p355 = pneg %p174
        $region34: #{mtl_forward.1} parent=11 // pred_check_branch
          %357 = sbr.rel (%p355) target = $region36
        $region35: #{mtl_forward.1} parent=11 // pred_region
          %s359 = ssub.s32 256, 256
          %360 = vsyncadd [#allocation7], %s359
          %s361 = sshll.u32 [#allocation8], 4
          %s362 = int_to_ptr.vmem [resolvable:$true] %s361
          %367 = dma.hbm_to_vmem [thread:$0]  %s6, 256, %s362, [#allocation7], 64, 64, 4
        $region36: #{mtl_forward.1} parent=11 // pred_fallthru
          _
        // Predicated region
        $region37: #{mtl_forward.1} parent=11 // pred_check
          %p368 = pneg %p195
        $region38: #{mtl_forward.1} parent=11 // pred_check_branch
          %370 = sbr.rel (%p368) target = $region40
        $region39: #{mtl_forward.1} parent=11 // pred_region
          %s372 = ssub.s32 64, 64
          %373 = vsyncadd [#allocation10], %s372
          %s374 = sshll.u32 [#allocation9], 4
          %s375 = int_to_ptr.vmem [resolvable:$true] %s374
          %380 = dma.hbm_to_vmem [thread:$0]  %s7, 64, %s375, [#allocation10], 16, 16, 1
        $region40: #{mtl_forward.1} parent=11 // pred_fallthru
          _
        // Predicated region
        $region41: #{mtl_forward.1} parent=11 // pred_check
          %p381 = pneg %p216
        $region42: #{mtl_forward.1} parent=11 // pred_check_branch
          %383 = sbr.rel (%p381) target = $region44
        $region43: #{mtl_forward.1} parent=11 // pred_region
          _
        $region44: #{mtl_forward.1} parent=11 // pred_fallthru
          _
        // Predicated region
        $region45: #{mtl_forward.1} parent=11 // pred_check
          %p384 = pneg %p237
        $region46: #{mtl_forward.1} parent=11 // pred_check_branch
          %386 = sbr.rel (%p384) target = $region48
        $region47: #{mtl_forward.1} parent=11 // pred_region
          %s388 = ssub.s32 64, 64
          %389 = vsyncadd [#allocation10], %s388
          %s390 = sshll.u32 [#allocation11], 4
          %s391 = int_to_ptr.vmem [resolvable:$true] %s390
          %396 = dma.hbm_to_vmem [thread:$0]  %s9, 64, %s391, [#allocation10], 16, 16, 1
        $region48: #{mtl_forward.1} parent=11 // pred_fallthru
          _
        // Predicated region
        $region49: #{mtl_forward.1} parent=11 // pred_check
          %p397 = pneg %p258
        $region50: #{mtl_forward.1} parent=11 // pred_check_branch
          %399 = sbr.rel (%p397) target = $region52
        $region51: #{mtl_forward.1} parent=11 // pred_region
          _
        $region52: #{mtl_forward.1} parent=11 // pred_fallthru
          _
        // Predicated region
        $region53: #{mtl_forward.1} parent=11 // pred_check
          %p400 = pneg %p279
        $region54: #{mtl_forward.1} parent=11 // pred_check_branch
          %402 = sbr.rel (%p400) target = $region56
        $region55: #{mtl_forward.1} parent=11 // pred_region
          %s404 = ssub.s32 64, 64
          %405 = vsyncadd [#allocation13], %s404
          %s406 = sshll.u32 [#allocation12], 4
          %s407 = int_to_ptr.vmem [resolvable:$true] %s406
          %412 = dma.hbm_to_vmem [thread:$0]  %s11, 64, %s407, [#allocation13], 16, 16, 1
        $region56: #{mtl_forward.1} parent=11 // pred_fallthru
          _
      $region12: #{mtl_forward.1} parent=5 // pred_fallthru
        _
      %p413 = scmp.lt.s32.totalorder %s22, 2
      // Predicated region
      $region57: #{mtl_forward.1} parent=5 // pred_check
        %p414 = pneg %p413
      $region58: #{mtl_forward.1} parent=5 // pred_check_branch
        %416 = sbr.rel (%p414) target = $region60
      $region59: #{mtl_forward.1} parent=5 // pred_region
        // Predicated region
        $region61: #{mtl_forward.1} parent=59 // pred_check
          %p417 = pneg %p42
        $region62: #{mtl_forward.1} parent=59 // pred_check_branch
          %419 = sbr.rel (%p417) target = $region64
        $region63: #{mtl_forward.1} parent=59 // pred_region
          %p420 = scmp.lt.s32.totalorder %s22, 1
          %s421 = scalar_select %p420, %s22, 1
          %s422 = smul.addr %s421, 32
          %s423 = smul.addr %s422, 8
          %s424 = scalar_lea.vmem %s0, %s423
        $region64: #{mtl_forward.1} parent=59 // pred_fallthru
          _
      $region60: #{mtl_forward.1} parent=5 // pred_fallthru
        _
      %p425 = scmp.le.s32.totalorder 1, %s22
      %p426 = scmp.lt.s32.totalorder %s22, 3
      %p427 = pnand %p425, %p426
      %p428 = pneg %p427
      // Predicated region
      $region65: #{mtl_forward.1} parent=5 // pred_check
        _
      $region66: #{mtl_forward.1} parent=5 // pred_check_branch
        %430 = sbr.rel (%p427) target = $region68
      $region67: #{mtl_forward.1} parent=5 // pred_region
        %s431 = ssub.s32 %s22, 1
        // Predicated region
        $region69: #{mtl_forward.1} parent=67 // pred_check
          %p432 = pneg %p132
        $region70: #{mtl_forward.1} parent=67 // pred_check_branch
          %434 = sbr.rel (%p432) target = $region72
        $region71: #{mtl_forward.1} parent=67 // pred_region
          %435 = dma.done [#allocation5], 2304
        $region72: #{mtl_forward.1} parent=67 // pred_fallthru
          _
        // Predicated region
        $region73: #{mtl_forward.1} parent=67 // pred_check
          %p436 = pneg %p153
        $region74: #{mtl_forward.1} parent=67 // pred_check_branch
          %438 = sbr.rel (%p436) target = $region76
        $region75: #{mtl_forward.1} parent=67 // pred_region
          %439 = dma.done [#allocation7], 256
        $region76: #{mtl_forward.1} parent=67 // pred_fallthru
          _
        // Predicated region
        $region77: #{mtl_forward.1} parent=67 // pred_check
          %p440 = pneg %p174
        $region78: #{mtl_forward.1} parent=67 // pred_check_branch
          %442 = sbr.rel (%p440) target = $region80
        $region79: #{mtl_forward.1} parent=67 // pred_region
          %443 = dma.done [#allocation7], 256
        $region80: #{mtl_forward.1} parent=67 // pred_fallthru
          _
        // Predicated region
        $region81: #{mtl_forward.1} parent=67 // pred_check
          %p444 = pneg %p195
        $region82: #{mtl_forward.1} parent=67 // pred_check_branch
          %446 = sbr.rel (%p444) target = $region84
        $region83: #{mtl_forward.1} parent=67 // pred_region
          %447 = dma.done [#allocation10], 64
        $region84: #{mtl_forward.1} parent=67 // pred_fallthru
          _
        // Predicated region
        $region85: #{mtl_forward.1} parent=67 // pred_check
          %p448 = pneg %p237
        $region86: #{mtl_forward.1} parent=67 // pred_check_branch
          %450 = sbr.rel (%p448) target = $region88
        $region87: #{mtl_forward.1} parent=67 // pred_region
          %451 = dma.done [#allocation10], 64
        $region88: #{mtl_forward.1} parent=67 // pred_fallthru
          _
        // Predicated region
        $region89: #{mtl_forward.1} parent=67 // pred_check
          %p452 = pneg %p279
        $region90: #{mtl_forward.1} parent=67 // pred_check_branch
          %454 = sbr.rel (%p452) target = $region92
        $region91: #{mtl_forward.1} parent=67 // pred_region
          %455 = dma.done [#allocation13], 64
        $region92: #{mtl_forward.1} parent=67 // pred_fallthru
          _
        %p456 = scmp.lt.s32.totalorder %s27, 1
        %s457 = scalar_select %p456, %s27, 1
        %s458 = smul.addr %s457, 32
        %s459 = smul.addr %s458, 8
        %s460 = scalar_lea.vmem %s0, %s459
        %p461 = pneg %p48
        %p462 = pneg %p45
        %p463 = pneg %p69
        %p464 = pneg %p66
        %p465 = pneg %p90
        %p466 = pneg %p87
        %p467 = pneg %p111
        %p468 = pneg %p108
        %p469 = pneg %p132
        %p470 = pneg %p129
        %p471 = pneg %p153
        %p472 = pneg %p150
        %p473 = pneg %p174
        %p474 = pneg %p171
        %p475 = pneg %p195
        %p476 = pneg %p192
        %p477 = pneg %p216
        %p478 = pneg %p213
        %p479 = pneg %p237
        %p480 = pneg %p234
        %p481 = pneg %p258
        %p482 = pneg %p255
        %p483 = pneg %p279
        %p484 = pneg %p276
        %p485 = pneg %p305
        %p486 = pneg %p302
        %p487 = scmp.lt.s32.totalorder %s27, 1
        %s488 = scalar_select %p487, %s27, 1
        %s489 = smul.addr %s488, 32
        %s490 = smul.addr %s489, 8
        %s491 = scalar_lea.vmem %s12, %s490
        %p492 = scmp.lt.s32.totalorder %s27, 1
        %s493 = scalar_select %p492, %s27, 1
        %s494 = smul.addr %s493, 32
        %s495 = smul.addr %s494, 8
        %s496 = scalar_lea.vmem %s0, %s495
        %p497 = scmp.lt.s32.totalorder %s27, 1
        %s498 = scalar_select %p497, %s27, 1
        %s499 = smul.addr %s498, 32
        %s500 = smul.addr %s499, 8
        %s501 = scalar_lea.vmem %s12, %s500
        %v503 = vld [vmem:[%s496] sm:$0xff]
        %v504 = vld [vmem:[%s496 + $0x8] sm:$0xff]
        %v505 = vld [vmem:[%s496 + $0x10] sm:$0xff]
        %v506 = vld [vmem:[%s496 + $0x18] sm:$0xff]
        %v507 = vld [vmem:[%s496 + $0x20] sm:$0xff]
        %v508 = vld [vmem:[%s496 + $0x28] sm:$0xff]
        %v509 = vld [vmem:[%s496 + $0x30] sm:$0xff]
        %v510 = vld [vmem:[%s496 + $0x38] sm:$0xff]
        %v511 = vld [vmem:[%s496 + $0x40] sm:$0xff]
        %v512 = vld [vmem:[%s496 + $0x48] sm:$0xff]
        %v513 = vld [vmem:[%s496 + $0x50] sm:$0xff]
        %v514 = vld [vmem:[%s496 + $0x58] sm:$0xff]
        %v515 = vld [vmem:[%s496 + $0x60] sm:$0xff]
        %v516 = vld [vmem:[%s496 + $0x68] sm:$0xff]
        %v517 = vld [vmem:[%s496 + $0x70] sm:$0xff]
        %v518 = vld [vmem:[%s496 + $0x78] sm:$0xff]
        %v519 = vld [vmem:[%s496 + $0x80] sm:$0xff]
        %v520 = vld [vmem:[%s496 + $0x88] sm:$0xff]
        %v521 = vld [vmem:[%s496 + $0x90] sm:$0xff]
        %v522 = vld [vmem:[%s496 + $0x98] sm:$0xff]
        %v523 = vld [vmem:[%s496 + $0xa0] sm:$0xff]
        %v524 = vld [vmem:[%s496 + $0xa8] sm:$0xff]
        %v525 = vld [vmem:[%s496 + $0xb0] sm:$0xff]
        %v526 = vld [vmem:[%s496 + $0xb8] sm:$0xff]
        %v527 = vld [vmem:[%s496 + $0xc0] sm:$0xff]
        %v528 = vld [vmem:[%s496 + $0xc8] sm:$0xff]
        %v529 = vld [vmem:[%s496 + $0xd0] sm:$0xff]
        %v530 = vld [vmem:[%s496 + $0xd8] sm:$0xff]
        %v531 = vld [vmem:[%s496 + $0xe0] sm:$0xff]
        %v532 = vld [vmem:[%s496 + $0xe8] sm:$0xff]
        %v533 = vld [vmem:[%s496 + $0xf0] sm:$0xff]
        %v534 = vld [vmem:[%s496 + $0xf8] sm:$0xff]
        %v535 = vpack.c.bf16 %v504, %v503
        %v536 = vpack.c.bf16 %v506, %v505
        %v537 = vpack.c.bf16 %v508, %v507
        %v538 = vpack.c.bf16 %v510, %v509
        %v539 = vpack.c.bf16 %v512, %v511
        %v540 = vpack.c.bf16 %v514, %v513
        %v541 = vpack.c.bf16 %v516, %v515
        %v542 = vpack.c.bf16 %v518, %v517
        %v543 = vpack.c.bf16 %v520, %v519
        %v544 = vpack.c.bf16 %v522, %v521
        %v545 = vpack.c.bf16 %v524, %v523
        %v546 = vpack.c.bf16 %v526, %v525
        %v547 = vpack.c.bf16 %v528, %v527
        %v548 = vpack.c.bf16 %v530, %v529
        %v549 = vpack.c.bf16 %v532, %v531
        %v550 = vpack.c.bf16 %v534, %v533
        %v551 = vld [vmem:[%s1] sm:$0x3]
        %v552 = vld [vmem:[%s2] sm:$0x1]
        %v554 = vlaneseq
        %v555 = vshrl.u32 %v554, 7
        %v556 = vsub.s32 0, %v555
        %v557 = vrot.slane %v552, %v556
        %vm559 = vcmask 31744
        %v561 = vsel %vm559, %v535, 0
        %v564 = vsel %vm559, %v536, 0
        %v567 = vsel %vm559, %v537, 0
        %v570 = vsel %vm559, %v538, 0
        %v573 = vsel %vm559, %v539, 0
        %v576 = vsel %vm559, %v540, 0
        %v579 = vsel %vm559, %v541, 0
        %v582 = vsel %vm559, %v542, 0
        %v585 = vsel %vm559, %v543, 0
        %v588 = vsel %vm559, %v544, 0
        %v591 = vsel %vm559, %v545, 0
        %v594 = vsel %vm559, %v546, 0
        %v597 = vsel %vm559, %v547, 0
        %v600 = vsel %vm559, %v548, 0
        %v603 = vsel %vm559, %v549, 0
        %v606 = vsel %vm559, %v550, 0
        %vm608 = vcmask 1041408
        %v610 = vsel %vm608, %v551, 0
        %612 = vmatprep.subr.bf16.mxu0 0
        %613 = vmatpush1.bf16.msra.mxu0 %v610
        %614 = vmatprep.subr.bf16.mxu0 0
        %615 = vmatpush1.bf16.msra.mxu0 0
        %616 = vmatprep.subr.bf16.mxu0 0
        %617 = vmatpush1.bf16.msra.mxu0 0
        %618 = vmatprep.subr.bf16.mxu0 0
        %619 = vmatpush1.bf16.msra.mxu0 0
        %620 = vmatprep.subr.bf16.mxu0 0
        %621 = vmatpush1.bf16.msra.mxu0 0
        %622 = vmatprep.subr.bf16.mxu0 0
        %623 = vmatpush1.bf16.msra.mxu0 0
        %624 = vmatprep.subr.bf16.mxu0 0
        %625 = vmatpush1.bf16.msra.mxu0 0
        %626 = vmatprep.subr.bf16.mxu0 0
        %627 = vmatpush1.bf16.msra.mxu0 0
        %628 = vmatprep.subr.bf16.mxu0 0
        %629 = vmatpush1.bf16.msra.mxu0 0
        %630 = vmatprep.subr.bf16.mxu0 0
        %631 = vmatpush1.bf16.msra.mxu0 0
        %632 = vmatprep.subr.bf16.mxu0 0
        %633 = vmatpush1.bf16.msra.mxu0 0
        %634 = vmatprep.subr.bf16.mxu0 0
        %635 = vmatpush1.bf16.msra.mxu0 0
        %636 = vmatprep.subr.bf16.mxu0 0
        %637 = vmatpush1.bf16.msra.mxu0 0
        %638 = vmatprep.subr.bf16.mxu0 0
        %639 = vmatpush1.bf16.msra.mxu0 0
        %640 = vmatprep.subr.bf16.mxu0 0
        %641 = vmatpush1.bf16.msra.mxu0 0
        %642 = vmatprep.subr.bf16.mxu0 0
        %643 = vmatpush1.bf16.msra.mxu0 0
        %644 = vmatprep.mubr.bf16.mxu0 0
        %645 = vmatmul.mubr.bf16.gmra.mrb[0].mxu0 %v561
        %v646 = vpop.f32.mrb[0].mxu0
        %v647 = vadd.f32 %v557, %v646
        %v648 = vpop.f32.mrb[0].mxu0
        %v649 = vpop.f32.mrb[0].mxu0
        %v650 = vadd.f32 %v557, %v649
        %v651 = vpop.f32.mrb[0].mxu0
        %652 = vmatprep.mubr.bf16.mxu0 0
        %653 = vmatmul.mubr.bf16.gmra.mrb[0].mxu0 %v564
        %v654 = vpop.f32.mrb[0].mxu0
        %v655 = vadd.f32 %v557, %v654
        %v656 = vpop.f32.mrb[0].mxu0
        %v657 = vpop.f32.mrb[0].mxu0
        %v658 = vadd.f32 %v557, %v657
        %v659 = vpop.f32.mrb[0].mxu0
        %660 = vmatprep.mubr.bf16.mxu0 0
        %661 = vmatmul.mubr.bf16.gmra.mrb[0].mxu0 %v567
        %v662 = vpop.f32.mrb[0].mxu0
        %v663 = vadd.f32 %v557, %v662
        %v664 = vpop.f32.mrb[0].mxu0
        %v665 = vpop.f32.mrb[0].mxu0
        %v666 = vadd.f32 %v557, %v665
        %v667 = vpop.f32.mrb[0].mxu0
        %668 = vmatprep.mubr.bf16.mxu0 0
        %669 = vmatmul.mubr.bf16.gmra.mrb[0].mxu0 %v570
        %v670 = vpop.f32.mrb[0].mxu0
        %v671 = vadd.f32 %v557, %v670
        %v672 = vpop.f32.mrb[0].mxu0
        %v673 = vpop.f32.mrb[0].mxu0
        %v674 = vadd.f32 %v557, %v673
        %v675 = vpop.f32.mrb[0].mxu0
        %676 = vmatprep.mubr.bf16.mxu0 0
        %677 = vmatmul.mubr.bf16.gmra.mrb[0].mxu0 %v573
        %v678 = vpop.f32.mrb[0].mxu0
        %v679 = vadd.f32 %v557, %v678
        %v680 = vpop.f32.mrb[0].mxu0
        %v681 = vpop.f32.mrb[0].mxu0
        %v682 = vadd.f32 %v557, %v681
        %v683 = vpop.f32.mrb[0].mxu0
        %684 = vmatprep.mubr.bf16.mxu0 0
        %685 = vmatmul.mubr.bf16.gmra.mrb[0].mxu0 %v576
        %v686 = vpop.f32.mrb[0].mxu0
        %v687 = vadd.f32 %v557, %v686
        %v688 = vpop.f32.mrb[0].mxu0
        %v689 = vpop.f32.mrb[0].mxu0
        %v690 = vadd.f32 %v557, %v689
        %v691 = vpop.f32.mrb[0].mxu0
        %692 = vmatprep.mubr.bf16.mxu0 0
        %693 = vmatmul.mubr.bf16.gmra.mrb[0].mxu0 %v579
        %v694 = vpop.f32.mrb[0].mxu0
        %v695 = vadd.f32 %v557, %v694
        %v696 = vpop.f32.mrb[0].mxu0
        %v697 = vpop.f32.mrb[0].mxu0
        %v698 = vadd.f32 %v557, %v697
        %v699 = vpop.f32.mrb[0].mxu0
        %700 = vmatprep.mubr.bf16.mxu0 0
        %701 = vmatmul.mubr.bf16.gmra.mrb[0].mxu0 %v582
        %v702 = vpop.f32.mrb[0].mxu0
        %v703 = vadd.f32 %v557, %v702
        %v704 = vpop.f32.mrb[0].mxu0
        %v705 = vpop.f32.mrb[0].mxu0
        %v706 = vadd.f32 %v557, %v705
        %v707 = vpop.f32.mrb[0].mxu0
        %708 = vmatprep.mubr.bf16.mxu0 0
        %709 = vmatmul.mubr.bf16.gmra.mrb[0].mxu0 %v585
        %v710 = vpop.f32.mrb[0].mxu0
        %v711 = vadd.f32 %v557, %v710
        %v712 = vpop.f32.mrb[0].mxu0
        %v713 = vpop.f32.mrb[0].mxu0
        %v714 = vadd.f32 %v557, %v713
        %v715 = vpop.f32.mrb[0].mxu0
        %716 = vmatprep.mubr.bf16.mxu0 0
        %717 = vmatmul.mubr.bf16.gmra.mrb[0].mxu0 %v588
        %v718 = vpop.f32.mrb[0].mxu0
        %v719 = vadd.f32 %v557, %v718
        %v720 = vpop.f32.mrb[0].mxu0
        %v721 = vpop.f32.mrb[0].mxu0
        %v722 = vadd.f32 %v557, %v721
        %v723 = vpop.f32.mrb[0].mxu0
        %724 = vmatprep.mubr.bf16.mxu0 0
        %725 = vmatmul.mubr.bf16.gmra.mrb[0].mxu0 %v591
        %v726 = vpop.f32.mrb[0].mxu0
        %v727 = vadd.f32 %v557, %v726
        %v728 = vpop.f32.mrb[0].mxu0
        %v729 = vpop.f32.mrb[0].mxu0
        %v730 = vadd.f32 %v557, %v729
        %v731 = vpop.f32.mrb[0].mxu0
        %732 = vmatprep.mubr.bf16.mxu0 0
        %733 = vmatmul.mubr.bf16.gmra.mrb[0].mxu0 %v594
        %v734 = vpop.f32.mrb[0].mxu0
        %v735 = vadd.f32 %v557, %v734
        %v736 = vpop.f32.mrb[0].mxu0
        %v737 = vpop.f32.mrb[0].mxu0
        %v738 = vadd.f32 %v557, %v737
        %v739 = vpop.f32.mrb[0].mxu0
        %740 = vmatprep.mubr.bf16.mxu0 0
        %741 = vmatmul.mubr.bf16.gmra.mrb[0].mxu0 %v597
        %v742 = vpop.f32.mrb[0].mxu0
        %v743 = vadd.f32 %v557, %v742
        %v744 = vpop.f32.mrb[0].mxu0
        %v745 = vpop.f32.mrb[0].mxu0
        %v746 = vadd.f32 %v557, %v745
        %v747 = vpop.f32.mrb[0].mxu0
        %748 = vmatprep.mubr.bf16.mxu0 0
        %749 = vmatmul.mubr.bf16.gmra.mrb[0].mxu0 %v600
        %v750 = vpop.f32.mrb[0].mxu0
        %v751 = vadd.f32 %v557, %v750
        %v752 = vpop.f32.mrb[0].mxu0
        %v753 = vpop.f32.mrb[0].mxu0
        %v754 = vadd.f32 %v557, %v753
        %v755 = vpop.f32.mrb[0].mxu0
        %756 = vmatprep.mubr.bf16.mxu0 0
        %757 = vmatmul.mubr.bf16.gmra.mrb[0].mxu0 %v603
        %v758 = vpop.f32.mrb[0].mxu0
        %v759 = vadd.f32 %v557, %v758
        %v760 = vpop.f32.mrb[0].mxu0
        %v761 = vpop.f32.mrb[0].mxu0
        %v762 = vadd.f32 %v557, %v761
        %v763 = vpop.f32.mrb[0].mxu0
        %764 = vmatprep.mubr.bf16.mxu0 0
        %765 = vmatmul.mubr.bf16.gmra.mrb[0].mxu0 %v606
        %v766 = vpop.f32.mrb[0].mxu0
        %v767 = vadd.f32 %v557, %v766
        %v768 = vpop.f32.mrb[0].mxu0
        %v769 = vpop.f32.mrb[0].mxu0
        %v770 = vadd.f32 %v557, %v769
        %v771 = vpop.f32.mrb[0].mxu0
        %772 = vdwg.mxu0
        %v773 = vmax.f32 %v647, 0.0
        %v774 = vmax.f32 %v650, 0.0
        %v775 = vmax.f32 %v655, 0.0
        %v776 = vmax.f32 %v658, 0.0
        %v777 = vmax.f32 %v663, 0.0
        %v778 = vmax.f32 %v666, 0.0
        %v779 = vmax.f32 %v671, 0.0
        %v780 = vmax.f32 %v674, 0.0
        %v781 = vmax.f32 %v679, 0.0
        %v782 = vmax.f32 %v682, 0.0
        %v783 = vmax.f32 %v687, 0.0
        %v784 = vmax.f32 %v690, 0.0
        %v785 = vmax.f32 %v695, 0.0
        %v786 = vmax.f32 %v698, 0.0
        %v787 = vmax.f32 %v703, 0.0
        %v788 = vmax.f32 %v706, 0.0
        %v789 = vmax.f32 %v711, 0.0
        %v790 = vmax.f32 %v714, 0.0
        %v791 = vmax.f32 %v719, 0.0
        %v792 = vmax.f32 %v722, 0.0
        %v793 = vmax.f32 %v727, 0.0
        %v794 = vmax.f32 %v730, 0.0
        %v795 = vmax.f32 %v735, 0.0
        %v796 = vmax.f32 %v738, 0.0
        %v797 = vmax.f32 %v743, 0.0
        %v798 = vmax.f32 %v746, 0.0
        %v799 = vmax.f32 %v751, 0.0
        %v800 = vmax.f32 %v754, 0.0
        %v801 = vmax.f32 %v759, 0.0
        %v802 = vmax.f32 %v762, 0.0
        %v803 = vmax.f32 %v767, 0.0
        %v804 = vmax.f32 %v770, 0.0
        %v805 = vpack.c.bf16 %v774, %v773
        %v806 = vpack.c.bf16 %v776, %v775
        %v807 = vpack.c.bf16 %v778, %v777
        %v808 = vpack.c.bf16 %v780, %v779
        %v809 = vpack.c.bf16 %v782, %v781
        %v810 = vpack.c.bf16 %v784, %v783
        %v811 = vpack.c.bf16 %v786, %v785
        %v812 = vpack.c.bf16 %v788, %v787
        %v813 = vpack.c.bf16 %v790, %v789
        %v814 = vpack.c.bf16 %v792, %v791
        %v815 = vpack.c.bf16 %v794, %v793
        %v816 = vpack.c.bf16 %v796, %v795
        %v817 = vpack.c.bf16 %v798, %v797
        %v818 = vpack.c.bf16 %v800, %v799
        %v819 = vpack.c.bf16 %v802, %v801
        %v820 = vpack.c.bf16 %v804, %v803
        %vm821 = vcmask 257024
        %822 = vst.msk [vmem:[#allocation2] sm:$0xf] %vm821, 0
        %823 = vst.msk [vmem:[#allocation2 + $0x4] sm:$0xf] %vm821, 0
        %824 = vst.msk [vmem:[#allocation2 + $0x8] sm:$0xf] %vm821, 0
        %825 = vst.msk [vmem:[#allocation2 + $0xc] sm:$0xf] %vm821, 0
        %826 = vst.msk [vmem:[#allocation2 + $0x10] sm:$0xf] %vm821, 0
        %827 = vst.msk [vmem:[#allocation2 + $0x14] sm:$0xf] %vm821, 0
        %828 = vst.msk [vmem:[#allocation2 + $0x18] sm:$0xf] %vm821, 0
        %829 = vst.msk [vmem:[#allocation2 + $0x1c] sm:$0xf] %vm821, 0
        %830 = vst.msk [vmem:[#allocation2 + $0x20] sm:$0xf] %vm821, 0
        %831 = vst.msk [vmem:[#allocation2 + $0x24] sm:$0xf] %vm821, 0
        %832 = vst.msk [vmem:[#allocation2 + $0x28] sm:$0xf] %vm821, 0
        %833 = vst.msk [vmem:[#allocation2 + $0x2c] sm:$0xf] %vm821, 0
        %834 = vst.msk [vmem:[#allocation2 + $0x30] sm:$0xf] %vm821, 0
        %835 = vst.msk [vmem:[#allocation2 + $0x34] sm:$0xf] %vm821, 0
        %836 = vst.msk [vmem:[#allocation2 + $0x38] sm:$0xf] %vm821, 0
        %837 = vst.msk [vmem:[#allocation2 + $0x3c] sm:$0xf] %vm821, 0
        %838 = vst.msk [vmem:[#allocation2 + $0x40] sm:$0xf] %vm821, 0
        %839 = vst.msk [vmem:[#allocation2 + $0x44] sm:$0xf] %vm821, 0
        %840 = vst.msk [vmem:[#allocation2 + $0x48] sm:$0xf] %vm821, 0
        %841 = vst.msk [vmem:[#allocation2 + $0x4c] sm:$0xf] %vm821, 0
        %842 = vst.msk [vmem:[#allocation2 + $0x50] sm:$0xf] %vm821, 0
        %843 = vst.msk [vmem:[#allocation2 + $0x54] sm:$0xf] %vm821, 0
        %844 = vst.msk [vmem:[#allocation2 + $0x58] sm:$0xf] %vm821, 0
        %845 = vst.msk [vmem:[#allocation2 + $0x5c] sm:$0xf] %vm821, 0
        %846 = vst.msk [vmem:[#allocation2 + $0x60] sm:$0xf] %vm821, 0
        %847 = vst.msk [vmem:[#allocation2 + $0x64] sm:$0xf] %vm821, 0
        %848 = vst.msk [vmem:[#allocation2 + $0x68] sm:$0xf] %vm821, 0
        %849 = vst.msk [vmem:[#allocation2 + $0x6c] sm:$0xf] %vm821, 0
        %850 = vst.msk [vmem:[#allocation2 + $0x70] sm:$0xf] %vm821, 0
        %851 = vst.msk [vmem:[#allocation2 + $0x74] sm:$0xf] %vm821, 0
        %852 = vst.msk [vmem:[#allocation2 + $0x78] sm:$0xf] %vm821, 0
        %853 = vst.msk [vmem:[#allocation2 + $0x7c] sm:$0xf] %vm821, 0
        %854 = vst.msk [vmem:[#allocation2 + $0x80] sm:$0xf] %vm821, 0
        %855 = vst.msk [vmem:[#allocation2 + $0x84] sm:$0xf] %vm821, 0
        %856 = vst.msk [vmem:[#allocation2 + $0x88] sm:$0xf] %vm821, 0
        %857 = vst.msk [vmem:[#allocation2 + $0x8c] sm:$0xf] %vm821, 0
        %858 = vst.msk [vmem:[#allocation2 + $0x90] sm:$0xf] %vm821, 0
        %859 = vst.msk [vmem:[#allocation2 + $0x94] sm:$0xf] %vm821, 0
        %860 = vst.msk [vmem:[#allocation2 + $0x98] sm:$0xf] %vm821, 0
        %861 = vst.msk [vmem:[#allocation2 + $0x9c] sm:$0xf] %vm821, 0
        %862 = vst.msk [vmem:[#allocation2 + $0xa0] sm:$0xf] %vm821, 0
        %863 = vst.msk [vmem:[#allocation2 + $0xa4] sm:$0xf] %vm821, 0
        %864 = vst.msk [vmem:[#allocation2 + $0xa8] sm:$0xf] %vm821, 0
        %865 = vst.msk [vmem:[#allocation2 + $0xac] sm:$0xf] %vm821, 0
        %866 = vst.msk [vmem:[#allocation2 + $0xb0] sm:$0xf] %vm821, 0
        %867 = vst.msk [vmem:[#allocation2 + $0xb4] sm:$0xf] %vm821, 0
        %868 = vst.msk [vmem:[#allocation2 + $0xb8] sm:$0xf] %vm821, 0
        %869 = vst.msk [vmem:[#allocation2 + $0xbc] sm:$0xf] %vm821, 0
        %870 = vst.msk [vmem:[#allocation2 + $0xc0] sm:$0xf] %vm821, 0
        %871 = vst.msk [vmem:[#allocation2 + $0xc4] sm:$0xf] %vm821, 0
        %872 = vst.msk [vmem:[#allocation2 + $0xc8] sm:$0xf] %vm821, 0
        %873 = vst.msk [vmem:[#allocation2 + $0xcc] sm:$0xf] %vm821, 0
        %874 = vst.msk [vmem:[#allocation2 + $0xd0] sm:$0xf] %vm821, 0
        %875 = vst.msk [vmem:[#allocation2 + $0xd4] sm:$0xf] %vm821, 0
        %876 = vst.msk [vmem:[#allocation2 + $0xd8] sm:$0xf] %vm821, 0
        %877 = vst.msk [vmem:[#allocation2 + $0xdc] sm:$0xf] %vm821, 0
        %878 = vst.msk [vmem:[#allocation2 + $0xe0] sm:$0xf] %vm821, 0
        %879 = vst.msk [vmem:[#allocation2 + $0xe4] sm:$0xf] %vm821, 0
        %880 = vst.msk [vmem:[#allocation2 + $0xe8] sm:$0xf] %vm821, 0
        %881 = vst.msk [vmem:[#allocation2 + $0xec] sm:$0xf] %vm821, 0
        %882 = vst.msk [vmem:[#allocation2 + $0xf0] sm:$0xf] %vm821, 0
        %883 = vst.msk [vmem:[#allocation2 + $0xf4] sm:$0xf] %vm821, 0
        %884 = vst.msk [vmem:[#allocation2 + $0xf8] sm:$0xf] %vm821, 0
        %885 = vst.msk [vmem:[#allocation2 + $0xfc] sm:$0xf] %vm821, 0
        %886 = vst.msk [vmem:[#allocation2 + $0x100] sm:$0xf] %vm821, 0
        %887 = vst.msk [vmem:[#allocation2 + $0x104] sm:$0xf] %vm821, 0
        %888 = vst.msk [vmem:[#allocation2 + $0x108] sm:$0xf] %vm821, 0
        %889 = vst.msk [vmem:[#allocation2 + $0x10c] sm:$0xf] %vm821, 0
        %890 = vst.msk [vmem:[#allocation2 + $0x110] sm:$0xf] %vm821, 0
        %891 = vst.msk [vmem:[#allocation2 + $0x114] sm:$0xf] %vm821, 0
        %892 = vst.msk [vmem:[#allocation2 + $0x118] sm:$0xf] %vm821, 0
        %893 = vst.msk [vmem:[#allocation2 + $0x11c] sm:$0xf] %vm821, 0
        %894 = vst.msk [vmem:[#allocation2 + $0x120] sm:$0xf] %vm821, 0
        %895 = vst.msk [vmem:[#allocation2 + $0x124] sm:$0xf] %vm821, 0
        %896 = vst.msk [vmem:[#allocation2 + $0x128] sm:$0xf] %vm821, 0
        %897 = vst.msk [vmem:[#allocation2 + $0x12c] sm:$0xf] %vm821, 0
        %898 = vst.msk [vmem:[#allocation2 + $0x130] sm:$0xf] %vm821, 0
        %899 = vst.msk [vmem:[#allocation2 + $0x134] sm:$0xf] %vm821, 0
        %900 = vst.msk [vmem:[#allocation2 + $0x138] sm:$0xf] %vm821, 0
        %901 = vst.msk [vmem:[#allocation2 + $0x13c] sm:$0xf] %vm821, 0
        %902 = vst.msk [vmem:[#allocation2 + $0x140] sm:$0xf] %vm821, 0
        %903 = vst.msk [vmem:[#allocation2 + $0x144] sm:$0xf] %vm821, 0
        %904 = vst.msk [vmem:[#allocation2 + $0x148] sm:$0xf] %vm821, 0
        %905 = vst.msk [vmem:[#allocation2 + $0x14c] sm:$0xf] %vm821, 0
        %906 = vst.msk [vmem:[#allocation2 + $0x150] sm:$0xf] %vm821, 0
        %907 = vst.msk [vmem:[#allocation2 + $0x154] sm:$0xf] %vm821, 0
        %908 = vst.msk [vmem:[#allocation2 + $0x158] sm:$0xf] %vm821, 0
        %909 = vst.msk [vmem:[#allocation2 + $0x15c] sm:$0xf] %vm821, 0
        %910 = vst.msk [vmem:[#allocation2 + $0x160] sm:$0xf] %vm821, 0
        %911 = vst.msk [vmem:[#allocation2 + $0x164] sm:$0xf] %vm821, 0
        %912 = vst.msk [vmem:[#allocation2 + $0x168] sm:$0xf] %vm821, 0
        %913 = vst.msk [vmem:[#allocation2 + $0x16c] sm:$0xf] %vm821, 0
        %914 = vst.msk [vmem:[#allocation2 + $0x170] sm:$0xf] %vm821, 0
        %915 = vst.msk [vmem:[#allocation2 + $0x174] sm:$0xf] %vm821, 0
        %916 = vst.msk [vmem:[#allocation2 + $0x178] sm:$0xf] %vm821, 0
        %917 = vst.msk [vmem:[#allocation2 + $0x17c] sm:$0xf] %vm821, 0
        %918 = vst.msk [vmem:[#allocation2 + $0x180] sm:$0xf] %vm821, 0
        %919 = vst.msk [vmem:[#allocation2 + $0x184] sm:$0xf] %vm821, 0
        %920 = vst.msk [vmem:[#allocation2 + $0x188] sm:$0xf] %vm821, 0
        %921 = vst.msk [vmem:[#allocation2 + $0x18c] sm:$0xf] %vm821, 0
        %922 = vst.msk [vmem:[#allocation2 + $0x190] sm:$0xf] %vm821, 0
        %923 = vst.msk [vmem:[#allocation2 + $0x194] sm:$0xf] %vm821, 0
        %924 = vst.msk [vmem:[#allocation2 + $0x198] sm:$0xf] %vm821, 0
        %925 = vst.msk [vmem:[#allocation2 + $0x19c] sm:$0xf] %vm821, 0
        %926 = vst.msk [vmem:[#allocation2 + $0x1a0] sm:$0xf] %vm821, 0
        %927 = vst.msk [vmem:[#allocation2 + $0x1a4] sm:$0xf] %vm821, 0
        %928 = vst.msk [vmem:[#allocation2 + $0x1a8] sm:$0xf] %vm821, 0
        %929 = vst.msk [vmem:[#allocation2 + $0x1ac] sm:$0xf] %vm821, 0
        %930 = vst.msk [vmem:[#allocation2 + $0x1b0] sm:$0xf] %vm821, 0
        %931 = vst.msk [vmem:[#allocation2 + $0x1b4] sm:$0xf] %vm821, 0
        %932 = vst.msk [vmem:[#allocation2 + $0x1b8] sm:$0xf] %vm821, 0
        %933 = vst.msk [vmem:[#allocation2 + $0x1bc] sm:$0xf] %vm821, 0
        %934 = vst.msk [vmem:[#allocation2 + $0x1c0] sm:$0xf] %vm821, 0
        %935 = vst.msk [vmem:[#allocation2 + $0x1c4] sm:$0xf] %vm821, 0
        %936 = vst.msk [vmem:[#allocation2 + $0x1c8] sm:$0xf] %vm821, 0
        %937 = vst.msk [vmem:[#allocation2 + $0x1cc] sm:$0xf] %vm821, 0
        %938 = vst.msk [vmem:[#allocation2 + $0x1d0] sm:$0xf] %vm821, 0
        %939 = vst.msk [vmem:[#allocation2 + $0x1d4] sm:$0xf] %vm821, 0
        %940 = vst.msk [vmem:[#allocation2 + $0x1d8] sm:$0xf] %vm821, 0
        %941 = vst.msk [vmem:[#allocation2 + $0x1dc] sm:$0xf] %vm821, 0
        %942 = vst.msk [vmem:[#allocation2 + $0x1e0] sm:$0xf] %vm821, 0
        %943 = vst.msk [vmem:[#allocation2 + $0x1e4] sm:$0xf] %vm821, 0
        %944 = vst.msk [vmem:[#allocation2 + $0x1e8] sm:$0xf] %vm821, 0
        %945 = vst.msk [vmem:[#allocation2 + $0x1ec] sm:$0xf] %vm821, 0
        %946 = vst.msk [vmem:[#allocation2 + $0x1f0] sm:$0xf] %vm821, 0
        %947 = vst.msk [vmem:[#allocation2 + $0x1f4] sm:$0xf] %vm821, 0
        %948 = vst.msk [vmem:[#allocation2 + $0x1f8] sm:$0xf] %vm821, 0
        %949 = vst.msk [vmem:[#allocation2 + $0x1fc] sm:$0xf] %vm821, 0
        %950 = vst.msk [vmem:[#allocation2 + $0x200] sm:$0xf] %vm821, 0
        %951 = vst.msk [vmem:[#allocation2 + $0x204] sm:$0xf] %vm821, 0
        %952 = vst.msk [vmem:[#allocation2 + $0x208] sm:$0xf] %vm821, 0
        %953 = vst.msk [vmem:[#allocation2 + $0x20c] sm:$0xf] %vm821, 0
        %954 = vst.msk [vmem:[#allocation2 + $0x210] sm:$0xf] %vm821, 0
        %955 = vst.msk [vmem:[#allocation2 + $0x214] sm:$0xf] %vm821, 0
        %956 = vst.msk [vmem:[#allocation2 + $0x218] sm:$0xf] %vm821, 0
        %957 = vst.msk [vmem:[#allocation2 + $0x21c] sm:$0xf] %vm821, 0
        %958 = vst.msk [vmem:[#allocation2 + $0x220] sm:$0xf] %vm821, 0
        %959 = vst.msk [vmem:[#allocation2 + $0x224] sm:$0xf] %vm821, 0
        %960 = vst.msk [vmem:[#allocation2 + $0x228] sm:$0xf] %vm821, 0
        %961 = vst.msk [vmem:[#allocation2 + $0x22c] sm:$0xf] %vm821, 0
        %962 = vst.msk [vmem:[#allocation2 + $0x230] sm:$0xf] %vm821, 0
        %963 = vst.msk [vmem:[#allocation2 + $0x234] sm:$0xf] %vm821, 0
        %964 = vst.msk [vmem:[#allocation2 + $0x238] sm:$0xf] %vm821, 0
        %965 = vst.msk [vmem:[#allocation2 + $0x23c] sm:$0xf] %vm821, 0
        %966 = vst.msk [vmem:[#allocation2 + $0x240] sm:$0xf] %vm821, 0
        %967 = vst.msk [vmem:[#allocation2 + $0x244] sm:$0xf] %vm821, 0
        %968 = vst.msk [vmem:[#allocation2 + $0x248] sm:$0xf] %vm821, 0
        %969 = vst.msk [vmem:[#allocation2 + $0x24c] sm:$0xf] %vm821, 0
        %970 = vst.msk [vmem:[#allocation2 + $0x250] sm:$0xf] %vm821, 0
        %971 = vst.msk [vmem:[#allocation2 + $0x254] sm:$0xf] %vm821, 0
        %972 = vst.msk [vmem:[#allocation2 + $0x258] sm:$0xf] %vm821, 0
        %973 = vst.msk [vmem:[#allocation2 + $0x25c] sm:$0xf] %vm821, 0
        %974 = vst.msk [vmem:[#allocation2 + $0x260] sm:$0xf] %vm821, 0
        %975 = vst.msk [vmem:[#allocation2 + $0x264] sm:$0xf] %vm821, 0
        %976 = vst.msk [vmem:[#allocation2 + $0x268] sm:$0xf] %vm821, 0
        %977 = vst.msk [vmem:[#allocation2 + $0x26c] sm:$0xf] %vm821, 0
        %978 = vst.msk [vmem:[#allocation2 + $0x270] sm:$0xf] %vm821, 0
        %979 = vst.msk [vmem:[#allocation2 + $0x274] sm:$0xf] %vm821, 0
        %980 = vst.msk [vmem:[#allocation2 + $0x278] sm:$0xf] %vm821, 0
        %981 = vst.msk [vmem:[#allocation2 + $0x27c] sm:$0xf] %vm821, 0
        %982 = vst.msk [vmem:[#allocation2 + $0x280] sm:$0xf] %vm821, 0
        %983 = vst.msk [vmem:[#allocation2 + $0x284] sm:$0xf] %vm821, 0
        %984 = vst.msk [vmem:[#allocation2 + $0x288] sm:$0xf] %vm821, 0
        %985 = vst.msk [vmem:[#allocation2 + $0x28c] sm:$0xf] %vm821, 0
        %986 = vst.msk [vmem:[#allocation2 + $0x290] sm:$0xf] %vm821, 0
        %987 = vst.msk [vmem:[#allocation2 + $0x294] sm:$0xf] %vm821, 0
        %988 = vst.msk [vmem:[#allocation2 + $0x298] sm:$0xf] %vm821, 0
        %989 = vst.msk [vmem:[#allocation2 + $0x29c] sm:$0xf] %vm821, 0
        %990 = vst.msk [vmem:[#allocation2 + $0x2a0] sm:$0xf] %vm821, 0
        %991 = vst.msk [vmem:[#allocation2 + $0x2a4] sm:$0xf] %vm821, 0
        %992 = vst.msk [vmem:[#allocation2 + $0x2a8] sm:$0xf] %vm821, 0
        %993 = vst.msk [vmem:[#allocation2 + $0x2ac] sm:$0xf] %vm821, 0
        %994 = vst.msk [vmem:[#allocation2 + $0x2b0] sm:$0xf] %vm821, 0
        %995 = vst.msk [vmem:[#allocation2 + $0x2b4] sm:$0xf] %vm821, 0
        %996 = vst.msk [vmem:[#allocation2 + $0x2b8] sm:$0xf] %vm821, 0
        %997 = vst.msk [vmem:[#allocation2 + $0x2bc] sm:$0xf] %vm821, 0
        %998 = vst.msk [vmem:[#allocation2 + $0x2c0] sm:$0xf] %vm821, 0
        %999 = vst.msk [vmem:[#allocation2 + $0x2c4] sm:$0xf] %vm821, 0
        %1000 = vst.msk [vmem:[#allocation2 + $0x2c8] sm:$0xf] %vm821, 0
        %1001 = vst.msk [vmem:[#allocation2 + $0x2cc] sm:$0xf] %vm821, 0
        %1002 = vst.msk [vmem:[#allocation2 + $0x2d0] sm:$0xf] %vm821, 0
        %1003 = vst.msk [vmem:[#allocation2 + $0x2d4] sm:$0xf] %vm821, 0
        %1004 = vst.msk [vmem:[#allocation2 + $0x2d8] sm:$0xf] %vm821, 0
        %1005 = vst.msk [vmem:[#allocation2 + $0x2dc] sm:$0xf] %vm821, 0
        %1006 = vst.msk [vmem:[#allocation2 + $0x2e0] sm:$0xf] %vm821, 0
        %1007 = vst.msk [vmem:[#allocation2 + $0x2e4] sm:$0xf] %vm821, 0
        %1008 = vst.msk [vmem:[#allocation2 + $0x2e8] sm:$0xf] %vm821, 0
        %1009 = vst.msk [vmem:[#allocation2 + $0x2ec] sm:$0xf] %vm821, 0
        %1010 = vst.msk [vmem:[#allocation2 + $0x2f0] sm:$0xf] %vm821, 0
        %1011 = vst.msk [vmem:[#allocation2 + $0x2f4] sm:$0xf] %vm821, 0
        %1012 = vst.msk [vmem:[#allocation2 + $0x2f8] sm:$0xf] %vm821, 0
        %1013 = vst.msk [vmem:[#allocation2 + $0x2fc] sm:$0xf] %vm821, 0
        %1014 = vst.msk [vmem:[#allocation2 + $0x300] sm:$0xf] %vm821, 0
        %1015 = vst.msk [vmem:[#allocation2 + $0x304] sm:$0xf] %vm821, 0
        %1016 = vst.msk [vmem:[#allocation2 + $0x308] sm:$0xf] %vm821, 0
        %1017 = vst.msk [vmem:[#allocation2 + $0x30c] sm:$0xf] %vm821, 0
        %1018 = vst.msk [vmem:[#allocation2 + $0x310] sm:$0xf] %vm821, 0
        %1019 = vst.msk [vmem:[#allocation2 + $0x314] sm:$0xf] %vm821, 0
        %1020 = vst.msk [vmem:[#allocation2 + $0x318] sm:$0xf] %vm821, 0
        %1021 = vst.msk [vmem:[#allocation2 + $0x31c] sm:$0xf] %vm821, 0
        %v1038 = vunpack.c.l.b16 %v805
        %v1039 = vunpack.c.h.b16 %v805
        %v1040 = vunpack.c.l.b16 %v806
        %v1041 = vunpack.c.h.b16 %v806
        %v1042 = vunpack.c.l.b16 %v807
        %v1043 = vunpack.c.h.b16 %v807
        %v1044 = vunpack.c.l.b16 %v808
        %v1045 = vunpack.c.h.b16 %v808
        %v1046 = vunpack.c.l.b16 %v809
        %v1047 = vunpack.c.h.b16 %v809
        %v1048 = vunpack.c.l.b16 %v810
        %v1049 = vunpack.c.h.b16 %v810
        %v1050 = vunpack.c.l.b16 %v811
        %v1051 = vunpack.c.h.b16 %v811
        %v1052 = vunpack.c.l.b16 %v812
        %v1053 = vunpack.c.h.b16 %v812
        %v1054 = vunpack.c.l.b16 %v813
        %v1055 = vunpack.c.h.b16 %v813
        %v1056 = vunpack.c.l.b16 %v814
        %v1057 = vunpack.c.h.b16 %v814
        %v1058 = vunpack.c.l.b16 %v815
        %v1059 = vunpack.c.h.b16 %v815
        %v1060 = vunpack.c.l.b16 %v816
        %v1061 = vunpack.c.h.b16 %v816
        %v1062 = vunpack.c.l.b16 %v817
        %v1063 = vunpack.c.h.b16 %v817
        %v1064 = vunpack.c.l.b16 %v818
        %v1065 = vunpack.c.h.b16 %v818
        %v1066 = vunpack.c.l.b16 %v819
        %v1067 = vunpack.c.h.b16 %v819
        %v1068 = vunpack.c.l.b16 %v820
        %v1069 = vunpack.c.h.b16 %v820
        %v1070 = vpack.c.b16 %v1038, %v1038
        %v1071 = vpack.c.b16 %v1039, %v1039
        %v1072 = vpack.c.b16 %v1040, %v1040
        %v1073 = vpack.c.b16 %v1041, %v1041
        %v1074 = vpack.c.b16 %v1042, %v1042
        %v1075 = vpack.c.b16 %v1043, %v1043
        %v1076 = vpack.c.b16 %v1044, %v1044
        %v1077 = vpack.c.b16 %v1045, %v1045
        %v1078 = vpack.c.b16 %v1046, %v1046
        %v1079 = vpack.c.b16 %v1047, %v1047
        %v1080 = vpack.c.b16 %v1048, %v1048
        %v1081 = vpack.c.b16 %v1049, %v1049
        %v1082 = vpack.c.b16 %v1050, %v1050
        %v1083 = vpack.c.b16 %v1051, %v1051
        %v1084 = vpack.c.b16 %v1052, %v1052
        %v1085 = vpack.c.b16 %v1053, %v1053
        %v1086 = vpack.c.b16 %v1054, %v1054
        %v1087 = vpack.c.b16 %v1055, %v1055
        %v1088 = vpack.c.b16 %v1056, %v1056
        %v1089 = vpack.c.b16 %v1057, %v1057
        %v1090 = vpack.c.b16 %v1058, %v1058
        %v1091 = vpack.c.b16 %v1059, %v1059
        %v1092 = vpack.c.b16 %v1060, %v1060
        %v1093 = vpack.c.b16 %v1061, %v1061
        %v1094 = vpack.c.b16 %v1062, %v1062
        %v1095 = vpack.c.b16 %v1063, %v1063
        %v1096 = vpack.c.b16 %v1064, %v1064
        %v1097 = vpack.c.b16 %v1065, %v1065
        %v1098 = vpack.c.b16 %v1066, %v1066
        %v1099 = vpack.c.b16 %v1067, %v1067
        %v1100 = vpack.c.b16 %v1068, %v1068
        %v1101 = vpack.c.b16 %v1069, %v1069
        %vm1102 = vcmask 1041408
        %vm1103 = vcmask 1045508
        %vm1104 = vmor %vm1102, %vm1103
        %v1105 = vrot.slane %v1070, 6
        %v1106 = vrot.slane %v1105, 4
        %v1107 = vrot.slane %v1071, 6
        %v1108 = vsel %vm1104, %v1106, %v1107
        %v1109 = vrot.slane %v1107, 4
        %v1110 = vrot.slane %v1072, 6
        %v1111 = vrot.slane %v1110, 4
        %v1112 = vrot.slane %v1073, 6
        %v1113 = vsel %vm1104, %v1111, %v1112
        %v1114 = vrot.slane %v1112, 4
        %v1115 = vrot.slane %v1074, 6
        %v1116 = vrot.slane %v1115, 4
        %v1117 = vrot.slane %v1075, 6
        %v1118 = vsel %vm1104, %v1116, %v1117
        %v1119 = vrot.slane %v1117, 4
        %v1120 = vrot.slane %v1076, 6
        %v1121 = vrot.slane %v1120, 4
        %v1122 = vrot.slane %v1077, 6
        %v1123 = vsel %vm1104, %v1121, %v1122
        %v1124 = vrot.slane %v1122, 4
        %v1125 = vrot.slane %v1078, 6
        %v1126 = vrot.slane %v1125, 4
        %v1127 = vrot.slane %v1079, 6
        %v1128 = vsel %vm1104, %v1126, %v1127
        %v1129 = vrot.slane %v1127, 4
        %v1130 = vrot.slane %v1080, 6
        %v1131 = vrot.slane %v1130, 4
        %v1132 = vrot.slane %v1081, 6
        %v1133 = vsel %vm1104, %v1131, %v1132
        %v1134 = vrot.slane %v1132, 4
        %v1135 = vrot.slane %v1082, 6
        %v1136 = vrot.slane %v1135, 4
        %v1137 = vrot.slane %v1083, 6
        %v1138 = vsel %vm1104, %v1136, %v1137
        %v1139 = vrot.slane %v1137, 4
        %v1140 = vrot.slane %v1084, 6
        %v1141 = vrot.slane %v1140, 4
        %v1142 = vrot.slane %v1085, 6
        %v1143 = vsel %vm1104, %v1141, %v1142
        %v1144 = vrot.slane %v1142, 4
        %v1145 = vrot.slane %v1086, 6
        %v1146 = vrot.slane %v1145, 4
        %v1147 = vrot.slane %v1087, 6
        %v1148 = vsel %vm1104, %v1146, %v1147
        %v1149 = vrot.slane %v1147, 4
        %v1150 = vrot.slane %v1088, 6
        %v1151 = vrot.slane %v1150, 4
        %v1152 = vrot.slane %v1089, 6
        %v1153 = vsel %vm1104, %v1151, %v1152
        %v1154 = vrot.slane %v1152, 4
        %v1155 = vrot.slane %v1090, 6
        %v1156 = vrot.slane %v1155, 4
        %v1157 = vrot.slane %v1091, 6
        %v1158 = vsel %vm1104, %v1156, %v1157
        %v1159 = vrot.slane %v1157, 4
        %v1160 = vrot.slane %v1092, 6
        %v1161 = vrot.slane %v1160, 4
        %v1162 = vrot.slane %v1093, 6
        %v1163 = vsel %vm1104, %v1161, %v1162
        %v1164 = vrot.slane %v1162, 4
        %v1165 = vrot.slane %v1094, 6
        %v1166 = vrot.slane %v1165, 4
        %v1167 = vrot.slane %v1095, 6
        %v1168 = vsel %vm1104, %v1166, %v1167
        %v1169 = vrot.slane %v1167, 4
        %v1170 = vrot.slane %v1096, 6
        %v1171 = vrot.slane %v1170, 4
        %v1172 = vrot.slane %v1097, 6
        %v1173 = vsel %vm1104, %v1171, %v1172
        %v1174 = vrot.slane %v1172, 4
        %v1175 = vrot.slane %v1098, 6
        %v1176 = vrot.slane %v1175, 4
        %v1177 = vrot.slane %v1099, 6
        %v1178 = vsel %vm1104, %v1176, %v1177
        %v1179 = vrot.slane %v1177, 4
        %v1180 = vrot.slane %v1100, 6
        %v1181 = vrot.slane %v1180, 4
        %v1182 = vrot.slane %v1101, 6
        %v1183 = vsel %vm1104, %v1181, %v1182
        %v1184 = vrot.slane %v1182, 4
        %s1233 = scalar_lea.vmem [#allocation2], 240
        %vm1234 = vcmask 257026
        %1235 = vst.msk [vmem:[%s1233 + $0x4] sm:$0xc] %vm1234, %v1105
        %1236 = vst.msk [vmem:[%s1233 + $0x8] sm:$0xf] %vm821, %v1108
        %vm1237 = vcmask 254976
        %1238 = vst.msk [vmem:[%s1233 + $0xc] sm:$0x3] %vm1237, %v1109
        %1239 = vst.msk [vmem:[%s1233 + $0x18] sm:$0xc] %vm1234, %v1110
        %1240 = vst.msk [vmem:[%s1233 + $0x1c] sm:$0xf] %vm821, %v1113
        %1241 = vst.msk [vmem:[%s1233 + $0x20] sm:$0x3] %vm1237, %v1114
        %1242 = vst.msk [vmem:[%s1233 + $0x2c] sm:$0xc] %vm1234, %v1115
        %1243 = vst.msk [vmem:[%s1233 + $0x30] sm:$0xf] %vm821, %v1118
        %1244 = vst.msk [vmem:[%s1233 + $0x34] sm:$0x3] %vm1237, %v1119
        %1245 = vst.msk [vmem:[%s1233 + $0x40] sm:$0xc] %vm1234, %v1120
        %1246 = vst.msk [vmem:[%s1233 + $0x44] sm:$0xf] %vm821, %v1123
        %1247 = vst.msk [vmem:[%s1233 + $0x48] sm:$0x3] %vm1237, %v1124
        %1248 = vst.msk [vmem:[%s1233 + $0x54] sm:$0xc] %vm1234, %v1125
        %1249 = vst.msk [vmem:[%s1233 + $0x58] sm:$0xf] %vm821, %v1128
        %1250 = vst.msk [vmem:[%s1233 + $0x5c] sm:$0x3] %vm1237, %v1129
        %1251 = vst.msk [vmem:[%s1233 + $0x68] sm:$0xc] %vm1234, %v1130
        %1252 = vst.msk [vmem:[%s1233 + $0x6c] sm:$0xf] %vm821, %v1133
        %1253 = vst.msk [vmem:[%s1233 + $0x70] sm:$0x3] %vm1237, %v1134
        %1254 = vst.msk [vmem:[%s1233 + $0x7c] sm:$0xc] %vm1234, %v1135
        %1255 = vst.msk [vmem:[%s1233 + $0x80] sm:$0xf] %vm821, %v1138
        %1256 = vst.msk [vmem:[%s1233 + $0x84] sm:$0x3] %vm1237, %v1139
        %1257 = vst.msk [vmem:[%s1233 + $0x90] sm:$0xc] %vm1234, %v1140
        %1258 = vst.msk [vmem:[%s1233 + $0x94] sm:$0xf] %vm821, %v1143
        %1259 = vst.msk [vmem:[%s1233 + $0x98] sm:$0x3] %vm1237, %v1144
        %1260 = vst.msk [vmem:[%s1233 + $0xa4] sm:$0xc] %vm1234, %v1145
        %1261 = vst.msk [vmem:[%s1233 + $0xa8] sm:$0xf] %vm821, %v1148
        %1262 = vst.msk [vmem:[%s1233 + $0xac] sm:$0x3] %vm1237, %v1149
        %1263 = vst.msk [vmem:[%s1233 + $0xb8] sm:$0xc] %vm1234, %v1150
        %1264 = vst.msk [vmem:[%s1233 + $0xbc] sm:$0xf] %vm821, %v1153
        %1265 = vst.msk [vmem:[%s1233 + $0xc0] sm:$0x3] %vm1237, %v1154
        %1266 = vst.msk [vmem:[%s1233 + $0xcc] sm:$0xc] %vm1234, %v1155
        %1267 = vst.msk [vmem:[%s1233 + $0xd0] sm:$0xf] %vm821, %v1158
        %1268 = vst.msk [vmem:[%s1233 + $0xd4] sm:$0x3] %vm1237, %v1159
        %1269 = vst.msk [vmem:[%s1233 + $0xe0] sm:$0xc] %vm1234, %v1160
        %1270 = vst.msk [vmem:[%s1233 + $0xe4] sm:$0xf] %vm821, %v1163
        %1271 = vst.msk [vmem:[%s1233 + $0xe8] sm:$0x3] %vm1237, %v1164
        %1272 = vst.msk [vmem:[%s1233 + $0xf4] sm:$0xc] %vm1234, %v1165
        %1273 = vst.msk [vmem:[%s1233 + $0xf8] sm:$0xf] %vm821, %v1168
        %1274 = vst.msk [vmem:[%s1233 + $0xfc] sm:$0x3] %vm1237, %v1169
        %1275 = vst.msk [vmem:[%s1233 + $0x108] sm:$0xc] %vm1234, %v1170
        %1276 = vst.msk [vmem:[%s1233 + $0x10c] sm:$0xf] %vm821, %v1173
        %1277 = vst.msk [vmem:[%s1233 + $0x110] sm:$0x3] %vm1237, %v1174
        %1278 = vst.msk [vmem:[%s1233 + $0x11c] sm:$0xc] %vm1234, %v1175
        %1279 = vst.msk [vmem:[%s1233 + $0x120] sm:$0xf] %vm821, %v1178
        %1280 = vst.msk [vmem:[%s1233 + $0x124] sm:$0x3] %vm1237, %v1179
        %1281 = vst.msk [vmem:[%s1233 + $0x130] sm:$0xc] %vm1234, %v1180
        %1282 = vst.msk [vmem:[%s1233 + $0x134] sm:$0xf] %vm821, %v1183
        %1283 = vst.msk [vmem:[%s1233 + $0x138] sm:$0x3] %vm1237, %v1184
        %s1284 = scalar_lea.vmem [#allocation2], 120
        %v1285 = vld [vmem:[%s1284] sm:$0x8]
        %v1286 = vld [vmem:[%s1284 + $0x4] sm:$0xf]
        %v1287 = vld [vmem:[%s1284 + $0x8] sm:$0x7]
        %v1288 = vld [vmem:[%s1284 + $0x14] sm:$0x8]
        %v1289 = vld [vmem:[%s1284 + $0x18] sm:$0xf]
        %v1290 = vld [vmem:[%s1284 + $0x1c] sm:$0x7]
        %v1291 = vld [vmem:[%s1284 + $0x28] sm:$0x8]
        %v1292 = vld [vmem:[%s1284 + $0x2c] sm:$0xf]
        %v1293 = vld [vmem:[%s1284 + $0x30] sm:$0x7]
        %v1294 = vld [vmem:[%s1284 + $0x3c] sm:$0x8]
        %v1295 = vld [vmem:[%s1284 + $0x40] sm:$0xf]
        %v1296 = vld [vmem:[%s1284 + $0x44] sm:$0x7]
        %v1297 = vld [vmem:[%s1284 + $0x50] sm:$0x8]
        %v1298 = vld [vmem:[%s1284 + $0x54] sm:$0xf]
        %v1299 = vld [vmem:[%s1284 + $0x58] sm:$0x7]
        %v1300 = vld [vmem:[%s1284 + $0x64] sm:$0x8]
        %v1301 = vld [vmem:[%s1284 + $0x68] sm:$0xf]
        %v1302 = vld [vmem:[%s1284 + $0x6c] sm:$0x7]
        %v1303 = vld [vmem:[%s1284 + $0x78] sm:$0x8]
        %v1304 = vld [vmem:[%s1284 + $0x7c] sm:$0xf]
        %v1305 = vld [vmem:[%s1284 + $0x80] sm:$0x7]
        %v1306 = vld [vmem:[%s1284 + $0x8c] sm:$0x8]
        %v1307 = vld [vmem:[%s1284 + $0x90] sm:$0xf]
        %v1308 = vld [vmem:[%s1284 + $0x94] sm:$0x7]
        %v1309 = vld [vmem:[%s1284 + $0xa0] sm:$0x8]
        %v1310 = vld [vmem:[%s1284 + $0xa4] sm:$0xf]
        %v1311 = vld [vmem:[%s1284 + $0xa8] sm:$0x7]
        %v1312 = vld [vmem:[%s1284 + $0xb4] sm:$0x8]
        %v1313 = vld [vmem:[%s1284 + $0xb8] sm:$0xf]
        %v1314 = vld [vmem:[%s1284 + $0xbc] sm:$0x7]
        %v1315 = vld [vmem:[%s1284 + $0xc8] sm:$0x8]
        %v1316 = vld [vmem:[%s1284 + $0xcc] sm:$0xf]
        %v1317 = vld [vmem:[%s1284 + $0xd0] sm:$0x7]
        %v1318 = vld [vmem:[%s1284 + $0xdc] sm:$0x8]
        %v1319 = vld [vmem:[%s1284 + $0xe0] sm:$0xf]
        %v1320 = vld [vmem:[%s1284 + $0xe4] sm:$0x7]
        %v1321 = vld [vmem:[%s1284 + $0xf0] sm:$0x8]
        %v1322 = vld [vmem:[%s1284 + $0xf4] sm:$0xf]
        %v1323 = vld [vmem:[%s1284 + $0xf8] sm:$0x7]
        %v1324 = vld [vmem:[%s1284 + $0x104] sm:$0x8]
        %v1325 = vld [vmem:[%s1284 + $0x108] sm:$0xf]
        %v1326 = vld [vmem:[%s1284 + $0x10c] sm:$0x7]
        %v1327 = vld [vmem:[%s1284 + $0x118] sm:$0x8]
        %v1328 = vld [vmem:[%s1284 + $0x11c] sm:$0xf]
        %v1329 = vld [vmem:[%s1284 + $0x120] sm:$0x7]
        %v1330 = vld [vmem:[%s1284 + $0x12c] sm:$0x8]
        %v1331 = vld [vmem:[%s1284 + $0x130] sm:$0xf]
        %v1332 = vld [vmem:[%s1284 + $0x134] sm:$0x7]
        %vm1381 = vcmask 1040384
        %vm1382 = vcmask 1044484
        %vm1383 = vmor %vm1381, %vm1382
        %v1384 = vrot.slane %v1285, 7
        %v1385 = vrot.slane %v1384, 4
        %v1386 = vrot.slane %v1286, 7
        %v1387 = vsel %vm1383, %v1385, %v1386
        %v1388 = vrot.slane %v1386, 4
        %v1389 = vrot.slane %v1287, 7
        %v1390 = vsel %vm1383, %v1388, %v1389
        %v1391 = vrot.slane %v1288, 7
        %v1392 = vrot.slane %v1391, 4
        %v1393 = vrot.slane %v1289, 7
        %v1394 = vsel %vm1383, %v1392, %v1393
        %v1395 = vrot.slane %v1393, 4
        %v1396 = vrot.slane %v1290, 7
        %v1397 = vsel %vm1383, %v1395, %v1396
        %v1398 = vrot.slane %v1291, 7
        %v1399 = vrot.slane %v1398, 4
        %v1400 = vrot.slane %v1292, 7
        %v1401 = vsel %vm1383, %v1399, %v1400
        %v1402 = vrot.slane %v1400, 4
        %v1403 = vrot.slane %v1293, 7
        %v1404 = vsel %vm1383, %v1402, %v1403
        %v1405 = vrot.slane %v1294, 7
        %v1406 = vrot.slane %v1405, 4
        %v1407 = vrot.slane %v1295, 7
        %v1408 = vsel %vm1383, %v1406, %v1407
        %v1409 = vrot.slane %v1407, 4
        %v1410 = vrot.slane %v1296, 7
        %v1411 = vsel %vm1383, %v1409, %v1410
        %v1412 = vrot.slane %v1297, 7
        %v1413 = vrot.slane %v1412, 4
        %v1414 = vrot.slane %v1298, 7
        %v1415 = vsel %vm1383, %v1413, %v1414
        %v1416 = vrot.slane %v1414, 4
        %v1417 = vrot.slane %v1299, 7
        %v1418 = vsel %vm1383, %v1416, %v1417
        %v1419 = vrot.slane %v1300, 7
        %v1420 = vrot.slane %v1419, 4
        %v1421 = vrot.slane %v1301, 7
        %v1422 = vsel %vm1383, %v1420, %v1421
        %v1423 = vrot.slane %v1421, 4
        %v1424 = vrot.slane %v1302, 7
        %v1425 = vsel %vm1383, %v1423, %v1424
        %v1426 = vrot.slane %v1303, 7
        %v1427 = vrot.slane %v1426, 4
        %v1428 = vrot.slane %v1304, 7
        %v1429 = vsel %vm1383, %v1427, %v1428
        %v1430 = vrot.slane %v1428, 4
        %v1431 = vrot.slane %v1305, 7
        %v1432 = vsel %vm1383, %v1430, %v1431
        %v1433 = vrot.slane %v1306, 7
        %v1434 = vrot.slane %v1433, 4
        %v1435 = vrot.slane %v1307, 7
        %v1436 = vsel %vm1383, %v1434, %v1435
        %v1437 = vrot.slane %v1435, 4
        %v1438 = vrot.slane %v1308, 7
        %v1439 = vsel %vm1383, %v1437, %v1438
        %v1440 = vrot.slane %v1309, 7
        %v1441 = vrot.slane %v1440, 4
        %v1442 = vrot.slane %v1310, 7
        %v1443 = vsel %vm1383, %v1441, %v1442
        %v1444 = vrot.slane %v1442, 4
        %v1445 = vrot.slane %v1311, 7
        %v1446 = vsel %vm1383, %v1444, %v1445
        %v1447 = vrot.slane %v1312, 7
        %v1448 = vrot.slane %v1447, 4
        %v1449 = vrot.slane %v1313, 7
        %v1450 = vsel %vm1383, %v1448, %v1449
        %v1451 = vrot.slane %v1449, 4
        %v1452 = vrot.slane %v1314, 7
        %v1453 = vsel %vm1383, %v1451, %v1452
        %v1454 = vrot.slane %v1315, 7
        %v1455 = vrot.slane %v1454, 4
        %v1456 = vrot.slane %v1316, 7
        %v1457 = vsel %vm1383, %v1455, %v1456
        %v1458 = vrot.slane %v1456, 4
        %v1459 = vrot.slane %v1317, 7
        %v1460 = vsel %vm1383, %v1458, %v1459
        %v1461 = vrot.slane %v1318, 7
        %v1462 = vrot.slane %v1461, 4
        %v1463 = vrot.slane %v1319, 7
        %v1464 = vsel %vm1383, %v1462, %v1463
        %v1465 = vrot.slane %v1463, 4
        %v1466 = vrot.slane %v1320, 7
        %v1467 = vsel %vm1383, %v1465, %v1466
        %v1468 = vrot.slane %v1321, 7
        %v1469 = vrot.slane %v1468, 4
        %v1470 = vrot.slane %v1322, 7
        %v1471 = vsel %vm1383, %v1469, %v1470
        %v1472 = vrot.slane %v1470, 4
        %v1473 = vrot.slane %v1323, 7
        %v1474 = vsel %vm1383, %v1472, %v1473
        %v1475 = vrot.slane %v1324, 7
        %v1476 = vrot.slane %v1475, 4
        %v1477 = vrot.slane %v1325, 7
        %v1478 = vsel %vm1383, %v1476, %v1477
        %v1479 = vrot.slane %v1477, 4
        %v1480 = vrot.slane %v1326, 7
        %v1481 = vsel %vm1383, %v1479, %v1480
        %v1482 = vrot.slane %v1327, 7
        %v1483 = vrot.slane %v1482, 4
        %v1484 = vrot.slane %v1328, 7
        %v1485 = vsel %vm1383, %v1483, %v1484
        %v1486 = vrot.slane %v1484, 4
        %v1487 = vrot.slane %v1329, 7
        %v1488 = vsel %vm1383, %v1486, %v1487
        %v1489 = vrot.slane %v1330, 7
        %v1490 = vrot.slane %v1489, 4
        %v1491 = vrot.slane %v1331, 7
        %v1492 = vsel %vm1383, %v1490, %v1491
        %v1493 = vrot.slane %v1491, 4
        %v1494 = vrot.slane %v1332, 7
        %v1495 = vsel %vm1383, %v1493, %v1494
        %v1496 = vunpack.c.l.b16 %v1387
        %v1497 = vunpack.c.l.b16 %v1390
        %v1498 = vunpack.c.l.b16 %v1394
        %v1499 = vunpack.c.l.b16 %v1397
        %v1500 = vunpack.c.l.b16 %v1401
        %v1501 = vunpack.c.l.b16 %v1404
        %v1502 = vunpack.c.l.b16 %v1408
        %v1503 = vunpack.c.l.b16 %v1411
        %v1504 = vunpack.c.l.b16 %v1415
        %v1505 = vunpack.c.l.b16 %v1418
        %v1506 = vunpack.c.l.b16 %v1422
        %v1507 = vunpack.c.l.b16 %v1425
        %v1508 = vunpack.c.l.b16 %v1429
        %v1509 = vunpack.c.l.b16 %v1432
        %v1510 = vunpack.c.l.b16 %v1436
        %v1511 = vunpack.c.l.b16 %v1439
        %v1512 = vunpack.c.l.b16 %v1443
        %v1513 = vunpack.c.l.b16 %v1446
        %v1514 = vunpack.c.l.b16 %v1450
        %v1515 = vunpack.c.l.b16 %v1453
        %v1516 = vunpack.c.l.b16 %v1457
        %v1517 = vunpack.c.l.b16 %v1460
        %v1518 = vunpack.c.l.b16 %v1464
        %v1519 = vunpack.c.l.b16 %v1467
        %v1520 = vunpack.c.l.b16 %v1471
        %v1521 = vunpack.c.l.b16 %v1474
        %v1522 = vunpack.c.l.b16 %v1478
        %v1523 = vunpack.c.l.b16 %v1481
        %v1524 = vunpack.c.l.b16 %v1485
        %v1525 = vunpack.c.l.b16 %v1488
        %v1526 = vunpack.c.l.b16 %v1492
        %v1527 = vunpack.c.l.b16 %v1495
        %v1528 = vpack.c.b16 %v1497, %v1496
        %v1529 = vpack.c.b16 %v1499, %v1498
        %v1530 = vpack.c.b16 %v1501, %v1500
        %v1531 = vpack.c.b16 %v1503, %v1502
        %v1532 = vpack.c.b16 %v1505, %v1504
        %v1533 = vpack.c.b16 %v1507, %v1506
        %v1534 = vpack.c.b16 %v1509, %v1508
        %v1535 = vpack.c.b16 %v1511, %v1510
        %v1536 = vpack.c.b16 %v1513, %v1512
        %v1537 = vpack.c.b16 %v1515, %v1514
        %v1538 = vpack.c.b16 %v1517, %v1516
        %v1539 = vpack.c.b16 %v1519, %v1518
        %v1540 = vpack.c.b16 %v1521, %v1520
        %v1541 = vpack.c.b16 %v1523, %v1522
        %v1542 = vpack.c.b16 %v1525, %v1524
        %v1543 = vpack.c.b16 %v1527, %v1526
        %vm1560 = vcmask 261120
        %1561 = vst.msk [vmem:[#allocation3] sm:$0xff] %vm1560, %v1528
        %1562 = vst.msk [vmem:[#allocation3 + $0x18] sm:$0xff] %vm1560, %v1529
        %1563 = vst.msk [vmem:[#allocation3 + $0x30] sm:$0xff] %vm1560, %v1530
        %1564 = vst.msk [vmem:[#allocation3 + $0x48] sm:$0xff] %vm1560, %v1531
        %1565 = vst.msk [vmem:[#allocation3 + $0x60] sm:$0xff] %vm1560, %v1532
        %1566 = vst.msk [vmem:[#allocation3 + $0x78] sm:$0xff] %vm1560, %v1533
        %1567 = vst.msk [vmem:[#allocation3 + $0x90] sm:$0xff] %vm1560, %v1534
        %1568 = vst.msk [vmem:[#allocation3 + $0xa8] sm:$0xff] %vm1560, %v1535
        %1569 = vst.msk [vmem:[#allocation3 + $0xc0] sm:$0xff] %vm1560, %v1536
        %1570 = vst.msk [vmem:[#allocation3 + $0xd8] sm:$0xff] %vm1560, %v1537
        %1571 = vst.msk [vmem:[#allocation3 + $0xf0] sm:$0xff] %vm1560, %v1538
        %1572 = vst.msk [vmem:[#allocation3 + $0x108] sm:$0xff] %vm1560, %v1539
        %1573 = vst.msk [vmem:[#allocation3 + $0x120] sm:$0xff] %vm1560, %v1540
        %1574 = vst.msk [vmem:[#allocation3 + $0x138] sm:$0xff] %vm1560, %v1541
        %1575 = vst.msk [vmem:[#allocation3 + $0x150] sm:$0xff] %vm1560, %v1542
        %1576 = vst.msk [vmem:[#allocation3 + $0x168] sm:$0xff] %vm1560, %v1543
        %v1577 = vld [vmem:[%s1284 + $0x4] sm:$0xc]
        %v1578 = vld [vmem:[%s1284 + $0x8] sm:$0xf]
        %v1579 = vld [vmem:[%s1284 + $0xc] sm:$0x3]
        %v1580 = vld [vmem:[%s1284 + $0x18] sm:$0xc]
        %v1581 = vld [vmem:[%s1284 + $0x1c] sm:$0xf]
        %v1582 = vld [vmem:[%s1284 + $0x20] sm:$0x3]
        %v1583 = vld [vmem:[%s1284 + $0x2c] sm:$0xc]
        %v1584 = vld [vmem:[%s1284 + $0x30] sm:$0xf]
        %v1585 = vld [vmem:[%s1284 + $0x34] sm:$0x3]
        %v1586 = vld [vmem:[%s1284 + $0x40] sm:$0xc]
        %v1587 = vld [vmem:[%s1284 + $0x44] sm:$0xf]
        %v1588 = vld [vmem:[%s1284 + $0x48] sm:$0x3]
        %v1589 = vld [vmem:[%s1284 + $0x54] sm:$0xc]
        %v1590 = vld [vmem:[%s1284 + $0x58] sm:$0xf]
        %v1591 = vld [vmem:[%s1284 + $0x5c] sm:$0x3]
        %v1592 = vld [vmem:[%s1284 + $0x68] sm:$0xc]
        %v1593 = vld [vmem:[%s1284 + $0x6c] sm:$0xf]
        %v1594 = vld [vmem:[%s1284 + $0x70] sm:$0x3]
        %v1595 = vld [vmem:[%s1284 + $0x7c] sm:$0xc]
        %v1596 = vld [vmem:[%s1284 + $0x80] sm:$0xf]
        %v1597 = vld [vmem:[%s1284 + $0x84] sm:$0x3]
        %v1598 = vld [vmem:[%s1284 + $0x90] sm:$0xc]
        %v1599 = vld [vmem:[%s1284 + $0x94] sm:$0xf]
        %v1600 = vld [vmem:[%s1284 + $0x98] sm:$0x3]
        %v1601 = vld [vmem:[%s1284 + $0xa4] sm:$0xc]
        %v1602 = vld [vmem:[%s1284 + $0xa8] sm:$0xf]
        %v1603 = vld [vmem:[%s1284 + $0xac] sm:$0x3]
        %v1604 = vld [vmem:[%s1284 + $0xb8] sm:$0xc]
        %v1605 = vld [vmem:[%s1284 + $0xbc] sm:$0xf]
        %v1606 = vld [vmem:[%s1284 + $0xc0] sm:$0x3]
        %v1607 = vld [vmem:[%s1284 + $0xcc] sm:$0xc]
        %v1608 = vld [vmem:[%s1284 + $0xd0] sm:$0xf]
        %v1609 = vld [vmem:[%s1284 + $0xd4] sm:$0x3]
        %v1610 = vld [vmem:[%s1284 + $0xe0] sm:$0xc]
        %v1611 = vld [vmem:[%s1284 + $0xe4] sm:$0xf]
        %v1612 = vld [vmem:[%s1284 + $0xe8] sm:$0x3]
        %v1613 = vld [vmem:[%s1284 + $0xf4] sm:$0xc]
        %v1614 = vld [vmem:[%s1284 + $0xf8] sm:$0xf]
        %v1615 = vld [vmem:[%s1284 + $0xfc] sm:$0x3]
        %v1616 = vld [vmem:[%s1284 + $0x108] sm:$0xc]
        %v1617 = vld [vmem:[%s1284 + $0x10c] sm:$0xf]
        %v1618 = vld [vmem:[%s1284 + $0x110] sm:$0x3]
        %v1619 = vld [vmem:[%s1284 + $0x11c] sm:$0xc]
        %v1620 = vld [vmem:[%s1284 + $0x120] sm:$0xf]
        %v1621 = vld [vmem:[%s1284 + $0x124] sm:$0x3]
        %v1622 = vld [vmem:[%s1284 + $0x130] sm:$0xc]
        %v1623 = vld [vmem:[%s1284 + $0x134] sm:$0xf]
        %v1624 = vld [vmem:[%s1284 + $0x138] sm:$0x3]
        %v1673 = vrot.slane %v1577, 6
        %v1674 = vrot.slane %v1673, 4
        %v1675 = vrot.slane %v1578, 6
        %v1676 = vsel %vm1104, %v1674, %v1675
        %v1677 = vrot.slane %v1675, 4
        %v1678 = vrot.slane %v1579, 6
        %v1679 = vsel %vm1104, %v1677, %v1678
        %v1680 = vrot.slane %v1580, 6
        %v1681 = vrot.slane %v1680, 4
        %v1682 = vrot.slane %v1581, 6
        %v1683 = vsel %vm1104, %v1681, %v1682
        %v1684 = vrot.slane %v1682, 4
        %v1685 = vrot.slane %v1582, 6
        %v1686 = vsel %vm1104, %v1684, %v1685
        %v1687 = vrot.slane %v1583, 6
        %v1688 = vrot.slane %v1687, 4
        %v1689 = vrot.slane %v1584, 6
        %v1690 = vsel %vm1104, %v1688, %v1689
        %v1691 = vrot.slane %v1689, 4
        %v1692 = vrot.slane %v1585, 6
        %v1693 = vsel %vm1104, %v1691, %v1692
        %v1694 = vrot.slane %v1586, 6
        %v1695 = vrot.slane %v1694, 4
        %v1696 = vrot.slane %v1587, 6
        %v1697 = vsel %vm1104, %v1695, %v1696
        %v1698 = vrot.slane %v1696, 4
        %v1699 = vrot.slane %v1588, 6
        %v1700 = vsel %vm1104, %v1698, %v1699
        %v1701 = vrot.slane %v1589, 6
        %v1702 = vrot.slane %v1701, 4
        %v1703 = vrot.slane %v1590, 6
        %v1704 = vsel %vm1104, %v1702, %v1703
        %v1705 = vrot.slane %v1703, 4
        %v1706 = vrot.slane %v1591, 6
        %v1707 = vsel %vm1104, %v1705, %v1706
        %v1708 = vrot.slane %v1592, 6
        %v1709 = vrot.slane %v1708, 4
        %v1710 = vrot.slane %v1593, 6
        %v1711 = vsel %vm1104, %v1709, %v1710
        %v1712 = vrot.slane %v1710, 4
        %v1713 = vrot.slane %v1594, 6
        %v1714 = vsel %vm1104, %v1712, %v1713
        %v1715 = vrot.slane %v1595, 6
        %v1716 = vrot.slane %v1715, 4
        %v1717 = vrot.slane %v1596, 6
        %v1718 = vsel %vm1104, %v1716, %v1717
        %v1719 = vrot.slane %v1717, 4
        %v1720 = vrot.slane %v1597, 6
        %v1721 = vsel %vm1104, %v1719, %v1720
        %v1722 = vrot.slane %v1598, 6
        %v1723 = vrot.slane %v1722, 4
        %v1724 = vrot.slane %v1599, 6
        %v1725 = vsel %vm1104, %v1723, %v1724
        %v1726 = vrot.slane %v1724, 4
        %v1727 = vrot.slane %v1600, 6
        %v1728 = vsel %vm1104, %v1726, %v1727
        %v1729 = vrot.slane %v1601, 6
        %v1730 = vrot.slane %v1729, 4
        %v1731 = vrot.slane %v1602, 6
        %v1732 = vsel %vm1104, %v1730, %v1731
        %v1733 = vrot.slane %v1731, 4
        %v1734 = vrot.slane %v1603, 6
        %v1735 = vsel %vm1104, %v1733, %v1734
        %v1736 = vrot.slane %v1604, 6
        %v1737 = vrot.slane %v1736, 4
        %v1738 = vrot.slane %v1605, 6
        %v1739 = vsel %vm1104, %v1737, %v1738
        %v1740 = vrot.slane %v1738, 4
        %v1741 = vrot.slane %v1606, 6
        %v1742 = vsel %vm1104, %v1740, %v1741
        %v1743 = vrot.slane %v1607, 6
        %v1744 = vrot.slane %v1743, 4
        %v1745 = vrot.slane %v1608, 6
        %v1746 = vsel %vm1104, %v1744, %v1745
        %v1747 = vrot.slane %v1745, 4
        %v1748 = vrot.slane %v1609, 6
        %v1749 = vsel %vm1104, %v1747, %v1748
        %v1750 = vrot.slane %v1610, 6
        %v1751 = vrot.slane %v1750, 4
        %v1752 = vrot.slane %v1611, 6
        %v1753 = vsel %vm1104, %v1751, %v1752
        %v1754 = vrot.slane %v1752, 4
        %v1755 = vrot.slane %v1612, 6
        %v1756 = vsel %vm1104, %v1754, %v1755
        %v1757 = vrot.slane %v1613, 6
        %v1758 = vrot.slane %v1757, 4
        %v1759 = vrot.slane %v1614, 6
        %v1760 = vsel %vm1104, %v1758, %v1759
        %v1761 = vrot.slane %v1759, 4
        %v1762 = vrot.slane %v1615, 6
        %v1763 = vsel %vm1104, %v1761, %v1762
        %v1764 = vrot.slane %v1616, 6
        %v1765 = vrot.slane %v1764, 4
        %v1766 = vrot.slane %v1617, 6
        %v1767 = vsel %vm1104, %v1765, %v1766
        %v1768 = vrot.slane %v1766, 4
        %v1769 = vrot.slane %v1618, 6
        %v1770 = vsel %vm1104, %v1768, %v1769
        %v1771 = vrot.slane %v1619, 6
        %v1772 = vrot.slane %v1771, 4
        %v1773 = vrot.slane %v1620, 6
        %v1774 = vsel %vm1104, %v1772, %v1773
        %v1775 = vrot.slane %v1773, 4
        %v1776 = vrot.slane %v1621, 6
        %v1777 = vsel %vm1104, %v1775, %v1776
        %v1778 = vrot.slane %v1622, 6
        %v1779 = vrot.slane %v1778, 4
        %v1780 = vrot.slane %v1623, 6
        %v1781 = vsel %vm1104, %v1779, %v1780
        %v1782 = vrot.slane %v1780, 4
        %v1783 = vrot.slane %v1624, 6
        %v1784 = vsel %vm1104, %v1782, %v1783
        %v1785 = vunpack.c.l.b16 %v1676
        %v1786 = vunpack.c.l.b16 %v1679
        %v1787 = vunpack.c.l.b16 %v1683
        %v1788 = vunpack.c.l.b16 %v1686
        %v1789 = vunpack.c.l.b16 %v1690
        %v1790 = vunpack.c.l.b16 %v1693
        %v1791 = vunpack.c.l.b16 %v1697
        %v1792 = vunpack.c.l.b16 %v1700
        %v1793 = vunpack.c.l.b16 %v1704
        %v1794 = vunpack.c.l.b16 %v1707
        %v1795 = vunpack.c.l.b16 %v1711
        %v1796 = vunpack.c.l.b16 %v1714
        %v1797 = vunpack.c.l.b16 %v1718
        %v1798 = vunpack.c.l.b16 %v1721
        %v1799 = vunpack.c.l.b16 %v1725
        %v1800 = vunpack.c.l.b16 %v1728
        %v1801 = vunpack.c.l.b16 %v1732
        %v1802 = vunpack.c.l.b16 %v1735
        %v1803 = vunpack.c.l.b16 %v1739
        %v1804 = vunpack.c.l.b16 %v1742
        %v1805 = vunpack.c.l.b16 %v1746
        %v1806 = vunpack.c.l.b16 %v1749
        %v1807 = vunpack.c.l.b16 %v1753
        %v1808 = vunpack.c.l.b16 %v1756
        %v1809 = vunpack.c.l.b16 %v1760
        %v1810 = vunpack.c.l.b16 %v1763
        %v1811 = vunpack.c.l.b16 %v1767
        %v1812 = vunpack.c.l.b16 %v1770
        %v1813 = vunpack.c.l.b16 %v1774
        %v1814 = vunpack.c.l.b16 %v1777
        %v1815 = vunpack.c.l.b16 %v1781
        %v1816 = vunpack.c.l.b16 %v1784
        %v1817 = vpack.c.b16 %v1786, %v1785
        %v1818 = vpack.c.b16 %v1788, %v1787
        %v1819 = vpack.c.b16 %v1790, %v1789
        %v1820 = vpack.c.b16 %v1792, %v1791
        %v1821 = vpack.c.b16 %v1794, %v1793
        %v1822 = vpack.c.b16 %v1796, %v1795
        %v1823 = vpack.c.b16 %v1798, %v1797
        %v1824 = vpack.c.b16 %v1800, %v1799
        %v1825 = vpack.c.b16 %v1802, %v1801
        %v1826 = vpack.c.b16 %v1804, %v1803
        %v1827 = vpack.c.b16 %v1806, %v1805
        %v1828 = vpack.c.b16 %v1808, %v1807
        %v1829 = vpack.c.b16 %v1810, %v1809
        %v1830 = vpack.c.b16 %v1812, %v1811
        %v1831 = vpack.c.b16 %v1814, %v1813
        %v1832 = vpack.c.b16 %v1816, %v1815
        %1833 = vrot.lane.b32.xlu0 %v1817, 32
        %v1834 = vpop.permute.xlu0 %1833
        %1835 = vrot.lane.b32.xlu0 %v1818, 32
        %v1836 = vpop.permute.xlu0 %1835
        %1837 = vrot.lane.b32.xlu0 %v1819, 32
        %v1838 = vpop.permute.xlu0 %1837
        %1839 = vrot.lane.b32.xlu0 %v1820, 32
        %v1840 = vpop.permute.xlu0 %1839
        %1841 = vrot.lane.b32.xlu0 %v1821, 32
        %v1842 = vpop.permute.xlu0 %1841
        %1843 = vrot.lane.b32.xlu0 %v1822, 32
        %v1844 = vpop.permute.xlu0 %1843
        %1845 = vrot.lane.b32.xlu0 %v1823, 32
        %v1846 = vpop.permute.xlu0 %1845
        %1847 = vrot.lane.b32.xlu0 %v1824, 32
        %v1848 = vpop.permute.xlu0 %1847
        %1849 = vrot.lane.b32.xlu0 %v1825, 32
        %v1850 = vpop.permute.xlu0 %1849
        %1851 = vrot.lane.b32.xlu0 %v1826, 32
        %v1852 = vpop.permute.xlu0 %1851
        %1853 = vrot.lane.b32.xlu0 %v1827, 32
        %v1854 = vpop.permute.xlu0 %1853
        %1855 = vrot.lane.b32.xlu0 %v1828, 32
        %v1856 = vpop.permute.xlu0 %1855
        %1857 = vrot.lane.b32.xlu0 %v1829, 32
        %v1858 = vpop.permute.xlu0 %1857
        %1859 = vrot.lane.b32.xlu0 %v1830, 32
        %v1860 = vpop.permute.xlu0 %1859
        %1861 = vrot.lane.b32.xlu0 %v1831, 32
        %v1862 = vpop.permute.xlu0 %1861
        %1863 = vrot.lane.b32.xlu0 %v1832, 32
        %v1864 = vpop.permute.xlu0 %1863
        %vm1881 = vcmask 523520
        %1882 = vst.msk [vmem:[#allocation3] sm:$0xff] %vm1881, %v1834
        %1883 = vst.msk [vmem:[#allocation3 + $0x18] sm:$0xff] %vm1881, %v1836
        %1884 = vst.msk [vmem:[#allocation3 + $0x30] sm:$0xff] %vm1881, %v1838
        %1885 = vst.msk [vmem:[#allocation3 + $0x48] sm:$0xff] %vm1881, %v1840
        %1886 = vst.msk [vmem:[#allocation3 + $0x60] sm:$0xff] %vm1881, %v1842
        %1887 = vst.msk [vmem:[#allocation3 + $0x78] sm:$0xff] %vm1881, %v1844
        %1888 = vst.msk [vmem:[#allocation3 + $0x90] sm:$0xff] %vm1881, %v1846
        %1889 = vst.msk [vmem:[#allocation3 + $0xa8] sm:$0xff] %vm1881, %v1848
        %1890 = vst.msk [vmem:[#allocation3 + $0xc0] sm:$0xff] %vm1881, %v1850
        %1891 = vst.msk [vmem:[#allocation3 + $0xd8] sm:$0xff] %vm1881, %v1852
        %1892 = vst.msk [vmem:[#allocation3 + $0xf0] sm:$0xff] %vm1881, %v1854
        %1893 = vst.msk [vmem:[#allocation3 + $0x108] sm:$0xff] %vm1881, %v1856
        %1894 = vst.msk [vmem:[#allocation3 + $0x120] sm:$0xff] %vm1881, %v1858
        %1895 = vst.msk [vmem:[#allocation3 + $0x138] sm:$0xff] %vm1881, %v1860
        %1896 = vst.msk [vmem:[#allocation3 + $0x150] sm:$0xff] %vm1881, %v1862
        %1897 = vst.msk [vmem:[#allocation3 + $0x168] sm:$0xff] %vm1881, %v1864
        %v1898 = vld [vmem:[%s1284 + $0x8] sm:$0xe]
        %v1899 = vld [vmem:[%s1284 + $0xc] sm:$0xf]
        %v1900 = vld [vmem:[%s1284 + $0x10] sm:$0x1]
        %v1901 = vld [vmem:[%s1284 + $0x1c] sm:$0xe]
        %v1902 = vld [vmem:[%s1284 + $0x20] sm:$0xf]
        %v1903 = vld [vmem:[%s1284 + $0x24] sm:$0x1]
        %v1904 = vld [vmem:[%s1284 + $0x30] sm:$0xe]
        %v1905 = vld [vmem:[%s1284 + $0x34] sm:$0xf]
        %v1906 = vld [vmem:[%s1284 + $0x38] sm:$0x1]
        %v1907 = vld [vmem:[%s1284 + $0x44] sm:$0xe]
        %v1908 = vld [vmem:[%s1284 + $0x48] sm:$0xf]
        %v1909 = vld [vmem:[%s1284 + $0x4c] sm:$0x1]
        %v1910 = vld [vmem:[%s1284 + $0x58] sm:$0xe]
        %v1911 = vld [vmem:[%s1284 + $0x5c] sm:$0xf]
        %v1912 = vld [vmem:[%s1284 + $0x60] sm:$0x1]
        %v1913 = vld [vmem:[%s1284 + $0x6c] sm:$0xe]
        %v1914 = vld [vmem:[%s1284 + $0x70] sm:$0xf]
        %v1915 = vld [vmem:[%s1284 + $0x74] sm:$0x1]
        %v1916 = vld [vmem:[%s1284 + $0x80] sm:$0xe]
        %v1917 = vld [vmem:[%s1284 + $0x84] sm:$0xf]
        %v1918 = vld [vmem:[%s1284 + $0x88] sm:$0x1]
        %v1919 = vld [vmem:[%s1284 + $0x94] sm:$0xe]
        %v1920 = vld [vmem:[%s1284 + $0x98] sm:$0xf]
        %v1921 = vld [vmem:[%s1284 + $0x9c] sm:$0x1]
        %v1922 = vld [vmem:[%s1284 + $0xa8] sm:$0xe]
        %v1923 = vld [vmem:[%s1284 + $0xac] sm:$0xf]
        %v1924 = vld [vmem:[%s1284 + $0xb0] sm:$0x1]
        %v1925 = vld [vmem:[%s1284 + $0xbc] sm:$0xe]
        %v1926 = vld [vmem:[%s1284 + $0xc0] sm:$0xf]
        %v1927 = vld [vmem:[%s1284 + $0xc4] sm:$0x1]
        %v1928 = vld [vmem:[%s1284 + $0xd0] sm:$0xe]
        %v1929 = vld [vmem:[%s1284 + $0xd4] sm:$0xf]
        %v1930 = vld [vmem:[%s1284 + $0xd8] sm:$0x1]
        %v1931 = vld [vmem:[%s1284 + $0xe4] sm:$0xe]
        %v1932 = vld [vmem:[%s1284 + $0xe8] sm:$0xf]
        %v1933 = vld [vmem:[%s1284 + $0xec] sm:$0x1]
        %v1934 = vld [vmem:[%s1284 + $0xf8] sm:$0xe]
        %v1935 = vld [vmem:[%s1284 + $0xfc] sm:$0xf]
        %v1936 = vld [vmem:[%s1284 + $0x100] sm:$0x1]
        %v1937 = vld [vmem:[%s1284 + $0x10c] sm:$0xe]
        %v1938 = vld [vmem:[%s1284 + $0x110] sm:$0xf]
        %v1939 = vld [vmem:[%s1284 + $0x114] sm:$0x1]
        %v1940 = vld [vmem:[%s1284 + $0x120] sm:$0xe]
        %v1941 = vld [vmem:[%s1284 + $0x124] sm:$0xf]
        %v1942 = vld [vmem:[%s1284 + $0x128] sm:$0x1]
        %v1943 = vld [vmem:[%s1284 + $0x134] sm:$0xe]
        %v1944 = vld [vmem:[%s1284 + $0x138] sm:$0xf]
        %v1945 = vld [vmem:[%s1284 + $0x13c] sm:$0x1]
        %vm1994 = vcmask 1042432
        %vm1995 = vcmask 1046532
        %vm1996 = vmor %vm1994, %vm1995
        %v1997 = vrot.slane %v1898, 5
        %v1998 = vrot.slane %v1997, 4
        %v1999 = vrot.slane %v1899, 5
        %v2000 = vsel %vm1996, %v1998, %v1999
        %v2001 = vrot.slane %v1999, 4
        %v2002 = vrot.slane %v1900, 5
        %v2003 = vsel %vm1996, %v2001, %v2002
        %v2004 = vrot.slane %v1901, 5
        %v2005 = vrot.slane %v2004, 4
        %v2006 = vrot.slane %v1902, 5
        %v2007 = vsel %vm1996, %v2005, %v2006
        %v2008 = vrot.slane %v2006, 4
        %v2009 = vrot.slane %v1903, 5
        %v2010 = vsel %vm1996, %v2008, %v2009
        %v2011 = vrot.slane %v1904, 5
        %v2012 = vrot.slane %v2011, 4
        %v2013 = vrot.slane %v1905, 5
        %v2014 = vsel %vm1996, %v2012, %v2013
        %v2015 = vrot.slane %v2013, 4
        %v2016 = vrot.slane %v1906, 5
        %v2017 = vsel %vm1996, %v2015, %v2016
        %v2018 = vrot.slane %v1907, 5
        %v2019 = vrot.slane %v2018, 4
        %v2020 = vrot.slane %v1908, 5
        %v2021 = vsel %vm1996, %v2019, %v2020
        %v2022 = vrot.slane %v2020, 4
        %v2023 = vrot.slane %v1909, 5
        %v2024 = vsel %vm1996, %v2022, %v2023
        %v2025 = vrot.slane %v1910, 5
        %v2026 = vrot.slane %v2025, 4
        %v2027 = vrot.slane %v1911, 5
        %v2028 = vsel %vm1996, %v2026, %v2027
        %v2029 = vrot.slane %v2027, 4
        %v2030 = vrot.slane %v1912, 5
        %v2031 = vsel %vm1996, %v2029, %v2030
        %v2032 = vrot.slane %v1913, 5
        %v2033 = vrot.slane %v2032, 4
        %v2034 = vrot.slane %v1914, 5
        %v2035 = vsel %vm1996, %v2033, %v2034
        %v2036 = vrot.slane %v2034, 4
        %v2037 = vrot.slane %v1915, 5
        %v2038 = vsel %vm1996, %v2036, %v2037
        %v2039 = vrot.slane %v1916, 5
        %v2040 = vrot.slane %v2039, 4
        %v2041 = vrot.slane %v1917, 5
        %v2042 = vsel %vm1996, %v2040, %v2041
        %v2043 = vrot.slane %v2041, 4
        %v2044 = vrot.slane %v1918, 5
        %v2045 = vsel %vm1996, %v2043, %v2044
        %v2046 = vrot.slane %v1919, 5
        %v2047 = vrot.slane %v2046, 4
        %v2048 = vrot.slane %v1920, 5
        %v2049 = vsel %vm1996, %v2047, %v2048
        %v2050 = vrot.slane %v2048, 4
        %v2051 = vrot.slane %v1921, 5
        %v2052 = vsel %vm1996, %v2050, %v2051
        %v2053 = vrot.slane %v1922, 5
        %v2054 = vrot.slane %v2053, 4
        %v2055 = vrot.slane %v1923, 5
        %v2056 = vsel %vm1996, %v2054, %v2055
        %v2057 = vrot.slane %v2055, 4
        %v2058 = vrot.slane %v1924, 5
        %v2059 = vsel %vm1996, %v2057, %v2058
        %v2060 = vrot.slane %v1925, 5
        %v2061 = vrot.slane %v2060, 4
        %v2062 = vrot.slane %v1926, 5
        %v2063 = vsel %vm1996, %v2061, %v2062
        %v2064 = vrot.slane %v2062, 4
        %v2065 = vrot.slane %v1927, 5
        %v2066 = vsel %vm1996, %v2064, %v2065
        %v2067 = vrot.slane %v1928, 5
        %v2068 = vrot.slane %v2067, 4
        %v2069 = vrot.slane %v1929, 5
        %v2070 = vsel %vm1996, %v2068, %v2069
        %v2071 = vrot.slane %v2069, 4
        %v2072 = vrot.slane %v1930, 5
        %v2073 = vsel %vm1996, %v2071, %v2072
        %v2074 = vrot.slane %v1931, 5
        %v2075 = vrot.slane %v2074, 4
        %v2076 = vrot.slane %v1932, 5
        %v2077 = vsel %vm1996, %v2075, %v2076
        %v2078 = vrot.slane %v2076, 4
        %v2079 = vrot.slane %v1933, 5
        %v2080 = vsel %vm1996, %v2078, %v2079
        %v2081 = vrot.slane %v1934, 5
        %v2082 = vrot.slane %v2081, 4
        %v2083 = vrot.slane %v1935, 5
        %v2084 = vsel %vm1996, %v2082, %v2083
        %v2085 = vrot.slane %v2083, 4
        %v2086 = vrot.slane %v1936, 5
        %v2087 = vsel %vm1996, %v2085, %v2086
        %v2088 = vrot.slane %v1937, 5
        %v2089 = vrot.slane %v2088, 4
        %v2090 = vrot.slane %v1938, 5
        %v2091 = vsel %vm1996, %v2089, %v2090
        %v2092 = vrot.slane %v2090, 4
        %v2093 = vrot.slane %v1939, 5
        %v2094 = vsel %vm1996, %v2092, %v2093
        %v2095 = vrot.slane %v1940, 5
        %v2096 = vrot.slane %v2095, 4
        %v2097 = vrot.slane %v1941, 5
        %v2098 = vsel %vm1996, %v2096, %v2097
        %v2099 = vrot.slane %v2097, 4
        %v2100 = vrot.slane %v1942, 5
        %v2101 = vsel %vm1996, %v2099, %v2100
        %v2102 = vrot.slane %v1943, 5
        %v2103 = vrot.slane %v2102, 4
        %v2104 = vrot.slane %v1944, 5
        %v2105 = vsel %vm1996, %v2103, %v2104
        %v2106 = vrot.slane %v2104, 4
        %v2107 = vrot.slane %v1945, 5
        %v2108 = vsel %vm1996, %v2106, %v2107
        %v2109 = vunpack.c.l.b16 %v2000
        %v2110 = vunpack.c.l.b16 %v2003
        %v2111 = vunpack.c.l.b16 %v2007
        %v2112 = vunpack.c.l.b16 %v2010
        %v2113 = vunpack.c.l.b16 %v2014
        %v2114 = vunpack.c.l.b16 %v2017
        %v2115 = vunpack.c.l.b16 %v2021
        %v2116 = vunpack.c.l.b16 %v2024
        %v2117 = vunpack.c.l.b16 %v2028
        %v2118 = vunpack.c.l.b16 %v2031
        %v2119 = vunpack.c.l.b16 %v2035
        %v2120 = vunpack.c.l.b16 %v2038
        %v2121 = vunpack.c.l.b16 %v2042
        %v2122 = vunpack.c.l.b16 %v2045
        %v2123 = vunpack.c.l.b16 %v2049
        %v2124 = vunpack.c.l.b16 %v2052
        %v2125 = vunpack.c.l.b16 %v2056
        %v2126 = vunpack.c.l.b16 %v2059
        %v2127 = vunpack.c.l.b16 %v2063
        %v2128 = vunpack.c.l.b16 %v2066
        %v2129 = vunpack.c.l.b16 %v2070
        %v2130 = vunpack.c.l.b16 %v2073
        %v2131 = vunpack.c.l.b16 %v2077
        %v2132 = vunpack.c.l.b16 %v2080
        %v2133 = vunpack.c.l.b16 %v2084
        %v2134 = vunpack.c.l.b16 %v2087
        %v2135 = vunpack.c.l.b16 %v2091
        %v2136 = vunpack.c.l.b16 %v2094
        %v2137 = vunpack.c.l.b16 %v2098
        %v2138 = vunpack.c.l.b16 %v2101
        %v2139 = vunpack.c.l.b16 %v2105
        %v2140 = vunpack.c.l.b16 %v2108
        %v2141 = vpack.c.b16 %v2110, %v2109
        %v2142 = vpack.c.b16 %v2112, %v2111
        %v2143 = vpack.c.b16 %v2114, %v2113
        %v2144 = vpack.c.b16 %v2116, %v2115
        %v2145 = vpack.c.b16 %v2118, %v2117
        %v2146 = vpack.c.b16 %v2120, %v2119
        %v2147 = vpack.c.b16 %v2122, %v2121
        %v2148 = vpack.c.b16 %v2124, %v2123
        %v2149 = vpack.c.b16 %v2126, %v2125
        %v2150 = vpack.c.b16 %v2128, %v2127
        %v2151 = vpack.c.b16 %v2130, %v2129
        %v2152 = vpack.c.b16 %v2132, %v2131
        %v2153 = vpack.c.b16 %v2134, %v2133
        %v2154 = vpack.c.b16 %v2136, %v2135
        %v2155 = vpack.c.b16 %v2138, %v2137
        %v2156 = vpack.c.b16 %v2140, %v2139
        %2157 = vrot.lane.b32.xlu0 %v2141, 64
        %v2158 = vpop.permute.xlu0 %2157
        %2159 = vrot.lane.b32.xlu0 %v2142, 64
        %v2160 = vpop.permute.xlu0 %2159
        %2161 = vrot.lane.b32.xlu0 %v2143, 64
        %v2162 = vpop.permute.xlu0 %2161
        %2163 = vrot.lane.b32.xlu0 %v2144, 64
        %v2164 = vpop.permute.xlu0 %2163
        %2165 = vrot.lane.b32.xlu0 %v2145, 64
        %v2166 = vpop.permute.xlu0 %2165
        %2167 = vrot.lane.b32.xlu0 %v2146, 64
        %v2168 = vpop.permute.xlu0 %2167
        %2169 = vrot.lane.b32.xlu0 %v2147, 64
        %v2170 = vpop.permute.xlu0 %2169
        %2171 = vrot.lane.b32.xlu0 %v2148, 64
        %v2172 = vpop.permute.xlu0 %2171
        %2173 = vrot.lane.b32.xlu0 %v2149, 64
        %v2174 = vpop.permute.xlu0 %2173
        %2175 = vrot.lane.b32.xlu0 %v2150, 64
        %v2176 = vpop.permute.xlu0 %2175
        %2177 = vrot.lane.b32.xlu0 %v2151, 64
        %v2178 = vpop.permute.xlu0 %2177
        %2179 = vrot.lane.b32.xlu0 %v2152, 64
        %v2180 = vpop.permute.xlu0 %2179
        %2181 = vrot.lane.b32.xlu0 %v2153, 64
        %v2182 = vpop.permute.xlu0 %2181
        %2183 = vrot.lane.b32.xlu0 %v2154, 64
        %v2184 = vpop.permute.xlu0 %2183
        %2185 = vrot.lane.b32.xlu0 %v2155, 64
        %v2186 = vpop.permute.xlu0 %2185
        %2187 = vrot.lane.b32.xlu0 %v2156, 64
        %v2188 = vpop.permute.xlu0 %2187
        %vm2205 = vcmask 785920
        %2206 = vst.msk [vmem:[#allocation3] sm:$0xff] %vm2205, %v2158
        %2207 = vst.msk [vmem:[#allocation3 + $0x18] sm:$0xff] %vm2205, %v2160
        %2208 = vst.msk [vmem:[#allocation3 + $0x30] sm:$0xff] %vm2205, %v2162
        %2209 = vst.msk [vmem:[#allocation3 + $0x48] sm:$0xff] %vm2205, %v2164
        %2210 = vst.msk [vmem:[#allocation3 + $0x60] sm:$0xff] %vm2205, %v2166
        %2211 = vst.msk [vmem:[#allocation3 + $0x78] sm:$0xff] %vm2205, %v2168
        %2212 = vst.msk [vmem:[#allocation3 + $0x90] sm:$0xff] %vm2205, %v2170
        %2213 = vst.msk [vmem:[#allocation3 + $0xa8] sm:$0xff] %vm2205, %v2172
        %2214 = vst.msk [vmem:[#allocation3 + $0xc0] sm:$0xff] %vm2205, %v2174
        %2215 = vst.msk [vmem:[#allocation3 + $0xd8] sm:$0xff] %vm2205, %v2176
        %2216 = vst.msk [vmem:[#allocation3 + $0xf0] sm:$0xff] %vm2205, %v2178
        %2217 = vst.msk [vmem:[#allocation3 + $0x108] sm:$0xff] %vm2205, %v2180
        %2218 = vst.msk [vmem:[#allocation3 + $0x120] sm:$0xff] %vm2205, %v2182
        %2219 = vst.msk [vmem:[#allocation3 + $0x138] sm:$0xff] %vm2205, %v2184
        %2220 = vst.msk [vmem:[#allocation3 + $0x150] sm:$0xff] %vm2205, %v2186
        %2221 = vst.msk [vmem:[#allocation3 + $0x168] sm:$0xff] %vm2205, %v2188
        %v2222 = vld [vmem:[%s1233] sm:$0x8]
        %v2223 = vld [vmem:[%s1233 + $0x4] sm:$0xf]
        %v2224 = vld [vmem:[%s1233 + $0x8] sm:$0x7]
        %v2225 = vld [vmem:[%s1233 + $0x14] sm:$0x8]
        %v2226 = vld [vmem:[%s1233 + $0x18] sm:$0xf]
        %v2227 = vld [vmem:[%s1233 + $0x1c] sm:$0x7]
        %v2228 = vld [vmem:[%s1233 + $0x28] sm:$0x8]
        %v2229 = vld [vmem:[%s1233 + $0x2c] sm:$0xf]
        %v2230 = vld [vmem:[%s1233 + $0x30] sm:$0x7]
        %v2231 = vld [vmem:[%s1233 + $0x3c] sm:$0x8]
        %v2232 = vld [vmem:[%s1233 + $0x40] sm:$0xf]
        %v2233 = vld [vmem:[%s1233 + $0x44] sm:$0x7]
        %v2234 = vld [vmem:[%s1233 + $0x50] sm:$0x8]
        %v2235 = vld [vmem:[%s1233 + $0x54] sm:$0xf]
        %v2236 = vld [vmem:[%s1233 + $0x58] sm:$0x7]
        %v2237 = vld [vmem:[%s1233 + $0x64] sm:$0x8]
        %v2238 = vld [vmem:[%s1233 + $0x68] sm:$0xf]
        %v2239 = vld [vmem:[%s1233 + $0x6c] sm:$0x7]
        %v2240 = vld [vmem:[%s1233 + $0x78] sm:$0x8]
        %v2241 = vld [vmem:[%s1233 + $0x7c] sm:$0xf]
        %v2242 = vld [vmem:[%s1233 + $0x80] sm:$0x7]
        %v2243 = vld [vmem:[%s1233 + $0x8c] sm:$0x8]
        %v2244 = vld [vmem:[%s1233 + $0x90] sm:$0xf]
        %v2245 = vld [vmem:[%s1233 + $0x94] sm:$0x7]
        %v2246 = vld [vmem:[%s1233 + $0xa0] sm:$0x8]
        %v2247 = vld [vmem:[%s1233 + $0xa4] sm:$0xf]
        %v2248 = vld [vmem:[%s1233 + $0xa8] sm:$0x7]
        %v2249 = vld [vmem:[%s1233 + $0xb4] sm:$0x8]
        %v2250 = vld [vmem:[%s1233 + $0xb8] sm:$0xf]
        %v2251 = vld [vmem:[%s1233 + $0xbc] sm:$0x7]
        %v2252 = vld [vmem:[%s1233 + $0xc8] sm:$0x8]
        %v2253 = vld [vmem:[%s1233 + $0xcc] sm:$0xf]
        %v2254 = vld [vmem:[%s1233 + $0xd0] sm:$0x7]
        %v2255 = vld [vmem:[%s1233 + $0xdc] sm:$0x8]
        %v2256 = vld [vmem:[%s1233 + $0xe0] sm:$0xf]
        %v2257 = vld [vmem:[%s1233 + $0xe4] sm:$0x7]
        %v2258 = vld [vmem:[%s1233 + $0xf0] sm:$0x8]
        %v2259 = vld [vmem:[%s1233 + $0xf4] sm:$0xf]
        %v2260 = vld [vmem:[%s1233 + $0xf8] sm:$0x7]
        %v2261 = vld [vmem:[%s1233 + $0x104] sm:$0x8]
        %v2262 = vld [vmem:[%s1233 + $0x108] sm:$0xf]
        %v2263 = vld [vmem:[%s1233 + $0x10c] sm:$0x7]
        %v2264 = vld [vmem:[%s1233 + $0x118] sm:$0x8]
        %v2265 = vld [vmem:[%s1233 + $0x11c] sm:$0xf]
        %v2266 = vld [vmem:[%s1233 + $0x120] sm:$0x7]
        %v2267 = vld [vmem:[%s1233 + $0x12c] sm:$0x8]
        %v2268 = vld [vmem:[%s1233 + $0x130] sm:$0xf]
        %v2269 = vld [vmem:[%s1233 + $0x134] sm:$0x7]
        %v2318 = vrot.slane %v2222, 7
        %v2319 = vrot.slane %v2318, 4
        %v2320 = vrot.slane %v2223, 7
        %v2321 = vsel %vm1383, %v2319, %v2320
        %v2322 = vrot.slane %v2320, 4
        %v2323 = vrot.slane %v2224, 7
        %v2324 = vsel %vm1383, %v2322, %v2323
        %v2325 = vrot.slane %v2225, 7
        %v2326 = vrot.slane %v2325, 4
        %v2327 = vrot.slane %v2226, 7
        %v2328 = vsel %vm1383, %v2326, %v2327
        %v2329 = vrot.slane %v2327, 4
        %v2330 = vrot.slane %v2227, 7
        %v2331 = vsel %vm1383, %v2329, %v2330
        %v2332 = vrot.slane %v2228, 7
        %v2333 = vrot.slane %v2332, 4
        %v2334 = vrot.slane %v2229, 7
        %v2335 = vsel %vm1383, %v2333, %v2334
        %v2336 = vrot.slane %v2334, 4
        %v2337 = vrot.slane %v2230, 7
        %v2338 = vsel %vm1383, %v2336, %v2337
        %v2339 = vrot.slane %v2231, 7
        %v2340 = vrot.slane %v2339, 4
        %v2341 = vrot.slane %v2232, 7
        %v2342 = vsel %vm1383, %v2340, %v2341
        %v2343 = vrot.slane %v2341, 4
        %v2344 = vrot.slane %v2233, 7
        %v2345 = vsel %vm1383, %v2343, %v2344
        %v2346 = vrot.slane %v2234, 7
        %v2347 = vrot.slane %v2346, 4
        %v2348 = vrot.slane %v2235, 7
        %v2349 = vsel %vm1383, %v2347, %v2348
        %v2350 = vrot.slane %v2348, 4
        %v2351 = vrot.slane %v2236, 7
        %v2352 = vsel %vm1383, %v2350, %v2351
        %v2353 = vrot.slane %v2237, 7
        %v2354 = vrot.slane %v2353, 4
        %v2355 = vrot.slane %v2238, 7
        %v2356 = vsel %vm1383, %v2354, %v2355
        %v2357 = vrot.slane %v2355, 4
        %v2358 = vrot.slane %v2239, 7
        %v2359 = vsel %vm1383, %v2357, %v2358
        %v2360 = vrot.slane %v2240, 7
        %v2361 = vrot.slane %v2360, 4
        %v2362 = vrot.slane %v2241, 7
        %v2363 = vsel %vm1383, %v2361, %v2362
        %v2364 = vrot.slane %v2362, 4
        %v2365 = vrot.slane %v2242, 7
        %v2366 = vsel %vm1383, %v2364, %v2365
        %v2367 = vrot.slane %v2243, 7
        %v2368 = vrot.slane %v2367, 4
        %v2369 = vrot.slane %v2244, 7
        %v2370 = vsel %vm1383, %v2368, %v2369
        %v2371 = vrot.slane %v2369, 4
        %v2372 = vrot.slane %v2245, 7
        %v2373 = vsel %vm1383, %v2371, %v2372
        %v2374 = vrot.slane %v2246, 7
        %v2375 = vrot.slane %v2374, 4
        %v2376 = vrot.slane %v2247, 7
        %v2377 = vsel %vm1383, %v2375, %v2376
        %v2378 = vrot.slane %v2376, 4
        %v2379 = vrot.slane %v2248, 7
        %v2380 = vsel %vm1383, %v2378, %v2379
        %v2381 = vrot.slane %v2249, 7
        %v2382 = vrot.slane %v2381, 4
        %v2383 = vrot.slane %v2250, 7
        %v2384 = vsel %vm1383, %v2382, %v2383
        %v2385 = vrot.slane %v2383, 4
        %v2386 = vrot.slane %v2251, 7
        %v2387 = vsel %vm1383, %v2385, %v2386
        %v2388 = vrot.slane %v2252, 7
        %v2389 = vrot.slane %v2388, 4
        %v2390 = vrot.slane %v2253, 7
        %v2391 = vsel %vm1383, %v2389, %v2390
        %v2392 = vrot.slane %v2390, 4
        %v2393 = vrot.slane %v2254, 7
        %v2394 = vsel %vm1383, %v2392, %v2393
        %v2395 = vrot.slane %v2255, 7
        %v2396 = vrot.slane %v2395, 4
        %v2397 = vrot.slane %v2256, 7
        %v2398 = vsel %vm1383, %v2396, %v2397
        %v2399 = vrot.slane %v2397, 4
        %v2400 = vrot.slane %v2257, 7
        %v2401 = vsel %vm1383, %v2399, %v2400
        %v2402 = vrot.slane %v2258, 7
        %v2403 = vrot.slane %v2402, 4
        %v2404 = vrot.slane %v2259, 7
        %v2405 = vsel %vm1383, %v2403, %v2404
        %v2406 = vrot.slane %v2404, 4
        %v2407 = vrot.slane %v2260, 7
        %v2408 = vsel %vm1383, %v2406, %v2407
        %v2409 = vrot.slane %v2261, 7
        %v2410 = vrot.slane %v2409, 4
        %v2411 = vrot.slane %v2262, 7
        %v2412 = vsel %vm1383, %v2410, %v2411
        %v2413 = vrot.slane %v2411, 4
        %v2414 = vrot.slane %v2263, 7
        %v2415 = vsel %vm1383, %v2413, %v2414
        %v2416 = vrot.slane %v2264, 7
        %v2417 = vrot.slane %v2416, 4
        %v2418 = vrot.slane %v2265, 7
        %v2419 = vsel %vm1383, %v2417, %v2418
        %v2420 = vrot.slane %v2418, 4
        %v2421 = vrot.slane %v2266, 7
        %v2422 = vsel %vm1383, %v2420, %v2421
        %v2423 = vrot.slane %v2267, 7
        %v2424 = vrot.slane %v2423, 4
        %v2425 = vrot.slane %v2268, 7
        %v2426 = vsel %vm1383, %v2424, %v2425
        %v2427 = vrot.slane %v2425, 4
        %v2428 = vrot.slane %v2269, 7
        %v2429 = vsel %vm1383, %v2427, %v2428
        %v2430 = vunpack.c.l.b16 %v2321
        %v2431 = vunpack.c.l.b16 %v2324
        %v2432 = vunpack.c.l.b16 %v2328
        %v2433 = vunpack.c.l.b16 %v2331
        %v2434 = vunpack.c.l.b16 %v2335
        %v2435 = vunpack.c.l.b16 %v2338
        %v2436 = vunpack.c.l.b16 %v2342
        %v2437 = vunpack.c.l.b16 %v2345
        %v2438 = vunpack.c.l.b16 %v2349
        %v2439 = vunpack.c.l.b16 %v2352
        %v2440 = vunpack.c.l.b16 %v2356
        %v2441 = vunpack.c.l.b16 %v2359
        %v2442 = vunpack.c.l.b16 %v2363
        %v2443 = vunpack.c.l.b16 %v2366
        %v2444 = vunpack.c.l.b16 %v2370
        %v2445 = vunpack.c.l.b16 %v2373
        %v2446 = vunpack.c.l.b16 %v2377
        %v2447 = vunpack.c.l.b16 %v2380
        %v2448 = vunpack.c.l.b16 %v2384
        %v2449 = vunpack.c.l.b16 %v2387
        %v2450 = vunpack.c.l.b16 %v2391
        %v2451 = vunpack.c.l.b16 %v2394
        %v2452 = vunpack.c.l.b16 %v2398
        %v2453 = vunpack.c.l.b16 %v2401
        %v2454 = vunpack.c.l.b16 %v2405
        %v2455 = vunpack.c.l.b16 %v2408
        %v2456 = vunpack.c.l.b16 %v2412
        %v2457 = vunpack.c.l.b16 %v2415
        %v2458 = vunpack.c.l.b16 %v2419
        %v2459 = vunpack.c.l.b16 %v2422
        %v2460 = vunpack.c.l.b16 %v2426
        %v2461 = vunpack.c.l.b16 %v2429
        %v2462 = vpack.c.b16 %v2431, %v2430
        %v2463 = vpack.c.b16 %v2433, %v2432
        %v2464 = vpack.c.b16 %v2435, %v2434
        %v2465 = vpack.c.b16 %v2437, %v2436
        %v2466 = vpack.c.b16 %v2439, %v2438
        %v2467 = vpack.c.b16 %v2441, %v2440
        %v2468 = vpack.c.b16 %v2443, %v2442
        %v2469 = vpack.c.b16 %v2445, %v2444
        %v2470 = vpack.c.b16 %v2447, %v2446
        %v2471 = vpack.c.b16 %v2449, %v2448
        %v2472 = vpack.c.b16 %v2451, %v2450
        %v2473 = vpack.c.b16 %v2453, %v2452
        %v2474 = vpack.c.b16 %v2455, %v2454
        %v2475 = vpack.c.b16 %v2457, %v2456
        %v2476 = vpack.c.b16 %v2459, %v2458
        %v2477 = vpack.c.b16 %v2461, %v2460
        %2478 = vrot.lane.b32.xlu0 %v2462, 96
        %v2479 = vpop.permute.xlu0 %2478
        %2480 = vrot.lane.b32.xlu0 %v2463, 96
        %v2481 = vpop.permute.xlu0 %2480
        %2482 = vrot.lane.b32.xlu0 %v2464, 96
        %v2483 = vpop.permute.xlu0 %2482
        %2484 = vrot.lane.b32.xlu0 %v2465, 96
        %v2485 = vpop.permute.xlu0 %2484
        %2486 = vrot.lane.b32.xlu0 %v2466, 96
        %v2487 = vpop.permute.xlu0 %2486
        %2488 = vrot.lane.b32.xlu0 %v2467, 96
        %v2489 = vpop.permute.xlu0 %2488
        %2490 = vrot.lane.b32.xlu0 %v2468, 96
        %v2491 = vpop.permute.xlu0 %2490
        %2492 = vrot.lane.b32.xlu0 %v2469, 96
        %v2493 = vpop.permute.xlu0 %2492
        %2494 = vrot.lane.b32.xlu0 %v2470, 96
        %v2495 = vpop.permute.xlu0 %2494
        %2496 = vrot.lane.b32.xlu0 %v2471, 96
        %v2497 = vpop.permute.xlu0 %2496
        %2498 = vrot.lane.b32.xlu0 %v2472, 96
        %v2499 = vpop.permute.xlu0 %2498
        %2500 = vrot.lane.b32.xlu0 %v2473, 96
        %v2501 = vpop.permute.xlu0 %2500
        %2502 = vrot.lane.b32.xlu0 %v2474, 96
        %v2503 = vpop.permute.xlu0 %2502
        %2504 = vrot.lane.b32.xlu0 %v2475, 96
        %v2505 = vpop.permute.xlu0 %2504
        %2506 = vrot.lane.b32.xlu0 %v2476, 96
        %v2507 = vpop.permute.xlu0 %2506
        %2508 = vrot.lane.b32.xlu0 %v2477, 96
        %v2509 = vpop.permute.xlu0 %2508
        %vm2526 = vcmask 1048320
        %2527 = vst.msk [vmem:[#allocation3] sm:$0xff] %vm2526, %v2479
        %2528 = vst.msk [vmem:[#allocation3 + $0x18] sm:$0xff] %vm2526, %v2481
        %2529 = vst.msk [vmem:[#allocation3 + $0x30] sm:$0xff] %vm2526, %v2483
        %2530 = vst.msk [vmem:[#allocation3 + $0x48] sm:$0xff] %vm2526, %v2485
        %2531 = vst.msk [vmem:[#allocation3 + $0x60] sm:$0xff] %vm2526, %v2487
        %2532 = vst.msk [vmem:[#allocation3 + $0x78] sm:$0xff] %vm2526, %v2489
        %2533 = vst.msk [vmem:[#allocation3 + $0x90] sm:$0xff] %vm2526, %v2491
        %2534 = vst.msk [vmem:[#allocation3 + $0xa8] sm:$0xff] %vm2526, %v2493
        %2535 = vst.msk [vmem:[#allocation3 + $0xc0] sm:$0xff] %vm2526, %v2495
        %2536 = vst.msk [vmem:[#allocation3 + $0xd8] sm:$0xff] %vm2526, %v2497
        %2537 = vst.msk [vmem:[#allocation3 + $0xf0] sm:$0xff] %vm2526, %v2499
        %2538 = vst.msk [vmem:[#allocation3 + $0x108] sm:$0xff] %vm2526, %v2501
        %2539 = vst.msk [vmem:[#allocation3 + $0x120] sm:$0xff] %vm2526, %v2503
        %2540 = vst.msk [vmem:[#allocation3 + $0x138] sm:$0xff] %vm2526, %v2505
        %2541 = vst.msk [vmem:[#allocation3 + $0x150] sm:$0xff] %vm2526, %v2507
        %2542 = vst.msk [vmem:[#allocation3 + $0x168] sm:$0xff] %vm2526, %v2509
        %v2543 = vld [vmem:[%s1233 + $0x4] sm:$0xc]
        %v2544 = vld [vmem:[%s1233 + $0x8] sm:$0xf]
        %v2545 = vld [vmem:[%s1233 + $0xc] sm:$0x3]
        %v2546 = vld [vmem:[%s1233 + $0x18] sm:$0xc]
        %v2547 = vld [vmem:[%s1233 + $0x1c] sm:$0xf]
        %v2548 = vld [vmem:[%s1233 + $0x20] sm:$0x3]
        %v2549 = vld [vmem:[%s1233 + $0x2c] sm:$0xc]
        %v2550 = vld [vmem:[%s1233 + $0x30] sm:$0xf]
        %v2551 = vld [vmem:[%s1233 + $0x34] sm:$0x3]
        %v2552 = vld [vmem:[%s1233 + $0x40] sm:$0xc]
        %v2553 = vld [vmem:[%s1233 + $0x44] sm:$0xf]
        %v2554 = vld [vmem:[%s1233 + $0x48] sm:$0x3]
        %v2555 = vld [vmem:[%s1233 + $0x54] sm:$0xc]
        %v2556 = vld [vmem:[%s1233 + $0x58] sm:$0xf]
        %v2557 = vld [vmem:[%s1233 + $0x5c] sm:$0x3]
        %v2558 = vld [vmem:[%s1233 + $0x68] sm:$0xc]
        %v2559 = vld [vmem:[%s1233 + $0x6c] sm:$0xf]
        %v2560 = vld [vmem:[%s1233 + $0x70] sm:$0x3]
        %v2561 = vld [vmem:[%s1233 + $0x7c] sm:$0xc]
        %v2562 = vld [vmem:[%s1233 + $0x80] sm:$0xf]
        %v2563 = vld [vmem:[%s1233 + $0x84] sm:$0x3]
        %v2564 = vld [vmem:[%s1233 + $0x90] sm:$0xc]
        %v2565 = vld [vmem:[%s1233 + $0x94] sm:$0xf]
        %v2566 = vld [vmem:[%s1233 + $0x98] sm:$0x3]
        %v2567 = vld [vmem:[%s1233 + $0xa4] sm:$0xc]
        %v2568 = vld [vmem:[%s1233 + $0xa8] sm:$0xf]
        %v2569 = vld [vmem:[%s1233 + $0xac] sm:$0x3]
        %v2570 = vld [vmem:[%s1233 + $0xb8] sm:$0xc]
        %v2571 = vld [vmem:[%s1233 + $0xbc] sm:$0xf]
        %v2572 = vld [vmem:[%s1233 + $0xc0] sm:$0x3]
        %v2573 = vld [vmem:[%s1233 + $0xcc] sm:$0xc]
        %v2574 = vld [vmem:[%s1233 + $0xd0] sm:$0xf]
        %v2575 = vld [vmem:[%s1233 + $0xd4] sm:$0x3]
        %v2576 = vld [vmem:[%s1233 + $0xe0] sm:$0xc]
        %v2577 = vld [vmem:[%s1233 + $0xe4] sm:$0xf]
        %v2578 = vld [vmem:[%s1233 + $0xe8] sm:$0x3]
        %v2579 = vld [vmem:[%s1233 + $0xf4] sm:$0xc]
        %v2580 = vld [vmem:[%s1233 + $0xf8] sm:$0xf]
        %v2581 = vld [vmem:[%s1233 + $0xfc] sm:$0x3]
        %v2582 = vld [vmem:[%s1233 + $0x108] sm:$0xc]
        %v2583 = vld [vmem:[%s1233 + $0x10c] sm:$0xf]
        %v2584 = vld [vmem:[%s1233 + $0x110] sm:$0x3]
        %v2585 = vld [vmem:[%s1233 + $0x11c] sm:$0xc]
        %v2586 = vld [vmem:[%s1233 + $0x120] sm:$0xf]
        %v2587 = vld [vmem:[%s1233 + $0x124] sm:$0x3]
        %v2588 = vld [vmem:[%s1233 + $0x130] sm:$0xc]
        %v2589 = vld [vmem:[%s1233 + $0x134] sm:$0xf]
        %v2590 = vld [vmem:[%s1233 + $0x138] sm:$0x3]
        %v2639 = vrot.slane %v2543, 6
        %v2640 = vrot.slane %v2639, 4
        %v2641 = vrot.slane %v2544, 6
        %v2642 = vsel %vm1104, %v2640, %v2641
        %v2643 = vrot.slane %v2641, 4
        %v2644 = vrot.slane %v2545, 6
        %v2645 = vsel %vm1104, %v2643, %v2644
        %v2646 = vrot.slane %v2546, 6
        %v2647 = vrot.slane %v2646, 4
        %v2648 = vrot.slane %v2547, 6
        %v2649 = vsel %vm1104, %v2647, %v2648
        %v2650 = vrot.slane %v2648, 4
        %v2651 = vrot.slane %v2548, 6
        %v2652 = vsel %vm1104, %v2650, %v2651
        %v2653 = vrot.slane %v2549, 6
        %v2654 = vrot.slane %v2653, 4
        %v2655 = vrot.slane %v2550, 6
        %v2656 = vsel %vm1104, %v2654, %v2655
        %v2657 = vrot.slane %v2655, 4
        %v2658 = vrot.slane %v2551, 6
        %v2659 = vsel %vm1104, %v2657, %v2658
        %v2660 = vrot.slane %v2552, 6
        %v2661 = vrot.slane %v2660, 4
        %v2662 = vrot.slane %v2553, 6
        %v2663 = vsel %vm1104, %v2661, %v2662
        %v2664 = vrot.slane %v2662, 4
        %v2665 = vrot.slane %v2554, 6
        %v2666 = vsel %vm1104, %v2664, %v2665
        %v2667 = vrot.slane %v2555, 6
        %v2668 = vrot.slane %v2667, 4
        %v2669 = vrot.slane %v2556, 6
        %v2670 = vsel %vm1104, %v2668, %v2669
        %v2671 = vrot.slane %v2669, 4
        %v2672 = vrot.slane %v2557, 6
        %v2673 = vsel %vm1104, %v2671, %v2672
        %v2674 = vrot.slane %v2558, 6
        %v2675 = vrot.slane %v2674, 4
        %v2676 = vrot.slane %v2559, 6
        %v2677 = vsel %vm1104, %v2675, %v2676
        %v2678 = vrot.slane %v2676, 4
        %v2679 = vrot.slane %v2560, 6
        %v2680 = vsel %vm1104, %v2678, %v2679
        %v2681 = vrot.slane %v2561, 6
        %v2682 = vrot.slane %v2681, 4
        %v2683 = vrot.slane %v2562, 6
        %v2684 = vsel %vm1104, %v2682, %v2683
        %v2685 = vrot.slane %v2683, 4
        %v2686 = vrot.slane %v2563, 6
        %v2687 = vsel %vm1104, %v2685, %v2686
        %v2688 = vrot.slane %v2564, 6
        %v2689 = vrot.slane %v2688, 4
        %v2690 = vrot.slane %v2565, 6
        %v2691 = vsel %vm1104, %v2689, %v2690
        %v2692 = vrot.slane %v2690, 4
        %v2693 = vrot.slane %v2566, 6
        %v2694 = vsel %vm1104, %v2692, %v2693
        %v2695 = vrot.slane %v2567, 6
        %v2696 = vrot.slane %v2695, 4
        %v2697 = vrot.slane %v2568, 6
        %v2698 = vsel %vm1104, %v2696, %v2697
        %v2699 = vrot.slane %v2697, 4
        %v2700 = vrot.slane %v2569, 6
        %v2701 = vsel %vm1104, %v2699, %v2700
        %v2702 = vrot.slane %v2570, 6
        %v2703 = vrot.slane %v2702, 4
        %v2704 = vrot.slane %v2571, 6
        %v2705 = vsel %vm1104, %v2703, %v2704
        %v2706 = vrot.slane %v2704, 4
        %v2707 = vrot.slane %v2572, 6
        %v2708 = vsel %vm1104, %v2706, %v2707
        %v2709 = vrot.slane %v2573, 6
        %v2710 = vrot.slane %v2709, 4
        %v2711 = vrot.slane %v2574, 6
        %v2712 = vsel %vm1104, %v2710, %v2711
        %v2713 = vrot.slane %v2711, 4
        %v2714 = vrot.slane %v2575, 6
        %v2715 = vsel %vm1104, %v2713, %v2714
        %v2716 = vrot.slane %v2576, 6
        %v2717 = vrot.slane %v2716, 4
        %v2718 = vrot.slane %v2577, 6
        %v2719 = vsel %vm1104, %v2717, %v2718
        %v2720 = vrot.slane %v2718, 4
        %v2721 = vrot.slane %v2578, 6
        %v2722 = vsel %vm1104, %v2720, %v2721
        %v2723 = vrot.slane %v2579, 6
        %v2724 = vrot.slane %v2723, 4
        %v2725 = vrot.slane %v2580, 6
        %v2726 = vsel %vm1104, %v2724, %v2725
        %v2727 = vrot.slane %v2725, 4
        %v2728 = vrot.slane %v2581, 6
        %v2729 = vsel %vm1104, %v2727, %v2728
        %v2730 = vrot.slane %v2582, 6
        %v2731 = vrot.slane %v2730, 4
        %v2732 = vrot.slane %v2583, 6
        %v2733 = vsel %vm1104, %v2731, %v2732
        %v2734 = vrot.slane %v2732, 4
        %v2735 = vrot.slane %v2584, 6
        %v2736 = vsel %vm1104, %v2734, %v2735
        %v2737 = vrot.slane %v2585, 6
        %v2738 = vrot.slane %v2737, 4
        %v2739 = vrot.slane %v2586, 6
        %v2740 = vsel %vm1104, %v2738, %v2739
        %v2741 = vrot.slane %v2739, 4
        %v2742 = vrot.slane %v2587, 6
        %v2743 = vsel %vm1104, %v2741, %v2742
        %v2744 = vrot.slane %v2588, 6
        %v2745 = vrot.slane %v2744, 4
        %v2746 = vrot.slane %v2589, 6
        %v2747 = vsel %vm1104, %v2745, %v2746
        %v2748 = vrot.slane %v2746, 4
        %v2749 = vrot.slane %v2590, 6
        %v2750 = vsel %vm1104, %v2748, %v2749
        %v2751 = vunpack.c.l.b16 %v2642
        %v2752 = vunpack.c.l.b16 %v2645
        %v2753 = vunpack.c.l.b16 %v2649
        %v2754 = vunpack.c.l.b16 %v2652
        %v2755 = vunpack.c.l.b16 %v2656
        %v2756 = vunpack.c.l.b16 %v2659
        %v2757 = vunpack.c.l.b16 %v2663
        %v2758 = vunpack.c.l.b16 %v2666
        %v2759 = vunpack.c.l.b16 %v2670
        %v2760 = vunpack.c.l.b16 %v2673
        %v2761 = vunpack.c.l.b16 %v2677
        %v2762 = vunpack.c.l.b16 %v2680
        %v2763 = vunpack.c.l.b16 %v2684
        %v2764 = vunpack.c.l.b16 %v2687
        %v2765 = vunpack.c.l.b16 %v2691
        %v2766 = vunpack.c.l.b16 %v2694
        %v2767 = vunpack.c.l.b16 %v2698
        %v2768 = vunpack.c.l.b16 %v2701
        %v2769 = vunpack.c.l.b16 %v2705
        %v2770 = vunpack.c.l.b16 %v2708
        %v2771 = vunpack.c.l.b16 %v2712
        %v2772 = vunpack.c.l.b16 %v2715
        %v2773 = vunpack.c.l.b16 %v2719
        %v2774 = vunpack.c.l.b16 %v2722
        %v2775 = vunpack.c.l.b16 %v2726
        %v2776 = vunpack.c.l.b16 %v2729
        %v2777 = vunpack.c.l.b16 %v2733
        %v2778 = vunpack.c.l.b16 %v2736
        %v2779 = vunpack.c.l.b16 %v2740
        %v2780 = vunpack.c.l.b16 %v2743
        %v2781 = vunpack.c.l.b16 %v2747
        %v2782 = vunpack.c.l.b16 %v2750
        %v2783 = vpack.c.b16 %v2752, %v2751
        %v2784 = vpack.c.b16 %v2754, %v2753
        %v2785 = vpack.c.b16 %v2756, %v2755
        %v2786 = vpack.c.b16 %v2758, %v2757
        %v2787 = vpack.c.b16 %v2760, %v2759
        %v2788 = vpack.c.b16 %v2762, %v2761
        %v2789 = vpack.c.b16 %v2764, %v2763
        %v2790 = vpack.c.b16 %v2766, %v2765
        %v2791 = vpack.c.b16 %v2768, %v2767
        %v2792 = vpack.c.b16 %v2770, %v2769
        %v2793 = vpack.c.b16 %v2772, %v2771
        %v2794 = vpack.c.b16 %v2774, %v2773
        %v2795 = vpack.c.b16 %v2776, %v2775
        %v2796 = vpack.c.b16 %v2778, %v2777
        %v2797 = vpack.c.b16 %v2780, %v2779
        %v2798 = vpack.c.b16 %v2782, %v2781
        %2815 = vst.msk [vmem:[#allocation3 + $0x8] sm:$0xff] %vm1560, %v2783
        %2816 = vst.msk [vmem:[#allocation3 + $0x20] sm:$0xff] %vm1560, %v2784
        %2817 = vst.msk [vmem:[#allocation3 + $0x38] sm:$0xff] %vm1560, %v2785
        %2818 = vst.msk [vmem:[#allocation3 + $0x50] sm:$0xff] %vm1560, %v2786
        %2819 = vst.msk [vmem:[#allocation3 + $0x68] sm:$0xff] %vm1560, %v2787
        %2820 = vst.msk [vmem:[#allocation3 + $0x80] sm:$0xff] %vm1560, %v2788
        %2821 = vst.msk [vmem:[#allocation3 + $0x98] sm:$0xff] %vm1560, %v2789
        %2822 = vst.msk [vmem:[#allocation3 + $0xb0] sm:$0xff] %vm1560, %v2790
        %2823 = vst.msk [vmem:[#allocation3 + $0xc8] sm:$0xff] %vm1560, %v2791
        %2824 = vst.msk [vmem:[#allocation3 + $0xe0] sm:$0xff] %vm1560, %v2792
        %2825 = vst.msk [vmem:[#allocation3 + $0xf8] sm:$0xff] %vm1560, %v2793
        %2826 = vst.msk [vmem:[#allocation3 + $0x110] sm:$0xff] %vm1560, %v2794
        %2827 = vst.msk [vmem:[#allocation3 + $0x128] sm:$0xff] %vm1560, %v2795
        %2828 = vst.msk [vmem:[#allocation3 + $0x140] sm:$0xff] %vm1560, %v2796
        %2829 = vst.msk [vmem:[#allocation3 + $0x158] sm:$0xff] %vm1560, %v2797
        %2830 = vst.msk [vmem:[#allocation3 + $0x170] sm:$0xff] %vm1560, %v2798
        %v2831 = vld [vmem:[%s1233 + $0x8] sm:$0xe]
        %v2832 = vld [vmem:[%s1233 + $0xc] sm:$0xf]
        %v2833 = vld [vmem:[%s1233 + $0x10] sm:$0x1]
        %v2834 = vld [vmem:[%s1233 + $0x1c] sm:$0xe]
        %v2835 = vld [vmem:[%s1233 + $0x20] sm:$0xf]
        %v2836 = vld [vmem:[%s1233 + $0x24] sm:$0x1]
        %v2837 = vld [vmem:[%s1233 + $0x30] sm:$0xe]
        %v2838 = vld [vmem:[%s1233 + $0x34] sm:$0xf]
        %v2839 = vld [vmem:[%s1233 + $0x38] sm:$0x1]
        %v2840 = vld [vmem:[%s1233 + $0x44] sm:$0xe]
        %v2841 = vld [vmem:[%s1233 + $0x48] sm:$0xf]
        %v2842 = vld [vmem:[%s1233 + $0x4c] sm:$0x1]
        %v2843 = vld [vmem:[%s1233 + $0x58] sm:$0xe]
        %v2844 = vld [vmem:[%s1233 + $0x5c] sm:$0xf]
        %v2845 = vld [vmem:[%s1233 + $0x60] sm:$0x1]
        %v2846 = vld [vmem:[%s1233 + $0x6c] sm:$0xe]
        %v2847 = vld [vmem:[%s1233 + $0x70] sm:$0xf]
        %v2848 = vld [vmem:[%s1233 + $0x74] sm:$0x1]
        %v2849 = vld [vmem:[%s1233 + $0x80] sm:$0xe]
        %v2850 = vld [vmem:[%s1233 + $0x84] sm:$0xf]
        %v2851 = vld [vmem:[%s1233 + $0x88] sm:$0x1]
        %v2852 = vld [vmem:[%s1233 + $0x94] sm:$0xe]
        %v2853 = vld [vmem:[%s1233 + $0x98] sm:$0xf]
        %v2854 = vld [vmem:[%s1233 + $0x9c] sm:$0x1]
        %v2855 = vld [vmem:[%s1233 + $0xa8] sm:$0xe]
        %v2856 = vld [vmem:[%s1233 + $0xac] sm:$0xf]
        %v2857 = vld [vmem:[%s1233 + $0xb0] sm:$0x1]
        %v2858 = vld [vmem:[%s1233 + $0xbc] sm:$0xe]
        %v2859 = vld [vmem:[%s1233 + $0xc0] sm:$0xf]
        %v2860 = vld [vmem:[%s1233 + $0xc4] sm:$0x1]
        %v2861 = vld [vmem:[%s1233 + $0xd0] sm:$0xe]
        %v2862 = vld [vmem:[%s1233 + $0xd4] sm:$0xf]
        %v2863 = vld [vmem:[%s1233 + $0xd8] sm:$0x1]
        %v2864 = vld [vmem:[%s1233 + $0xe4] sm:$0xe]
        %v2865 = vld [vmem:[%s1233 + $0xe8] sm:$0xf]
        %v2866 = vld [vmem:[%s1233 + $0xec] sm:$0x1]
        %v2867 = vld [vmem:[%s1233 + $0xf8] sm:$0xe]
        %v2868 = vld [vmem:[%s1233 + $0xfc] sm:$0xf]
        %v2869 = vld [vmem:[%s1233 + $0x100] sm:$0x1]
        %v2870 = vld [vmem:[%s1233 + $0x10c] sm:$0xe]
        %v2871 = vld [vmem:[%s1233 + $0x110] sm:$0xf]
        %v2872 = vld [vmem:[%s1233 + $0x114] sm:$0x1]
        %v2873 = vld [vmem:[%s1233 + $0x120] sm:$0xe]
        %v2874 = vld [vmem:[%s1233 + $0x124] sm:$0xf]
        %v2875 = vld [vmem:[%s1233 + $0x128] sm:$0x1]
        %v2876 = vld [vmem:[%s1233 + $0x134] sm:$0xe]
        %v2877 = vld [vmem:[%s1233 + $0x138] sm:$0xf]
        %v2878 = vld [vmem:[%s1233 + $0x13c] sm:$0x1]
        %v2927 = vrot.slane %v2831, 5
        %v2928 = vrot.slane %v2927, 4
        %v2929 = vrot.slane %v2832, 5
        %v2930 = vsel %vm1996, %v2928, %v2929
        %v2931 = vrot.slane %v2929, 4
        %v2932 = vrot.slane %v2833, 5
        %v2933 = vsel %vm1996, %v2931, %v2932
        %v2934 = vrot.slane %v2834, 5
        %v2935 = vrot.slane %v2934, 4
        %v2936 = vrot.slane %v2835, 5
        %v2937 = vsel %vm1996, %v2935, %v2936
        %v2938 = vrot.slane %v2936, 4
        %v2939 = vrot.slane %v2836, 5
        %v2940 = vsel %vm1996, %v2938, %v2939
        %v2941 = vrot.slane %v2837, 5
        %v2942 = vrot.slane %v2941, 4
        %v2943 = vrot.slane %v2838, 5
        %v2944 = vsel %vm1996, %v2942, %v2943
        %v2945 = vrot.slane %v2943, 4
        %v2946 = vrot.slane %v2839, 5
        %v2947 = vsel %vm1996, %v2945, %v2946
        %v2948 = vrot.slane %v2840, 5
        %v2949 = vrot.slane %v2948, 4
        %v2950 = vrot.slane %v2841, 5
        %v2951 = vsel %vm1996, %v2949, %v2950
        %v2952 = vrot.slane %v2950, 4
        %v2953 = vrot.slane %v2842, 5
        %v2954 = vsel %vm1996, %v2952, %v2953
        %v2955 = vrot.slane %v2843, 5
        %v2956 = vrot.slane %v2955, 4
        %v2957 = vrot.slane %v2844, 5
        %v2958 = vsel %vm1996, %v2956, %v2957
        %v2959 = vrot.slane %v2957, 4
        %v2960 = vrot.slane %v2845, 5
        %v2961 = vsel %vm1996, %v2959, %v2960
        %v2962 = vrot.slane %v2846, 5
        %v2963 = vrot.slane %v2962, 4
        %v2964 = vrot.slane %v2847, 5
        %v2965 = vsel %vm1996, %v2963, %v2964
        %v2966 = vrot.slane %v2964, 4
        %v2967 = vrot.slane %v2848, 5
        %v2968 = vsel %vm1996, %v2966, %v2967
        %v2969 = vrot.slane %v2849, 5
        %v2970 = vrot.slane %v2969, 4
        %v2971 = vrot.slane %v2850, 5
        %v2972 = vsel %vm1996, %v2970, %v2971
        %v2973 = vrot.slane %v2971, 4
        %v2974 = vrot.slane %v2851, 5
        %v2975 = vsel %vm1996, %v2973, %v2974
        %v2976 = vrot.slane %v2852, 5
        %v2977 = vrot.slane %v2976, 4
        %v2978 = vrot.slane %v2853, 5
        %v2979 = vsel %vm1996, %v2977, %v2978
        %v2980 = vrot.slane %v2978, 4
        %v2981 = vrot.slane %v2854, 5
        %v2982 = vsel %vm1996, %v2980, %v2981
        %v2983 = vrot.slane %v2855, 5
        %v2984 = vrot.slane %v2983, 4
        %v2985 = vrot.slane %v2856, 5
        %v2986 = vsel %vm1996, %v2984, %v2985
        %v2987 = vrot.slane %v2985, 4
        %v2988 = vrot.slane %v2857, 5
        %v2989 = vsel %vm1996, %v2987, %v2988
        %v2990 = vrot.slane %v2858, 5
        %v2991 = vrot.slane %v2990, 4
        %v2992 = vrot.slane %v2859, 5
        %v2993 = vsel %vm1996, %v2991, %v2992
        %v2994 = vrot.slane %v2992, 4
        %v2995 = vrot.slane %v2860, 5
        %v2996 = vsel %vm1996, %v2994, %v2995
        %v2997 = vrot.slane %v2861, 5
        %v2998 = vrot.slane %v2997, 4
        %v2999 = vrot.slane %v2862, 5
        %v3000 = vsel %vm1996, %v2998, %v2999
        %v3001 = vrot.slane %v2999, 4
        %v3002 = vrot.slane %v2863, 5
        %v3003 = vsel %vm1996, %v3001, %v3002
        %v3004 = vrot.slane %v2864, 5
        %v3005 = vrot.slane %v3004, 4
        %v3006 = vrot.slane %v2865, 5
        %v3007 = vsel %vm1996, %v3005, %v3006
        %v3008 = vrot.slane %v3006, 4
        %v3009 = vrot.slane %v2866, 5
        %v3010 = vsel %vm1996, %v3008, %v3009
        %v3011 = vrot.slane %v2867, 5
        %v3012 = vrot.slane %v3011, 4
        %v3013 = vrot.slane %v2868, 5
        %v3014 = vsel %vm1996, %v3012, %v3013
        %v3015 = vrot.slane %v3013, 4
        %v3016 = vrot.slane %v2869, 5
        %v3017 = vsel %vm1996, %v3015, %v3016
        %v3018 = vrot.slane %v2870, 5
        %v3019 = vrot.slane %v3018, 4
        %v3020 = vrot.slane %v2871, 5
        %v3021 = vsel %vm1996, %v3019, %v3020
        %v3022 = vrot.slane %v3020, 4
        %v3023 = vrot.slane %v2872, 5
        %v3024 = vsel %vm1996, %v3022, %v3023
        %v3025 = vrot.slane %v2873, 5
        %v3026 = vrot.slane %v3025, 4
        %v3027 = vrot.slane %v2874, 5
        %v3028 = vsel %vm1996, %v3026, %v3027
        %v3029 = vrot.slane %v3027, 4
        %v3030 = vrot.slane %v2875, 5
        %v3031 = vsel %vm1996, %v3029, %v3030
        %v3032 = vrot.slane %v2876, 5
        %v3033 = vrot.slane %v3032, 4
        %v3034 = vrot.slane %v2877, 5
        %v3035 = vsel %vm1996, %v3033, %v3034
        %v3036 = vrot.slane %v3034, 4
        %v3037 = vrot.slane %v2878, 5
        %v3038 = vsel %vm1996, %v3036, %v3037
        %v3039 = vunpack.c.l.b16 %v2930
        %v3040 = vunpack.c.l.b16 %v2933
        %v3041 = vunpack.c.l.b16 %v2937
        %v3042 = vunpack.c.l.b16 %v2940
        %v3043 = vunpack.c.l.b16 %v2944
        %v3044 = vunpack.c.l.b16 %v2947
        %v3045 = vunpack.c.l.b16 %v2951
        %v3046 = vunpack.c.l.b16 %v2954
        %v3047 = vunpack.c.l.b16 %v2958
        %v3048 = vunpack.c.l.b16 %v2961
        %v3049 = vunpack.c.l.b16 %v2965
        %v3050 = vunpack.c.l.b16 %v2968
        %v3051 = vunpack.c.l.b16 %v2972
        %v3052 = vunpack.c.l.b16 %v2975
        %v3053 = vunpack.c.l.b16 %v2979
        %v3054 = vunpack.c.l.b16 %v2982
        %v3055 = vunpack.c.l.b16 %v2986
        %v3056 = vunpack.c.l.b16 %v2989
        %v3057 = vunpack.c.l.b16 %v2993
        %v3058 = vunpack.c.l.b16 %v2996
        %v3059 = vunpack.c.l.b16 %v3000
        %v3060 = vunpack.c.l.b16 %v3003
        %v3061 = vunpack.c.l.b16 %v3007
        %v3062 = vunpack.c.l.b16 %v3010
        %v3063 = vunpack.c.l.b16 %v3014
        %v3064 = vunpack.c.l.b16 %v3017
        %v3065 = vunpack.c.l.b16 %v3021
        %v3066 = vunpack.c.l.b16 %v3024
        %v3067 = vunpack.c.l.b16 %v3028
        %v3068 = vunpack.c.l.b16 %v3031
        %v3069 = vunpack.c.l.b16 %v3035
        %v3070 = vunpack.c.l.b16 %v3038
        %v3071 = vpack.c.b16 %v3040, %v3039
        %v3072 = vpack.c.b16 %v3042, %v3041
        %v3073 = vpack.c.b16 %v3044, %v3043
        %v3074 = vpack.c.b16 %v3046, %v3045
        %v3075 = vpack.c.b16 %v3048, %v3047
        %v3076 = vpack.c.b16 %v3050, %v3049
        %v3077 = vpack.c.b16 %v3052, %v3051
        %v3078 = vpack.c.b16 %v3054, %v3053
        %v3079 = vpack.c.b16 %v3056, %v3055
        %v3080 = vpack.c.b16 %v3058, %v3057
        %v3081 = vpack.c.b16 %v3060, %v3059
        %v3082 = vpack.c.b16 %v3062, %v3061
        %v3083 = vpack.c.b16 %v3064, %v3063
        %v3084 = vpack.c.b16 %v3066, %v3065
        %v3085 = vpack.c.b16 %v3068, %v3067
        %v3086 = vpack.c.b16 %v3070, %v3069
        %3087 = vrot.lane.b32.xlu0 %v3071, 32
        %v3088 = vpop.permute.xlu0 %3087
        %3089 = vrot.lane.b32.xlu0 %v3072, 32
        %v3090 = vpop.permute.xlu0 %3089
        %3091 = vrot.lane.b32.xlu0 %v3073, 32
        %v3092 = vpop.permute.xlu0 %3091
        %3093 = vrot.lane.b32.xlu0 %v3074, 32
        %v3094 = vpop.permute.xlu0 %3093
        %3095 = vrot.lane.b32.xlu0 %v3075, 32
        %v3096 = vpop.permute.xlu0 %3095
        %3097 = vrot.lane.b32.xlu0 %v3076, 32
        %v3098 = vpop.permute.xlu0 %3097
        %3099 = vrot.lane.b32.xlu0 %v3077, 32
        %v3100 = vpop.permute.xlu0 %3099
        %3101 = vrot.lane.b32.xlu0 %v3078, 32
        %v3102 = vpop.permute.xlu0 %3101
        %3103 = vrot.lane.b32.xlu0 %v3079, 32
        %v3104 = vpop.permute.xlu0 %3103
        %3105 = vrot.lane.b32.xlu0 %v3080, 32
        %v3106 = vpop.permute.xlu0 %3105
        %3107 = vrot.lane.b32.xlu0 %v3081, 32
        %v3108 = vpop.permute.xlu0 %3107
        %3109 = vrot.lane.b32.xlu0 %v3082, 32
        %v3110 = vpop.permute.xlu0 %3109
        %3111 = vrot.lane.b32.xlu0 %v3083, 32
        %v3112 = vpop.permute.xlu0 %3111
        %3113 = vrot.lane.b32.xlu0 %v3084, 32
        %v3114 = vpop.permute.xlu0 %3113
        %3115 = vrot.lane.b32.xlu0 %v3085, 32
        %v3116 = vpop.permute.xlu0 %3115
        %3117 = vrot.lane.b32.xlu0 %v3086, 32
        %v3118 = vpop.permute.xlu0 %3117
        %3135 = vst.msk [vmem:[#allocation3 + $0x8] sm:$0xff] %vm1881, %v3088
        %3136 = vst.msk [vmem:[#allocation3 + $0x20] sm:$0xff] %vm1881, %v3090
        %3137 = vst.msk [vmem:[#allocation3 + $0x38] sm:$0xff] %vm1881, %v3092
        %3138 = vst.msk [vmem:[#allocation3 + $0x50] sm:$0xff] %vm1881, %v3094
        %3139 = vst.msk [vmem:[#allocation3 + $0x68] sm:$0xff] %vm1881, %v3096
        %3140 = vst.msk [vmem:[#allocation3 + $0x80] sm:$0xff] %vm1881, %v3098
        %3141 = vst.msk [vmem:[#allocation3 + $0x98] sm:$0xff] %vm1881, %v3100
        %3142 = vst.msk [vmem:[#allocation3 + $0xb0] sm:$0xff] %vm1881, %v3102
        %3143 = vst.msk [vmem:[#allocation3 + $0xc8] sm:$0xff] %vm1881, %v3104
        %3144 = vst.msk [vmem:[#allocation3 + $0xe0] sm:$0xff] %vm1881, %v3106
        %3145 = vst.msk [vmem:[#allocation3 + $0xf8] sm:$0xff] %vm1881, %v3108
        %3146 = vst.msk [vmem:[#allocation3 + $0x110] sm:$0xff] %vm1881, %v3110
        %3147 = vst.msk [vmem:[#allocation3 + $0x128] sm:$0xff] %vm1881, %v3112
        %3148 = vst.msk [vmem:[#allocation3 + $0x140] sm:$0xff] %vm1881, %v3114
        %3149 = vst.msk [vmem:[#allocation3 + $0x158] sm:$0xff] %vm1881, %v3116
        %3150 = vst.msk [vmem:[#allocation3 + $0x170] sm:$0xff] %vm1881, %v3118
        %s3151 = scalar_lea.vmem [#allocation2], 360
        %v3152 = vld [vmem:[%s3151] sm:$0x8]
        %v3153 = vld [vmem:[%s3151 + $0x4] sm:$0xf]
        %v3154 = vld [vmem:[%s3151 + $0x8] sm:$0x7]
        %v3155 = vld [vmem:[%s3151 + $0x14] sm:$0x8]
        %v3156 = vld [vmem:[%s3151 + $0x18] sm:$0xf]
        %v3157 = vld [vmem:[%s3151 + $0x1c] sm:$0x7]
        %v3158 = vld [vmem:[%s3151 + $0x28] sm:$0x8]
        %v3159 = vld [vmem:[%s3151 + $0x2c] sm:$0xf]
        %v3160 = vld [vmem:[%s3151 + $0x30] sm:$0x7]
        %v3161 = vld [vmem:[%s3151 + $0x3c] sm:$0x8]
        %v3162 = vld [vmem:[%s3151 + $0x40] sm:$0xf]
        %v3163 = vld [vmem:[%s3151 + $0x44] sm:$0x7]
        %v3164 = vld [vmem:[%s3151 + $0x50] sm:$0x8]
        %v3165 = vld [vmem:[%s3151 + $0x54] sm:$0xf]
        %v3166 = vld [vmem:[%s3151 + $0x58] sm:$0x7]
        %v3167 = vld [vmem:[%s3151 + $0x64] sm:$0x8]
        %v3168 = vld [vmem:[%s3151 + $0x68] sm:$0xf]
        %v3169 = vld [vmem:[%s3151 + $0x6c] sm:$0x7]
        %v3170 = vld [vmem:[%s3151 + $0x78] sm:$0x8]
        %v3171 = vld [vmem:[%s3151 + $0x7c] sm:$0xf]
        %v3172 = vld [vmem:[%s3151 + $0x80] sm:$0x7]
        %v3173 = vld [vmem:[%s3151 + $0x8c] sm:$0x8]
        %v3174 = vld [vmem:[%s3151 + $0x90] sm:$0xf]
        %v3175 = vld [vmem:[%s3151 + $0x94] sm:$0x7]
        %v3176 = vld [vmem:[%s3151 + $0xa0] sm:$0x8]
        %v3177 = vld [vmem:[%s3151 + $0xa4] sm:$0xf]
        %v3178 = vld [vmem:[%s3151 + $0xa8] sm:$0x7]
        %v3179 = vld [vmem:[%s3151 + $0xb4] sm:$0x8]
        %v3180 = vld [vmem:[%s3151 + $0xb8] sm:$0xf]
        %v3181 = vld [vmem:[%s3151 + $0xbc] sm:$0x7]
        %v3182 = vld [vmem:[%s3151 + $0xc8] sm:$0x8]
        %v3183 = vld [vmem:[%s3151 + $0xcc] sm:$0xf]
        %v3184 = vld [vmem:[%s3151 + $0xd0] sm:$0x7]
        %v3185 = vld [vmem:[%s3151 + $0xdc] sm:$0x8]
        %v3186 = vld [vmem:[%s3151 + $0xe0] sm:$0xf]
        %v3187 = vld [vmem:[%s3151 + $0xe4] sm:$0x7]
        %v3188 = vld [vmem:[%s3151 + $0xf0] sm:$0x8]
        %v3189 = vld [vmem:[%s3151 + $0xf4] sm:$0xf]
        %v3190 = vld [vmem:[%s3151 + $0xf8] sm:$0x7]
        %v3191 = vld [vmem:[%s3151 + $0x104] sm:$0x8]
        %v3192 = vld [vmem:[%s3151 + $0x108] sm:$0xf]
        %v3193 = vld [vmem:[%s3151 + $0x10c] sm:$0x7]
        %v3194 = vld [vmem:[%s3151 + $0x118] sm:$0x8]
        %v3195 = vld [vmem:[%s3151 + $0x11c] sm:$0xf]
        %v3196 = vld [vmem:[%s3151 + $0x120] sm:$0x7]
        %v3197 = vld [vmem:[%s3151 + $0x12c] sm:$0x8]
        %v3198 = vld [vmem:[%s3151 + $0x130] sm:$0xf]
        %v3199 = vld [vmem:[%s3151 + $0x134] sm:$0x7]
        %v3248 = vrot.slane %v3152, 7
        %v3249 = vrot.slane %v3248, 4
        %v3250 = vrot.slane %v3153, 7
        %v3251 = vsel %vm1383, %v3249, %v3250
        %v3252 = vrot.slane %v3250, 4
        %v3253 = vrot.slane %v3154, 7
        %v3254 = vsel %vm1383, %v3252, %v3253
        %v3255 = vrot.slane %v3155, 7
        %v3256 = vrot.slane %v3255, 4
        %v3257 = vrot.slane %v3156, 7
        %v3258 = vsel %vm1383, %v3256, %v3257
        %v3259 = vrot.slane %v3257, 4
        %v3260 = vrot.slane %v3157, 7
        %v3261 = vsel %vm1383, %v3259, %v3260
        %v3262 = vrot.slane %v3158, 7
        %v3263 = vrot.slane %v3262, 4
        %v3264 = vrot.slane %v3159, 7
        %v3265 = vsel %vm1383, %v3263, %v3264
        %v3266 = vrot.slane %v3264, 4
        %v3267 = vrot.slane %v3160, 7
        %v3268 = vsel %vm1383, %v3266, %v3267
        %v3269 = vrot.slane %v3161, 7
        %v3270 = vrot.slane %v3269, 4
        %v3271 = vrot.slane %v3162, 7
        %v3272 = vsel %vm1383, %v3270, %v3271
        %v3273 = vrot.slane %v3271, 4
        %v3274 = vrot.slane %v3163, 7
        %v3275 = vsel %vm1383, %v3273, %v3274
        %v3276 = vrot.slane %v3164, 7
        %v3277 = vrot.slane %v3276, 4
        %v3278 = vrot.slane %v3165, 7
        %v3279 = vsel %vm1383, %v3277, %v3278
        %v3280 = vrot.slane %v3278, 4
        %v3281 = vrot.slane %v3166, 7
        %v3282 = vsel %vm1383, %v3280, %v3281
        %v3283 = vrot.slane %v3167, 7
        %v3284 = vrot.slane %v3283, 4
        %v3285 = vrot.slane %v3168, 7
        %v3286 = vsel %vm1383, %v3284, %v3285
        %v3287 = vrot.slane %v3285, 4
        %v3288 = vrot.slane %v3169, 7
        %v3289 = vsel %vm1383, %v3287, %v3288
        %v3290 = vrot.slane %v3170, 7
        %v3291 = vrot.slane %v3290, 4
        %v3292 = vrot.slane %v3171, 7
        %v3293 = vsel %vm1383, %v3291, %v3292
        %v3294 = vrot.slane %v3292, 4
        %v3295 = vrot.slane %v3172, 7
        %v3296 = vsel %vm1383, %v3294, %v3295
        %v3297 = vrot.slane %v3173, 7
        %v3298 = vrot.slane %v3297, 4
        %v3299 = vrot.slane %v3174, 7
        %v3300 = vsel %vm1383, %v3298, %v3299
        %v3301 = vrot.slane %v3299, 4
        %v3302 = vrot.slane %v3175, 7
        %v3303 = vsel %vm1383, %v3301, %v3302
        %v3304 = vrot.slane %v3176, 7
        %v3305 = vrot.slane %v3304, 4
        %v3306 = vrot.slane %v3177, 7
        %v3307 = vsel %vm1383, %v3305, %v3306
        %v3308 = vrot.slane %v3306, 4
        %v3309 = vrot.slane %v3178, 7
        %v3310 = vsel %vm1383, %v3308, %v3309
        %v3311 = vrot.slane %v3179, 7
        %v3312 = vrot.slane %v3311, 4
        %v3313 = vrot.slane %v3180, 7
        %v3314 = vsel %vm1383, %v3312, %v3313
        %v3315 = vrot.slane %v3313, 4
        %v3316 = vrot.slane %v3181, 7
        %v3317 = vsel %vm1383, %v3315, %v3316
        %v3318 = vrot.slane %v3182, 7
        %v3319 = vrot.slane %v3318, 4
        %v3320 = vrot.slane %v3183, 7
        %v3321 = vsel %vm1383, %v3319, %v3320
        %v3322 = vrot.slane %v3320, 4
        %v3323 = vrot.slane %v3184, 7
        %v3324 = vsel %vm1383, %v3322, %v3323
        %v3325 = vrot.slane %v3185, 7
        %v3326 = vrot.slane %v3325, 4
        %v3327 = vrot.slane %v3186, 7
        %v3328 = vsel %vm1383, %v3326, %v3327
        %v3329 = vrot.slane %v3327, 4
        %v3330 = vrot.slane %v3187, 7
        %v3331 = vsel %vm1383, %v3329, %v3330
        %v3332 = vrot.slane %v3188, 7
        %v3333 = vrot.slane %v3332, 4
        %v3334 = vrot.slane %v3189, 7
        %v3335 = vsel %vm1383, %v3333, %v3334
        %v3336 = vrot.slane %v3334, 4
        %v3337 = vrot.slane %v3190, 7
        %v3338 = vsel %vm1383, %v3336, %v3337
        %v3339 = vrot.slane %v3191, 7
        %v3340 = vrot.slane %v3339, 4
        %v3341 = vrot.slane %v3192, 7
        %v3342 = vsel %vm1383, %v3340, %v3341
        %v3343 = vrot.slane %v3341, 4
        %v3344 = vrot.slane %v3193, 7
        %v3345 = vsel %vm1383, %v3343, %v3344
        %v3346 = vrot.slane %v3194, 7
        %v3347 = vrot.slane %v3346, 4
        %v3348 = vrot.slane %v3195, 7
        %v3349 = vsel %vm1383, %v3347, %v3348
        %v3350 = vrot.slane %v3348, 4
        %v3351 = vrot.slane %v3196, 7
        %v3352 = vsel %vm1383, %v3350, %v3351
        %v3353 = vrot.slane %v3197, 7
        %v3354 = vrot.slane %v3353, 4
        %v3355 = vrot.slane %v3198, 7
        %v3356 = vsel %vm1383, %v3354, %v3355
        %v3357 = vrot.slane %v3355, 4
        %v3358 = vrot.slane %v3199, 7
        %v3359 = vsel %vm1383, %v3357, %v3358
        %v3360 = vunpack.c.l.b16 %v3251
        %v3361 = vunpack.c.l.b16 %v3254
        %v3362 = vunpack.c.l.b16 %v3258
        %v3363 = vunpack.c.l.b16 %v3261
        %v3364 = vunpack.c.l.b16 %v3265
        %v3365 = vunpack.c.l.b16 %v3268
        %v3366 = vunpack.c.l.b16 %v3272
        %v3367 = vunpack.c.l.b16 %v3275
        %v3368 = vunpack.c.l.b16 %v3279
        %v3369 = vunpack.c.l.b16 %v3282
        %v3370 = vunpack.c.l.b16 %v3286
        %v3371 = vunpack.c.l.b16 %v3289
        %v3372 = vunpack.c.l.b16 %v3293
        %v3373 = vunpack.c.l.b16 %v3296
        %v3374 = vunpack.c.l.b16 %v3300
        %v3375 = vunpack.c.l.b16 %v3303
        %v3376 = vunpack.c.l.b16 %v3307
        %v3377 = vunpack.c.l.b16 %v3310
        %v3378 = vunpack.c.l.b16 %v3314
        %v3379 = vunpack.c.l.b16 %v3317
        %v3380 = vunpack.c.l.b16 %v3321
        %v3381 = vunpack.c.l.b16 %v3324
        %v3382 = vunpack.c.l.b16 %v3328
        %v3383 = vunpack.c.l.b16 %v3331
        %v3384 = vunpack.c.l.b16 %v3335
        %v3385 = vunpack.c.l.b16 %v3338
        %v3386 = vunpack.c.l.b16 %v3342
        %v3387 = vunpack.c.l.b16 %v3345
        %v3388 = vunpack.c.l.b16 %v3349
        %v3389 = vunpack.c.l.b16 %v3352
        %v3390 = vunpack.c.l.b16 %v3356
        %v3391 = vunpack.c.l.b16 %v3359
        %v3392 = vpack.c.b16 %v3361, %v3360
        %v3393 = vpack.c.b16 %v3363, %v3362
        %v3394 = vpack.c.b16 %v3365, %v3364
        %v3395 = vpack.c.b16 %v3367, %v3366
        %v3396 = vpack.c.b16 %v3369, %v3368
        %v3397 = vpack.c.b16 %v3371, %v3370
        %v3398 = vpack.c.b16 %v3373, %v3372
        %v3399 = vpack.c.b16 %v3375, %v3374
        %v3400 = vpack.c.b16 %v3377, %v3376
        %v3401 = vpack.c.b16 %v3379, %v3378
        %v3402 = vpack.c.b16 %v3381, %v3380
        %v3403 = vpack.c.b16 %v3383, %v3382
        %v3404 = vpack.c.b16 %v3385, %v3384
        %v3405 = vpack.c.b16 %v3387, %v3386
        %v3406 = vpack.c.b16 %v3389, %v3388
        %v3407 = vpack.c.b16 %v3391, %v3390
        %3408 = vrot.lane.b32.xlu0 %v3392, 64
        %v3409 = vpop.permute.xlu0 %3408
        %3410 = vrot.lane.b32.xlu0 %v3393, 64
        %v3411 = vpop.permute.xlu0 %3410
        %3412 = vrot.lane.b32.xlu0 %v3394, 64
        %v3413 = vpop.permute.xlu0 %3412
        %3414 = vrot.lane.b32.xlu0 %v3395, 64
        %v3415 = vpop.permute.xlu0 %3414
        %3416 = vrot.lane.b32.xlu0 %v3396, 64
        %v3417 = vpop.permute.xlu0 %3416
        %3418 = vrot.lane.b32.xlu0 %v3397, 64
        %v3419 = vpop.permute.xlu0 %3418
        %3420 = vrot.lane.b32.xlu0 %v3398, 64
        %v3421 = vpop.permute.xlu0 %3420
        %3422 = vrot.lane.b32.xlu0 %v3399, 64
        %v3423 = vpop.permute.xlu0 %3422
        %3424 = vrot.lane.b32.xlu0 %v3400, 64
        %v3425 = vpop.permute.xlu0 %3424
        %3426 = vrot.lane.b32.xlu0 %v3401, 64
        %v3427 = vpop.permute.xlu0 %3426
        %3428 = vrot.lane.b32.xlu0 %v3402, 64
        %v3429 = vpop.permute.xlu0 %3428
        %3430 = vrot.lane.b32.xlu0 %v3403, 64
        %v3431 = vpop.permute.xlu0 %3430
        %3432 = vrot.lane.b32.xlu0 %v3404, 64
        %v3433 = vpop.permute.xlu0 %3432
        %3434 = vrot.lane.b32.xlu0 %v3405, 64
        %v3435 = vpop.permute.xlu0 %3434
        %3436 = vrot.lane.b32.xlu0 %v3406, 64
        %v3437 = vpop.permute.xlu0 %3436
        %3438 = vrot.lane.b32.xlu0 %v3407, 64
        %v3439 = vpop.permute.xlu0 %3438
        %3456 = vst.msk [vmem:[#allocation3 + $0x8] sm:$0xff] %vm2205, %v3409
        %3457 = vst.msk [vmem:[#allocation3 + $0x20] sm:$0xff] %vm2205, %v3411
        %3458 = vst.msk [vmem:[#allocation3 + $0x38] sm:$0xff] %vm2205, %v3413
        %3459 = vst.msk [vmem:[#allocation3 + $0x50] sm:$0xff] %vm2205, %v3415
        %3460 = vst.msk [vmem:[#allocation3 + $0x68] sm:$0xff] %vm2205, %v3417
        %3461 = vst.msk [vmem:[#allocation3 + $0x80] sm:$0xff] %vm2205, %v3419
        %3462 = vst.msk [vmem:[#allocation3 + $0x98] sm:$0xff] %vm2205, %v3421
        %3463 = vst.msk [vmem:[#allocation3 + $0xb0] sm:$0xff] %vm2205, %v3423
        %3464 = vst.msk [vmem:[#allocation3 + $0xc8] sm:$0xff] %vm2205, %v3425
        %3465 = vst.msk [vmem:[#allocation3 + $0xe0] sm:$0xff] %vm2205, %v3427
        %3466 = vst.msk [vmem:[#allocation3 + $0xf8] sm:$0xff] %vm2205, %v3429
        %3467 = vst.msk [vmem:[#allocation3 + $0x110] sm:$0xff] %vm2205, %v3431
        %3468 = vst.msk [vmem:[#allocation3 + $0x128] sm:$0xff] %vm2205, %v3433
        %3469 = vst.msk [vmem:[#allocation3 + $0x140] sm:$0xff] %vm2205, %v3435
        %3470 = vst.msk [vmem:[#allocation3 + $0x158] sm:$0xff] %vm2205, %v3437
        %3471 = vst.msk [vmem:[#allocation3 + $0x170] sm:$0xff] %vm2205, %v3439
        %v3472 = vld [vmem:[%s3151 + $0x4] sm:$0xc]
        %v3473 = vld [vmem:[%s3151 + $0x8] sm:$0xf]
        %v3474 = vld [vmem:[%s3151 + $0xc] sm:$0x3]
        %v3475 = vld [vmem:[%s3151 + $0x18] sm:$0xc]
        %v3476 = vld [vmem:[%s3151 + $0x1c] sm:$0xf]
        %v3477 = vld [vmem:[%s3151 + $0x20] sm:$0x3]
        %v3478 = vld [vmem:[%s3151 + $0x2c] sm:$0xc]
        %v3479 = vld [vmem:[%s3151 + $0x30] sm:$0xf]
        %v3480 = vld [vmem:[%s3151 + $0x34] sm:$0x3]
        %v3481 = vld [vmem:[%s3151 + $0x40] sm:$0xc]
        %v3482 = vld [vmem:[%s3151 + $0x44] sm:$0xf]
        %v3483 = vld [vmem:[%s3151 + $0x48] sm:$0x3]
        %v3484 = vld [vmem:[%s3151 + $0x54] sm:$0xc]
        %v3485 = vld [vmem:[%s3151 + $0x58] sm:$0xf]
        %v3486 = vld [vmem:[%s3151 + $0x5c] sm:$0x3]
        %v3487 = vld [vmem:[%s3151 + $0x68] sm:$0xc]
        %v3488 = vld [vmem:[%s3151 + $0x6c] sm:$0xf]
        %v3489 = vld [vmem:[%s3151 + $0x70] sm:$0x3]
        %v3490 = vld [vmem:[%s3151 + $0x7c] sm:$0xc]
        %v3491 = vld [vmem:[%s3151 + $0x80] sm:$0xf]
        %v3492 = vld [vmem:[%s3151 + $0x84] sm:$0x3]
        %v3493 = vld [vmem:[%s3151 + $0x90] sm:$0xc]
        %v3494 = vld [vmem:[%s3151 + $0x94] sm:$0xf]
        %v3495 = vld [vmem:[%s3151 + $0x98] sm:$0x3]
        %v3496 = vld [vmem:[%s3151 + $0xa4] sm:$0xc]
        %v3497 = vld [vmem:[%s3151 + $0xa8] sm:$0xf]
        %v3498 = vld [vmem:[%s3151 + $0xac] sm:$0x3]
        %v3499 = vld [vmem:[%s3151 + $0xb8] sm:$0xc]
        %v3500 = vld [vmem:[%s3151 + $0xbc] sm:$0xf]
        %v3501 = vld [vmem:[%s3151 + $0xc0] sm:$0x3]
        %v3502 = vld [vmem:[%s3151 + $0xcc] sm:$0xc]
        %v3503 = vld [vmem:[%s3151 + $0xd0] sm:$0xf]
        %v3504 = vld [vmem:[%s3151 + $0xd4] sm:$0x3]
        %v3505 = vld [vmem:[%s3151 + $0xe0] sm:$0xc]
        %v3506 = vld [vmem:[%s3151 + $0xe4] sm:$0xf]
        %v3507 = vld [vmem:[%s3151 + $0xe8] sm:$0x3]
        %v3508 = vld [vmem:[%s3151 + $0xf4] sm:$0xc]
        %v3509 = vld [vmem:[%s3151 + $0xf8] sm:$0xf]
        %v3510 = vld [vmem:[%s3151 + $0xfc] sm:$0x3]
        %v3511 = vld [vmem:[%s3151 + $0x108] sm:$0xc]
        %v3512 = vld [vmem:[%s3151 + $0x10c] sm:$0xf]
        %v3513 = vld [vmem:[%s3151 + $0x110] sm:$0x3]
        %v3514 = vld [vmem:[%s3151 + $0x11c] sm:$0xc]
        %v3515 = vld [vmem:[%s3151 + $0x120] sm:$0xf]
        %v3516 = vld [vmem:[%s3151 + $0x124] sm:$0x3]
        %v3517 = vld [vmem:[%s3151 + $0x130] sm:$0xc]
        %v3518 = vld [vmem:[%s3151 + $0x134] sm:$0xf]
        %v3519 = vld [vmem:[%s3151 + $0x138] sm:$0x3]
        %v3568 = vrot.slane %v3472, 6
        %v3569 = vrot.slane %v3568, 4
        %v3570 = vrot.slane %v3473, 6
        %v3571 = vsel %vm1104, %v3569, %v3570
        %v3572 = vrot.slane %v3570, 4
        %v3573 = vrot.slane %v3474, 6
        %v3574 = vsel %vm1104, %v3572, %v3573
        %v3575 = vrot.slane %v3475, 6
        %v3576 = vrot.slane %v3575, 4
        %v3577 = vrot.slane %v3476, 6
        %v3578 = vsel %vm1104, %v3576, %v3577
        %v3579 = vrot.slane %v3577, 4
        %v3580 = vrot.slane %v3477, 6
        %v3581 = vsel %vm1104, %v3579, %v3580
        %v3582 = vrot.slane %v3478, 6
        %v3583 = vrot.slane %v3582, 4
        %v3584 = vrot.slane %v3479, 6
        %v3585 = vsel %vm1104, %v3583, %v3584
        %v3586 = vrot.slane %v3584, 4
        %v3587 = vrot.slane %v3480, 6
        %v3588 = vsel %vm1104, %v3586, %v3587
        %v3589 = vrot.slane %v3481, 6
        %v3590 = vrot.slane %v3589, 4
        %v3591 = vrot.slane %v3482, 6
        %v3592 = vsel %vm1104, %v3590, %v3591
        %v3593 = vrot.slane %v3591, 4
        %v3594 = vrot.slane %v3483, 6
        %v3595 = vsel %vm1104, %v3593, %v3594
        %v3596 = vrot.slane %v3484, 6
        %v3597 = vrot.slane %v3596, 4
        %v3598 = vrot.slane %v3485, 6
        %v3599 = vsel %vm1104, %v3597, %v3598
        %v3600 = vrot.slane %v3598, 4
        %v3601 = vrot.slane %v3486, 6
        %v3602 = vsel %vm1104, %v3600, %v3601
        %v3603 = vrot.slane %v3487, 6
        %v3604 = vrot.slane %v3603, 4
        %v3605 = vrot.slane %v3488, 6
        %v3606 = vsel %vm1104, %v3604, %v3605
        %v3607 = vrot.slane %v3605, 4
        %v3608 = vrot.slane %v3489, 6
        %v3609 = vsel %vm1104, %v3607, %v3608
        %v3610 = vrot.slane %v3490, 6
        %v3611 = vrot.slane %v3610, 4
        %v3612 = vrot.slane %v3491, 6
        %v3613 = vsel %vm1104, %v3611, %v3612
        %v3614 = vrot.slane %v3612, 4
        %v3615 = vrot.slane %v3492, 6
        %v3616 = vsel %vm1104, %v3614, %v3615
        %v3617 = vrot.slane %v3493, 6
        %v3618 = vrot.slane %v3617, 4
        %v3619 = vrot.slane %v3494, 6
        %v3620 = vsel %vm1104, %v3618, %v3619
        %v3621 = vrot.slane %v3619, 4
        %v3622 = vrot.slane %v3495, 6
        %v3623 = vsel %vm1104, %v3621, %v3622
        %v3624 = vrot.slane %v3496, 6
        %v3625 = vrot.slane %v3624, 4
        %v3626 = vrot.slane %v3497, 6
        %v3627 = vsel %vm1104, %v3625, %v3626
        %v3628 = vrot.slane %v3626, 4
        %v3629 = vrot.slane %v3498, 6
        %v3630 = vsel %vm1104, %v3628, %v3629
        %v3631 = vrot.slane %v3499, 6
        %v3632 = vrot.slane %v3631, 4
        %v3633 = vrot.slane %v3500, 6
        %v3634 = vsel %vm1104, %v3632, %v3633
        %v3635 = vrot.slane %v3633, 4
        %v3636 = vrot.slane %v3501, 6
        %v3637 = vsel %vm1104, %v3635, %v3636
        %v3638 = vrot.slane %v3502, 6
        %v3639 = vrot.slane %v3638, 4
        %v3640 = vrot.slane %v3503, 6
        %v3641 = vsel %vm1104, %v3639, %v3640
        %v3642 = vrot.slane %v3640, 4
        %v3643 = vrot.slane %v3504, 6
        %v3644 = vsel %vm1104, %v3642, %v3643
        %v3645 = vrot.slane %v3505, 6
        %v3646 = vrot.slane %v3645, 4
        %v3647 = vrot.slane %v3506, 6
        %v3648 = vsel %vm1104, %v3646, %v3647
        %v3649 = vrot.slane %v3647, 4
        %v3650 = vrot.slane %v3507, 6
        %v3651 = vsel %vm1104, %v3649, %v3650
        %v3652 = vrot.slane %v3508, 6
        %v3653 = vrot.slane %v3652, 4
        %v3654 = vrot.slane %v3509, 6
        %v3655 = vsel %vm1104, %v3653, %v3654
        %v3656 = vrot.slane %v3654, 4
        %v3657 = vrot.slane %v3510, 6
        %v3658 = vsel %vm1104, %v3656, %v3657
        %v3659 = vrot.slane %v3511, 6
        %v3660 = vrot.slane %v3659, 4
        %v3661 = vrot.slane %v3512, 6
        %v3662 = vsel %vm1104, %v3660, %v3661
        %v3663 = vrot.slane %v3661, 4
        %v3664 = vrot.slane %v3513, 6
        %v3665 = vsel %vm1104, %v3663, %v3664
        %v3666 = vrot.slane %v3514, 6
        %v3667 = vrot.slane %v3666, 4
        %v3668 = vrot.slane %v3515, 6
        %v3669 = vsel %vm1104, %v3667, %v3668
        %v3670 = vrot.slane %v3668, 4
        %v3671 = vrot.slane %v3516, 6
        %v3672 = vsel %vm1104, %v3670, %v3671
        %v3673 = vrot.slane %v3517, 6
        %v3674 = vrot.slane %v3673, 4
        %v3675 = vrot.slane %v3518, 6
        %v3676 = vsel %vm1104, %v3674, %v3675
        %v3677 = vrot.slane %v3675, 4
        %v3678 = vrot.slane %v3519, 6
        %v3679 = vsel %vm1104, %v3677, %v3678
        %v3680 = vunpack.c.l.b16 %v3571
        %v3681 = vunpack.c.l.b16 %v3574
        %v3682 = vunpack.c.l.b16 %v3578
        %v3683 = vunpack.c.l.b16 %v3581
        %v3684 = vunpack.c.l.b16 %v3585
        %v3685 = vunpack.c.l.b16 %v3588
        %v3686 = vunpack.c.l.b16 %v3592
        %v3687 = vunpack.c.l.b16 %v3595
        %v3688 = vunpack.c.l.b16 %v3599
        %v3689 = vunpack.c.l.b16 %v3602
        %v3690 = vunpack.c.l.b16 %v3606
        %v3691 = vunpack.c.l.b16 %v3609
        %v3692 = vunpack.c.l.b16 %v3613
        %v3693 = vunpack.c.l.b16 %v3616
        %v3694 = vunpack.c.l.b16 %v3620
        %v3695 = vunpack.c.l.b16 %v3623
        %v3696 = vunpack.c.l.b16 %v3627
        %v3697 = vunpack.c.l.b16 %v3630
        %v3698 = vunpack.c.l.b16 %v3634
        %v3699 = vunpack.c.l.b16 %v3637
        %v3700 = vunpack.c.l.b16 %v3641
        %v3701 = vunpack.c.l.b16 %v3644
        %v3702 = vunpack.c.l.b16 %v3648
        %v3703 = vunpack.c.l.b16 %v3651
        %v3704 = vunpack.c.l.b16 %v3655
        %v3705 = vunpack.c.l.b16 %v3658
        %v3706 = vunpack.c.l.b16 %v3662
        %v3707 = vunpack.c.l.b16 %v3665
        %v3708 = vunpack.c.l.b16 %v3669
        %v3709 = vunpack.c.l.b16 %v3672
        %v3710 = vunpack.c.l.b16 %v3676
        %v3711 = vunpack.c.l.b16 %v3679
        %v3712 = vpack.c.b16 %v3681, %v3680
        %v3713 = vpack.c.b16 %v3683, %v3682
        %v3714 = vpack.c.b16 %v3685, %v3684
        %v3715 = vpack.c.b16 %v3687, %v3686
        %v3716 = vpack.c.b16 %v3689, %v3688
        %v3717 = vpack.c.b16 %v3691, %v3690
        %v3718 = vpack.c.b16 %v3693, %v3692
        %v3719 = vpack.c.b16 %v3695, %v3694
        %v3720 = vpack.c.b16 %v3697, %v3696
        %v3721 = vpack.c.b16 %v3699, %v3698
        %v3722 = vpack.c.b16 %v3701, %v3700
        %v3723 = vpack.c.b16 %v3703, %v3702
        %v3724 = vpack.c.b16 %v3705, %v3704
        %v3725 = vpack.c.b16 %v3707, %v3706
        %v3726 = vpack.c.b16 %v3709, %v3708
        %v3727 = vpack.c.b16 %v3711, %v3710
        %3728 = vrot.lane.b32.xlu0 %v3712, 96
        %v3729 = vpop.permute.xlu0 %3728
        %3730 = vrot.lane.b32.xlu0 %v3713, 96
        %v3731 = vpop.permute.xlu0 %3730
        %3732 = vrot.lane.b32.xlu0 %v3714, 96
        %v3733 = vpop.permute.xlu0 %3732
        %3734 = vrot.lane.b32.xlu0 %v3715, 96
        %v3735 = vpop.permute.xlu0 %3734
        %3736 = vrot.lane.b32.xlu0 %v3716, 96
        %v3737 = vpop.permute.xlu0 %3736
        %3738 = vrot.lane.b32.xlu0 %v3717, 96
        %v3739 = vpop.permute.xlu0 %3738
        %3740 = vrot.lane.b32.xlu0 %v3718, 96
        %v3741 = vpop.permute.xlu0 %3740
        %3742 = vrot.lane.b32.xlu0 %v3719, 96
        %v3743 = vpop.permute.xlu0 %3742
        %3744 = vrot.lane.b32.xlu0 %v3720, 96
        %v3745 = vpop.permute.xlu0 %3744
        %3746 = vrot.lane.b32.xlu0 %v3721, 96
        %v3747 = vpop.permute.xlu0 %3746
        %3748 = vrot.lane.b32.xlu0 %v3722, 96
        %v3749 = vpop.permute.xlu0 %3748
        %3750 = vrot.lane.b32.xlu0 %v3723, 96
        %v3751 = vpop.permute.xlu0 %3750
        %3752 = vrot.lane.b32.xlu0 %v3724, 96
        %v3753 = vpop.permute.xlu0 %3752
        %3754 = vrot.lane.b32.xlu0 %v3725, 96
        %v3755 = vpop.permute.xlu0 %3754
        %3756 = vrot.lane.b32.xlu0 %v3726, 96
        %v3757 = vpop.permute.xlu0 %3756
        %3758 = vrot.lane.b32.xlu0 %v3727, 96
        %v3759 = vpop.permute.xlu0 %3758
        %3776 = vst.msk [vmem:[#allocation3 + $0x8] sm:$0xff] %vm2526, %v3729
        %3777 = vst.msk [vmem:[#allocation3 + $0x20] sm:$0xff] %vm2526, %v3731
        %3778 = vst.msk [vmem:[#allocation3 + $0x38] sm:$0xff] %vm2526, %v3733
        %3779 = vst.msk [vmem:[#allocation3 + $0x50] sm:$0xff] %vm2526, %v3735
        %3780 = vst.msk [vmem:[#allocation3 + $0x68] sm:$0xff] %vm2526, %v3737
        %3781 = vst.msk [vmem:[#allocation3 + $0x80] sm:$0xff] %vm2526, %v3739
        %3782 = vst.msk [vmem:[#allocation3 + $0x98] sm:$0xff] %vm2526, %v3741
        %3783 = vst.msk [vmem:[#allocation3 + $0xb0] sm:$0xff] %vm2526, %v3743
        %3784 = vst.msk [vmem:[#allocation3 + $0xc8] sm:$0xff] %vm2526, %v3745
        %3785 = vst.msk [vmem:[#allocation3 + $0xe0] sm:$0xff] %vm2526, %v3747
        %3786 = vst.msk [vmem:[#allocation3 + $0xf8] sm:$0xff] %vm2526, %v3749
        %3787 = vst.msk [vmem:[#allocation3 + $0x110] sm:$0xff] %vm2526, %v3751
        %3788 = vst.msk [vmem:[#allocation3 + $0x128] sm:$0xff] %vm2526, %v3753
        %3789 = vst.msk [vmem:[#allocation3 + $0x140] sm:$0xff] %vm2526, %v3755
        %3790 = vst.msk [vmem:[#allocation3 + $0x158] sm:$0xff] %vm2526, %v3757
        %3791 = vst.msk [vmem:[#allocation3 + $0x170] sm:$0xff] %vm2526, %v3759
        %v3792 = vld [vmem:[%s3151 + $0x8] sm:$0xe]
        %v3793 = vld [vmem:[%s3151 + $0xc] sm:$0xf]
        %v3794 = vld [vmem:[%s3151 + $0x10] sm:$0x1]
        %v3795 = vld [vmem:[%s3151 + $0x1c] sm:$0xe]
        %v3796 = vld [vmem:[%s3151 + $0x20] sm:$0xf]
        %v3797 = vld [vmem:[%s3151 + $0x24] sm:$0x1]
        %v3798 = vld [vmem:[%s3151 + $0x30] sm:$0xe]
        %v3799 = vld [vmem:[%s3151 + $0x34] sm:$0xf]
        %v3800 = vld [vmem:[%s3151 + $0x38] sm:$0x1]
        %v3801 = vld [vmem:[%s3151 + $0x44] sm:$0xe]
        %v3802 = vld [vmem:[%s3151 + $0x48] sm:$0xf]
        %v3803 = vld [vmem:[%s3151 + $0x4c] sm:$0x1]
        %v3804 = vld [vmem:[%s3151 + $0x58] sm:$0xe]
        %v3805 = vld [vmem:[%s3151 + $0x5c] sm:$0xf]
        %v3806 = vld [vmem:[%s3151 + $0x60] sm:$0x1]
        %v3807 = vld [vmem:[%s3151 + $0x6c] sm:$0xe]
        %v3808 = vld [vmem:[%s3151 + $0x70] sm:$0xf]
        %v3809 = vld [vmem:[%s3151 + $0x74] sm:$0x1]
        %v3810 = vld [vmem:[%s3151 + $0x80] sm:$0xe]
        %v3811 = vld [vmem:[%s3151 + $0x84] sm:$0xf]
        %v3812 = vld [vmem:[%s3151 + $0x88] sm:$0x1]
        %v3813 = vld [vmem:[%s3151 + $0x94] sm:$0xe]
        %v3814 = vld [vmem:[%s3151 + $0x98] sm:$0xf]
        %v3815 = vld [vmem:[%s3151 + $0x9c] sm:$0x1]
        %v3816 = vld [vmem:[%s3151 + $0xa8] sm:$0xe]
        %v3817 = vld [vmem:[%s3151 + $0xac] sm:$0xf]
        %v3818 = vld [vmem:[%s3151 + $0xb0] sm:$0x1]
        %v3819 = vld [vmem:[%s3151 + $0xbc] sm:$0xe]
        %v3820 = vld [vmem:[%s3151 + $0xc0] sm:$0xf]
        %v3821 = vld [vmem:[%s3151 + $0xc4] sm:$0x1]
        %v3822 = vld [vmem:[%s3151 + $0xd0] sm:$0xe]
        %v3823 = vld [vmem:[%s3151 + $0xd4] sm:$0xf]
        %v3824 = vld [vmem:[%s3151 + $0xd8] sm:$0x1]
        %v3825 = vld [vmem:[%s3151 + $0xe4] sm:$0xe]
        %v3826 = vld [vmem:[%s3151 + $0xe8] sm:$0xf]
        %v3827 = vld [vmem:[%s3151 + $0xec] sm:$0x1]
        %v3828 = vld [vmem:[%s3151 + $0xf8] sm:$0xe]
        %v3829 = vld [vmem:[%s3151 + $0xfc] sm:$0xf]
        %v3830 = vld [vmem:[%s3151 + $0x100] sm:$0x1]
        %v3831 = vld [vmem:[%s3151 + $0x10c] sm:$0xe]
        %v3832 = vld [vmem:[%s3151 + $0x110] sm:$0xf]
        %v3833 = vld [vmem:[%s3151 + $0x114] sm:$0x1]
        %v3834 = vld [vmem:[%s3151 + $0x120] sm:$0xe]
        %v3835 = vld [vmem:[%s3151 + $0x124] sm:$0xf]
        %v3836 = vld [vmem:[%s3151 + $0x128] sm:$0x1]
        %v3837 = vld [vmem:[%s3151 + $0x134] sm:$0xe]
        %v3838 = vld [vmem:[%s3151 + $0x138] sm:$0xf]
        %v3839 = vld [vmem:[%s3151 + $0x13c] sm:$0x1]
        %v3888 = vrot.slane %v3792, 5
        %v3889 = vrot.slane %v3888, 4
        %v3890 = vrot.slane %v3793, 5
        %v3891 = vsel %vm1996, %v3889, %v3890
        %v3892 = vrot.slane %v3890, 4
        %v3893 = vrot.slane %v3794, 5
        %v3894 = vsel %vm1996, %v3892, %v3893
        %v3895 = vrot.slane %v3795, 5
        %v3896 = vrot.slane %v3895, 4
        %v3897 = vrot.slane %v3796, 5
        %v3898 = vsel %vm1996, %v3896, %v3897
        %v3899 = vrot.slane %v3897, 4
        %v3900 = vrot.slane %v3797, 5
        %v3901 = vsel %vm1996, %v3899, %v3900
        %v3902 = vrot.slane %v3798, 5
        %v3903 = vrot.slane %v3902, 4
        %v3904 = vrot.slane %v3799, 5
        %v3905 = vsel %vm1996, %v3903, %v3904
        %v3906 = vrot.slane %v3904, 4
        %v3907 = vrot.slane %v3800, 5
        %v3908 = vsel %vm1996, %v3906, %v3907
        %v3909 = vrot.slane %v3801, 5
        %v3910 = vrot.slane %v3909, 4
        %v3911 = vrot.slane %v3802, 5
        %v3912 = vsel %vm1996, %v3910, %v3911
        %v3913 = vrot.slane %v3911, 4
        %v3914 = vrot.slane %v3803, 5
        %v3915 = vsel %vm1996, %v3913, %v3914
        %v3916 = vrot.slane %v3804, 5
        %v3917 = vrot.slane %v3916, 4
        %v3918 = vrot.slane %v3805, 5
        %v3919 = vsel %vm1996, %v3917, %v3918
        %v3920 = vrot.slane %v3918, 4
        %v3921 = vrot.slane %v3806, 5
        %v3922 = vsel %vm1996, %v3920, %v3921
        %v3923 = vrot.slane %v3807, 5
        %v3924 = vrot.slane %v3923, 4
        %v3925 = vrot.slane %v3808, 5
        %v3926 = vsel %vm1996, %v3924, %v3925
        %v3927 = vrot.slane %v3925, 4
        %v3928 = vrot.slane %v3809, 5
        %v3929 = vsel %vm1996, %v3927, %v3928
        %v3930 = vrot.slane %v3810, 5
        %v3931 = vrot.slane %v3930, 4
        %v3932 = vrot.slane %v3811, 5
        %v3933 = vsel %vm1996, %v3931, %v3932
        %v3934 = vrot.slane %v3932, 4
        %v3935 = vrot.slane %v3812, 5
        %v3936 = vsel %vm1996, %v3934, %v3935
        %v3937 = vrot.slane %v3813, 5
        %v3938 = vrot.slane %v3937, 4
        %v3939 = vrot.slane %v3814, 5
        %v3940 = vsel %vm1996, %v3938, %v3939
        %v3941 = vrot.slane %v3939, 4
        %v3942 = vrot.slane %v3815, 5
        %v3943 = vsel %vm1996, %v3941, %v3942
        %v3944 = vrot.slane %v3816, 5
        %v3945 = vrot.slane %v3944, 4
        %v3946 = vrot.slane %v3817, 5
        %v3947 = vsel %vm1996, %v3945, %v3946
        %v3948 = vrot.slane %v3946, 4
        %v3949 = vrot.slane %v3818, 5
        %v3950 = vsel %vm1996, %v3948, %v3949
        %v3951 = vrot.slane %v3819, 5
        %v3952 = vrot.slane %v3951, 4
        %v3953 = vrot.slane %v3820, 5
        %v3954 = vsel %vm1996, %v3952, %v3953
        %v3955 = vrot.slane %v3953, 4
        %v3956 = vrot.slane %v3821, 5
        %v3957 = vsel %vm1996, %v3955, %v3956
        %v3958 = vrot.slane %v3822, 5
        %v3959 = vrot.slane %v3958, 4
        %v3960 = vrot.slane %v3823, 5
        %v3961 = vsel %vm1996, %v3959, %v3960
        %v3962 = vrot.slane %v3960, 4
        %v3963 = vrot.slane %v3824, 5
        %v3964 = vsel %vm1996, %v3962, %v3963
        %v3965 = vrot.slane %v3825, 5
        %v3966 = vrot.slane %v3965, 4
        %v3967 = vrot.slane %v3826, 5
        %v3968 = vsel %vm1996, %v3966, %v3967
        %v3969 = vrot.slane %v3967, 4
        %v3970 = vrot.slane %v3827, 5
        %v3971 = vsel %vm1996, %v3969, %v3970
        %v3972 = vrot.slane %v3828, 5
        %v3973 = vrot.slane %v3972, 4
        %v3974 = vrot.slane %v3829, 5
        %v3975 = vsel %vm1996, %v3973, %v3974
        %v3976 = vrot.slane %v3974, 4
        %v3977 = vrot.slane %v3830, 5
        %v3978 = vsel %vm1996, %v3976, %v3977
        %v3979 = vrot.slane %v3831, 5
        %v3980 = vrot.slane %v3979, 4
        %v3981 = vrot.slane %v3832, 5
        %v3982 = vsel %vm1996, %v3980, %v3981
        %v3983 = vrot.slane %v3981, 4
        %v3984 = vrot.slane %v3833, 5
        %v3985 = vsel %vm1996, %v3983, %v3984
        %v3986 = vrot.slane %v3834, 5
        %v3987 = vrot.slane %v3986, 4
        %v3988 = vrot.slane %v3835, 5
        %v3989 = vsel %vm1996, %v3987, %v3988
        %v3990 = vrot.slane %v3988, 4
        %v3991 = vrot.slane %v3836, 5
        %v3992 = vsel %vm1996, %v3990, %v3991
        %v3993 = vrot.slane %v3837, 5
        %v3994 = vrot.slane %v3993, 4
        %v3995 = vrot.slane %v3838, 5
        %v3996 = vsel %vm1996, %v3994, %v3995
        %v3997 = vrot.slane %v3995, 4
        %v3998 = vrot.slane %v3839, 5
        %v3999 = vsel %vm1996, %v3997, %v3998
        %v4000 = vunpack.c.l.b16 %v3891
        %v4001 = vunpack.c.l.b16 %v3894
        %v4002 = vunpack.c.l.b16 %v3898
        %v4003 = vunpack.c.l.b16 %v3901
        %v4004 = vunpack.c.l.b16 %v3905
        %v4005 = vunpack.c.l.b16 %v3908
        %v4006 = vunpack.c.l.b16 %v3912
        %v4007 = vunpack.c.l.b16 %v3915
        %v4008 = vunpack.c.l.b16 %v3919
        %v4009 = vunpack.c.l.b16 %v3922
        %v4010 = vunpack.c.l.b16 %v3926
        %v4011 = vunpack.c.l.b16 %v3929
        %v4012 = vunpack.c.l.b16 %v3933
        %v4013 = vunpack.c.l.b16 %v3936
        %v4014 = vunpack.c.l.b16 %v3940
        %v4015 = vunpack.c.l.b16 %v3943
        %v4016 = vunpack.c.l.b16 %v3947
        %v4017 = vunpack.c.l.b16 %v3950
        %v4018 = vunpack.c.l.b16 %v3954
        %v4019 = vunpack.c.l.b16 %v3957
        %v4020 = vunpack.c.l.b16 %v3961
        %v4021 = vunpack.c.l.b16 %v3964
        %v4022 = vunpack.c.l.b16 %v3968
        %v4023 = vunpack.c.l.b16 %v3971
        %v4024 = vunpack.c.l.b16 %v3975
        %v4025 = vunpack.c.l.b16 %v3978
        %v4026 = vunpack.c.l.b16 %v3982
        %v4027 = vunpack.c.l.b16 %v3985
        %v4028 = vunpack.c.l.b16 %v3989
        %v4029 = vunpack.c.l.b16 %v3992
        %v4030 = vunpack.c.l.b16 %v3996
        %v4031 = vunpack.c.l.b16 %v3999
        %v4032 = vpack.c.b16 %v4001, %v4000
        %v4033 = vpack.c.b16 %v4003, %v4002
        %v4034 = vpack.c.b16 %v4005, %v4004
        %v4035 = vpack.c.b16 %v4007, %v4006
        %v4036 = vpack.c.b16 %v4009, %v4008
        %v4037 = vpack.c.b16 %v4011, %v4010
        %v4038 = vpack.c.b16 %v4013, %v4012
        %v4039 = vpack.c.b16 %v4015, %v4014
        %v4040 = vpack.c.b16 %v4017, %v4016
        %v4041 = vpack.c.b16 %v4019, %v4018
        %v4042 = vpack.c.b16 %v4021, %v4020
        %v4043 = vpack.c.b16 %v4023, %v4022
        %v4044 = vpack.c.b16 %v4025, %v4024
        %v4045 = vpack.c.b16 %v4027, %v4026
        %v4046 = vpack.c.b16 %v4029, %v4028
        %v4047 = vpack.c.b16 %v4031, %v4030
        %4064 = vst.msk [vmem:[#allocation3 + $0x10] sm:$0xff] %vm1560, %v4032
        %4065 = vst.msk [vmem:[#allocation3 + $0x28] sm:$0xff] %vm1560, %v4033
        %4066 = vst.msk [vmem:[#allocation3 + $0x40] sm:$0xff] %vm1560, %v4034
        %4067 = vst.msk [vmem:[#allocation3 + $0x58] sm:$0xff] %vm1560, %v4035
        %4068 = vst.msk [vmem:[#allocation3 + $0x70] sm:$0xff] %vm1560, %v4036
        %4069 = vst.msk [vmem:[#allocation3 + $0x88] sm:$0xff] %vm1560, %v4037
        %4070 = vst.msk [vmem:[#allocation3 + $0xa0] sm:$0xff] %vm1560, %v4038
        %4071 = vst.msk [vmem:[#allocation3 + $0xb8] sm:$0xff] %vm1560, %v4039
        %4072 = vst.msk [vmem:[#allocation3 + $0xd0] sm:$0xff] %vm1560, %v4040
        %4073 = vst.msk [vmem:[#allocation3 + $0xe8] sm:$0xff] %vm1560, %v4041
        %4074 = vst.msk [vmem:[#allocation3 + $0x100] sm:$0xff] %vm1560, %v4042
        %4075 = vst.msk [vmem:[#allocation3 + $0x118] sm:$0xff] %vm1560, %v4043
        %4076 = vst.msk [vmem:[#allocation3 + $0x130] sm:$0xff] %vm1560, %v4044
        %4077 = vst.msk [vmem:[#allocation3 + $0x148] sm:$0xff] %vm1560, %v4045
        %4078 = vst.msk [vmem:[#allocation3 + $0x160] sm:$0xff] %vm1560, %v4046
        %4079 = vst.msk [vmem:[#allocation3 + $0x178] sm:$0xff] %vm1560, %v4047
        %v4080 = vld [vmem:[#allocation3] sm:$0xff]
        %v4081 = vld [vmem:[#allocation3 + $0x8] sm:$0xff]
        %v4082 = vld [vmem:[#allocation3 + $0x10] sm:$0xff]
        %v4083 = vld [vmem:[#allocation3 + $0x18] sm:$0xff]
        %v4084 = vld [vmem:[#allocation3 + $0x20] sm:$0xff]
        %v4085 = vld [vmem:[#allocation3 + $0x28] sm:$0xff]
        %v4086 = vld [vmem:[#allocation3 + $0x30] sm:$0xff]
        %v4087 = vld [vmem:[#allocation3 + $0x38] sm:$0xff]
        %v4088 = vld [vmem:[#allocation3 + $0x40] sm:$0xff]
        %v4089 = vld [vmem:[#allocation3 + $0x48] sm:$0xff]
        %v4090 = vld [vmem:[#allocation3 + $0x50] sm:$0xff]
        %v4091 = vld [vmem:[#allocation3 + $0x58] sm:$0xff]
        %v4092 = vld [vmem:[#allocation3 + $0x60] sm:$0xff]
        %v4093 = vld [vmem:[#allocation3 + $0x68] sm:$0xff]
        %v4094 = vld [vmem:[#allocation3 + $0x70] sm:$0xff]
        %v4095 = vld [vmem:[#allocation3 + $0x78] sm:$0xff]
        %v4096 = vld [vmem:[#allocation3 + $0x80] sm:$0xff]
        %v4097 = vld [vmem:[#allocation3 + $0x88] sm:$0xff]
        %v4098 = vld [vmem:[#allocation3 + $0x90] sm:$0xff]
        %v4099 = vld [vmem:[#allocation3 + $0x98] sm:$0xff]
        %v4100 = vld [vmem:[#allocation3 + $0xa0] sm:$0xff]
        %v4101 = vld [vmem:[#allocation3 + $0xa8] sm:$0xff]
        %v4102 = vld [vmem:[#allocation3 + $0xb0] sm:$0xff]
        %v4103 = vld [vmem:[#allocation3 + $0xb8] sm:$0xff]
        %v4104 = vld [vmem:[#allocation3 + $0xc0] sm:$0xff]
        %v4105 = vld [vmem:[#allocation3 + $0xc8] sm:$0xff]
        %v4106 = vld [vmem:[#allocation3 + $0xd0] sm:$0xff]
        %v4107 = vld [vmem:[#allocation3 + $0xd8] sm:$0xff]
        %v4108 = vld [vmem:[#allocation3 + $0xe0] sm:$0xff]
        %v4109 = vld [vmem:[#allocation3 + $0xe8] sm:$0xff]
        %v4110 = vld [vmem:[#allocation3 + $0xf0] sm:$0xff]
        %v4111 = vld [vmem:[#allocation3 + $0xf8] sm:$0xff]
        %v4112 = vld [vmem:[#allocation3 + $0x100] sm:$0xff]
        %v4113 = vld [vmem:[#allocation3 + $0x108] sm:$0xff]
        %v4114 = vld [vmem:[#allocation3 + $0x110] sm:$0xff]
        %v4115 = vld [vmem:[#allocation3 + $0x118] sm:$0xff]
        %v4116 = vld [vmem:[#allocation3 + $0x120] sm:$0xff]
        %v4117 = vld [vmem:[#allocation3 + $0x128] sm:$0xff]
        %v4118 = vld [vmem:[#allocation3 + $0x130] sm:$0xff]
        %v4119 = vld [vmem:[#allocation3 + $0x138] sm:$0xff]
        %v4120 = vld [vmem:[#allocation3 + $0x140] sm:$0xff]
        %v4121 = vld [vmem:[#allocation3 + $0x148] sm:$0xff]
        %v4122 = vld [vmem:[#allocation3 + $0x150] sm:$0xff]
        %v4123 = vld [vmem:[#allocation3 + $0x158] sm:$0xff]
        %v4124 = vld [vmem:[#allocation3 + $0x160] sm:$0xff]
        %v4125 = vld [vmem:[#allocation3 + $0x168] sm:$0xff]
        %v4126 = vld [vmem:[#allocation3 + $0x170] sm:$0xff]
        %v4127 = vld [vmem:[#allocation3 + $0x178] sm:$0xff]
        %v4128 = vld [vmem:[%s3] sm:$0xf]
        %v4129 = vld [vmem:[%s3 + $0x4] sm:$0xf]
        %v4130 = vld [vmem:[%s3 + $0x8] sm:$0xf]
        %v4131 = vld [vmem:[%s3 + $0xc] sm:$0xf]
        %v4132 = vld [vmem:[%s3 + $0x10] sm:$0xf]
        %v4133 = vld [vmem:[%s3 + $0x14] sm:$0xf]
        %v4134 = vld [vmem:[%s3 + $0x18] sm:$0xf]
        %v4135 = vld [vmem:[%s3 + $0x1c] sm:$0xf]
        %v4136 = vld [vmem:[%s3 + $0x20] sm:$0xf]
        %v4137 = vld [vmem:[%s3 + $0x24] sm:$0xf]
        %v4138 = vld [vmem:[%s3 + $0x28] sm:$0xf]
        %v4139 = vld [vmem:[%s3 + $0x2c] sm:$0xf]
        %v4140 = vld [vmem:[%s3 + $0x30] sm:$0xf]
        %v4141 = vld [vmem:[%s3 + $0x34] sm:$0xf]
        %v4142 = vld [vmem:[%s3 + $0x38] sm:$0xf]
        %v4143 = vld [vmem:[%s3 + $0x3c] sm:$0xf]
        %v4144 = vld [vmem:[%s3 + $0x40] sm:$0xf]
        %v4145 = vld [vmem:[%s3 + $0x44] sm:$0xf]
        %v4146 = vld [vmem:[%s3 + $0x48] sm:$0xf]
        %v4147 = vld [vmem:[%s3 + $0x4c] sm:$0xf]
        %v4148 = vld [vmem:[%s3 + $0x50] sm:$0xf]
        %v4149 = vld [vmem:[%s3 + $0x54] sm:$0xf]
        %v4150 = vld [vmem:[%s3 + $0x58] sm:$0xf]
        %v4151 = vld [vmem:[%s3 + $0x5c] sm:$0xf]
        %v4152 = vld [vmem:[%s3 + $0x60] sm:$0xf]
        %v4153 = vld [vmem:[%s3 + $0x64] sm:$0xf]
        %v4154 = vld [vmem:[%s3 + $0x68] sm:$0xf]
        %v4155 = vld [vmem:[%s3 + $0x6c] sm:$0xf]
        %v4156 = vld [vmem:[%s3 + $0x70] sm:$0xf]
        %v4157 = vld [vmem:[%s3 + $0x74] sm:$0xf]
        %v4158 = vld [vmem:[%s3 + $0x78] sm:$0xf]
        %v4159 = vld [vmem:[%s3 + $0x7c] sm:$0xf]
        %v4160 = vld [vmem:[%s3 + $0x80] sm:$0xf]
        %v4161 = vld [vmem:[%s3 + $0x84] sm:$0xf]
        %v4162 = vld [vmem:[%s3 + $0x88] sm:$0xf]
        %v4163 = vld [vmem:[%s3 + $0x8c] sm:$0xf]
        %v4164 = vld [vmem:[#allocation9] sm:$0x1]
        %v4166 = vlaneseq
        %v4167 = vshrl.u32 %v4166, 7
        %v4168 = vsub.s32 0, %v4167
        %v4169 = vrot.slane %v4164, %v4168
        %v4207 = vunpack.c.l.b16 %v4128
        %v4208 = vunpack.c.l.b16 %v4129
        %v4209 = vunpack.c.l.b16 %v4130
        %v4210 = vunpack.c.l.b16 %v4131
        %v4211 = vunpack.c.l.b16 %v4132
        %v4212 = vunpack.c.l.b16 %v4133
        %v4213 = vunpack.c.l.b16 %v4134
        %v4214 = vunpack.c.l.b16 %v4135
        %v4215 = vunpack.c.l.b16 %v4136
        %v4216 = vunpack.c.l.b16 %v4137
        %v4217 = vunpack.c.l.b16 %v4138
        %v4218 = vunpack.c.l.b16 %v4139
        %v4219 = vunpack.c.l.b16 %v4140
        %v4220 = vunpack.c.l.b16 %v4141
        %v4221 = vunpack.c.l.b16 %v4142
        %v4222 = vunpack.c.l.b16 %v4143
        %v4223 = vunpack.c.l.b16 %v4144
        %v4224 = vunpack.c.l.b16 %v4145
        %v4225 = vunpack.c.l.b16 %v4146
        %v4226 = vunpack.c.l.b16 %v4147
        %v4227 = vunpack.c.l.b16 %v4148
        %v4228 = vunpack.c.l.b16 %v4149
        %v4229 = vunpack.c.l.b16 %v4150
        %v4230 = vunpack.c.l.b16 %v4151
        %v4231 = vunpack.c.l.b16 %v4152
        %v4232 = vunpack.c.l.b16 %v4153
        %v4233 = vunpack.c.l.b16 %v4154
        %v4234 = vunpack.c.l.b16 %v4155
        %v4235 = vunpack.c.l.b16 %v4156
        %v4236 = vunpack.c.l.b16 %v4157
        %v4237 = vunpack.c.l.b16 %v4158
        %v4238 = vunpack.c.l.b16 %v4159
        %v4239 = vunpack.c.l.b16 %v4160
        %v4240 = vunpack.c.l.b16 %v4161
        %v4241 = vunpack.c.l.b16 %v4162
        %v4242 = vunpack.c.l.b16 %v4163
        %v4243 = vpack.c.b16 %v4208, %v4207
        %v4244 = vpack.c.b16 %v4210, %v4209
        %v4245 = vpack.c.b16 %v4212, %v4211
        %v4246 = vpack.c.b16 %v4214, %v4213
        %v4247 = vpack.c.b16 %v4216, %v4215
        %v4248 = vpack.c.b16 %v4218, %v4217
        %v4249 = vpack.c.b16 %v4220, %v4219
        %v4250 = vpack.c.b16 %v4222, %v4221
        %v4251 = vpack.c.b16 %v4224, %v4223
        %v4252 = vpack.c.b16 %v4226, %v4225
        %v4253 = vpack.c.b16 %v4228, %v4227
        %v4254 = vpack.c.b16 %v4230, %v4229
        %v4255 = vpack.c.b16 %v4232, %v4231
        %v4256 = vpack.c.b16 %v4234, %v4233
        %v4257 = vpack.c.b16 %v4236, %v4235
        %v4258 = vpack.c.b16 %v4238, %v4237
        %v4259 = vpack.c.b16 %v4240, %v4239
        %v4260 = vpack.c.b16 %v4242, %v4241
        %v4280 = vsel %vm1560, %v4082, 0
        %v4283 = vsel %vm1560, %v4085, 0
        %v4286 = vsel %vm1560, %v4088, 0
        %v4289 = vsel %vm1560, %v4091, 0
        %v4292 = vsel %vm1560, %v4094, 0
        %v4295 = vsel %vm1560, %v4097, 0
        %v4298 = vsel %vm1560, %v4100, 0
        %v4301 = vsel %vm1560, %v4103, 0
        %v4304 = vsel %vm1560, %v4106, 0
        %v4307 = vsel %vm1560, %v4109, 0
        %v4310 = vsel %vm1560, %v4112, 0
        %v4313 = vsel %vm1560, %v4115, 0
        %v4316 = vsel %vm1560, %v4118, 0
        %v4319 = vsel %vm1560, %v4121, 0
        %v4322 = vsel %vm1560, %v4124, 0
        %v4325 = vsel %vm1560, %v4127, 0
        %4327 = vmatprep.subr.bf16.mxu0 0
        %4328 = vmatpush1.bf16.msra.mxu0 %v4243
        %4329 = vmatprep.subr.bf16.mxu0 0
        %4330 = vmatpush1.bf16.msra.mxu0 %v4244
        %4331 = vmatprep.subr.bf16.mxu0 0
        %4332 = vmatpush1.bf16.msra.mxu0 %v4245
        %4333 = vmatprep.subr.bf16.mxu0 0
        %4334 = vmatpush1.bf16.msra.mxu0 %v4246
        %4335 = vmatprep.subr.bf16.mxu0 0
        %4336 = vmatpush1.bf16.msra.mxu0 %v4247
        %4337 = vmatprep.subr.bf16.mxu0 0
        %4338 = vmatpush1.bf16.msra.mxu0 %v4248
        %4339 = vmatprep.subr.bf16.mxu0 0
        %4340 = vmatpush1.bf16.msra.mxu0 %v4249
        %4341 = vmatprep.subr.bf16.mxu0 0
        %4342 = vmatpush1.bf16.msra.mxu0 %v4250
        %4343 = vmatprep.subr.bf16.mxu0 0
        %4344 = vmatpush1.bf16.msra.mxu0 %v4251
        %4345 = vmatprep.subr.bf16.mxu0 0
        %4346 = vmatpush1.bf16.msra.mxu0 %v4252
        %4347 = vmatprep.subr.bf16.mxu0 0
        %4348 = vmatpush1.bf16.msra.mxu0 %v4253
        %4349 = vmatprep.subr.bf16.mxu0 0
        %4350 = vmatpush1.bf16.msra.mxu0 %v4254
        %4351 = vmatprep.subr.bf16.mxu0 0
        %4352 = vmatpush1.bf16.msra.mxu0 %v4255
        %4353 = vmatprep.subr.bf16.mxu0 0
        %4354 = vmatpush1.bf16.msra.mxu0 %v4256
        %4355 = vmatprep.subr.bf16.mxu0 0
        %4356 = vmatpush1.bf16.msra.mxu0 %v4257
        %4357 = vmatprep.subr.bf16.mxu0 0
        %4358 = vmatpush1.bf16.msra.mxu0 %v4258
        %4359 = vmatprep.mubr.bf16.mxu0 %v4081
        %4360 = vmatmul.mubr.bf16.gmra.mrb[0].mxu0 %v4080
        %v4361 = vpop.f32.mrb[0].mxu0
        %v4362 = vadd.f32 %v4169, %v4361
        %v4363 = vpop.f32.mrb[0].mxu0
        %v4364 = vpop.f32.mrb[0].mxu0
        %v4365 = vadd.f32 %v4169, %v4364
        %v4366 = vpop.f32.mrb[0].mxu0
        %4367 = vmatprep.mubr.bf16.mxu0 %v4084
        %4368 = vmatmul.mubr.bf16.gmra.mrb[0].mxu0 %v4083
        %v4369 = vpop.f32.mrb[0].mxu0
        %v4370 = vadd.f32 %v4169, %v4369
        %v4371 = vpop.f32.mrb[0].mxu0
        %v4372 = vpop.f32.mrb[0].mxu0
        %v4373 = vadd.f32 %v4169, %v4372
        %v4374 = vpop.f32.mrb[0].mxu0
        %4375 = vmatprep.mubr.bf16.mxu0 %v4087
        %4376 = vmatmul.mubr.bf16.gmra.mrb[0].mxu0 %v4086
        %v4377 = vpop.f32.mrb[0].mxu0
        %v4378 = vadd.f32 %v4169, %v4377
        %v4379 = vpop.f32.mrb[0].mxu0
        %v4380 = vpop.f32.mrb[0].mxu0
        %v4381 = vadd.f32 %v4169, %v4380
        %v4382 = vpop.f32.mrb[0].mxu0
        %4383 = vmatprep.mubr.bf16.mxu0 %v4090
        %4384 = vmatmul.mubr.bf16.gmra.mrb[0].mxu0 %v4089
        %v4385 = vpop.f32.mrb[0].mxu0
        %v4386 = vadd.f32 %v4169, %v4385
        %v4387 = vpop.f32.mrb[0].mxu0
        %v4388 = vpop.f32.mrb[0].mxu0
        %v4389 = vadd.f32 %v4169, %v4388
        %v4390 = vpop.f32.mrb[0].mxu0
        %4391 = vmatprep.mubr.bf16.mxu0 %v4093
        %4392 = vmatmul.mubr.bf16.gmra.mrb[0].mxu0 %v4092
        %v4393 = vpop.f32.mrb[0].mxu0
        %v4394 = vadd.f32 %v4169, %v4393
        %v4395 = vpop.f32.mrb[0].mxu0
        %v4396 = vpop.f32.mrb[0].mxu0
        %v4397 = vadd.f32 %v4169, %v4396
        %v4398 = vpop.f32.mrb[0].mxu0
        %4399 = vmatprep.mubr.bf16.mxu0 %v4096
        %4400 = vmatmul.mubr.bf16.gmra.mrb[0].mxu0 %v4095
        %v4401 = vpop.f32.mrb[0].mxu0
        %v4402 = vadd.f32 %v4169, %v4401
        %v4403 = vpop.f32.mrb[0].mxu0
        %v4404 = vpop.f32.mrb[0].mxu0
        %v4405 = vadd.f32 %v4169, %v4404
        %v4406 = vpop.f32.mrb[0].mxu0
        %4407 = vmatprep.mubr.bf16.mxu0 %v4099
        %4408 = vmatmul.mubr.bf16.gmra.mrb[0].mxu0 %v4098
        %v4409 = vpop.f32.mrb[0].mxu0
        %v4410 = vadd.f32 %v4169, %v4409
        %v4411 = vpop.f32.mrb[0].mxu0
        %v4412 = vpop.f32.mrb[0].mxu0
        %v4413 = vadd.f32 %v4169, %v4412
        %v4414 = vpop.f32.mrb[0].mxu0
        %4415 = vmatprep.mubr.bf16.mxu0 %v4102
        %4416 = vmatmul.mubr.bf16.gmra.mrb[0].mxu0 %v4101
        %v4417 = vpop.f32.mrb[0].mxu0
        %v4418 = vadd.f32 %v4169, %v4417
        %v4419 = vpop.f32.mrb[0].mxu0
        %v4420 = vpop.f32.mrb[0].mxu0
        %v4421 = vadd.f32 %v4169, %v4420
        %v4422 = vpop.f32.mrb[0].mxu0
        %4423 = vmatprep.mubr.bf16.mxu0 %v4105
        %4424 = vmatmul.mubr.bf16.gmra.mrb[0].mxu0 %v4104
        %v4425 = vpop.f32.mrb[0].mxu0
        %v4426 = vadd.f32 %v4169, %v4425
        %v4427 = vpop.f32.mrb[0].mxu0
        %v4428 = vpop.f32.mrb[0].mxu0
        %v4429 = vadd.f32 %v4169, %v4428
        %v4430 = vpop.f32.mrb[0].mxu0
        %4431 = vmatprep.mubr.bf16.mxu0 %v4108
        %4432 = vmatmul.mubr.bf16.gmra.mrb[0].mxu0 %v4107
        %v4433 = vpop.f32.mrb[0].mxu0
        %v4434 = vadd.f32 %v4169, %v4433
        %v4435 = vpop.f32.mrb[0].mxu0
        %v4436 = vpop.f32.mrb[0].mxu0
        %v4437 = vadd.f32 %v4169, %v4436
        %v4438 = vpop.f32.mrb[0].mxu0
        %4439 = vmatprep.mubr.bf16.mxu0 %v4111
        %4440 = vmatmul.mubr.bf16.gmra.mrb[0].mxu0 %v4110
        %v4441 = vpop.f32.mrb[0].mxu0
        %v4442 = vadd.f32 %v4169, %v4441
        %v4443 = vpop.f32.mrb[0].mxu0
        %v4444 = vpop.f32.mrb[0].mxu0
        %v4445 = vadd.f32 %v4169, %v4444
        %v4446 = vpop.f32.mrb[0].mxu0
        %4447 = vmatprep.mubr.bf16.mxu0 %v4114
        %4448 = vmatmul.mubr.bf16.gmra.mrb[0].mxu0 %v4113
        %v4449 = vpop.f32.mrb[0].mxu0
        %v4450 = vadd.f32 %v4169, %v4449
        %v4451 = vpop.f32.mrb[0].mxu0
        %v4452 = vpop.f32.mrb[0].mxu0
        %v4453 = vadd.f32 %v4169, %v4452
        %v4454 = vpop.f32.mrb[0].mxu0
        %4455 = vmatprep.mubr.bf16.mxu0 %v4117
        %4456 = vmatmul.mubr.bf16.gmra.mrb[0].mxu0 %v4116
        %v4457 = vpop.f32.mrb[0].mxu0
        %v4458 = vadd.f32 %v4169, %v4457
        %v4459 = vpop.f32.mrb[0].mxu0
        %v4460 = vpop.f32.mrb[0].mxu0
        %v4461 = vadd.f32 %v4169, %v4460
        %v4462 = vpop.f32.mrb[0].mxu0
        %4463 = vmatprep.mubr.bf16.mxu0 %v4120
        %4464 = vmatmul.mubr.bf16.gmra.mrb[0].mxu0 %v4119
        %v4465 = vpop.f32.mrb[0].mxu0
        %v4466 = vadd.f32 %v4169, %v4465
        %v4467 = vpop.f32.mrb[0].mxu0
        %v4468 = vpop.f32.mrb[0].mxu0
        %v4469 = vadd.f32 %v4169, %v4468
        %v4470 = vpop.f32.mrb[0].mxu0
        %4471 = vmatprep.mubr.bf16.mxu0 %v4123
        %4472 = vmatmul.mubr.bf16.gmra.mrb[0].mxu0 %v4122
        %v4473 = vpop.f32.mrb[0].mxu0
        %v4474 = vadd.f32 %v4169, %v4473
        %v4475 = vpop.f32.mrb[0].mxu0
        %v4476 = vpop.f32.mrb[0].mxu0
        %v4477 = vadd.f32 %v4169, %v4476
        %v4478 = vpop.f32.mrb[0].mxu0
        %4479 = vmatprep.mubr.bf16.mxu0 %v4126
        %4480 = vmatmul.mubr.bf16.gmra.mrb[0].mxu0 %v4125
        %v4481 = vpop.f32.mrb[0].mxu0
        %v4482 = vadd.f32 %v4169, %v4481
        %v4483 = vpop.f32.mrb[0].mxu0
        %v4484 = vpop.f32.mrb[0].mxu0
        %v4485 = vadd.f32 %v4169, %v4484
        %v4486 = vpop.f32.mrb[0].mxu0
        %4487 = vdwg.mxu0
        %4488 = vmatprep.subr.bf16.mxu0 0
        %4489 = vmatpush1.bf16.msra.mxu0 %v4259
        %4490 = vmatprep.subr.bf16.mxu0 0
        %4491 = vmatpush1.bf16.msra.mxu0 %v4260
        %4492 = vmatprep.subr.bf16.mxu0 0
        %4493 = vmatpush1.bf16.msra.mxu0 0
        %4494 = vmatprep.subr.bf16.mxu0 0
        %4495 = vmatpush1.bf16.msra.mxu0 0
        %4496 = vmatprep.subr.bf16.mxu0 0
        %4497 = vmatpush1.bf16.msra.mxu0 0
        %4498 = vmatprep.subr.bf16.mxu0 0
        %4499 = vmatpush1.bf16.msra.mxu0 0
        %4500 = vmatprep.subr.bf16.mxu0 0
        %4501 = vmatpush1.bf16.msra.mxu0 0
        %4502 = vmatprep.subr.bf16.mxu0 0
        %4503 = vmatpush1.bf16.msra.mxu0 0
        %4504 = vmatprep.subr.bf16.mxu0 0
        %4505 = vmatpush1.bf16.msra.mxu0 0
        %4506 = vmatprep.subr.bf16.mxu0 0
        %4507 = vmatpush1.bf16.msra.mxu0 0
        %4508 = vmatprep.subr.bf16.mxu0 0
        %4509 = vmatpush1.bf16.msra.mxu0 0
        %4510 = vmatprep.subr.bf16.mxu0 0
        %4511 = vmatpush1.bf16.msra.mxu0 0
        %4512 = vmatprep.subr.bf16.mxu0 0
        %4513 = vmatpush1.bf16.msra.mxu0 0
        %4514 = vmatprep.subr.bf16.mxu0 0
        %4515 = vmatpush1.bf16.msra.mxu0 0
        %4516 = vmatprep.subr.bf16.mxu0 0
        %4517 = vmatpush1.bf16.msra.mxu0 0
        %4518 = vmatprep.subr.bf16.mxu0 0
        %4519 = vmatpush1.bf16.msra.mxu0 0
        %4520 = vmatprep.mubr.bf16.mxu0 0
        %4521 = vmatmul.mubr.bf16.gmra.mrb[0].mxu0 %v4280
        %v4522 = vpop.f32.mrb[0].mxu0
        %v4523 = vadd.f32 %v4362, %v4522
        %v4524 = vpop.f32.mrb[0].mxu0
        %v4525 = vpop.f32.mrb[0].mxu0
        %v4526 = vadd.f32 %v4365, %v4525
        %v4527 = vpop.f32.mrb[0].mxu0
        %4528 = vmatprep.mubr.bf16.mxu0 0
        %4529 = vmatmul.mubr.bf16.gmra.mrb[0].mxu0 %v4283
        %v4530 = vpop.f32.mrb[0].mxu0
        %v4531 = vadd.f32 %v4370, %v4530
        %v4532 = vpop.f32.mrb[0].mxu0
        %v4533 = vpop.f32.mrb[0].mxu0
        %v4534 = vadd.f32 %v4373, %v4533
        %v4535 = vpop.f32.mrb[0].mxu0
        %4536 = vmatprep.mubr.bf16.mxu0 0
        %4537 = vmatmul.mubr.bf16.gmra.mrb[0].mxu0 %v4286
        %v4538 = vpop.f32.mrb[0].mxu0
        %v4539 = vadd.f32 %v4378, %v4538
        %v4540 = vpop.f32.mrb[0].mxu0
        %v4541 = vpop.f32.mrb[0].mxu0
        %v4542 = vadd.f32 %v4381, %v4541
        %v4543 = vpop.f32.mrb[0].mxu0
        %4544 = vmatprep.mubr.bf16.mxu0 0
        %4545 = vmatmul.mubr.bf16.gmra.mrb[0].mxu0 %v4289
        %v4546 = vpop.f32.mrb[0].mxu0
        %v4547 = vadd.f32 %v4386, %v4546
        %v4548 = vpop.f32.mrb[0].mxu0
        %v4549 = vpop.f32.mrb[0].mxu0
        %v4550 = vadd.f32 %v4389, %v4549
        %v4551 = vpop.f32.mrb[0].mxu0
        %4552 = vmatprep.mubr.bf16.mxu0 0
        %4553 = vmatmul.mubr.bf16.gmra.mrb[0].mxu0 %v4292
        %v4554 = vpop.f32.mrb[0].mxu0
        %v4555 = vadd.f32 %v4394, %v4554
        %v4556 = vpop.f32.mrb[0].mxu0
        %v4557 = vpop.f32.mrb[0].mxu0
        %v4558 = vadd.f32 %v4397, %v4557
        %v4559 = vpop.f32.mrb[0].mxu0
        %4560 = vmatprep.mubr.bf16.mxu0 0
        %4561 = vmatmul.mubr.bf16.gmra.mrb[0].mxu0 %v4295
        %v4562 = vpop.f32.mrb[0].mxu0
        %v4563 = vadd.f32 %v4402, %v4562
        %v4564 = vpop.f32.mrb[0].mxu0
        %v4565 = vpop.f32.mrb[0].mxu0
        %v4566 = vadd.f32 %v4405, %v4565
        %v4567 = vpop.f32.mrb[0].mxu0
        %4568 = vmatprep.mubr.bf16.mxu0 0
        %4569 = vmatmul.mubr.bf16.gmra.mrb[0].mxu0 %v4298
        %v4570 = vpop.f32.mrb[0].mxu0
        %v4571 = vadd.f32 %v4410, %v4570
        %v4572 = vpop.f32.mrb[0].mxu0
        %v4573 = vpop.f32.mrb[0].mxu0
        %v4574 = vadd.f32 %v4413, %v4573
        %v4575 = vpop.f32.mrb[0].mxu0
        %4576 = vmatprep.mubr.bf16.mxu0 0
        %4577 = vmatmul.mubr.bf16.gmra.mrb[0].mxu0 %v4301
        %v4578 = vpop.f32.mrb[0].mxu0
        %v4579 = vadd.f32 %v4418, %v4578
        %v4580 = vpop.f32.mrb[0].mxu0
        %v4581 = vpop.f32.mrb[0].mxu0
        %v4582 = vadd.f32 %v4421, %v4581
        %v4583 = vpop.f32.mrb[0].mxu0
        %4584 = vmatprep.mubr.bf16.mxu0 0
        %4585 = vmatmul.mubr.bf16.gmra.mrb[0].mxu0 %v4304
        %v4586 = vpop.f32.mrb[0].mxu0
        %v4587 = vadd.f32 %v4426, %v4586
        %v4588 = vpop.f32.mrb[0].mxu0
        %v4589 = vpop.f32.mrb[0].mxu0
        %v4590 = vadd.f32 %v4429, %v4589
        %v4591 = vpop.f32.mrb[0].mxu0
        %4592 = vmatprep.mubr.bf16.mxu0 0
        %4593 = vmatmul.mubr.bf16.gmra.mrb[0].mxu0 %v4307
        %v4594 = vpop.f32.mrb[0].mxu0
        %v4595 = vadd.f32 %v4434, %v4594
        %v4596 = vpop.f32.mrb[0].mxu0
        %v4597 = vpop.f32.mrb[0].mxu0
        %v4598 = vadd.f32 %v4437, %v4597
        %v4599 = vpop.f32.mrb[0].mxu0
        %4600 = vmatprep.mubr.bf16.mxu0 0
        %4601 = vmatmul.mubr.bf16.gmra.mrb[0].mxu0 %v4310
        %v4602 = vpop.f32.mrb[0].mxu0
        %v4603 = vadd.f32 %v4442, %v4602
        %v4604 = vpop.f32.mrb[0].mxu0
        %v4605 = vpop.f32.mrb[0].mxu0
        %v4606 = vadd.f32 %v4445, %v4605
        %v4607 = vpop.f32.mrb[0].mxu0
        %4608 = vmatprep.mubr.bf16.mxu0 0
        %4609 = vmatmul.mubr.bf16.gmra.mrb[0].mxu0 %v4313
        %v4610 = vpop.f32.mrb[0].mxu0
        %v4611 = vadd.f32 %v4450, %v4610
        %v4612 = vpop.f32.mrb[0].mxu0
        %v4613 = vpop.f32.mrb[0].mxu0
        %v4614 = vadd.f32 %v4453, %v4613
        %v4615 = vpop.f32.mrb[0].mxu0
        %4616 = vmatprep.mubr.bf16.mxu0 0
        %4617 = vmatmul.mubr.bf16.gmra.mrb[0].mxu0 %v4316
        %v4618 = vpop.f32.mrb[0].mxu0
        %v4619 = vadd.f32 %v4458, %v4618
        %v4620 = vpop.f32.mrb[0].mxu0
        %v4621 = vpop.f32.mrb[0].mxu0
        %v4622 = vadd.f32 %v4461, %v4621
        %v4623 = vpop.f32.mrb[0].mxu0
        %4624 = vmatprep.mubr.bf16.mxu0 0
        %4625 = vmatmul.mubr.bf16.gmra.mrb[0].mxu0 %v4319
        %v4626 = vpop.f32.mrb[0].mxu0
        %v4627 = vadd.f32 %v4466, %v4626
        %v4628 = vpop.f32.mrb[0].mxu0
        %v4629 = vpop.f32.mrb[0].mxu0
        %v4630 = vadd.f32 %v4469, %v4629
        %v4631 = vpop.f32.mrb[0].mxu0
        %4632 = vmatprep.mubr.bf16.mxu0 0
        %4633 = vmatmul.mubr.bf16.gmra.mrb[0].mxu0 %v4322
        %v4634 = vpop.f32.mrb[0].mxu0
        %v4635 = vadd.f32 %v4474, %v4634
        %v4636 = vpop.f32.mrb[0].mxu0
        %v4637 = vpop.f32.mrb[0].mxu0
        %v4638 = vadd.f32 %v4477, %v4637
        %v4639 = vpop.f32.mrb[0].mxu0
        %4640 = vmatprep.mubr.bf16.mxu0 0
        %4641 = vmatmul.mubr.bf16.gmra.mrb[0].mxu0 %v4325
        %v4642 = vpop.f32.mrb[0].mxu0
        %v4643 = vadd.f32 %v4482, %v4642
        %v4644 = vpop.f32.mrb[0].mxu0
        %v4645 = vpop.f32.mrb[0].mxu0
        %v4646 = vadd.f32 %v4485, %v4645
        %v4647 = vpop.f32.mrb[0].mxu0
        %4648 = vdwg.mxu0
        %v4649 = vmax.f32 %v4523, 0.0
        %v4650 = vmax.f32 %v4526, 0.0
        %v4651 = vmax.f32 %v4531, 0.0
        %v4652 = vmax.f32 %v4534, 0.0
        %v4653 = vmax.f32 %v4539, 0.0
        %v4654 = vmax.f32 %v4542, 0.0
        %v4655 = vmax.f32 %v4547, 0.0
        %v4656 = vmax.f32 %v4550, 0.0
        %v4657 = vmax.f32 %v4555, 0.0
        %v4658 = vmax.f32 %v4558, 0.0
        %v4659 = vmax.f32 %v4563, 0.0
        %v4660 = vmax.f32 %v4566, 0.0
        %v4661 = vmax.f32 %v4571, 0.0
        %v4662 = vmax.f32 %v4574, 0.0
        %v4663 = vmax.f32 %v4579, 0.0
        %v4664 = vmax.f32 %v4582, 0.0
        %v4665 = vmax.f32 %v4587, 0.0
        %v4666 = vmax.f32 %v4590, 0.0
        %v4667 = vmax.f32 %v4595, 0.0
        %v4668 = vmax.f32 %v4598, 0.0
        %v4669 = vmax.f32 %v4603, 0.0
        %v4670 = vmax.f32 %v4606, 0.0
        %v4671 = vmax.f32 %v4611, 0.0
        %v4672 = vmax.f32 %v4614, 0.0
        %v4673 = vmax.f32 %v4619, 0.0
        %v4674 = vmax.f32 %v4622, 0.0
        %v4675 = vmax.f32 %v4627, 0.0
        %v4676 = vmax.f32 %v4630, 0.0
        %v4677 = vmax.f32 %v4635, 0.0
        %v4678 = vmax.f32 %v4638, 0.0
        %v4679 = vmax.f32 %v4643, 0.0
        %v4680 = vmax.f32 %v4646, 0.0
        %v4681 = vpack.c.bf16 %v4650, %v4649
        %v4682 = vpack.c.bf16 %v4652, %v4651
        %v4683 = vpack.c.bf16 %v4654, %v4653
        %v4684 = vpack.c.bf16 %v4656, %v4655
        %v4685 = vpack.c.bf16 %v4658, %v4657
        %v4686 = vpack.c.bf16 %v4660, %v4659
        %v4687 = vpack.c.bf16 %v4662, %v4661
        %v4688 = vpack.c.bf16 %v4664, %v4663
        %v4689 = vpack.c.bf16 %v4666, %v4665
        %v4690 = vpack.c.bf16 %v4668, %v4667
        %v4691 = vpack.c.bf16 %v4670, %v4669
        %v4692 = vpack.c.bf16 %v4672, %v4671
        %v4693 = vpack.c.bf16 %v4674, %v4673
        %v4694 = vpack.c.bf16 %v4676, %v4675
        %v4695 = vpack.c.bf16 %v4678, %v4677
        %v4696 = vpack.c.bf16 %v4680, %v4679
        %v4697 = vld [vmem:[%s8] sm:$0xf]
        %v4698 = vld [vmem:[%s8 + $0x4] sm:$0xf]
        %v4699 = vld [vmem:[%s8 + $0x8] sm:$0xf]
        %v4700 = vld [vmem:[%s8 + $0xc] sm:$0xf]
        %v4701 = vld [vmem:[%s8 + $0x10] sm:$0xf]
        %v4702 = vld [vmem:[%s8 + $0x14] sm:$0xf]
        %v4703 = vld [vmem:[%s8 + $0x18] sm:$0xf]
        %v4704 = vld [vmem:[%s8 + $0x1c] sm:$0xf]
        %v4705 = vld [vmem:[%s8 + $0x20] sm:$0xf]
        %v4706 = vld [vmem:[%s8 + $0x24] sm:$0xf]
        %v4707 = vld [vmem:[%s8 + $0x28] sm:$0xf]
        %v4708 = vld [vmem:[%s8 + $0x2c] sm:$0xf]
        %v4709 = vld [vmem:[%s8 + $0x30] sm:$0xf]
        %v4710 = vld [vmem:[%s8 + $0x34] sm:$0xf]
        %v4711 = vld [vmem:[%s8 + $0x38] sm:$0xf]
        %v4712 = vld [vmem:[%s8 + $0x3c] sm:$0xf]
        %v4713 = vld [vmem:[#allocation11] sm:$0x1]
        %v4715 = vlaneseq
        %v4716 = vshrl.u32 %v4715, 7
        %v4717 = vsub.s32 0, %v4716
        %v4718 = vrot.slane %v4713, %v4717
        %v4736 = vunpack.c.l.b16 %v4697
        %v4737 = vunpack.c.l.b16 %v4698
        %v4738 = vunpack.c.l.b16 %v4699
        %v4739 = vunpack.c.l.b16 %v4700
        %v4740 = vunpack.c.l.b16 %v4701
        %v4741 = vunpack.c.l.b16 %v4702
        %v4742 = vunpack.c.l.b16 %v4703
        %v4743 = vunpack.c.l.b16 %v4704
        %v4744 = vunpack.c.l.b16 %v4705
        %v4745 = vunpack.c.l.b16 %v4706
        %v4746 = vunpack.c.l.b16 %v4707
        %v4747 = vunpack.c.l.b16 %v4708
        %v4748 = vunpack.c.l.b16 %v4709
        %v4749 = vunpack.c.l.b16 %v4710
        %v4750 = vunpack.c.l.b16 %v4711
        %v4751 = vunpack.c.l.b16 %v4712
        %v4752 = vpack.c.b16 %v4737, %v4736
        %v4753 = vpack.c.b16 %v4739, %v4738
        %v4754 = vpack.c.b16 %v4741, %v4740
        %v4755 = vpack.c.b16 %v4743, %v4742
        %v4756 = vpack.c.b16 %v4745, %v4744
        %v4757 = vpack.c.b16 %v4747, %v4746
        %v4758 = vpack.c.b16 %v4749, %v4748
        %v4759 = vpack.c.b16 %v4751, %v4750
        %4768 = vmatprep.subr.bf16.mxu0 0
        %4769 = vmatpush1.bf16.msra.mxu0 %v4752
        %4770 = vmatprep.subr.bf16.mxu0 0
        %4771 = vmatpush1.bf16.msra.mxu0 %v4753
        %4772 = vmatprep.subr.bf16.mxu0 0
        %4773 = vmatpush1.bf16.msra.mxu0 %v4754
        %4774 = vmatprep.subr.bf16.mxu0 0
        %4775 = vmatpush1.bf16.msra.mxu0 %v4755
        %4776 = vmatprep.subr.bf16.mxu0 0
        %4777 = vmatpush1.bf16.msra.mxu0 %v4756
        %4778 = vmatprep.subr.bf16.mxu0 0
        %4779 = vmatpush1.bf16.msra.mxu0 %v4757
        %4780 = vmatprep.subr.bf16.mxu0 0
        %4781 = vmatpush1.bf16.msra.mxu0 %v4758
        %4782 = vmatprep.subr.bf16.mxu0 0
        %4783 = vmatpush1.bf16.msra.mxu0 %v4759
        %4784 = vmatprep.subr.bf16.mxu0 0
        %4785 = vmatpush1.bf16.msra.mxu0 0
        %4786 = vmatprep.subr.bf16.mxu0 0
        %4787 = vmatpush1.bf16.msra.mxu0 0
        %4788 = vmatprep.subr.bf16.mxu0 0
        %4789 = vmatpush1.bf16.msra.mxu0 0
        %4790 = vmatprep.subr.bf16.mxu0 0
        %4791 = vmatpush1.bf16.msra.mxu0 0
        %4792 = vmatprep.subr.bf16.mxu0 0
        %4793 = vmatpush1.bf16.msra.mxu0 0
        %4794 = vmatprep.subr.bf16.mxu0 0
        %4795 = vmatpush1.bf16.msra.mxu0 0
        %4796 = vmatprep.subr.bf16.mxu0 0
        %4797 = vmatpush1.bf16.msra.mxu0 0
        %4798 = vmatprep.subr.bf16.mxu0 0
        %4799 = vmatpush1.bf16.msra.mxu0 0
        %4800 = vmatprep.mubr.bf16.mxu0 0
        %4801 = vmatmul.mubr.bf16.gmra.mrb[0].mxu0 %v4681
        %v4802 = vpop.f32.mrb[0].mxu0
        %v4803 = vadd.f32 %v4718, %v4802
        %v4804 = vpop.f32.mrb[0].mxu0
        %v4805 = vpop.f32.mrb[0].mxu0
        %v4806 = vadd.f32 %v4718, %v4805
        %v4807 = vpop.f32.mrb[0].mxu0
        %4808 = vmatprep.mubr.bf16.mxu0 0
        %4809 = vmatmul.mubr.bf16.gmra.mrb[0].mxu0 %v4682
        %v4810 = vpop.f32.mrb[0].mxu0
        %v4811 = vadd.f32 %v4718, %v4810
        %v4812 = vpop.f32.mrb[0].mxu0
        %v4813 = vpop.f32.mrb[0].mxu0
        %v4814 = vadd.f32 %v4718, %v4813
        %v4815 = vpop.f32.mrb[0].mxu0
        %4816 = vmatprep.mubr.bf16.mxu0 0
        %4817 = vmatmul.mubr.bf16.gmra.mrb[0].mxu0 %v4683
        %v4818 = vpop.f32.mrb[0].mxu0
        %v4819 = vadd.f32 %v4718, %v4818
        %v4820 = vpop.f32.mrb[0].mxu0
        %v4821 = vpop.f32.mrb[0].mxu0
        %v4822 = vadd.f32 %v4718, %v4821
        %v4823 = vpop.f32.mrb[0].mxu0
        %4824 = vmatprep.mubr.bf16.mxu0 0
        %4825 = vmatmul.mubr.bf16.gmra.mrb[0].mxu0 %v4684
        %v4826 = vpop.f32.mrb[0].mxu0
        %v4827 = vadd.f32 %v4718, %v4826
        %v4828 = vpop.f32.mrb[0].mxu0
        %v4829 = vpop.f32.mrb[0].mxu0
        %v4830 = vadd.f32 %v4718, %v4829
        %v4831 = vpop.f32.mrb[0].mxu0
        %4832 = vmatprep.mubr.bf16.mxu0 0
        %4833 = vmatmul.mubr.bf16.gmra.mrb[0].mxu0 %v4685
        %v4834 = vpop.f32.mrb[0].mxu0
        %v4835 = vadd.f32 %v4718, %v4834
        %v4836 = vpop.f32.mrb[0].mxu0
        %v4837 = vpop.f32.mrb[0].mxu0
        %v4838 = vadd.f32 %v4718, %v4837
        %v4839 = vpop.f32.mrb[0].mxu0
        %4840 = vmatprep.mubr.bf16.mxu0 0
        %4841 = vmatmul.mubr.bf16.gmra.mrb[0].mxu0 %v4686
        %v4842 = vpop.f32.mrb[0].mxu0
        %v4843 = vadd.f32 %v4718, %v4842
        %v4844 = vpop.f32.mrb[0].mxu0
        %v4845 = vpop.f32.mrb[0].mxu0
        %v4846 = vadd.f32 %v4718, %v4845
        %v4847 = vpop.f32.mrb[0].mxu0
        %4848 = vmatprep.mubr.bf16.mxu0 0
        %4849 = vmatmul.mubr.bf16.gmra.mrb[0].mxu0 %v4687
        %v4850 = vpop.f32.mrb[0].mxu0
        %v4851 = vadd.f32 %v4718, %v4850
        %v4852 = vpop.f32.mrb[0].mxu0
        %v4853 = vpop.f32.mrb[0].mxu0
        %v4854 = vadd.f32 %v4718, %v4853
        %v4855 = vpop.f32.mrb[0].mxu0
        %4856 = vmatprep.mubr.bf16.mxu0 0
        %4857 = vmatmul.mubr.bf16.gmra.mrb[0].mxu0 %v4688
        %v4858 = vpop.f32.mrb[0].mxu0
        %v4859 = vadd.f32 %v4718, %v4858
        %v4860 = vpop.f32.mrb[0].mxu0
        %v4861 = vpop.f32.mrb[0].mxu0
        %v4862 = vadd.f32 %v4718, %v4861
        %v4863 = vpop.f32.mrb[0].mxu0
        %4864 = vmatprep.mubr.bf16.mxu0 0
        %4865 = vmatmul.mubr.bf16.gmra.mrb[0].mxu0 %v4689
        %v4866 = vpop.f32.mrb[0].mxu0
        %v4867 = vadd.f32 %v4718, %v4866
        %v4868 = vpop.f32.mrb[0].mxu0
        %v4869 = vpop.f32.mrb[0].mxu0
        %v4870 = vadd.f32 %v4718, %v4869
        %v4871 = vpop.f32.mrb[0].mxu0
        %4872 = vmatprep.mubr.bf16.mxu0 0
        %4873 = vmatmul.mubr.bf16.gmra.mrb[0].mxu0 %v4690
        %v4874 = vpop.f32.mrb[0].mxu0
        %v4875 = vadd.f32 %v4718, %v4874
        %v4876 = vpop.f32.mrb[0].mxu0
        %v4877 = vpop.f32.mrb[0].mxu0
        %v4878 = vadd.f32 %v4718, %v4877
        %v4879 = vpop.f32.mrb[0].mxu0
        %4880 = vmatprep.mubr.bf16.mxu0 0
        %4881 = vmatmul.mubr.bf16.gmra.mrb[0].mxu0 %v4691
        %v4882 = vpop.f32.mrb[0].mxu0
        %v4883 = vadd.f32 %v4718, %v4882
        %v4884 = vpop.f32.mrb[0].mxu0
        %v4885 = vpop.f32.mrb[0].mxu0
        %v4886 = vadd.f32 %v4718, %v4885
        %v4887 = vpop.f32.mrb[0].mxu0
        %4888 = vmatprep.mubr.bf16.mxu0 0
        %4889 = vmatmul.mubr.bf16.gmra.mrb[0].mxu0 %v4692
        %v4890 = vpop.f32.mrb[0].mxu0
        %v4891 = vadd.f32 %v4718, %v4890
        %v4892 = vpop.f32.mrb[0].mxu0
        %v4893 = vpop.f32.mrb[0].mxu0
        %v4894 = vadd.f32 %v4718, %v4893
        %v4895 = vpop.f32.mrb[0].mxu0
        %4896 = vmatprep.mubr.bf16.mxu0 0
        %4897 = vmatmul.mubr.bf16.gmra.mrb[0].mxu0 %v4693
        %v4898 = vpop.f32.mrb[0].mxu0
        %v4899 = vadd.f32 %v4718, %v4898
        %v4900 = vpop.f32.mrb[0].mxu0
        %v4901 = vpop.f32.mrb[0].mxu0
        %v4902 = vadd.f32 %v4718, %v4901
        %v4903 = vpop.f32.mrb[0].mxu0
        %4904 = vmatprep.mubr.bf16.mxu0 0
        %4905 = vmatmul.mubr.bf16.gmra.mrb[0].mxu0 %v4694
        %v4906 = vpop.f32.mrb[0].mxu0
        %v4907 = vadd.f32 %v4718, %v4906
        %v4908 = vpop.f32.mrb[0].mxu0
        %v4909 = vpop.f32.mrb[0].mxu0
        %v4910 = vadd.f32 %v4718, %v4909
        %v4911 = vpop.f32.mrb[0].mxu0
        %4912 = vmatprep.mubr.bf16.mxu0 0
        %4913 = vmatmul.mubr.bf16.gmra.mrb[0].mxu0 %v4695
        %v4914 = vpop.f32.mrb[0].mxu0
        %v4915 = vadd.f32 %v4718, %v4914
        %v4916 = vpop.f32.mrb[0].mxu0
        %v4917 = vpop.f32.mrb[0].mxu0
        %v4918 = vadd.f32 %v4718, %v4917
        %v4919 = vpop.f32.mrb[0].mxu0
        %4920 = vmatprep.mubr.bf16.mxu0 0
        %4921 = vmatmul.mubr.bf16.gmra.mrb[0].mxu0 %v4696
        %v4922 = vpop.f32.mrb[0].mxu0
        %v4923 = vadd.f32 %v4718, %v4922
        %v4924 = vpop.f32.mrb[0].mxu0
        %v4925 = vpop.f32.mrb[0].mxu0
        %v4926 = vadd.f32 %v4718, %v4925
        %v4927 = vpop.f32.mrb[0].mxu0
        %4928 = vdwg.mxu0
        %v4929 = vmax.f32 %v4803, 0.0
        %v4930 = vmax.f32 %v4806, 0.0
        %v4931 = vmax.f32 %v4811, 0.0
        %v4932 = vmax.f32 %v4814, 0.0
        %v4933 = vmax.f32 %v4819, 0.0
        %v4934 = vmax.f32 %v4822, 0.0
        %v4935 = vmax.f32 %v4827, 0.0
        %v4936 = vmax.f32 %v4830, 0.0
        %v4937 = vmax.f32 %v4835, 0.0
        %v4938 = vmax.f32 %v4838, 0.0
        %v4939 = vmax.f32 %v4843, 0.0
        %v4940 = vmax.f32 %v4846, 0.0
        %v4941 = vmax.f32 %v4851, 0.0
        %v4942 = vmax.f32 %v4854, 0.0
        %v4943 = vmax.f32 %v4859, 0.0
        %v4944 = vmax.f32 %v4862, 0.0
        %v4945 = vmax.f32 %v4867, 0.0
        %v4946 = vmax.f32 %v4870, 0.0
        %v4947 = vmax.f32 %v4875, 0.0
        %v4948 = vmax.f32 %v4878, 0.0
        %v4949 = vmax.f32 %v4883, 0.0
        %v4950 = vmax.f32 %v4886, 0.0
        %v4951 = vmax.f32 %v4891, 0.0
        %v4952 = vmax.f32 %v4894, 0.0
        %v4953 = vmax.f32 %v4899, 0.0
        %v4954 = vmax.f32 %v4902, 0.0
        %v4955 = vmax.f32 %v4907, 0.0
        %v4956 = vmax.f32 %v4910, 0.0
        %v4957 = vmax.f32 %v4915, 0.0
        %v4958 = vmax.f32 %v4918, 0.0
        %v4959 = vmax.f32 %v4923, 0.0
        %v4960 = vmax.f32 %v4926, 0.0
        %v4961 = vpack.c.bf16 %v4930, %v4929
        %v4962 = vpack.c.bf16 %v4932, %v4931
        %v4963 = vpack.c.bf16 %v4934, %v4933
        %v4964 = vpack.c.bf16 %v4936, %v4935
        %v4965 = vpack.c.bf16 %v4938, %v4937
        %v4966 = vpack.c.bf16 %v4940, %v4939
        %v4967 = vpack.c.bf16 %v4942, %v4941
        %v4968 = vpack.c.bf16 %v4944, %v4943
        %v4969 = vpack.c.bf16 %v4946, %v4945
        %v4970 = vpack.c.bf16 %v4948, %v4947
        %v4971 = vpack.c.bf16 %v4950, %v4949
        %v4972 = vpack.c.bf16 %v4952, %v4951
        %v4973 = vpack.c.bf16 %v4954, %v4953
        %v4974 = vpack.c.bf16 %v4956, %v4955
        %v4975 = vpack.c.bf16 %v4958, %v4957
        %v4976 = vpack.c.bf16 %v4960, %v4959
        %v4977 = vld [vmem:[%s10] sm:$0xf]
        %v4978 = vld [vmem:[%s10 + $0x4] sm:$0xf]
        %v4979 = vld [vmem:[%s10 + $0x8] sm:$0xf]
        %v4980 = vld [vmem:[%s10 + $0xc] sm:$0xf]
        %v4981 = vld [vmem:[%s10 + $0x10] sm:$0xf]
        %v4982 = vld [vmem:[%s10 + $0x14] sm:$0xf]
        %v4983 = vld [vmem:[%s10 + $0x18] sm:$0xf]
        %v4984 = vld [vmem:[%s10 + $0x1c] sm:$0xf]
        %v4985 = vld [vmem:[%s10 + $0x20] sm:$0xf]
        %v4986 = vld [vmem:[%s10 + $0x24] sm:$0xf]
        %v4987 = vld [vmem:[%s10 + $0x28] sm:$0xf]
        %v4988 = vld [vmem:[%s10 + $0x2c] sm:$0xf]
        %v4989 = vld [vmem:[%s10 + $0x30] sm:$0xf]
        %v4990 = vld [vmem:[%s10 + $0x34] sm:$0xf]
        %v4991 = vld [vmem:[%s10 + $0x38] sm:$0xf]
        %v4992 = vld [vmem:[%s10 + $0x3c] sm:$0xf]
        %v4993 = vld [vmem:[#allocation12] sm:$0x1]
        %v4995 = vlaneseq
        %v4996 = vshrl.u32 %v4995, 7
        %v4997 = vsub.s32 0, %v4996
        %v4998 = vrot.slane %v4993, %v4997
        %v5016 = vunpack.c.l.b16 %v4977
        %v5017 = vunpack.c.l.b16 %v4978
        %v5018 = vunpack.c.l.b16 %v4979
        %v5019 = vunpack.c.l.b16 %v4980
        %v5020 = vunpack.c.l.b16 %v4981
        %v5021 = vunpack.c.l.b16 %v4982
        %v5022 = vunpack.c.l.b16 %v4983
        %v5023 = vunpack.c.l.b16 %v4984
        %v5024 = vunpack.c.l.b16 %v4985
        %v5025 = vunpack.c.l.b16 %v4986
        %v5026 = vunpack.c.l.b16 %v4987
        %v5027 = vunpack.c.l.b16 %v4988
        %v5028 = vunpack.c.l.b16 %v4989
        %v5029 = vunpack.c.l.b16 %v4990
        %v5030 = vunpack.c.l.b16 %v4991
        %v5031 = vunpack.c.l.b16 %v4992
        %v5032 = vpack.c.b16 %v5017, %v5016
        %v5033 = vpack.c.b16 %v5019, %v5018
        %v5034 = vpack.c.b16 %v5021, %v5020
        %v5035 = vpack.c.b16 %v5023, %v5022
        %v5036 = vpack.c.b16 %v5025, %v5024
        %v5037 = vpack.c.b16 %v5027, %v5026
        %v5038 = vpack.c.b16 %v5029, %v5028
        %v5039 = vpack.c.b16 %v5031, %v5030
        %5048 = vmatprep.subr.bf16.mxu0 0
        %5049 = vmatpush1.bf16.msra.mxu0 %v5032
        %5050 = vmatprep.subr.bf16.mxu0 0
        %5051 = vmatpush1.bf16.msra.mxu0 %v5033
        %5052 = vmatprep.subr.bf16.mxu0 0
        %5053 = vmatpush1.bf16.msra.mxu0 %v5034
        %5054 = vmatprep.subr.bf16.mxu0 0
        %5055 = vmatpush1.bf16.msra.mxu0 %v5035
        %5056 = vmatprep.subr.bf16.mxu0 0
        %5057 = vmatpush1.bf16.msra.mxu0 %v5036
        %5058 = vmatprep.subr.bf16.mxu0 0
        %5059 = vmatpush1.bf16.msra.mxu0 %v5037
        %5060 = vmatprep.subr.bf16.mxu0 0
        %5061 = vmatpush1.bf16.msra.mxu0 %v5038
        %5062 = vmatprep.subr.bf16.mxu0 0
        %5063 = vmatpush1.bf16.msra.mxu0 %v5039
        %5064 = vmatprep.subr.bf16.mxu0 0
        %5065 = vmatpush1.bf16.msra.mxu0 0
        %5066 = vmatprep.subr.bf16.mxu0 0
        %5067 = vmatpush1.bf16.msra.mxu0 0
        %5068 = vmatprep.subr.bf16.mxu0 0
        %5069 = vmatpush1.bf16.msra.mxu0 0
        %5070 = vmatprep.subr.bf16.mxu0 0
        %5071 = vmatpush1.bf16.msra.mxu0 0
        %5072 = vmatprep.subr.bf16.mxu0 0
        %5073 = vmatpush1.bf16.msra.mxu0 0
        %5074 = vmatprep.subr.bf16.mxu0 0
        %5075 = vmatpush1.bf16.msra.mxu0 0
        %5076 = vmatprep.subr.bf16.mxu0 0
        %5077 = vmatpush1.bf16.msra.mxu0 0
        %5078 = vmatprep.subr.bf16.mxu0 0
        %5079 = vmatpush1.bf16.msra.mxu0 0
        %5080 = vmatprep.mubr.bf16.mxu0 0
        %5081 = vmatmul.mubr.bf16.gmra.mrb[0].mxu0 %v4961
        %v5082 = vpop.f32.mrb[0].mxu0
        %v5083 = vadd.f32 %v4998, %v5082
        %v5084 = vpop.f32.mrb[0].mxu0
        %v5085 = vpop.f32.mrb[0].mxu0
        %v5086 = vadd.f32 %v4998, %v5085
        %v5087 = vpop.f32.mrb[0].mxu0
        %5088 = vmatprep.mubr.bf16.mxu0 0
        %5089 = vmatmul.mubr.bf16.gmra.mrb[0].mxu0 %v4962
        %v5090 = vpop.f32.mrb[0].mxu0
        %v5091 = vadd.f32 %v4998, %v5090
        %v5092 = vpop.f32.mrb[0].mxu0
        %v5093 = vpop.f32.mrb[0].mxu0
        %v5094 = vadd.f32 %v4998, %v5093
        %v5095 = vpop.f32.mrb[0].mxu0
        %5096 = vmatprep.mubr.bf16.mxu0 0
        %5097 = vmatmul.mubr.bf16.gmra.mrb[0].mxu0 %v4963
        %v5098 = vpop.f32.mrb[0].mxu0
        %v5099 = vadd.f32 %v4998, %v5098
        %v5100 = vpop.f32.mrb[0].mxu0
        %v5101 = vpop.f32.mrb[0].mxu0
        %v5102 = vadd.f32 %v4998, %v5101
        %v5103 = vpop.f32.mrb[0].mxu0
        %5104 = vmatprep.mubr.bf16.mxu0 0
        %5105 = vmatmul.mubr.bf16.gmra.mrb[0].mxu0 %v4964
        %v5106 = vpop.f32.mrb[0].mxu0
        %v5107 = vadd.f32 %v4998, %v5106
        %v5108 = vpop.f32.mrb[0].mxu0
        %v5109 = vpop.f32.mrb[0].mxu0
        %v5110 = vadd.f32 %v4998, %v5109
        %v5111 = vpop.f32.mrb[0].mxu0
        %5112 = vmatprep.mubr.bf16.mxu0 0
        %5113 = vmatmul.mubr.bf16.gmra.mrb[0].mxu0 %v4965
        %v5114 = vpop.f32.mrb[0].mxu0
        %v5115 = vadd.f32 %v4998, %v5114
        %v5116 = vpop.f32.mrb[0].mxu0
        %v5117 = vpop.f32.mrb[0].mxu0
        %v5118 = vadd.f32 %v4998, %v5117
        %v5119 = vpop.f32.mrb[0].mxu0
        %5120 = vmatprep.mubr.bf16.mxu0 0
        %5121 = vmatmul.mubr.bf16.gmra.mrb[0].mxu0 %v4966
        %v5122 = vpop.f32.mrb[0].mxu0
        %v5123 = vadd.f32 %v4998, %v5122
        %v5124 = vpop.f32.mrb[0].mxu0
        %v5125 = vpop.f32.mrb[0].mxu0
        %v5126 = vadd.f32 %v4998, %v5125
        %v5127 = vpop.f32.mrb[0].mxu0
        %5128 = vmatprep.mubr.bf16.mxu0 0
        %5129 = vmatmul.mubr.bf16.gmra.mrb[0].mxu0 %v4967
        %v5130 = vpop.f32.mrb[0].mxu0
        %v5131 = vadd.f32 %v4998, %v5130
        %v5132 = vpop.f32.mrb[0].mxu0
        %v5133 = vpop.f32.mrb[0].mxu0
        %v5134 = vadd.f32 %v4998, %v5133
        %v5135 = vpop.f32.mrb[0].mxu0
        %5136 = vmatprep.mubr.bf16.mxu0 0
        %5137 = vmatmul.mubr.bf16.gmra.mrb[0].mxu0 %v4968
        %v5138 = vpop.f32.mrb[0].mxu0
        %v5139 = vadd.f32 %v4998, %v5138
        %v5140 = vpop.f32.mrb[0].mxu0
        %v5141 = vpop.f32.mrb[0].mxu0
        %v5142 = vadd.f32 %v4998, %v5141
        %v5143 = vpop.f32.mrb[0].mxu0
        %5144 = vmatprep.mubr.bf16.mxu0 0
        %5145 = vmatmul.mubr.bf16.gmra.mrb[0].mxu0 %v4969
        %v5146 = vpop.f32.mrb[0].mxu0
        %v5147 = vadd.f32 %v4998, %v5146
        %v5148 = vpop.f32.mrb[0].mxu0
        %v5149 = vpop.f32.mrb[0].mxu0
        %v5150 = vadd.f32 %v4998, %v5149
        %v5151 = vpop.f32.mrb[0].mxu0
        %5152 = vmatprep.mubr.bf16.mxu0 0
        %5153 = vmatmul.mubr.bf16.gmra.mrb[0].mxu0 %v4970
        %v5154 = vpop.f32.mrb[0].mxu0
        %v5155 = vadd.f32 %v4998, %v5154
        %v5156 = vpop.f32.mrb[0].mxu0
        %v5157 = vpop.f32.mrb[0].mxu0
        %v5158 = vadd.f32 %v4998, %v5157
        %v5159 = vpop.f32.mrb[0].mxu0
        %5160 = vmatprep.mubr.bf16.mxu0 0
        %5161 = vmatmul.mubr.bf16.gmra.mrb[0].mxu0 %v4971
        %v5162 = vpop.f32.mrb[0].mxu0
        %v5163 = vadd.f32 %v4998, %v5162
        %v5164 = vpop.f32.mrb[0].mxu0
        %v5165 = vpop.f32.mrb[0].mxu0
        %v5166 = vadd.f32 %v4998, %v5165
        %v5167 = vpop.f32.mrb[0].mxu0
        %5168 = vmatprep.mubr.bf16.mxu0 0
        %5169 = vmatmul.mubr.bf16.gmra.mrb[0].mxu0 %v4972
        %v5170 = vpop.f32.mrb[0].mxu0
        %v5171 = vadd.f32 %v4998, %v5170
        %v5172 = vpop.f32.mrb[0].mxu0
        %v5173 = vpop.f32.mrb[0].mxu0
        %v5174 = vadd.f32 %v4998, %v5173
        %v5175 = vpop.f32.mrb[0].mxu0
        %5176 = vmatprep.mubr.bf16.mxu0 0
        %5177 = vmatmul.mubr.bf16.gmra.mrb[0].mxu0 %v4973
        %v5178 = vpop.f32.mrb[0].mxu0
        %v5179 = vadd.f32 %v4998, %v5178
        %v5180 = vpop.f32.mrb[0].mxu0
        %v5181 = vpop.f32.mrb[0].mxu0
        %v5182 = vadd.f32 %v4998, %v5181
        %v5183 = vpop.f32.mrb[0].mxu0
        %5184 = vmatprep.mubr.bf16.mxu0 0
        %5185 = vmatmul.mubr.bf16.gmra.mrb[0].mxu0 %v4974
        %v5186 = vpop.f32.mrb[0].mxu0
        %v5187 = vadd.f32 %v4998, %v5186
        %v5188 = vpop.f32.mrb[0].mxu0
        %v5189 = vpop.f32.mrb[0].mxu0
        %v5190 = vadd.f32 %v4998, %v5189
        %v5191 = vpop.f32.mrb[0].mxu0
        %5192 = vmatprep.mubr.bf16.mxu0 0
        %5193 = vmatmul.mubr.bf16.gmra.mrb[0].mxu0 %v4975
        %v5194 = vpop.f32.mrb[0].mxu0
        %v5195 = vadd.f32 %v4998, %v5194
        %v5196 = vpop.f32.mrb[0].mxu0
        %v5197 = vpop.f32.mrb[0].mxu0
        %v5198 = vadd.f32 %v4998, %v5197
        %v5199 = vpop.f32.mrb[0].mxu0
        %5200 = vmatprep.mubr.bf16.mxu0 0
        %5201 = vmatmul.mubr.bf16.gmra.mrb[0].mxu0 %v4976
        %v5202 = vpop.f32.mrb[0].mxu0
        %v5203 = vadd.f32 %v4998, %v5202
        %v5204 = vpop.f32.mrb[0].mxu0
        %v5205 = vpop.f32.mrb[0].mxu0
        %v5206 = vadd.f32 %v4998, %v5205
        %v5207 = vpop.f32.mrb[0].mxu0
        %5208 = vdwg.mxu0
        %5209 = vst [vmem:[%s501] sm:$0xff] %v5083
        %5210 = vst [vmem:[%s501 + $0x8] sm:$0xff] %v5086
        %5211 = vst [vmem:[%s501 + $0x10] sm:$0xff] %v5091
        %5212 = vst [vmem:[%s501 + $0x18] sm:$0xff] %v5094
        %5213 = vst [vmem:[%s501 + $0x20] sm:$0xff] %v5099
        %5214 = vst [vmem:[%s501 + $0x28] sm:$0xff] %v5102
        %5215 = vst [vmem:[%s501 + $0x30] sm:$0xff] %v5107
        %5216 = vst [vmem:[%s501 + $0x38] sm:$0xff] %v5110
        %5217 = vst [vmem:[%s501 + $0x40] sm:$0xff] %v5115
        %5218 = vst [vmem:[%s501 + $0x48] sm:$0xff] %v5118
        %5219 = vst [vmem:[%s501 + $0x50] sm:$0xff] %v5123
        %5220 = vst [vmem:[%s501 + $0x58] sm:$0xff] %v5126
        %5221 = vst [vmem:[%s501 + $0x60] sm:$0xff] %v5131
        %5222 = vst [vmem:[%s501 + $0x68] sm:$0xff] %v5134
        %5223 = vst [vmem:[%s501 + $0x70] sm:$0xff] %v5139
        %5224 = vst [vmem:[%s501 + $0x78] sm:$0xff] %v5142
        %5225 = vst [vmem:[%s501 + $0x80] sm:$0xff] %v5147
        %5226 = vst [vmem:[%s501 + $0x88] sm:$0xff] %v5150
        %5227 = vst [vmem:[%s501 + $0x90] sm:$0xff] %v5155
        %5228 = vst [vmem:[%s501 + $0x98] sm:$0xff] %v5158
        %5229 = vst [vmem:[%s501 + $0xa0] sm:$0xff] %v5163
        %5230 = vst [vmem:[%s501 + $0xa8] sm:$0xff] %v5166
        %5231 = vst [vmem:[%s501 + $0xb0] sm:$0xff] %v5171
        %5232 = vst [vmem:[%s501 + $0xb8] sm:$0xff] %v5174
        %5233 = vst [vmem:[%s501 + $0xc0] sm:$0xff] %v5179
        %5234 = vst [vmem:[%s501 + $0xc8] sm:$0xff] %v5182
        %5235 = vst [vmem:[%s501 + $0xd0] sm:$0xff] %v5187
        %5236 = vst [vmem:[%s501 + $0xd8] sm:$0xff] %v5190
        %5237 = vst [vmem:[%s501 + $0xe0] sm:$0xff] %v5195
        %5238 = vst [vmem:[%s501 + $0xe8] sm:$0xff] %v5198
        %5239 = vst [vmem:[%s501 + $0xf0] sm:$0xff] %v5203
        %5240 = vst [vmem:[%s501 + $0xf8] sm:$0xff] %v5206
        %v5241 = vld [vmem:[#allocation2] sm:$0xf]
        %v5242 = vld [vmem:[#allocation2 + $0x4] sm:$0xf]
        %v5243 = vld [vmem:[#allocation2 + $0x14] sm:$0xf]
        %v5244 = vld [vmem:[#allocation2 + $0x18] sm:$0xf]
        %v5245 = vld [vmem:[#allocation2 + $0x28] sm:$0xf]
        %v5246 = vld [vmem:[#allocation2 + $0x2c] sm:$0xf]
        %v5247 = vld [vmem:[#allocation2 + $0x3c] sm:$0xf]
        %v5248 = vld [vmem:[#allocation2 + $0x40] sm:$0xf]
        %v5249 = vld [vmem:[#allocation2 + $0x50] sm:$0xf]
        %v5250 = vld [vmem:[#allocation2 + $0x54] sm:$0xf]
        %v5251 = vld [vmem:[#allocation2 + $0x64] sm:$0xf]
        %v5252 = vld [vmem:[#allocation2 + $0x68] sm:$0xf]
        %v5253 = vld [vmem:[#allocation2 + $0x78] sm:$0xf]
        %v5254 = vld [vmem:[#allocation2 + $0x7c] sm:$0xf]
        %v5255 = vld [vmem:[#allocation2 + $0x8c] sm:$0xf]
        %v5256 = vld [vmem:[#allocation2 + $0x90] sm:$0xf]
        %v5257 = vld [vmem:[#allocation2 + $0xa0] sm:$0xf]
        %v5258 = vld [vmem:[#allocation2 + $0xa4] sm:$0xf]
        %v5259 = vld [vmem:[#allocation2 + $0xb4] sm:$0xf]
        %v5260 = vld [vmem:[#allocation2 + $0xb8] sm:$0xf]
        %v5261 = vld [vmem:[#allocation2 + $0xc8] sm:$0xf]
        %v5262 = vld [vmem:[#allocation2 + $0xcc] sm:$0xf]
        %v5263 = vld [vmem:[#allocation2 + $0xdc] sm:$0xf]
        %v5264 = vld [vmem:[#allocation2 + $0xe0] sm:$0xf]
        %v5265 = vld [vmem:[#allocation2 + $0xf0] sm:$0xf]
        %v5266 = vld [vmem:[#allocation2 + $0xf4] sm:$0xf]
        %v5267 = vld [vmem:[#allocation2 + $0x104] sm:$0xf]
        %v5268 = vld [vmem:[#allocation2 + $0x108] sm:$0xf]
        %v5269 = vld [vmem:[#allocation2 + $0x118] sm:$0xf]
        %v5270 = vld [vmem:[#allocation2 + $0x11c] sm:$0xf]
        %v5271 = vld [vmem:[#allocation2 + $0x12c] sm:$0xf]
        %v5272 = vld [vmem:[#allocation2 + $0x130] sm:$0xf]
        %v5305 = vunpack.c.l.b16 %v5241
        %v5306 = vunpack.c.l.b16 %v5242
        %v5307 = vunpack.c.l.b16 %v5243
        %v5308 = vunpack.c.l.b16 %v5244
        %v5309 = vunpack.c.l.b16 %v5245
        %v5310 = vunpack.c.l.b16 %v5246
        %v5311 = vunpack.c.l.b16 %v5247
        %v5312 = vunpack.c.l.b16 %v5248
        %v5313 = vunpack.c.l.b16 %v5249
        %v5314 = vunpack.c.l.b16 %v5250
        %v5315 = vunpack.c.l.b16 %v5251
        %v5316 = vunpack.c.l.b16 %v5252
        %v5317 = vunpack.c.l.b16 %v5253
        %v5318 = vunpack.c.l.b16 %v5254
        %v5319 = vunpack.c.l.b16 %v5255
        %v5320 = vunpack.c.l.b16 %v5256
        %v5321 = vunpack.c.l.b16 %v5257
        %v5322 = vunpack.c.l.b16 %v5258
        %v5323 = vunpack.c.l.b16 %v5259
        %v5324 = vunpack.c.l.b16 %v5260
        %v5325 = vunpack.c.l.b16 %v5261
        %v5326 = vunpack.c.l.b16 %v5262
        %v5327 = vunpack.c.l.b16 %v5263
        %v5328 = vunpack.c.l.b16 %v5264
        %v5329 = vunpack.c.l.b16 %v5265
        %v5330 = vunpack.c.l.b16 %v5266
        %v5331 = vunpack.c.l.b16 %v5267
        %v5332 = vunpack.c.l.b16 %v5268
        %v5333 = vunpack.c.l.b16 %v5269
        %v5334 = vunpack.c.l.b16 %v5270
        %v5335 = vunpack.c.l.b16 %v5271
        %v5336 = vunpack.c.l.b16 %v5272
        %v5337 = vpack.c.b16 %v5306, %v5305
        %v5338 = vpack.c.b16 %v5308, %v5307
        %v5339 = vpack.c.b16 %v5310, %v5309
        %v5340 = vpack.c.b16 %v5312, %v5311
        %v5341 = vpack.c.b16 %v5314, %v5313
        %v5342 = vpack.c.b16 %v5316, %v5315
        %v5343 = vpack.c.b16 %v5318, %v5317
        %v5344 = vpack.c.b16 %v5320, %v5319
        %v5345 = vpack.c.b16 %v5322, %v5321
        %v5346 = vpack.c.b16 %v5324, %v5323
        %v5347 = vpack.c.b16 %v5326, %v5325
        %v5348 = vpack.c.b16 %v5328, %v5327
        %v5349 = vpack.c.b16 %v5330, %v5329
        %v5350 = vpack.c.b16 %v5332, %v5331
        %v5351 = vpack.c.b16 %v5334, %v5333
        %v5352 = vpack.c.b16 %v5336, %v5335
        %5369 = vst.msk [vmem:[#allocation3] sm:$0xff] %vm1560, %v5337
        %5370 = vst.msk [vmem:[#allocation3 + $0x18] sm:$0xff] %vm1560, %v5338
        %5371 = vst.msk [vmem:[#allocation3 + $0x30] sm:$0xff] %vm1560, %v5339
        %5372 = vst.msk [vmem:[#allocation3 + $0x48] sm:$0xff] %vm1560, %v5340
        %5373 = vst.msk [vmem:[#allocation3 + $0x60] sm:$0xff] %vm1560, %v5341
        %5374 = vst.msk [vmem:[#allocation3 + $0x78] sm:$0xff] %vm1560, %v5342
        %5375 = vst.msk [vmem:[#allocation3 + $0x90] sm:$0xff] %vm1560, %v5343
        %5376 = vst.msk [vmem:[#allocation3 + $0xa8] sm:$0xff] %vm1560, %v5344
        %5377 = vst.msk [vmem:[#allocation3 + $0xc0] sm:$0xff] %vm1560, %v5345
        %5378 = vst.msk [vmem:[#allocation3 + $0xd8] sm:$0xff] %vm1560, %v5346
        %5379 = vst.msk [vmem:[#allocation3 + $0xf0] sm:$0xff] %vm1560, %v5347
        %5380 = vst.msk [vmem:[#allocation3 + $0x108] sm:$0xff] %vm1560, %v5348
        %5381 = vst.msk [vmem:[#allocation3 + $0x120] sm:$0xff] %vm1560, %v5349
        %5382 = vst.msk [vmem:[#allocation3 + $0x138] sm:$0xff] %vm1560, %v5350
        %5383 = vst.msk [vmem:[#allocation3 + $0x150] sm:$0xff] %vm1560, %v5351
        %5384 = vst.msk [vmem:[#allocation3 + $0x168] sm:$0xff] %vm1560, %v5352
        %v5385 = vld [vmem:[#allocation2 + $0x4] sm:$0xc]
        %v5386 = vld [vmem:[#allocation2 + $0x8] sm:$0xf]
        %v5387 = vld [vmem:[#allocation2 + $0xc] sm:$0x3]
        %v5388 = vld [vmem:[#allocation2 + $0x18] sm:$0xc]
        %v5389 = vld [vmem:[#allocation2 + $0x1c] sm:$0xf]
        %v5390 = vld [vmem:[#allocation2 + $0x20] sm:$0x3]
        %v5391 = vld [vmem:[#allocation2 + $0x2c] sm:$0xc]
        %v5392 = vld [vmem:[#allocation2 + $0x30] sm:$0xf]
        %v5393 = vld [vmem:[#allocation2 + $0x34] sm:$0x3]
        %v5394 = vld [vmem:[#allocation2 + $0x40] sm:$0xc]
        %v5395 = vld [vmem:[#allocation2 + $0x44] sm:$0xf]
        %v5396 = vld [vmem:[#allocation2 + $0x48] sm:$0x3]
        %v5397 = vld [vmem:[#allocation2 + $0x54] sm:$0xc]
        %v5398 = vld [vmem:[#allocation2 + $0x58] sm:$0xf]
        %v5399 = vld [vmem:[#allocation2 + $0x5c] sm:$0x3]
        %v5400 = vld [vmem:[#allocation2 + $0x68] sm:$0xc]
        %v5401 = vld [vmem:[#allocation2 + $0x6c] sm:$0xf]
        %v5402 = vld [vmem:[#allocation2 + $0x70] sm:$0x3]
        %v5403 = vld [vmem:[#allocation2 + $0x7c] sm:$0xc]
        %v5404 = vld [vmem:[#allocation2 + $0x80] sm:$0xf]
        %v5405 = vld [vmem:[#allocation2 + $0x84] sm:$0x3]
        %v5406 = vld [vmem:[#allocation2 + $0x90] sm:$0xc]
        %v5407 = vld [vmem:[#allocation2 + $0x94] sm:$0xf]
        %v5408 = vld [vmem:[#allocation2 + $0x98] sm:$0x3]
        %v5409 = vld [vmem:[#allocation2 + $0xa4] sm:$0xc]
        %v5410 = vld [vmem:[#allocation2 + $0xa8] sm:$0xf]
        %v5411 = vld [vmem:[#allocation2 + $0xac] sm:$0x3]
        %v5412 = vld [vmem:[#allocation2 + $0xb8] sm:$0xc]
        %v5413 = vld [vmem:[#allocation2 + $0xbc] sm:$0xf]
        %v5414 = vld [vmem:[#allocation2 + $0xc0] sm:$0x3]
        %v5415 = vld [vmem:[#allocation2 + $0xcc] sm:$0xc]
        %v5416 = vld [vmem:[#allocation2 + $0xd0] sm:$0xf]
        %v5417 = vld [vmem:[#allocation2 + $0xd4] sm:$0x3]
        %v5418 = vld [vmem:[#allocation2 + $0xe0] sm:$0xc]
        %v5419 = vld [vmem:[#allocation2 + $0xe4] sm:$0xf]
        %v5420 = vld [vmem:[#allocation2 + $0xe8] sm:$0x3]
        %v5421 = vld [vmem:[#allocation2 + $0xf4] sm:$0xc]
        %v5422 = vld [vmem:[#allocation2 + $0xf8] sm:$0xf]
        %v5423 = vld [vmem:[#allocation2 + $0xfc] sm:$0x3]
        %v5424 = vld [vmem:[#allocation2 + $0x108] sm:$0xc]
        %v5425 = vld [vmem:[#allocation2 + $0x10c] sm:$0xf]
        %v5426 = vld [vmem:[#allocation2 + $0x110] sm:$0x3]
        %v5427 = vld [vmem:[#allocation2 + $0x11c] sm:$0xc]
        %v5428 = vld [vmem:[#allocation2 + $0x120] sm:$0xf]
        %v5429 = vld [vmem:[#allocation2 + $0x124] sm:$0x3]
        %v5430 = vld [vmem:[#allocation2 + $0x130] sm:$0xc]
        %v5431 = vld [vmem:[#allocation2 + $0x134] sm:$0xf]
        %v5432 = vld [vmem:[#allocation2 + $0x138] sm:$0x3]
        %v5481 = vrot.slane %v5385, 6
        %v5482 = vrot.slane %v5481, 4
        %v5483 = vrot.slane %v5386, 6
        %v5484 = vsel %vm1104, %v5482, %v5483
        %v5485 = vrot.slane %v5483, 4
        %v5486 = vrot.slane %v5387, 6
        %v5487 = vsel %vm1104, %v5485, %v5486
        %v5488 = vrot.slane %v5388, 6
        %v5489 = vrot.slane %v5488, 4
        %v5490 = vrot.slane %v5389, 6
        %v5491 = vsel %vm1104, %v5489, %v5490
        %v5492 = vrot.slane %v5490, 4
        %v5493 = vrot.slane %v5390, 6
        %v5494 = vsel %vm1104, %v5492, %v5493
        %v5495 = vrot.slane %v5391, 6
        %v5496 = vrot.slane %v5495, 4
        %v5497 = vrot.slane %v5392, 6
        %v5498 = vsel %vm1104, %v5496, %v5497
        %v5499 = vrot.slane %v5497, 4
        %v5500 = vrot.slane %v5393, 6
        %v5501 = vsel %vm1104, %v5499, %v5500
        %v5502 = vrot.slane %v5394, 6
        %v5503 = vrot.slane %v5502, 4
        %v5504 = vrot.slane %v5395, 6
        %v5505 = vsel %vm1104, %v5503, %v5504
        %v5506 = vrot.slane %v5504, 4
        %v5507 = vrot.slane %v5396, 6
        %v5508 = vsel %vm1104, %v5506, %v5507
        %v5509 = vrot.slane %v5397, 6
        %v5510 = vrot.slane %v5509, 4
        %v5511 = vrot.slane %v5398, 6
        %v5512 = vsel %vm1104, %v5510, %v5511
        %v5513 = vrot.slane %v5511, 4
        %v5514 = vrot.slane %v5399, 6
        %v5515 = vsel %vm1104, %v5513, %v5514
        %v5516 = vrot.slane %v5400, 6
        %v5517 = vrot.slane %v5516, 4
        %v5518 = vrot.slane %v5401, 6
        %v5519 = vsel %vm1104, %v5517, %v5518
        %v5520 = vrot.slane %v5518, 4
        %v5521 = vrot.slane %v5402, 6
        %v5522 = vsel %vm1104, %v5520, %v5521
        %v5523 = vrot.slane %v5403, 6
        %v5524 = vrot.slane %v5523, 4
        %v5525 = vrot.slane %v5404, 6
        %v5526 = vsel %vm1104, %v5524, %v5525
        %v5527 = vrot.slane %v5525, 4
        %v5528 = vrot.slane %v5405, 6
        %v5529 = vsel %vm1104, %v5527, %v5528
        %v5530 = vrot.slane %v5406, 6
        %v5531 = vrot.slane %v5530, 4
        %v5532 = vrot.slane %v5407, 6
        %v5533 = vsel %vm1104, %v5531, %v5532
        %v5534 = vrot.slane %v5532, 4
        %v5535 = vrot.slane %v5408, 6
        %v5536 = vsel %vm1104, %v5534, %v5535
        %v5537 = vrot.slane %v5409, 6
        %v5538 = vrot.slane %v5537, 4
        %v5539 = vrot.slane %v5410, 6
        %v5540 = vsel %vm1104, %v5538, %v5539
        %v5541 = vrot.slane %v5539, 4
        %v5542 = vrot.slane %v5411, 6
        %v5543 = vsel %vm1104, %v5541, %v5542
        %v5544 = vrot.slane %v5412, 6
        %v5545 = vrot.slane %v5544, 4
        %v5546 = vrot.slane %v5413, 6
        %v5547 = vsel %vm1104, %v5545, %v5546
        %v5548 = vrot.slane %v5546, 4
        %v5549 = vrot.slane %v5414, 6
        %v5550 = vsel %vm1104, %v5548, %v5549
        %v5551 = vrot.slane %v5415, 6
        %v5552 = vrot.slane %v5551, 4
        %v5553 = vrot.slane %v5416, 6
        %v5554 = vsel %vm1104, %v5552, %v5553
        %v5555 = vrot.slane %v5553, 4
        %v5556 = vrot.slane %v5417, 6
        %v5557 = vsel %vm1104, %v5555, %v5556
        %v5558 = vrot.slane %v5418, 6
        %v5559 = vrot.slane %v5558, 4
        %v5560 = vrot.slane %v5419, 6
        %v5561 = vsel %vm1104, %v5559, %v5560
        %v5562 = vrot.slane %v5560, 4
        %v5563 = vrot.slane %v5420, 6
        %v5564 = vsel %vm1104, %v5562, %v5563
        %v5565 = vrot.slane %v5421, 6
        %v5566 = vrot.slane %v5565, 4
        %v5567 = vrot.slane %v5422, 6
        %v5568 = vsel %vm1104, %v5566, %v5567
        %v5569 = vrot.slane %v5567, 4
        %v5570 = vrot.slane %v5423, 6
        %v5571 = vsel %vm1104, %v5569, %v5570
        %v5572 = vrot.slane %v5424, 6
        %v5573 = vrot.slane %v5572, 4
        %v5574 = vrot.slane %v5425, 6
        %v5575 = vsel %vm1104, %v5573, %v5574
        %v5576 = vrot.slane %v5574, 4
        %v5577 = vrot.slane %v5426, 6
        %v5578 = vsel %vm1104, %v5576, %v5577
        %v5579 = vrot.slane %v5427, 6
        %v5580 = vrot.slane %v5579, 4
        %v5581 = vrot.slane %v5428, 6
        %v5582 = vsel %vm1104, %v5580, %v5581
        %v5583 = vrot.slane %v5581, 4
        %v5584 = vrot.slane %v5429, 6
        %v5585 = vsel %vm1104, %v5583, %v5584
        %v5586 = vrot.slane %v5430, 6
        %v5587 = vrot.slane %v5586, 4
        %v5588 = vrot.slane %v5431, 6
        %v5589 = vsel %vm1104, %v5587, %v5588
        %v5590 = vrot.slane %v5588, 4
        %v5591 = vrot.slane %v5432, 6
        %v5592 = vsel %vm1104, %v5590, %v5591
        %v5593 = vunpack.c.l.b16 %v5484
        %v5594 = vunpack.c.l.b16 %v5487
        %v5595 = vunpack.c.l.b16 %v5491
        %v5596 = vunpack.c.l.b16 %v5494
        %v5597 = vunpack.c.l.b16 %v5498
        %v5598 = vunpack.c.l.b16 %v5501
        %v5599 = vunpack.c.l.b16 %v5505
        %v5600 = vunpack.c.l.b16 %v5508
        %v5601 = vunpack.c.l.b16 %v5512
        %v5602 = vunpack.c.l.b16 %v5515
        %v5603 = vunpack.c.l.b16 %v5519
        %v5604 = vunpack.c.l.b16 %v5522
        %v5605 = vunpack.c.l.b16 %v5526
        %v5606 = vunpack.c.l.b16 %v5529
        %v5607 = vunpack.c.l.b16 %v5533
        %v5608 = vunpack.c.l.b16 %v5536
        %v5609 = vunpack.c.l.b16 %v5540
        %v5610 = vunpack.c.l.b16 %v5543
        %v5611 = vunpack.c.l.b16 %v5547
        %v5612 = vunpack.c.l.b16 %v5550
        %v5613 = vunpack.c.l.b16 %v5554
        %v5614 = vunpack.c.l.b16 %v5557
        %v5615 = vunpack.c.l.b16 %v5561
        %v5616 = vunpack.c.l.b16 %v5564
        %v5617 = vunpack.c.l.b16 %v5568
        %v5618 = vunpack.c.l.b16 %v5571
        %v5619 = vunpack.c.l.b16 %v5575
        %v5620 = vunpack.c.l.b16 %v5578
        %v5621 = vunpack.c.l.b16 %v5582
        %v5622 = vunpack.c.l.b16 %v5585
        %v5623 = vunpack.c.l.b16 %v5589
        %v5624 = vunpack.c.l.b16 %v5592
        %v5625 = vpack.c.b16 %v5594, %v5593
        %v5626 = vpack.c.b16 %v5596, %v5595
        %v5627 = vpack.c.b16 %v5598, %v5597
        %v5628 = vpack.c.b16 %v5600, %v5599
        %v5629 = vpack.c.b16 %v5602, %v5601
        %v5630 = vpack.c.b16 %v5604, %v5603
        %v5631 = vpack.c.b16 %v5606, %v5605
        %v5632 = vpack.c.b16 %v5608, %v5607
        %v5633 = vpack.c.b16 %v5610, %v5609
        %v5634 = vpack.c.b16 %v5612, %v5611
        %v5635 = vpack.c.b16 %v5614, %v5613
        %v5636 = vpack.c.b16 %v5616, %v5615
        %v5637 = vpack.c.b16 %v5618, %v5617
        %v5638 = vpack.c.b16 %v5620, %v5619
        %v5639 = vpack.c.b16 %v5622, %v5621
        %v5640 = vpack.c.b16 %v5624, %v5623
        %5641 = vrot.lane.b32.xlu0 %v5625, 32
        %v5642 = vpop.permute.xlu0 %5641
        %5643 = vrot.lane.b32.xlu0 %v5626, 32
        %v5644 = vpop.permute.xlu0 %5643
        %5645 = vrot.lane.b32.xlu0 %v5627, 32
        %v5646 = vpop.permute.xlu0 %5645
        %5647 = vrot.lane.b32.xlu0 %v5628, 32
        %v5648 = vpop.permute.xlu0 %5647
        %5649 = vrot.lane.b32.xlu0 %v5629, 32
        %v5650 = vpop.permute.xlu0 %5649
        %5651 = vrot.lane.b32.xlu0 %v5630, 32
        %v5652 = vpop.permute.xlu0 %5651
        %5653 = vrot.lane.b32.xlu0 %v5631, 32
        %v5654 = vpop.permute.xlu0 %5653
        %5655 = vrot.lane.b32.xlu0 %v5632, 32
        %v5656 = vpop.permute.xlu0 %5655
        %5657 = vrot.lane.b32.xlu0 %v5633, 32
        %v5658 = vpop.permute.xlu0 %5657
        %5659 = vrot.lane.b32.xlu0 %v5634, 32
        %v5660 = vpop.permute.xlu0 %5659
        %5661 = vrot.lane.b32.xlu0 %v5635, 32
        %v5662 = vpop.permute.xlu0 %5661
        %5663 = vrot.lane.b32.xlu0 %v5636, 32
        %v5664 = vpop.permute.xlu0 %5663
        %5665 = vrot.lane.b32.xlu0 %v5637, 32
        %v5666 = vpop.permute.xlu0 %5665
        %5667 = vrot.lane.b32.xlu0 %v5638, 32
        %v5668 = vpop.permute.xlu0 %5667
        %5669 = vrot.lane.b32.xlu0 %v5639, 32
        %v5670 = vpop.permute.xlu0 %5669
        %5671 = vrot.lane.b32.xlu0 %v5640, 32
        %v5672 = vpop.permute.xlu0 %5671
        %5689 = vst.msk [vmem:[#allocation3] sm:$0xff] %vm1881, %v5642
        %5690 = vst.msk [vmem:[#allocation3 + $0x18] sm:$0xff] %vm1881, %v5644
        %5691 = vst.msk [vmem:[#allocation3 + $0x30] sm:$0xff] %vm1881, %v5646
        %5692 = vst.msk [vmem:[#allocation3 + $0x48] sm:$0xff] %vm1881, %v5648
        %5693 = vst.msk [vmem:[#allocation3 + $0x60] sm:$0xff] %vm1881, %v5650
        %5694 = vst.msk [vmem:[#allocation3 + $0x78] sm:$0xff] %vm1881, %v5652
        %5695 = vst.msk [vmem:[#allocation3 + $0x90] sm:$0xff] %vm1881, %v5654
        %5696 = vst.msk [vmem:[#allocation3 + $0xa8] sm:$0xff] %vm1881, %v5656
        %5697 = vst.msk [vmem:[#allocation3 + $0xc0] sm:$0xff] %vm1881, %v5658
        %5698 = vst.msk [vmem:[#allocation3 + $0xd8] sm:$0xff] %vm1881, %v5660
        %5699 = vst.msk [vmem:[#allocation3 + $0xf0] sm:$0xff] %vm1881, %v5662
        %5700 = vst.msk [vmem:[#allocation3 + $0x108] sm:$0xff] %vm1881, %v5664
        %5701 = vst.msk [vmem:[#allocation3 + $0x120] sm:$0xff] %vm1881, %v5666
        %5702 = vst.msk [vmem:[#allocation3 + $0x138] sm:$0xff] %vm1881, %v5668
        %5703 = vst.msk [vmem:[#allocation3 + $0x150] sm:$0xff] %vm1881, %v5670
        %5704 = vst.msk [vmem:[#allocation3 + $0x168] sm:$0xff] %vm1881, %v5672
        %v5705 = vld [vmem:[#allocation2 + $0xc] sm:$0xf]
        %v5706 = vld [vmem:[#allocation2 + $0x10] sm:$0xf]
        %v5707 = vld [vmem:[#allocation2 + $0x20] sm:$0xf]
        %v5708 = vld [vmem:[#allocation2 + $0x24] sm:$0xf]
        %v5709 = vld [vmem:[#allocation2 + $0x34] sm:$0xf]
        %v5710 = vld [vmem:[#allocation2 + $0x38] sm:$0xf]
        %v5711 = vld [vmem:[#allocation2 + $0x48] sm:$0xf]
        %v5712 = vld [vmem:[#allocation2 + $0x4c] sm:$0xf]
        %v5713 = vld [vmem:[#allocation2 + $0x5c] sm:$0xf]
        %v5714 = vld [vmem:[#allocation2 + $0x60] sm:$0xf]
        %v5715 = vld [vmem:[#allocation2 + $0x70] sm:$0xf]
        %v5716 = vld [vmem:[#allocation2 + $0x74] sm:$0xf]
        %v5717 = vld [vmem:[#allocation2 + $0x84] sm:$0xf]
        %v5718 = vld [vmem:[#allocation2 + $0x88] sm:$0xf]
        %v5719 = vld [vmem:[#allocation2 + $0x98] sm:$0xf]
        %v5720 = vld [vmem:[#allocation2 + $0x9c] sm:$0xf]
        %v5721 = vld [vmem:[#allocation2 + $0xac] sm:$0xf]
        %v5722 = vld [vmem:[#allocation2 + $0xb0] sm:$0xf]
        %v5723 = vld [vmem:[#allocation2 + $0xc0] sm:$0xf]
        %v5724 = vld [vmem:[#allocation2 + $0xc4] sm:$0xf]
        %v5725 = vld [vmem:[#allocation2 + $0xd4] sm:$0xf]
        %v5726 = vld [vmem:[#allocation2 + $0xd8] sm:$0xf]
        %v5727 = vld [vmem:[#allocation2 + $0xe8] sm:$0xf]
        %v5728 = vld [vmem:[#allocation2 + $0xec] sm:$0xf]
        %v5729 = vld [vmem:[#allocation2 + $0xfc] sm:$0xf]
        %v5730 = vld [vmem:[#allocation2 + $0x100] sm:$0xf]
        %v5731 = vld [vmem:[#allocation2 + $0x110] sm:$0xf]
        %v5732 = vld [vmem:[#allocation2 + $0x114] sm:$0xf]
        %v5733 = vld [vmem:[#allocation2 + $0x124] sm:$0xf]
        %v5734 = vld [vmem:[#allocation2 + $0x128] sm:$0xf]
        %v5735 = vld [vmem:[#allocation2 + $0x138] sm:$0xf]
        %v5736 = vld [vmem:[#allocation2 + $0x13c] sm:$0xf]
        %v5769 = vunpack.c.l.b16 %v5705
        %v5770 = vunpack.c.l.b16 %v5706
        %v5771 = vunpack.c.l.b16 %v5707
        %v5772 = vunpack.c.l.b16 %v5708
        %v5773 = vunpack.c.l.b16 %v5709
        %v5774 = vunpack.c.l.b16 %v5710
        %v5775 = vunpack.c.l.b16 %v5711
        %v5776 = vunpack.c.l.b16 %v5712
        %v5777 = vunpack.c.l.b16 %v5713
        %v5778 = vunpack.c.l.b16 %v5714
        %v5779 = vunpack.c.l.b16 %v5715
        %v5780 = vunpack.c.l.b16 %v5716
        %v5781 = vunpack.c.l.b16 %v5717
        %v5782 = vunpack.c.l.b16 %v5718
        %v5783 = vunpack.c.l.b16 %v5719
        %v5784 = vunpack.c.l.b16 %v5720
        %v5785 = vunpack.c.l.b16 %v5721
        %v5786 = vunpack.c.l.b16 %v5722
        %v5787 = vunpack.c.l.b16 %v5723
        %v5788 = vunpack.c.l.b16 %v5724
        %v5789 = vunpack.c.l.b16 %v5725
        %v5790 = vunpack.c.l.b16 %v5726
        %v5791 = vunpack.c.l.b16 %v5727
        %v5792 = vunpack.c.l.b16 %v5728
        %v5793 = vunpack.c.l.b16 %v5729
        %v5794 = vunpack.c.l.b16 %v5730
        %v5795 = vunpack.c.l.b16 %v5731
        %v5796 = vunpack.c.l.b16 %v5732
        %v5797 = vunpack.c.l.b16 %v5733
        %v5798 = vunpack.c.l.b16 %v5734
        %v5799 = vunpack.c.l.b16 %v5735
        %v5800 = vunpack.c.l.b16 %v5736
        %v5801 = vpack.c.b16 %v5770, %v5769
        %v5802 = vpack.c.b16 %v5772, %v5771
        %v5803 = vpack.c.b16 %v5774, %v5773
        %v5804 = vpack.c.b16 %v5776, %v5775
        %v5805 = vpack.c.b16 %v5778, %v5777
        %v5806 = vpack.c.b16 %v5780, %v5779
        %v5807 = vpack.c.b16 %v5782, %v5781
        %v5808 = vpack.c.b16 %v5784, %v5783
        %v5809 = vpack.c.b16 %v5786, %v5785
        %v5810 = vpack.c.b16 %v5788, %v5787
        %v5811 = vpack.c.b16 %v5790, %v5789
        %v5812 = vpack.c.b16 %v5792, %v5791
        %v5813 = vpack.c.b16 %v5794, %v5793
        %v5814 = vpack.c.b16 %v5796, %v5795
        %v5815 = vpack.c.b16 %v5798, %v5797
        %v5816 = vpack.c.b16 %v5800, %v5799
        %5817 = vrot.lane.b32.xlu0 %v5801, 64
        %v5818 = vpop.permute.xlu0 %5817
        %5819 = vrot.lane.b32.xlu0 %v5802, 64
        %v5820 = vpop.permute.xlu0 %5819
        %5821 = vrot.lane.b32.xlu0 %v5803, 64
        %v5822 = vpop.permute.xlu0 %5821
        %5823 = vrot.lane.b32.xlu0 %v5804, 64
        %v5824 = vpop.permute.xlu0 %5823
        %5825 = vrot.lane.b32.xlu0 %v5805, 64
        %v5826 = vpop.permute.xlu0 %5825
        %5827 = vrot.lane.b32.xlu0 %v5806, 64
        %v5828 = vpop.permute.xlu0 %5827
        %5829 = vrot.lane.b32.xlu0 %v5807, 64
        %v5830 = vpop.permute.xlu0 %5829
        %5831 = vrot.lane.b32.xlu0 %v5808, 64
        %v5832 = vpop.permute.xlu0 %5831
        %5833 = vrot.lane.b32.xlu0 %v5809, 64
        %v5834 = vpop.permute.xlu0 %5833
        %5835 = vrot.lane.b32.xlu0 %v5810, 64
        %v5836 = vpop.permute.xlu0 %5835
        %5837 = vrot.lane.b32.xlu0 %v5811, 64
        %v5838 = vpop.permute.xlu0 %5837
        %5839 = vrot.lane.b32.xlu0 %v5812, 64
        %v5840 = vpop.permute.xlu0 %5839
        %5841 = vrot.lane.b32.xlu0 %v5813, 64
        %v5842 = vpop.permute.xlu0 %5841
        %5843 = vrot.lane.b32.xlu0 %v5814, 64
        %v5844 = vpop.permute.xlu0 %5843
        %5845 = vrot.lane.b32.xlu0 %v5815, 64
        %v5846 = vpop.permute.xlu0 %5845
        %5847 = vrot.lane.b32.xlu0 %v5816, 64
        %v5848 = vpop.permute.xlu0 %5847
        %5865 = vst.msk [vmem:[#allocation3] sm:$0xff] %vm2205, %v5818
        %5866 = vst.msk [vmem:[#allocation3 + $0x18] sm:$0xff] %vm2205, %v5820
        %5867 = vst.msk [vmem:[#allocation3 + $0x30] sm:$0xff] %vm2205, %v5822
        %5868 = vst.msk [vmem:[#allocation3 + $0x48] sm:$0xff] %vm2205, %v5824
        %5869 = vst.msk [vmem:[#allocation3 + $0x60] sm:$0xff] %vm2205, %v5826
        %5870 = vst.msk [vmem:[#allocation3 + $0x78] sm:$0xff] %vm2205, %v5828
        %5871 = vst.msk [vmem:[#allocation3 + $0x90] sm:$0xff] %vm2205, %v5830
        %5872 = vst.msk [vmem:[#allocation3 + $0xa8] sm:$0xff] %vm2205, %v5832
        %5873 = vst.msk [vmem:[#allocation3 + $0xc0] sm:$0xff] %vm2205, %v5834
        %5874 = vst.msk [vmem:[#allocation3 + $0xd8] sm:$0xff] %vm2205, %v5836
        %5875 = vst.msk [vmem:[#allocation3 + $0xf0] sm:$0xff] %vm2205, %v5838
        %5876 = vst.msk [vmem:[#allocation3 + $0x108] sm:$0xff] %vm2205, %v5840
        %5877 = vst.msk [vmem:[#allocation3 + $0x120] sm:$0xff] %vm2205, %v5842
        %5878 = vst.msk [vmem:[#allocation3 + $0x138] sm:$0xff] %vm2205, %v5844
        %5879 = vst.msk [vmem:[#allocation3 + $0x150] sm:$0xff] %vm2205, %v5846
        %5880 = vst.msk [vmem:[#allocation3 + $0x168] sm:$0xff] %vm2205, %v5848
        %v5881 = vld [vmem:[%s1233] sm:$0xf]
        %v5882 = vld [vmem:[%s1233 + $0x4] sm:$0xf]
        %v5883 = vld [vmem:[%s1233 + $0x14] sm:$0xf]
        %v5884 = vld [vmem:[%s1233 + $0x18] sm:$0xf]
        %v5885 = vld [vmem:[%s1233 + $0x28] sm:$0xf]
        %v5886 = vld [vmem:[%s1233 + $0x2c] sm:$0xf]
        %v5887 = vld [vmem:[%s1233 + $0x3c] sm:$0xf]
        %v5888 = vld [vmem:[%s1233 + $0x40] sm:$0xf]
        %v5889 = vld [vmem:[%s1233 + $0x50] sm:$0xf]
        %v5890 = vld [vmem:[%s1233 + $0x54] sm:$0xf]
        %v5891 = vld [vmem:[%s1233 + $0x64] sm:$0xf]
        %v5892 = vld [vmem:[%s1233 + $0x68] sm:$0xf]
        %v5893 = vld [vmem:[%s1233 + $0x78] sm:$0xf]
        %v5894 = vld [vmem:[%s1233 + $0x7c] sm:$0xf]
        %v5895 = vld [vmem:[%s1233 + $0x8c] sm:$0xf]
        %v5896 = vld [vmem:[%s1233 + $0x90] sm:$0xf]
        %v5897 = vld [vmem:[%s1233 + $0xa0] sm:$0xf]
        %v5898 = vld [vmem:[%s1233 + $0xa4] sm:$0xf]
        %v5899 = vld [vmem:[%s1233 + $0xb4] sm:$0xf]
        %v5900 = vld [vmem:[%s1233 + $0xb8] sm:$0xf]
        %v5901 = vld [vmem:[%s1233 + $0xc8] sm:$0xf]
        %v5902 = vld [vmem:[%s1233 + $0xcc] sm:$0xf]
        %v5903 = vld [vmem:[%s1233 + $0xdc] sm:$0xf]
        %v5904 = vld [vmem:[%s1233 + $0xe0] sm:$0xf]
        %v5905 = vld [vmem:[%s1233 + $0xf0] sm:$0xf]
        %v5906 = vld [vmem:[%s1233 + $0xf4] sm:$0xf]
        %v5907 = vld [vmem:[%s1233 + $0x104] sm:$0xf]
        %v5908 = vld [vmem:[%s1233 + $0x108] sm:$0xf]
        %v5909 = vld [vmem:[%s1233 + $0x118] sm:$0xf]
        %v5910 = vld [vmem:[%s1233 + $0x11c] sm:$0xf]
        %v5911 = vld [vmem:[%s1233 + $0x12c] sm:$0xf]
        %v5912 = vld [vmem:[%s1233 + $0x130] sm:$0xf]
        %v5945 = vunpack.c.l.b16 %v5881
        %v5946 = vunpack.c.l.b16 %v5882
        %v5947 = vunpack.c.l.b16 %v5883
        %v5948 = vunpack.c.l.b16 %v5884
        %v5949 = vunpack.c.l.b16 %v5885
        %v5950 = vunpack.c.l.b16 %v5886
        %v5951 = vunpack.c.l.b16 %v5887
        %v5952 = vunpack.c.l.b16 %v5888
        %v5953 = vunpack.c.l.b16 %v5889
        %v5954 = vunpack.c.l.b16 %v5890
        %v5955 = vunpack.c.l.b16 %v5891
        %v5956 = vunpack.c.l.b16 %v5892
        %v5957 = vunpack.c.l.b16 %v5893
        %v5958 = vunpack.c.l.b16 %v5894
        %v5959 = vunpack.c.l.b16 %v5895
        %v5960 = vunpack.c.l.b16 %v5896
        %v5961 = vunpack.c.l.b16 %v5897
        %v5962 = vunpack.c.l.b16 %v5898
        %v5963 = vunpack.c.l.b16 %v5899
        %v5964 = vunpack.c.l.b16 %v5900
        %v5965 = vunpack.c.l.b16 %v5901
        %v5966 = vunpack.c.l.b16 %v5902
        %v5967 = vunpack.c.l.b16 %v5903
        %v5968 = vunpack.c.l.b16 %v5904
        %v5969 = vunpack.c.l.b16 %v5905
        %v5970 = vunpack.c.l.b16 %v5906
        %v5971 = vunpack.c.l.b16 %v5907
        %v5972 = vunpack.c.l.b16 %v5908
        %v5973 = vunpack.c.l.b16 %v5909
        %v5974 = vunpack.c.l.b16 %v5910
        %v5975 = vunpack.c.l.b16 %v5911
        %v5976 = vunpack.c.l.b16 %v5912
        %v5977 = vpack.c.b16 %v5946, %v5945
        %v5978 = vpack.c.b16 %v5948, %v5947
        %v5979 = vpack.c.b16 %v5950, %v5949
        %v5980 = vpack.c.b16 %v5952, %v5951
        %v5981 = vpack.c.b16 %v5954, %v5953
        %v5982 = vpack.c.b16 %v5956, %v5955
        %v5983 = vpack.c.b16 %v5958, %v5957
        %v5984 = vpack.c.b16 %v5960, %v5959
        %v5985 = vpack.c.b16 %v5962, %v5961
        %v5986 = vpack.c.b16 %v5964, %v5963
        %v5987 = vpack.c.b16 %v5966, %v5965
        %v5988 = vpack.c.b16 %v5968, %v5967
        %v5989 = vpack.c.b16 %v5970, %v5969
        %v5990 = vpack.c.b16 %v5972, %v5971
        %v5991 = vpack.c.b16 %v5974, %v5973
        %v5992 = vpack.c.b16 %v5976, %v5975
        %5993 = vrot.lane.b32.xlu0 %v5977, 96
        %v5994 = vpop.permute.xlu0 %5993
        %5995 = vrot.lane.b32.xlu0 %v5978, 96
        %v5996 = vpop.permute.xlu0 %5995
        %5997 = vrot.lane.b32.xlu0 %v5979, 96
        %v5998 = vpop.permute.xlu0 %5997
        %5999 = vrot.lane.b32.xlu0 %v5980, 96
        %v6000 = vpop.permute.xlu0 %5999
        %6001 = vrot.lane.b32.xlu0 %v5981, 96
        %v6002 = vpop.permute.xlu0 %6001
        %6003 = vrot.lane.b32.xlu0 %v5982, 96
        %v6004 = vpop.permute.xlu0 %6003
        %6005 = vrot.lane.b32.xlu0 %v5983, 96
        %v6006 = vpop.permute.xlu0 %6005
        %6007 = vrot.lane.b32.xlu0 %v5984, 96
        %v6008 = vpop.permute.xlu0 %6007
        %6009 = vrot.lane.b32.xlu0 %v5985, 96
        %v6010 = vpop.permute.xlu0 %6009
        %6011 = vrot.lane.b32.xlu0 %v5986, 96
        %v6012 = vpop.permute.xlu0 %6011
        %6013 = vrot.lane.b32.xlu0 %v5987, 96
        %v6014 = vpop.permute.xlu0 %6013
        %6015 = vrot.lane.b32.xlu0 %v5988, 96
        %v6016 = vpop.permute.xlu0 %6015
        %6017 = vrot.lane.b32.xlu0 %v5989, 96
        %v6018 = vpop.permute.xlu0 %6017
        %6019 = vrot.lane.b32.xlu0 %v5990, 96
        %v6020 = vpop.permute.xlu0 %6019
        %6021 = vrot.lane.b32.xlu0 %v5991, 96
        %v6022 = vpop.permute.xlu0 %6021
        %6023 = vrot.lane.b32.xlu0 %v5992, 96
        %v6024 = vpop.permute.xlu0 %6023
        %6041 = vst.msk [vmem:[#allocation3] sm:$0xff] %vm2526, %v5994
        %6042 = vst.msk [vmem:[#allocation3 + $0x18] sm:$0xff] %vm2526, %v5996
        %6043 = vst.msk [vmem:[#allocation3 + $0x30] sm:$0xff] %vm2526, %v5998
        %6044 = vst.msk [vmem:[#allocation3 + $0x48] sm:$0xff] %vm2526, %v6000
        %6045 = vst.msk [vmem:[#allocation3 + $0x60] sm:$0xff] %vm2526, %v6002
        %6046 = vst.msk [vmem:[#allocation3 + $0x78] sm:$0xff] %vm2526, %v6004
        %6047 = vst.msk [vmem:[#allocation3 + $0x90] sm:$0xff] %vm2526, %v6006
        %6048 = vst.msk [vmem:[#allocation3 + $0xa8] sm:$0xff] %vm2526, %v6008
        %6049 = vst.msk [vmem:[#allocation3 + $0xc0] sm:$0xff] %vm2526, %v6010
        %6050 = vst.msk [vmem:[#allocation3 + $0xd8] sm:$0xff] %vm2526, %v6012
        %6051 = vst.msk [vmem:[#allocation3 + $0xf0] sm:$0xff] %vm2526, %v6014
        %6052 = vst.msk [vmem:[#allocation3 + $0x108] sm:$0xff] %vm2526, %v6016
        %6053 = vst.msk [vmem:[#allocation3 + $0x120] sm:$0xff] %vm2526, %v6018
        %6054 = vst.msk [vmem:[#allocation3 + $0x138] sm:$0xff] %vm2526, %v6020
        %6055 = vst.msk [vmem:[#allocation3 + $0x150] sm:$0xff] %vm2526, %v6022
        %6056 = vst.msk [vmem:[#allocation3 + $0x168] sm:$0xff] %vm2526, %v6024
        %v6057 = vld [vmem:[%s1233 + $0x4] sm:$0xc]
        %v6058 = vld [vmem:[%s1233 + $0x8] sm:$0xf]
        %v6059 = vld [vmem:[%s1233 + $0xc] sm:$0x3]
        %v6060 = vld [vmem:[%s1233 + $0x18] sm:$0xc]
        %v6061 = vld [vmem:[%s1233 + $0x1c] sm:$0xf]
        %v6062 = vld [vmem:[%s1233 + $0x20] sm:$0x3]
        %v6063 = vld [vmem:[%s1233 + $0x2c] sm:$0xc]
        %v6064 = vld [vmem:[%s1233 + $0x30] sm:$0xf]
        %v6065 = vld [vmem:[%s1233 + $0x34] sm:$0x3]
        %v6066 = vld [vmem:[%s1233 + $0x40] sm:$0xc]
        %v6067 = vld [vmem:[%s1233 + $0x44] sm:$0xf]
        %v6068 = vld [vmem:[%s1233 + $0x48] sm:$0x3]
        %v6069 = vld [vmem:[%s1233 + $0x54] sm:$0xc]
        %v6070 = vld [vmem:[%s1233 + $0x58] sm:$0xf]
        %v6071 = vld [vmem:[%s1233 + $0x5c] sm:$0x3]
        %v6072 = vld [vmem:[%s1233 + $0x68] sm:$0xc]
        %v6073 = vld [vmem:[%s1233 + $0x6c] sm:$0xf]
        %v6074 = vld [vmem:[%s1233 + $0x70] sm:$0x3]
        %v6075 = vld [vmem:[%s1233 + $0x7c] sm:$0xc]
        %v6076 = vld [vmem:[%s1233 + $0x80] sm:$0xf]
        %v6077 = vld [vmem:[%s1233 + $0x84] sm:$0x3]
        %v6078 = vld [vmem:[%s1233 + $0x90] sm:$0xc]
        %v6079 = vld [vmem:[%s1233 + $0x94] sm:$0xf]
        %v6080 = vld [vmem:[%s1233 + $0x98] sm:$0x3]
        %v6081 = vld [vmem:[%s1233 + $0xa4] sm:$0xc]
        %v6082 = vld [vmem:[%s1233 + $0xa8] sm:$0xf]
        %v6083 = vld [vmem:[%s1233 + $0xac] sm:$0x3]
        %v6084 = vld [vmem:[%s1233 + $0xb8] sm:$0xc]
        %v6085 = vld [vmem:[%s1233 + $0xbc] sm:$0xf]
        %v6086 = vld [vmem:[%s1233 + $0xc0] sm:$0x3]
        %v6087 = vld [vmem:[%s1233 + $0xcc] sm:$0xc]
        %v6088 = vld [vmem:[%s1233 + $0xd0] sm:$0xf]
        %v6089 = vld [vmem:[%s1233 + $0xd4] sm:$0x3]
        %v6090 = vld [vmem:[%s1233 + $0xe0] sm:$0xc]
        %v6091 = vld [vmem:[%s1233 + $0xe4] sm:$0xf]
        %v6092 = vld [vmem:[%s1233 + $0xe8] sm:$0x3]
        %v6093 = vld [vmem:[%s1233 + $0xf4] sm:$0xc]
        %v6094 = vld [vmem:[%s1233 + $0xf8] sm:$0xf]
        %v6095 = vld [vmem:[%s1233 + $0xfc] sm:$0x3]
        %v6096 = vld [vmem:[%s1233 + $0x108] sm:$0xc]
        %v6097 = vld [vmem:[%s1233 + $0x10c] sm:$0xf]
        %v6098 = vld [vmem:[%s1233 + $0x110] sm:$0x3]
        %v6099 = vld [vmem:[%s1233 + $0x11c] sm:$0xc]
        %v6100 = vld [vmem:[%s1233 + $0x120] sm:$0xf]
        %v6101 = vld [vmem:[%s1233 + $0x124] sm:$0x3]
        %v6102 = vld [vmem:[%s1233 + $0x130] sm:$0xc]
        %v6103 = vld [vmem:[%s1233 + $0x134] sm:$0xf]
        %v6104 = vld [vmem:[%s1233 + $0x138] sm:$0x3]
        %v6153 = vrot.slane %v6057, 6
        %v6154 = vrot.slane %v6153, 4
        %v6155 = vrot.slane %v6058, 6
        %v6156 = vsel %vm1104, %v6154, %v6155
        %v6157 = vrot.slane %v6155, 4
        %v6158 = vrot.slane %v6059, 6
        %v6159 = vsel %vm1104, %v6157, %v6158
        %v6160 = vrot.slane %v6060, 6
        %v6161 = vrot.slane %v6160, 4
        %v6162 = vrot.slane %v6061, 6
        %v6163 = vsel %vm1104, %v6161, %v6162
        %v6164 = vrot.slane %v6162, 4
        %v6165 = vrot.slane %v6062, 6
        %v6166 = vsel %vm1104, %v6164, %v6165
        %v6167 = vrot.slane %v6063, 6
        %v6168 = vrot.slane %v6167, 4
        %v6169 = vrot.slane %v6064, 6
        %v6170 = vsel %vm1104, %v6168, %v6169
        %v6171 = vrot.slane %v6169, 4
        %v6172 = vrot.slane %v6065, 6
        %v6173 = vsel %vm1104, %v6171, %v6172
        %v6174 = vrot.slane %v6066, 6
        %v6175 = vrot.slane %v6174, 4
        %v6176 = vrot.slane %v6067, 6
        %v6177 = vsel %vm1104, %v6175, %v6176
        %v6178 = vrot.slane %v6176, 4
        %v6179 = vrot.slane %v6068, 6
        %v6180 = vsel %vm1104, %v6178, %v6179
        %v6181 = vrot.slane %v6069, 6
        %v6182 = vrot.slane %v6181, 4
        %v6183 = vrot.slane %v6070, 6
        %v6184 = vsel %vm1104, %v6182, %v6183
        %v6185 = vrot.slane %v6183, 4
        %v6186 = vrot.slane %v6071, 6
        %v6187 = vsel %vm1104, %v6185, %v6186
        %v6188 = vrot.slane %v6072, 6
        %v6189 = vrot.slane %v6188, 4
        %v6190 = vrot.slane %v6073, 6
        %v6191 = vsel %vm1104, %v6189, %v6190
        %v6192 = vrot.slane %v6190, 4
        %v6193 = vrot.slane %v6074, 6
        %v6194 = vsel %vm1104, %v6192, %v6193
        %v6195 = vrot.slane %v6075, 6
        %v6196 = vrot.slane %v6195, 4
        %v6197 = vrot.slane %v6076, 6
        %v6198 = vsel %vm1104, %v6196, %v6197
        %v6199 = vrot.slane %v6197, 4
        %v6200 = vrot.slane %v6077, 6
        %v6201 = vsel %vm1104, %v6199, %v6200
        %v6202 = vrot.slane %v6078, 6
        %v6203 = vrot.slane %v6202, 4
        %v6204 = vrot.slane %v6079, 6
        %v6205 = vsel %vm1104, %v6203, %v6204
        %v6206 = vrot.slane %v6204, 4
        %v6207 = vrot.slane %v6080, 6
        %v6208 = vsel %vm1104, %v6206, %v6207
        %v6209 = vrot.slane %v6081, 6
        %v6210 = vrot.slane %v6209, 4
        %v6211 = vrot.slane %v6082, 6
        %v6212 = vsel %vm1104, %v6210, %v6211
        %v6213 = vrot.slane %v6211, 4
        %v6214 = vrot.slane %v6083, 6
        %v6215 = vsel %vm1104, %v6213, %v6214
        %v6216 = vrot.slane %v6084, 6
        %v6217 = vrot.slane %v6216, 4
        %v6218 = vrot.slane %v6085, 6
        %v6219 = vsel %vm1104, %v6217, %v6218
        %v6220 = vrot.slane %v6218, 4
        %v6221 = vrot.slane %v6086, 6
        %v6222 = vsel %vm1104, %v6220, %v6221
        %v6223 = vrot.slane %v6087, 6
        %v6224 = vrot.slane %v6223, 4
        %v6225 = vrot.slane %v6088, 6
        %v6226 = vsel %vm1104, %v6224, %v6225
        %v6227 = vrot.slane %v6225, 4
        %v6228 = vrot.slane %v6089, 6
        %v6229 = vsel %vm1104, %v6227, %v6228
        %v6230 = vrot.slane %v6090, 6
        %v6231 = vrot.slane %v6230, 4
        %v6232 = vrot.slane %v6091, 6
        %v6233 = vsel %vm1104, %v6231, %v6232
        %v6234 = vrot.slane %v6232, 4
        %v6235 = vrot.slane %v6092, 6
        %v6236 = vsel %vm1104, %v6234, %v6235
        %v6237 = vrot.slane %v6093, 6
        %v6238 = vrot.slane %v6237, 4
        %v6239 = vrot.slane %v6094, 6
        %v6240 = vsel %vm1104, %v6238, %v6239
        %v6241 = vrot.slane %v6239, 4
        %v6242 = vrot.slane %v6095, 6
        %v6243 = vsel %vm1104, %v6241, %v6242
        %v6244 = vrot.slane %v6096, 6
        %v6245 = vrot.slane %v6244, 4
        %v6246 = vrot.slane %v6097, 6
        %v6247 = vsel %vm1104, %v6245, %v6246
        %v6248 = vrot.slane %v6246, 4
        %v6249 = vrot.slane %v6098, 6
        %v6250 = vsel %vm1104, %v6248, %v6249
        %v6251 = vrot.slane %v6099, 6
        %v6252 = vrot.slane %v6251, 4
        %v6253 = vrot.slane %v6100, 6
        %v6254 = vsel %vm1104, %v6252, %v6253
        %v6255 = vrot.slane %v6253, 4
        %v6256 = vrot.slane %v6101, 6
        %v6257 = vsel %vm1104, %v6255, %v6256
        %v6258 = vrot.slane %v6102, 6
        %v6259 = vrot.slane %v6258, 4
        %v6260 = vrot.slane %v6103, 6
        %v6261 = vsel %vm1104, %v6259, %v6260
        %v6262 = vrot.slane %v6260, 4
        %v6263 = vrot.slane %v6104, 6
        %v6264 = vsel %vm1104, %v6262, %v6263
        %v6265 = vunpack.c.l.b16 %v6156
        %v6266 = vunpack.c.l.b16 %v6159
        %v6267 = vunpack.c.l.b16 %v6163
        %v6268 = vunpack.c.l.b16 %v6166
        %v6269 = vunpack.c.l.b16 %v6170
        %v6270 = vunpack.c.l.b16 %v6173
        %v6271 = vunpack.c.l.b16 %v6177
        %v6272 = vunpack.c.l.b16 %v6180
        %v6273 = vunpack.c.l.b16 %v6184
        %v6274 = vunpack.c.l.b16 %v6187
        %v6275 = vunpack.c.l.b16 %v6191
        %v6276 = vunpack.c.l.b16 %v6194
        %v6277 = vunpack.c.l.b16 %v6198
        %v6278 = vunpack.c.l.b16 %v6201
        %v6279 = vunpack.c.l.b16 %v6205
        %v6280 = vunpack.c.l.b16 %v6208
        %v6281 = vunpack.c.l.b16 %v6212
        %v6282 = vunpack.c.l.b16 %v6215
        %v6283 = vunpack.c.l.b16 %v6219
        %v6284 = vunpack.c.l.b16 %v6222
        %v6285 = vunpack.c.l.b16 %v6226
        %v6286 = vunpack.c.l.b16 %v6229
        %v6287 = vunpack.c.l.b16 %v6233
        %v6288 = vunpack.c.l.b16 %v6236
        %v6289 = vunpack.c.l.b16 %v6240
        %v6290 = vunpack.c.l.b16 %v6243
        %v6291 = vunpack.c.l.b16 %v6247
        %v6292 = vunpack.c.l.b16 %v6250
        %v6293 = vunpack.c.l.b16 %v6254
        %v6294 = vunpack.c.l.b16 %v6257
        %v6295 = vunpack.c.l.b16 %v6261
        %v6296 = vunpack.c.l.b16 %v6264
        %v6297 = vpack.c.b16 %v6266, %v6265
        %v6298 = vpack.c.b16 %v6268, %v6267
        %v6299 = vpack.c.b16 %v6270, %v6269
        %v6300 = vpack.c.b16 %v6272, %v6271
        %v6301 = vpack.c.b16 %v6274, %v6273
        %v6302 = vpack.c.b16 %v6276, %v6275
        %v6303 = vpack.c.b16 %v6278, %v6277
        %v6304 = vpack.c.b16 %v6280, %v6279
        %v6305 = vpack.c.b16 %v6282, %v6281
        %v6306 = vpack.c.b16 %v6284, %v6283
        %v6307 = vpack.c.b16 %v6286, %v6285
        %v6308 = vpack.c.b16 %v6288, %v6287
        %v6309 = vpack.c.b16 %v6290, %v6289
        %v6310 = vpack.c.b16 %v6292, %v6291
        %v6311 = vpack.c.b16 %v6294, %v6293
        %v6312 = vpack.c.b16 %v6296, %v6295
        %6329 = vst.msk [vmem:[#allocation3 + $0x8] sm:$0xff] %vm1560, %v6297
        %6330 = vst.msk [vmem:[#allocation3 + $0x20] sm:$0xff] %vm1560, %v6298
        %6331 = vst.msk [vmem:[#allocation3 + $0x38] sm:$0xff] %vm1560, %v6299
        %6332 = vst.msk [vmem:[#allocation3 + $0x50] sm:$0xff] %vm1560, %v6300
        %6333 = vst.msk [vmem:[#allocation3 + $0x68] sm:$0xff] %vm1560, %v6301
        %6334 = vst.msk [vmem:[#allocation3 + $0x80] sm:$0xff] %vm1560, %v6302
        %6335 = vst.msk [vmem:[#allocation3 + $0x98] sm:$0xff] %vm1560, %v6303
        %6336 = vst.msk [vmem:[#allocation3 + $0xb0] sm:$0xff] %vm1560, %v6304
        %6337 = vst.msk [vmem:[#allocation3 + $0xc8] sm:$0xff] %vm1560, %v6305
        %6338 = vst.msk [vmem:[#allocation3 + $0xe0] sm:$0xff] %vm1560, %v6306
        %6339 = vst.msk [vmem:[#allocation3 + $0xf8] sm:$0xff] %vm1560, %v6307
        %6340 = vst.msk [vmem:[#allocation3 + $0x110] sm:$0xff] %vm1560, %v6308
        %6341 = vst.msk [vmem:[#allocation3 + $0x128] sm:$0xff] %vm1560, %v6309
        %6342 = vst.msk [vmem:[#allocation3 + $0x140] sm:$0xff] %vm1560, %v6310
        %6343 = vst.msk [vmem:[#allocation3 + $0x158] sm:$0xff] %vm1560, %v6311
        %6344 = vst.msk [vmem:[#allocation3 + $0x170] sm:$0xff] %vm1560, %v6312
        %v6345 = vld [vmem:[%s1233 + $0xc] sm:$0xf]
        %v6346 = vld [vmem:[%s1233 + $0x10] sm:$0xf]
        %v6347 = vld [vmem:[%s1233 + $0x20] sm:$0xf]
        %v6348 = vld [vmem:[%s1233 + $0x24] sm:$0xf]
        %v6349 = vld [vmem:[%s1233 + $0x34] sm:$0xf]
        %v6350 = vld [vmem:[%s1233 + $0x38] sm:$0xf]
        %v6351 = vld [vmem:[%s1233 + $0x48] sm:$0xf]
        %v6352 = vld [vmem:[%s1233 + $0x4c] sm:$0xf]
        %v6353 = vld [vmem:[%s1233 + $0x5c] sm:$0xf]
        %v6354 = vld [vmem:[%s1233 + $0x60] sm:$0xf]
        %v6355 = vld [vmem:[%s1233 + $0x70] sm:$0xf]
        %v6356 = vld [vmem:[%s1233 + $0x74] sm:$0xf]
        %v6357 = vld [vmem:[%s1233 + $0x84] sm:$0xf]
        %v6358 = vld [vmem:[%s1233 + $0x88] sm:$0xf]
        %v6359 = vld [vmem:[%s1233 + $0x98] sm:$0xf]
        %v6360 = vld [vmem:[%s1233 + $0x9c] sm:$0xf]
        %v6361 = vld [vmem:[%s1233 + $0xac] sm:$0xf]
        %v6362 = vld [vmem:[%s1233 + $0xb0] sm:$0xf]
        %v6363 = vld [vmem:[%s1233 + $0xc0] sm:$0xf]
        %v6364 = vld [vmem:[%s1233 + $0xc4] sm:$0xf]
        %v6365 = vld [vmem:[%s1233 + $0xd4] sm:$0xf]
        %v6366 = vld [vmem:[%s1233 + $0xd8] sm:$0xf]
        %v6367 = vld [vmem:[%s1233 + $0xe8] sm:$0xf]
        %v6368 = vld [vmem:[%s1233 + $0xec] sm:$0xf]
        %v6369 = vld [vmem:[%s1233 + $0xfc] sm:$0xf]
        %v6370 = vld [vmem:[%s1233 + $0x100] sm:$0xf]
        %v6371 = vld [vmem:[%s1233 + $0x110] sm:$0xf]
        %v6372 = vld [vmem:[%s1233 + $0x114] sm:$0xf]
        %v6373 = vld [vmem:[%s1233 + $0x124] sm:$0xf]
        %v6374 = vld [vmem:[%s1233 + $0x128] sm:$0xf]
        %v6375 = vld [vmem:[%s1233 + $0x138] sm:$0xf]
        %v6376 = vld [vmem:[%s1233 + $0x13c] sm:$0xf]
        %v6409 = vunpack.c.l.b16 %v6345
        %v6410 = vunpack.c.l.b16 %v6346
        %v6411 = vunpack.c.l.b16 %v6347
        %v6412 = vunpack.c.l.b16 %v6348
        %v6413 = vunpack.c.l.b16 %v6349
        %v6414 = vunpack.c.l.b16 %v6350
        %v6415 = vunpack.c.l.b16 %v6351
        %v6416 = vunpack.c.l.b16 %v6352
        %v6417 = vunpack.c.l.b16 %v6353
        %v6418 = vunpack.c.l.b16 %v6354
        %v6419 = vunpack.c.l.b16 %v6355
        %v6420 = vunpack.c.l.b16 %v6356
        %v6421 = vunpack.c.l.b16 %v6357
        %v6422 = vunpack.c.l.b16 %v6358
        %v6423 = vunpack.c.l.b16 %v6359
        %v6424 = vunpack.c.l.b16 %v6360
        %v6425 = vunpack.c.l.b16 %v6361
        %v6426 = vunpack.c.l.b16 %v6362
        %v6427 = vunpack.c.l.b16 %v6363
        %v6428 = vunpack.c.l.b16 %v6364
        %v6429 = vunpack.c.l.b16 %v6365
        %v6430 = vunpack.c.l.b16 %v6366
        %v6431 = vunpack.c.l.b16 %v6367
        %v6432 = vunpack.c.l.b16 %v6368
        %v6433 = vunpack.c.l.b16 %v6369
        %v6434 = vunpack.c.l.b16 %v6370
        %v6435 = vunpack.c.l.b16 %v6371
        %v6436 = vunpack.c.l.b16 %v6372
        %v6437 = vunpack.c.l.b16 %v6373
        %v6438 = vunpack.c.l.b16 %v6374
        %v6439 = vunpack.c.l.b16 %v6375
        %v6440 = vunpack.c.l.b16 %v6376
        %v6441 = vpack.c.b16 %v6410, %v6409
        %v6442 = vpack.c.b16 %v6412, %v6411
        %v6443 = vpack.c.b16 %v6414, %v6413
        %v6444 = vpack.c.b16 %v6416, %v6415
        %v6445 = vpack.c.b16 %v6418, %v6417
        %v6446 = vpack.c.b16 %v6420, %v6419
        %v6447 = vpack.c.b16 %v6422, %v6421
        %v6448 = vpack.c.b16 %v6424, %v6423
        %v6449 = vpack.c.b16 %v6426, %v6425
        %v6450 = vpack.c.b16 %v6428, %v6427
        %v6451 = vpack.c.b16 %v6430, %v6429
        %v6452 = vpack.c.b16 %v6432, %v6431
        %v6453 = vpack.c.b16 %v6434, %v6433
        %v6454 = vpack.c.b16 %v6436, %v6435
        %v6455 = vpack.c.b16 %v6438, %v6437
        %v6456 = vpack.c.b16 %v6440, %v6439
        %6457 = vrot.lane.b32.xlu0 %v6441, 32
        %v6458 = vpop.permute.xlu0 %6457
        %6459 = vrot.lane.b32.xlu0 %v6442, 32
        %v6460 = vpop.permute.xlu0 %6459
        %6461 = vrot.lane.b32.xlu0 %v6443, 32
        %v6462 = vpop.permute.xlu0 %6461
        %6463 = vrot.lane.b32.xlu0 %v6444, 32
        %v6464 = vpop.permute.xlu0 %6463
        %6465 = vrot.lane.b32.xlu0 %v6445, 32
        %v6466 = vpop.permute.xlu0 %6465
        %6467 = vrot.lane.b32.xlu0 %v6446, 32
        %v6468 = vpop.permute.xlu0 %6467
        %6469 = vrot.lane.b32.xlu0 %v6447, 32
        %v6470 = vpop.permute.xlu0 %6469
        %6471 = vrot.lane.b32.xlu0 %v6448, 32
        %v6472 = vpop.permute.xlu0 %6471
        %6473 = vrot.lane.b32.xlu0 %v6449, 32
        %v6474 = vpop.permute.xlu0 %6473
        %6475 = vrot.lane.b32.xlu0 %v6450, 32
        %v6476 = vpop.permute.xlu0 %6475
        %6477 = vrot.lane.b32.xlu0 %v6451, 32
        %v6478 = vpop.permute.xlu0 %6477
        %6479 = vrot.lane.b32.xlu0 %v6452, 32
        %v6480 = vpop.permute.xlu0 %6479
        %6481 = vrot.lane.b32.xlu0 %v6453, 32
        %v6482 = vpop.permute.xlu0 %6481
        %6483 = vrot.lane.b32.xlu0 %v6454, 32
        %v6484 = vpop.permute.xlu0 %6483
        %6485 = vrot.lane.b32.xlu0 %v6455, 32
        %v6486 = vpop.permute.xlu0 %6485
        %6487 = vrot.lane.b32.xlu0 %v6456, 32
        %v6488 = vpop.permute.xlu0 %6487
        %6505 = vst.msk [vmem:[#allocation3 + $0x8] sm:$0xff] %vm1881, %v6458
        %6506 = vst.msk [vmem:[#allocation3 + $0x20] sm:$0xff] %vm1881, %v6460
        %6507 = vst.msk [vmem:[#allocation3 + $0x38] sm:$0xff] %vm1881, %v6462
        %6508 = vst.msk [vmem:[#allocation3 + $0x50] sm:$0xff] %vm1881, %v6464
        %6509 = vst.msk [vmem:[#allocation3 + $0x68] sm:$0xff] %vm1881, %v6466
        %6510 = vst.msk [vmem:[#allocation3 + $0x80] sm:$0xff] %vm1881, %v6468
        %6511 = vst.msk [vmem:[#allocation3 + $0x98] sm:$0xff] %vm1881, %v6470
        %6512 = vst.msk [vmem:[#allocation3 + $0xb0] sm:$0xff] %vm1881, %v6472
        %6513 = vst.msk [vmem:[#allocation3 + $0xc8] sm:$0xff] %vm1881, %v6474
        %6514 = vst.msk [vmem:[#allocation3 + $0xe0] sm:$0xff] %vm1881, %v6476
        %6515 = vst.msk [vmem:[#allocation3 + $0xf8] sm:$0xff] %vm1881, %v6478
        %6516 = vst.msk [vmem:[#allocation3 + $0x110] sm:$0xff] %vm1881, %v6480
        %6517 = vst.msk [vmem:[#allocation3 + $0x128] sm:$0xff] %vm1881, %v6482
        %6518 = vst.msk [vmem:[#allocation3 + $0x140] sm:$0xff] %vm1881, %v6484
        %6519 = vst.msk [vmem:[#allocation3 + $0x158] sm:$0xff] %vm1881, %v6486
        %6520 = vst.msk [vmem:[#allocation3 + $0x170] sm:$0xff] %vm1881, %v6488
        %s6521 = scalar_lea.vmem [#allocation2], 480
        %v6522 = vld [vmem:[%s6521] sm:$0xf]
        %v6523 = vld [vmem:[%s6521 + $0x4] sm:$0xf]
        %v6524 = vld [vmem:[%s6521 + $0x14] sm:$0xf]
        %v6525 = vld [vmem:[%s6521 + $0x18] sm:$0xf]
        %v6526 = vld [vmem:[%s6521 + $0x28] sm:$0xf]
        %v6527 = vld [vmem:[%s6521 + $0x2c] sm:$0xf]
        %v6528 = vld [vmem:[%s6521 + $0x3c] sm:$0xf]
        %v6529 = vld [vmem:[%s6521 + $0x40] sm:$0xf]
        %v6530 = vld [vmem:[%s6521 + $0x50] sm:$0xf]
        %v6531 = vld [vmem:[%s6521 + $0x54] sm:$0xf]
        %v6532 = vld [vmem:[%s6521 + $0x64] sm:$0xf]
        %v6533 = vld [vmem:[%s6521 + $0x68] sm:$0xf]
        %v6534 = vld [vmem:[%s6521 + $0x78] sm:$0xf]
        %v6535 = vld [vmem:[%s6521 + $0x7c] sm:$0xf]
        %v6536 = vld [vmem:[%s6521 + $0x8c] sm:$0xf]
        %v6537 = vld [vmem:[%s6521 + $0x90] sm:$0xf]
        %v6538 = vld [vmem:[%s6521 + $0xa0] sm:$0xf]
        %v6539 = vld [vmem:[%s6521 + $0xa4] sm:$0xf]
        %v6540 = vld [vmem:[%s6521 + $0xb4] sm:$0xf]
        %v6541 = vld [vmem:[%s6521 + $0xb8] sm:$0xf]
        %v6542 = vld [vmem:[%s6521 + $0xc8] sm:$0xf]
        %v6543 = vld [vmem:[%s6521 + $0xcc] sm:$0xf]
        %v6544 = vld [vmem:[%s6521 + $0xdc] sm:$0xf]
        %v6545 = vld [vmem:[%s6521 + $0xe0] sm:$0xf]
        %v6546 = vld [vmem:[%s6521 + $0xf0] sm:$0xf]
        %v6547 = vld [vmem:[%s6521 + $0xf4] sm:$0xf]
        %v6548 = vld [vmem:[%s6521 + $0x104] sm:$0xf]
        %v6549 = vld [vmem:[%s6521 + $0x108] sm:$0xf]
        %v6550 = vld [vmem:[%s6521 + $0x118] sm:$0xf]
        %v6551 = vld [vmem:[%s6521 + $0x11c] sm:$0xf]
        %v6552 = vld [vmem:[%s6521 + $0x12c] sm:$0xf]
        %v6553 = vld [vmem:[%s6521 + $0x130] sm:$0xf]
        %v6586 = vunpack.c.l.b16 %v6522
        %v6587 = vunpack.c.l.b16 %v6523
        %v6588 = vunpack.c.l.b16 %v6524
        %v6589 = vunpack.c.l.b16 %v6525
        %v6590 = vunpack.c.l.b16 %v6526
        %v6591 = vunpack.c.l.b16 %v6527
        %v6592 = vunpack.c.l.b16 %v6528
        %v6593 = vunpack.c.l.b16 %v6529
        %v6594 = vunpack.c.l.b16 %v6530
        %v6595 = vunpack.c.l.b16 %v6531
        %v6596 = vunpack.c.l.b16 %v6532
        %v6597 = vunpack.c.l.b16 %v6533
        %v6598 = vunpack.c.l.b16 %v6534
        %v6599 = vunpack.c.l.b16 %v6535
        %v6600 = vunpack.c.l.b16 %v6536
        %v6601 = vunpack.c.l.b16 %v6537
        %v6602 = vunpack.c.l.b16 %v6538
        %v6603 = vunpack.c.l.b16 %v6539
        %v6604 = vunpack.c.l.b16 %v6540
        %v6605 = vunpack.c.l.b16 %v6541
        %v6606 = vunpack.c.l.b16 %v6542
        %v6607 = vunpack.c.l.b16 %v6543
        %v6608 = vunpack.c.l.b16 %v6544
        %v6609 = vunpack.c.l.b16 %v6545
        %v6610 = vunpack.c.l.b16 %v6546
        %v6611 = vunpack.c.l.b16 %v6547
        %v6612 = vunpack.c.l.b16 %v6548
        %v6613 = vunpack.c.l.b16 %v6549
        %v6614 = vunpack.c.l.b16 %v6550
        %v6615 = vunpack.c.l.b16 %v6551
        %v6616 = vunpack.c.l.b16 %v6552
        %v6617 = vunpack.c.l.b16 %v6553
        %v6618 = vpack.c.b16 %v6587, %v6586
        %v6619 = vpack.c.b16 %v6589, %v6588
        %v6620 = vpack.c.b16 %v6591, %v6590
        %v6621 = vpack.c.b16 %v6593, %v6592
        %v6622 = vpack.c.b16 %v6595, %v6594
        %v6623 = vpack.c.b16 %v6597, %v6596
        %v6624 = vpack.c.b16 %v6599, %v6598
        %v6625 = vpack.c.b16 %v6601, %v6600
        %v6626 = vpack.c.b16 %v6603, %v6602
        %v6627 = vpack.c.b16 %v6605, %v6604
        %v6628 = vpack.c.b16 %v6607, %v6606
        %v6629 = vpack.c.b16 %v6609, %v6608
        %v6630 = vpack.c.b16 %v6611, %v6610
        %v6631 = vpack.c.b16 %v6613, %v6612
        %v6632 = vpack.c.b16 %v6615, %v6614
        %v6633 = vpack.c.b16 %v6617, %v6616
        %6634 = vrot.lane.b32.xlu0 %v6618, 64
        %v6635 = vpop.permute.xlu0 %6634
        %6636 = vrot.lane.b32.xlu0 %v6619, 64
        %v6637 = vpop.permute.xlu0 %6636
        %6638 = vrot.lane.b32.xlu0 %v6620, 64
        %v6639 = vpop.permute.xlu0 %6638
        %6640 = vrot.lane.b32.xlu0 %v6621, 64
        %v6641 = vpop.permute.xlu0 %6640
        %6642 = vrot.lane.b32.xlu0 %v6622, 64
        %v6643 = vpop.permute.xlu0 %6642
        %6644 = vrot.lane.b32.xlu0 %v6623, 64
        %v6645 = vpop.permute.xlu0 %6644
        %6646 = vrot.lane.b32.xlu0 %v6624, 64
        %v6647 = vpop.permute.xlu0 %6646
        %6648 = vrot.lane.b32.xlu0 %v6625, 64
        %v6649 = vpop.permute.xlu0 %6648
        %6650 = vrot.lane.b32.xlu0 %v6626, 64
        %v6651 = vpop.permute.xlu0 %6650
        %6652 = vrot.lane.b32.xlu0 %v6627, 64
        %v6653 = vpop.permute.xlu0 %6652
        %6654 = vrot.lane.b32.xlu0 %v6628, 64
        %v6655 = vpop.permute.xlu0 %6654
        %6656 = vrot.lane.b32.xlu0 %v6629, 64
        %v6657 = vpop.permute.xlu0 %6656
        %6658 = vrot.lane.b32.xlu0 %v6630, 64
        %v6659 = vpop.permute.xlu0 %6658
        %6660 = vrot.lane.b32.xlu0 %v6631, 64
        %v6661 = vpop.permute.xlu0 %6660
        %6662 = vrot.lane.b32.xlu0 %v6632, 64
        %v6663 = vpop.permute.xlu0 %6662
        %6664 = vrot.lane.b32.xlu0 %v6633, 64
        %v6665 = vpop.permute.xlu0 %6664
        %6682 = vst.msk [vmem:[#allocation3 + $0x8] sm:$0xff] %vm2205, %v6635
        %6683 = vst.msk [vmem:[#allocation3 + $0x20] sm:$0xff] %vm2205, %v6637
        %6684 = vst.msk [vmem:[#allocation3 + $0x38] sm:$0xff] %vm2205, %v6639
        %6685 = vst.msk [vmem:[#allocation3 + $0x50] sm:$0xff] %vm2205, %v6641
        %6686 = vst.msk [vmem:[#allocation3 + $0x68] sm:$0xff] %vm2205, %v6643
        %6687 = vst.msk [vmem:[#allocation3 + $0x80] sm:$0xff] %vm2205, %v6645
        %6688 = vst.msk [vmem:[#allocation3 + $0x98] sm:$0xff] %vm2205, %v6647
        %6689 = vst.msk [vmem:[#allocation3 + $0xb0] sm:$0xff] %vm2205, %v6649
        %6690 = vst.msk [vmem:[#allocation3 + $0xc8] sm:$0xff] %vm2205, %v6651
        %6691 = vst.msk [vmem:[#allocation3 + $0xe0] sm:$0xff] %vm2205, %v6653
        %6692 = vst.msk [vmem:[#allocation3 + $0xf8] sm:$0xff] %vm2205, %v6655
        %6693 = vst.msk [vmem:[#allocation3 + $0x110] sm:$0xff] %vm2205, %v6657
        %6694 = vst.msk [vmem:[#allocation3 + $0x128] sm:$0xff] %vm2205, %v6659
        %6695 = vst.msk [vmem:[#allocation3 + $0x140] sm:$0xff] %vm2205, %v6661
        %6696 = vst.msk [vmem:[#allocation3 + $0x158] sm:$0xff] %vm2205, %v6663
        %6697 = vst.msk [vmem:[#allocation3 + $0x170] sm:$0xff] %vm2205, %v6665
        %v6698 = vld [vmem:[%s6521 + $0x4] sm:$0xc]
        %v6699 = vld [vmem:[%s6521 + $0x8] sm:$0xf]
        %v6700 = vld [vmem:[%s6521 + $0xc] sm:$0x3]
        %v6701 = vld [vmem:[%s6521 + $0x18] sm:$0xc]
        %v6702 = vld [vmem:[%s6521 + $0x1c] sm:$0xf]
        %v6703 = vld [vmem:[%s6521 + $0x20] sm:$0x3]
        %v6704 = vld [vmem:[%s6521 + $0x2c] sm:$0xc]
        %v6705 = vld [vmem:[%s6521 + $0x30] sm:$0xf]
        %v6706 = vld [vmem:[%s6521 + $0x34] sm:$0x3]
        %v6707 = vld [vmem:[%s6521 + $0x40] sm:$0xc]
        %v6708 = vld [vmem:[%s6521 + $0x44] sm:$0xf]
        %v6709 = vld [vmem:[%s6521 + $0x48] sm:$0x3]
        %v6710 = vld [vmem:[%s6521 + $0x54] sm:$0xc]
        %v6711 = vld [vmem:[%s6521 + $0x58] sm:$0xf]
        %v6712 = vld [vmem:[%s6521 + $0x5c] sm:$0x3]
        %v6713 = vld [vmem:[%s6521 + $0x68] sm:$0xc]
        %v6714 = vld [vmem:[%s6521 + $0x6c] sm:$0xf]
        %v6715 = vld [vmem:[%s6521 + $0x70] sm:$0x3]
        %v6716 = vld [vmem:[%s6521 + $0x7c] sm:$0xc]
        %v6717 = vld [vmem:[%s6521 + $0x80] sm:$0xf]
        %v6718 = vld [vmem:[%s6521 + $0x84] sm:$0x3]
        %v6719 = vld [vmem:[%s6521 + $0x90] sm:$0xc]
        %v6720 = vld [vmem:[%s6521 + $0x94] sm:$0xf]
        %v6721 = vld [vmem:[%s6521 + $0x98] sm:$0x3]
        %v6722 = vld [vmem:[%s6521 + $0xa4] sm:$0xc]
        %v6723 = vld [vmem:[%s6521 + $0xa8] sm:$0xf]
        %v6724 = vld [vmem:[%s6521 + $0xac] sm:$0x3]
        %v6725 = vld [vmem:[%s6521 + $0xb8] sm:$0xc]
        %v6726 = vld [vmem:[%s6521 + $0xbc] sm:$0xf]
        %v6727 = vld [vmem:[%s6521 + $0xc0] sm:$0x3]
        %v6728 = vld [vmem:[%s6521 + $0xcc] sm:$0xc]
        %v6729 = vld [vmem:[%s6521 + $0xd0] sm:$0xf]
        %v6730 = vld [vmem:[%s6521 + $0xd4] sm:$0x3]
        %v6731 = vld [vmem:[%s6521 + $0xe0] sm:$0xc]
        %v6732 = vld [vmem:[%s6521 + $0xe4] sm:$0xf]
        %v6733 = vld [vmem:[%s6521 + $0xe8] sm:$0x3]
        %v6734 = vld [vmem:[%s6521 + $0xf4] sm:$0xc]
        %v6735 = vld [vmem:[%s6521 + $0xf8] sm:$0xf]
        %v6736 = vld [vmem:[%s6521 + $0xfc] sm:$0x3]
        %v6737 = vld [vmem:[%s6521 + $0x108] sm:$0xc]
        %v6738 = vld [vmem:[%s6521 + $0x10c] sm:$0xf]
        %v6739 = vld [vmem:[%s6521 + $0x110] sm:$0x3]
        %v6740 = vld [vmem:[%s6521 + $0x11c] sm:$0xc]
        %v6741 = vld [vmem:[%s6521 + $0x120] sm:$0xf]
        %v6742 = vld [vmem:[%s6521 + $0x124] sm:$0x3]
        %v6743 = vld [vmem:[%s6521 + $0x130] sm:$0xc]
        %v6744 = vld [vmem:[%s6521 + $0x134] sm:$0xf]
        %v6745 = vld [vmem:[%s6521 + $0x138] sm:$0x3]
        %v6794 = vrot.slane %v6698, 6
        %v6795 = vrot.slane %v6794, 4
        %v6796 = vrot.slane %v6699, 6
        %v6797 = vsel %vm1104, %v6795, %v6796
        %v6798 = vrot.slane %v6796, 4
        %v6799 = vrot.slane %v6700, 6
        %v6800 = vsel %vm1104, %v6798, %v6799
        %v6801 = vrot.slane %v6701, 6
        %v6802 = vrot.slane %v6801, 4
        %v6803 = vrot.slane %v6702, 6
        %v6804 = vsel %vm1104, %v6802, %v6803
        %v6805 = vrot.slane %v6803, 4
        %v6806 = vrot.slane %v6703, 6
        %v6807 = vsel %vm1104, %v6805, %v6806
        %v6808 = vrot.slane %v6704, 6
        %v6809 = vrot.slane %v6808, 4
        %v6810 = vrot.slane %v6705, 6
        %v6811 = vsel %vm1104, %v6809, %v6810
        %v6812 = vrot.slane %v6810, 4
        %v6813 = vrot.slane %v6706, 6
        %v6814 = vsel %vm1104, %v6812, %v6813
        %v6815 = vrot.slane %v6707, 6
        %v6816 = vrot.slane %v6815, 4
        %v6817 = vrot.slane %v6708, 6
        %v6818 = vsel %vm1104, %v6816, %v6817
        %v6819 = vrot.slane %v6817, 4
        %v6820 = vrot.slane %v6709, 6
        %v6821 = vsel %vm1104, %v6819, %v6820
        %v6822 = vrot.slane %v6710, 6
        %v6823 = vrot.slane %v6822, 4
        %v6824 = vrot.slane %v6711, 6
        %v6825 = vsel %vm1104, %v6823, %v6824
        %v6826 = vrot.slane %v6824, 4
        %v6827 = vrot.slane %v6712, 6
        %v6828 = vsel %vm1104, %v6826, %v6827
        %v6829 = vrot.slane %v6713, 6
        %v6830 = vrot.slane %v6829, 4
        %v6831 = vrot.slane %v6714, 6
        %v6832 = vsel %vm1104, %v6830, %v6831
        %v6833 = vrot.slane %v6831, 4
        %v6834 = vrot.slane %v6715, 6
        %v6835 = vsel %vm1104, %v6833, %v6834
        %v6836 = vrot.slane %v6716, 6
        %v6837 = vrot.slane %v6836, 4
        %v6838 = vrot.slane %v6717, 6
        %v6839 = vsel %vm1104, %v6837, %v6838
        %v6840 = vrot.slane %v6838, 4
        %v6841 = vrot.slane %v6718, 6
        %v6842 = vsel %vm1104, %v6840, %v6841
        %v6843 = vrot.slane %v6719, 6
        %v6844 = vrot.slane %v6843, 4
        %v6845 = vrot.slane %v6720, 6
        %v6846 = vsel %vm1104, %v6844, %v6845
        %v6847 = vrot.slane %v6845, 4
        %v6848 = vrot.slane %v6721, 6
        %v6849 = vsel %vm1104, %v6847, %v6848
        %v6850 = vrot.slane %v6722, 6
        %v6851 = vrot.slane %v6850, 4
        %v6852 = vrot.slane %v6723, 6
        %v6853 = vsel %vm1104, %v6851, %v6852
        %v6854 = vrot.slane %v6852, 4
        %v6855 = vrot.slane %v6724, 6
        %v6856 = vsel %vm1104, %v6854, %v6855
        %v6857 = vrot.slane %v6725, 6
        %v6858 = vrot.slane %v6857, 4
        %v6859 = vrot.slane %v6726, 6
        %v6860 = vsel %vm1104, %v6858, %v6859
        %v6861 = vrot.slane %v6859, 4
        %v6862 = vrot.slane %v6727, 6
        %v6863 = vsel %vm1104, %v6861, %v6862
        %v6864 = vrot.slane %v6728, 6
        %v6865 = vrot.slane %v6864, 4
        %v6866 = vrot.slane %v6729, 6
        %v6867 = vsel %vm1104, %v6865, %v6866
        %v6868 = vrot.slane %v6866, 4
        %v6869 = vrot.slane %v6730, 6
        %v6870 = vsel %vm1104, %v6868, %v6869
        %v6871 = vrot.slane %v6731, 6
        %v6872 = vrot.slane %v6871, 4
        %v6873 = vrot.slane %v6732, 6
        %v6874 = vsel %vm1104, %v6872, %v6873
        %v6875 = vrot.slane %v6873, 4
        %v6876 = vrot.slane %v6733, 6
        %v6877 = vsel %vm1104, %v6875, %v6876
        %v6878 = vrot.slane %v6734, 6
        %v6879 = vrot.slane %v6878, 4
        %v6880 = vrot.slane %v6735, 6
        %v6881 = vsel %vm1104, %v6879, %v6880
        %v6882 = vrot.slane %v6880, 4
        %v6883 = vrot.slane %v6736, 6
        %v6884 = vsel %vm1104, %v6882, %v6883
        %v6885 = vrot.slane %v6737, 6
        %v6886 = vrot.slane %v6885, 4
        %v6887 = vrot.slane %v6738, 6
        %v6888 = vsel %vm1104, %v6886, %v6887
        %v6889 = vrot.slane %v6887, 4
        %v6890 = vrot.slane %v6739, 6
        %v6891 = vsel %vm1104, %v6889, %v6890
        %v6892 = vrot.slane %v6740, 6
        %v6893 = vrot.slane %v6892, 4
        %v6894 = vrot.slane %v6741, 6
        %v6895 = vsel %vm1104, %v6893, %v6894
        %v6896 = vrot.slane %v6894, 4
        %v6897 = vrot.slane %v6742, 6
        %v6898 = vsel %vm1104, %v6896, %v6897
        %v6899 = vrot.slane %v6743, 6
        %v6900 = vrot.slane %v6899, 4
        %v6901 = vrot.slane %v6744, 6
        %v6902 = vsel %vm1104, %v6900, %v6901
        %v6903 = vrot.slane %v6901, 4
        %v6904 = vrot.slane %v6745, 6
        %v6905 = vsel %vm1104, %v6903, %v6904
        %v6906 = vunpack.c.l.b16 %v6797
        %v6907 = vunpack.c.l.b16 %v6800
        %v6908 = vunpack.c.l.b16 %v6804
        %v6909 = vunpack.c.l.b16 %v6807
        %v6910 = vunpack.c.l.b16 %v6811
        %v6911 = vunpack.c.l.b16 %v6814
        %v6912 = vunpack.c.l.b16 %v6818
        %v6913 = vunpack.c.l.b16 %v6821
        %v6914 = vunpack.c.l.b16 %v6825
        %v6915 = vunpack.c.l.b16 %v6828
        %v6916 = vunpack.c.l.b16 %v6832
        %v6917 = vunpack.c.l.b16 %v6835
        %v6918 = vunpack.c.l.b16 %v6839
        %v6919 = vunpack.c.l.b16 %v6842
        %v6920 = vunpack.c.l.b16 %v6846
        %v6921 = vunpack.c.l.b16 %v6849
        %v6922 = vunpack.c.l.b16 %v6853
        %v6923 = vunpack.c.l.b16 %v6856
        %v6924 = vunpack.c.l.b16 %v6860
        %v6925 = vunpack.c.l.b16 %v6863
        %v6926 = vunpack.c.l.b16 %v6867
        %v6927 = vunpack.c.l.b16 %v6870
        %v6928 = vunpack.c.l.b16 %v6874
        %v6929 = vunpack.c.l.b16 %v6877
        %v6930 = vunpack.c.l.b16 %v6881
        %v6931 = vunpack.c.l.b16 %v6884
        %v6932 = vunpack.c.l.b16 %v6888
        %v6933 = vunpack.c.l.b16 %v6891
        %v6934 = vunpack.c.l.b16 %v6895
        %v6935 = vunpack.c.l.b16 %v6898
        %v6936 = vunpack.c.l.b16 %v6902
        %v6937 = vunpack.c.l.b16 %v6905
        %v6938 = vpack.c.b16 %v6907, %v6906
        %v6939 = vpack.c.b16 %v6909, %v6908
        %v6940 = vpack.c.b16 %v6911, %v6910
        %v6941 = vpack.c.b16 %v6913, %v6912
        %v6942 = vpack.c.b16 %v6915, %v6914
        %v6943 = vpack.c.b16 %v6917, %v6916
        %v6944 = vpack.c.b16 %v6919, %v6918
        %v6945 = vpack.c.b16 %v6921, %v6920
        %v6946 = vpack.c.b16 %v6923, %v6922
        %v6947 = vpack.c.b16 %v6925, %v6924
        %v6948 = vpack.c.b16 %v6927, %v6926
        %v6949 = vpack.c.b16 %v6929, %v6928
        %v6950 = vpack.c.b16 %v6931, %v6930
        %v6951 = vpack.c.b16 %v6933, %v6932
        %v6952 = vpack.c.b16 %v6935, %v6934
        %v6953 = vpack.c.b16 %v6937, %v6936
        %6954 = vrot.lane.b32.xlu0 %v6938, 96
        %v6955 = vpop.permute.xlu0 %6954
        %6956 = vrot.lane.b32.xlu0 %v6939, 96
        %v6957 = vpop.permute.xlu0 %6956
        %6958 = vrot.lane.b32.xlu0 %v6940, 96
        %v6959 = vpop.permute.xlu0 %6958
        %6960 = vrot.lane.b32.xlu0 %v6941, 96
        %v6961 = vpop.permute.xlu0 %6960
        %6962 = vrot.lane.b32.xlu0 %v6942, 96
        %v6963 = vpop.permute.xlu0 %6962
        %6964 = vrot.lane.b32.xlu0 %v6943, 96
        %v6965 = vpop.permute.xlu0 %6964
        %6966 = vrot.lane.b32.xlu0 %v6944, 96
        %v6967 = vpop.permute.xlu0 %6966
        %6968 = vrot.lane.b32.xlu0 %v6945, 96
        %v6969 = vpop.permute.xlu0 %6968
        %6970 = vrot.lane.b32.xlu0 %v6946, 96
        %v6971 = vpop.permute.xlu0 %6970
        %6972 = vrot.lane.b32.xlu0 %v6947, 96
        %v6973 = vpop.permute.xlu0 %6972
        %6974 = vrot.lane.b32.xlu0 %v6948, 96
        %v6975 = vpop.permute.xlu0 %6974
        %6976 = vrot.lane.b32.xlu0 %v6949, 96
        %v6977 = vpop.permute.xlu0 %6976
        %6978 = vrot.lane.b32.xlu0 %v6950, 96
        %v6979 = vpop.permute.xlu0 %6978
        %6980 = vrot.lane.b32.xlu0 %v6951, 96
        %v6981 = vpop.permute.xlu0 %6980
        %6982 = vrot.lane.b32.xlu0 %v6952, 96
        %v6983 = vpop.permute.xlu0 %6982
        %6984 = vrot.lane.b32.xlu0 %v6953, 96
        %v6985 = vpop.permute.xlu0 %6984
        %7002 = vst.msk [vmem:[#allocation3 + $0x8] sm:$0xff] %vm2526, %v6955
        %7003 = vst.msk [vmem:[#allocation3 + $0x20] sm:$0xff] %vm2526, %v6957
        %7004 = vst.msk [vmem:[#allocation3 + $0x38] sm:$0xff] %vm2526, %v6959
        %7005 = vst.msk [vmem:[#allocation3 + $0x50] sm:$0xff] %vm2526, %v6961
        %7006 = vst.msk [vmem:[#allocation3 + $0x68] sm:$0xff] %vm2526, %v6963
        %7007 = vst.msk [vmem:[#allocation3 + $0x80] sm:$0xff] %vm2526, %v6965
        %7008 = vst.msk [vmem:[#allocation3 + $0x98] sm:$0xff] %vm2526, %v6967
        %7009 = vst.msk [vmem:[#allocation3 + $0xb0] sm:$0xff] %vm2526, %v6969
        %7010 = vst.msk [vmem:[#allocation3 + $0xc8] sm:$0xff] %vm2526, %v6971
        %7011 = vst.msk [vmem:[#allocation3 + $0xe0] sm:$0xff] %vm2526, %v6973
        %7012 = vst.msk [vmem:[#allocation3 + $0xf8] sm:$0xff] %vm2526, %v6975
        %7013 = vst.msk [vmem:[#allocation3 + $0x110] sm:$0xff] %vm2526, %v6977
        %7014 = vst.msk [vmem:[#allocation3 + $0x128] sm:$0xff] %vm2526, %v6979
        %7015 = vst.msk [vmem:[#allocation3 + $0x140] sm:$0xff] %vm2526, %v6981
        %7016 = vst.msk [vmem:[#allocation3 + $0x158] sm:$0xff] %vm2526, %v6983
        %7017 = vst.msk [vmem:[#allocation3 + $0x170] sm:$0xff] %vm2526, %v6985
        %v7018 = vld [vmem:[%s6521 + $0xc] sm:$0xf]
        %v7019 = vld [vmem:[%s6521 + $0x10] sm:$0xf]
        %v7020 = vld [vmem:[%s6521 + $0x20] sm:$0xf]
        %v7021 = vld [vmem:[%s6521 + $0x24] sm:$0xf]
        %v7022 = vld [vmem:[%s6521 + $0x34] sm:$0xf]
        %v7023 = vld [vmem:[%s6521 + $0x38] sm:$0xf]
        %v7024 = vld [vmem:[%s6521 + $0x48] sm:$0xf]
        %v7025 = vld [vmem:[%s6521 + $0x4c] sm:$0xf]
        %v7026 = vld [vmem:[%s6521 + $0x5c] sm:$0xf]
        %v7027 = vld [vmem:[%s6521 + $0x60] sm:$0xf]
        %v7028 = vld [vmem:[%s6521 + $0x70] sm:$0xf]
        %v7029 = vld [vmem:[%s6521 + $0x74] sm:$0xf]
        %v7030 = vld [vmem:[%s6521 + $0x84] sm:$0xf]
        %v7031 = vld [vmem:[%s6521 + $0x88] sm:$0xf]
        %v7032 = vld [vmem:[%s6521 + $0x98] sm:$0xf]
        %v7033 = vld [vmem:[%s6521 + $0x9c] sm:$0xf]
        %v7034 = vld [vmem:[%s6521 + $0xac] sm:$0xf]
        %v7035 = vld [vmem:[%s6521 + $0xb0] sm:$0xf]
        %v7036 = vld [vmem:[%s6521 + $0xc0] sm:$0xf]
        %v7037 = vld [vmem:[%s6521 + $0xc4] sm:$0xf]
        %v7038 = vld [vmem:[%s6521 + $0xd4] sm:$0xf]
        %v7039 = vld [vmem:[%s6521 + $0xd8] sm:$0xf]
        %v7040 = vld [vmem:[%s6521 + $0xe8] sm:$0xf]
        %v7041 = vld [vmem:[%s6521 + $0xec] sm:$0xf]
        %v7042 = vld [vmem:[%s6521 + $0xfc] sm:$0xf]
        %v7043 = vld [vmem:[%s6521 + $0x100] sm:$0xf]
        %v7044 = vld [vmem:[%s6521 + $0x110] sm:$0xf]
        %v7045 = vld [vmem:[%s6521 + $0x114] sm:$0xf]
        %v7046 = vld [vmem:[%s6521 + $0x124] sm:$0xf]
        %v7047 = vld [vmem:[%s6521 + $0x128] sm:$0xf]
        %v7048 = vld [vmem:[%s6521 + $0x138] sm:$0xf]
        %v7049 = vld [vmem:[%s6521 + $0x13c] sm:$0xf]
        %v7082 = vunpack.c.l.b16 %v7018
        %v7083 = vunpack.c.l.b16 %v7019
        %v7084 = vunpack.c.l.b16 %v7020
        %v7085 = vunpack.c.l.b16 %v7021
        %v7086 = vunpack.c.l.b16 %v7022
        %v7087 = vunpack.c.l.b16 %v7023
        %v7088 = vunpack.c.l.b16 %v7024
        %v7089 = vunpack.c.l.b16 %v7025
        %v7090 = vunpack.c.l.b16 %v7026
        %v7091 = vunpack.c.l.b16 %v7027
        %v7092 = vunpack.c.l.b16 %v7028
        %v7093 = vunpack.c.l.b16 %v7029
        %v7094 = vunpack.c.l.b16 %v7030
        %v7095 = vunpack.c.l.b16 %v7031
        %v7096 = vunpack.c.l.b16 %v7032
        %v7097 = vunpack.c.l.b16 %v7033
        %v7098 = vunpack.c.l.b16 %v7034
        %v7099 = vunpack.c.l.b16 %v7035
        %v7100 = vunpack.c.l.b16 %v7036
        %v7101 = vunpack.c.l.b16 %v7037
        %v7102 = vunpack.c.l.b16 %v7038
        %v7103 = vunpack.c.l.b16 %v7039
        %v7104 = vunpack.c.l.b16 %v7040
        %v7105 = vunpack.c.l.b16 %v7041
        %v7106 = vunpack.c.l.b16 %v7042
        %v7107 = vunpack.c.l.b16 %v7043
        %v7108 = vunpack.c.l.b16 %v7044
        %v7109 = vunpack.c.l.b16 %v7045
        %v7110 = vunpack.c.l.b16 %v7046
        %v7111 = vunpack.c.l.b16 %v7047
        %v7112 = vunpack.c.l.b16 %v7048
        %v7113 = vunpack.c.l.b16 %v7049
        %v7114 = vpack.c.b16 %v7083, %v7082
        %v7115 = vpack.c.b16 %v7085, %v7084
        %v7116 = vpack.c.b16 %v7087, %v7086
        %v7117 = vpack.c.b16 %v7089, %v7088
        %v7118 = vpack.c.b16 %v7091, %v7090
        %v7119 = vpack.c.b16 %v7093, %v7092
        %v7120 = vpack.c.b16 %v7095, %v7094
        %v7121 = vpack.c.b16 %v7097, %v7096
        %v7122 = vpack.c.b16 %v7099, %v7098
        %v7123 = vpack.c.b16 %v7101, %v7100
        %v7124 = vpack.c.b16 %v7103, %v7102
        %v7125 = vpack.c.b16 %v7105, %v7104
        %v7126 = vpack.c.b16 %v7107, %v7106
        %v7127 = vpack.c.b16 %v7109, %v7108
        %v7128 = vpack.c.b16 %v7111, %v7110
        %v7129 = vpack.c.b16 %v7113, %v7112
        %7146 = vst.msk [vmem:[#allocation3 + $0x10] sm:$0xff] %vm1560, %v7114
        %7147 = vst.msk [vmem:[#allocation3 + $0x28] sm:$0xff] %vm1560, %v7115
        %7148 = vst.msk [vmem:[#allocation3 + $0x40] sm:$0xff] %vm1560, %v7116
        %7149 = vst.msk [vmem:[#allocation3 + $0x58] sm:$0xff] %vm1560, %v7117
        %7150 = vst.msk [vmem:[#allocation3 + $0x70] sm:$0xff] %vm1560, %v7118
        %7151 = vst.msk [vmem:[#allocation3 + $0x88] sm:$0xff] %vm1560, %v7119
        %7152 = vst.msk [vmem:[#allocation3 + $0xa0] sm:$0xff] %vm1560, %v7120
        %7153 = vst.msk [vmem:[#allocation3 + $0xb8] sm:$0xff] %vm1560, %v7121
        %7154 = vst.msk [vmem:[#allocation3 + $0xd0] sm:$0xff] %vm1560, %v7122
        %7155 = vst.msk [vmem:[#allocation3 + $0xe8] sm:$0xff] %vm1560, %v7123
        %7156 = vst.msk [vmem:[#allocation3 + $0x100] sm:$0xff] %vm1560, %v7124
        %7157 = vst.msk [vmem:[#allocation3 + $0x118] sm:$0xff] %vm1560, %v7125
        %7158 = vst.msk [vmem:[#allocation3 + $0x130] sm:$0xff] %vm1560, %v7126
        %7159 = vst.msk [vmem:[#allocation3 + $0x148] sm:$0xff] %vm1560, %v7127
        %7160 = vst.msk [vmem:[#allocation3 + $0x160] sm:$0xff] %vm1560, %v7128
        %7161 = vst.msk [vmem:[#allocation3 + $0x178] sm:$0xff] %vm1560, %v7129
        %v7162 = vld [vmem:[#allocation3] sm:$0xff]
        %v7163 = vld [vmem:[#allocation3 + $0x8] sm:$0xff]
        %v7164 = vld [vmem:[#allocation3 + $0x10] sm:$0xff]
        %v7165 = vld [vmem:[#allocation3 + $0x18] sm:$0xff]
        %v7166 = vld [vmem:[#allocation3 + $0x20] sm:$0xff]
        %v7167 = vld [vmem:[#allocation3 + $0x28] sm:$0xff]
        %v7168 = vld [vmem:[#allocation3 + $0x30] sm:$0xff]
        %v7169 = vld [vmem:[#allocation3 + $0x38] sm:$0xff]
        %v7170 = vld [vmem:[#allocation3 + $0x40] sm:$0xff]
        %v7171 = vld [vmem:[#allocation3 + $0x48] sm:$0xff]
        %v7172 = vld [vmem:[#allocation3 + $0x50] sm:$0xff]
        %v7173 = vld [vmem:[#allocation3 + $0x58] sm:$0xff]
        %v7174 = vld [vmem:[#allocation3 + $0x60] sm:$0xff]
        %v7175 = vld [vmem:[#allocation3 + $0x68] sm:$0xff]
        %v7176 = vld [vmem:[#allocation3 + $0x70] sm:$0xff]
        %v7177 = vld [vmem:[#allocation3 + $0x78] sm:$0xff]
        %v7178 = vld [vmem:[#allocation3 + $0x80] sm:$0xff]
        %v7179 = vld [vmem:[#allocation3 + $0x88] sm:$0xff]
        %v7180 = vld [vmem:[#allocation3 + $0x90] sm:$0xff]
        %v7181 = vld [vmem:[#allocation3 + $0x98] sm:$0xff]
        %v7182 = vld [vmem:[#allocation3 + $0xa0] sm:$0xff]
        %v7183 = vld [vmem:[#allocation3 + $0xa8] sm:$0xff]
        %v7184 = vld [vmem:[#allocation3 + $0xb0] sm:$0xff]
        %v7185 = vld [vmem:[#allocation3 + $0xb8] sm:$0xff]
        %v7186 = vld [vmem:[#allocation3 + $0xc0] sm:$0xff]
        %v7187 = vld [vmem:[#allocation3 + $0xc8] sm:$0xff]
        %v7188 = vld [vmem:[#allocation3 + $0xd0] sm:$0xff]
        %v7189 = vld [vmem:[#allocation3 + $0xd8] sm:$0xff]
        %v7190 = vld [vmem:[#allocation3 + $0xe0] sm:$0xff]
        %v7191 = vld [vmem:[#allocation3 + $0xe8] sm:$0xff]
        %v7192 = vld [vmem:[#allocation3 + $0xf0] sm:$0xff]
        %v7193 = vld [vmem:[#allocation3 + $0xf8] sm:$0xff]
        %v7194 = vld [vmem:[#allocation3 + $0x100] sm:$0xff]
        %v7195 = vld [vmem:[#allocation3 + $0x108] sm:$0xff]
        %v7196 = vld [vmem:[#allocation3 + $0x110] sm:$0xff]
        %v7197 = vld [vmem:[#allocation3 + $0x118] sm:$0xff]
        %v7198 = vld [vmem:[#allocation3 + $0x120] sm:$0xff]
        %v7199 = vld [vmem:[#allocation3 + $0x128] sm:$0xff]
        %v7200 = vld [vmem:[#allocation3 + $0x130] sm:$0xff]
        %v7201 = vld [vmem:[#allocation3 + $0x138] sm:$0xff]
        %v7202 = vld [vmem:[#allocation3 + $0x140] sm:$0xff]
        %v7203 = vld [vmem:[#allocation3 + $0x148] sm:$0xff]
        %v7204 = vld [vmem:[#allocation3 + $0x150] sm:$0xff]
        %v7205 = vld [vmem:[#allocation3 + $0x158] sm:$0xff]
        %v7206 = vld [vmem:[#allocation3 + $0x160] sm:$0xff]
        %v7207 = vld [vmem:[#allocation3 + $0x168] sm:$0xff]
        %v7208 = vld [vmem:[#allocation3 + $0x170] sm:$0xff]
        %v7209 = vld [vmem:[#allocation3 + $0x178] sm:$0xff]
        %v7210 = vld [vmem:[#allocation4] sm:$0xf]
        %v7211 = vld [vmem:[#allocation4 + $0x4] sm:$0xf]
        %v7212 = vld [vmem:[#allocation4 + $0x8] sm:$0xf]
        %v7213 = vld [vmem:[#allocation4 + $0xc] sm:$0xf]
        %v7214 = vld [vmem:[#allocation4 + $0x10] sm:$0xf]
        %v7215 = vld [vmem:[#allocation4 + $0x14] sm:$0xf]
        %v7216 = vld [vmem:[#allocation4 + $0x18] sm:$0xf]
        %v7217 = vld [vmem:[#allocation4 + $0x1c] sm:$0xf]
        %v7218 = vld [vmem:[#allocation4 + $0x20] sm:$0xf]
        %v7219 = vld [vmem:[#allocation4 + $0x24] sm:$0xf]
        %v7220 = vld [vmem:[#allocation4 + $0x28] sm:$0xf]
        %v7221 = vld [vmem:[#allocation4 + $0x2c] sm:$0xf]
        %v7222 = vld [vmem:[#allocation4 + $0x30] sm:$0xf]
        %v7223 = vld [vmem:[#allocation4 + $0x34] sm:$0xf]
        %v7224 = vld [vmem:[#allocation4 + $0x38] sm:$0xf]
        %v7225 = vld [vmem:[#allocation4 + $0x3c] sm:$0xf]
        %v7226 = vld [vmem:[#allocation4 + $0x40] sm:$0xf]
        %v7227 = vld [vmem:[#allocation4 + $0x44] sm:$0xf]
        %v7228 = vld [vmem:[#allocation4 + $0x48] sm:$0xf]
        %v7229 = vld [vmem:[#allocation4 + $0x4c] sm:$0xf]
        %v7230 = vld [vmem:[#allocation4 + $0x50] sm:$0xf]
        %v7231 = vld [vmem:[#allocation4 + $0x54] sm:$0xf]
        %v7232 = vld [vmem:[#allocation4 + $0x58] sm:$0xf]
        %v7233 = vld [vmem:[#allocation4 + $0x5c] sm:$0xf]
        %v7234 = vld [vmem:[#allocation4 + $0x60] sm:$0xf]
        %v7235 = vld [vmem:[#allocation4 + $0x64] sm:$0xf]
        %v7236 = vld [vmem:[#allocation4 + $0x68] sm:$0xf]
        %v7237 = vld [vmem:[#allocation4 + $0x6c] sm:$0xf]
        %v7238 = vld [vmem:[#allocation4 + $0x70] sm:$0xf]
        %v7239 = vld [vmem:[#allocation4 + $0x74] sm:$0xf]
        %v7240 = vld [vmem:[#allocation4 + $0x78] sm:$0xf]
        %v7241 = vld [vmem:[#allocation4 + $0x7c] sm:$0xf]
        %v7242 = vld [vmem:[#allocation4 + $0x80] sm:$0xf]
        %v7243 = vld [vmem:[#allocation4 + $0x84] sm:$0xf]
        %v7244 = vld [vmem:[#allocation4 + $0x88] sm:$0xf]
        %v7245 = vld [vmem:[#allocation4 + $0x8c] sm:$0xf]
        %s7246 = scalar_lea.vmem [#allocation9], 1
        %v7247 = vld [vmem:[%s7246] sm:$0x1]
        %v7249 = vlaneseq
        %v7250 = vshrl.u32 %v7249, 7
        %v7251 = vsub.s32 0, %v7250
        %v7252 = vrot.slane %v7247, %v7251
        %v7290 = vunpack.c.l.b16 %v7210
        %v7291 = vunpack.c.l.b16 %v7211
        %v7292 = vunpack.c.l.b16 %v7212
        %v7293 = vunpack.c.l.b16 %v7213
        %v7294 = vunpack.c.l.b16 %v7214
        %v7295 = vunpack.c.l.b16 %v7215
        %v7296 = vunpack.c.l.b16 %v7216
        %v7297 = vunpack.c.l.b16 %v7217
        %v7298 = vunpack.c.l.b16 %v7218
        %v7299 = vunpack.c.l.b16 %v7219
        %v7300 = vunpack.c.l.b16 %v7220
        %v7301 = vunpack.c.l.b16 %v7221
        %v7302 = vunpack.c.l.b16 %v7222
        %v7303 = vunpack.c.l.b16 %v7223
        %v7304 = vunpack.c.l.b16 %v7224
        %v7305 = vunpack.c.l.b16 %v7225
        %v7306 = vunpack.c.l.b16 %v7226
        %v7307 = vunpack.c.l.b16 %v7227
        %v7308 = vunpack.c.l.b16 %v7228
        %v7309 = vunpack.c.l.b16 %v7229
        %v7310 = vunpack.c.l.b16 %v7230
        %v7311 = vunpack.c.l.b16 %v7231
        %v7312 = vunpack.c.l.b16 %v7232
        %v7313 = vunpack.c.l.b16 %v7233
        %v7314 = vunpack.c.l.b16 %v7234
        %v7315 = vunpack.c.l.b16 %v7235
        %v7316 = vunpack.c.l.b16 %v7236
        %v7317 = vunpack.c.l.b16 %v7237
        %v7318 = vunpack.c.l.b16 %v7238
        %v7319 = vunpack.c.l.b16 %v7239
        %v7320 = vunpack.c.l.b16 %v7240
        %v7321 = vunpack.c.l.b16 %v7241
        %v7322 = vunpack.c.l.b16 %v7242
        %v7323 = vunpack.c.l.b16 %v7243
        %v7324 = vunpack.c.l.b16 %v7244
        %v7325 = vunpack.c.l.b16 %v7245
        %v7326 = vpack.c.b16 %v7291, %v7290
        %v7327 = vpack.c.b16 %v7293, %v7292
        %v7328 = vpack.c.b16 %v7295, %v7294
        %v7329 = vpack.c.b16 %v7297, %v7296
        %v7330 = vpack.c.b16 %v7299, %v7298
        %v7331 = vpack.c.b16 %v7301, %v7300
        %v7332 = vpack.c.b16 %v7303, %v7302
        %v7333 = vpack.c.b16 %v7305, %v7304
        %v7334 = vpack.c.b16 %v7307, %v7306
        %v7335 = vpack.c.b16 %v7309, %v7308
        %v7336 = vpack.c.b16 %v7311, %v7310
        %v7337 = vpack.c.b16 %v7313, %v7312
        %v7338 = vpack.c.b16 %v7315, %v7314
        %v7339 = vpack.c.b16 %v7317, %v7316
        %v7340 = vpack.c.b16 %v7319, %v7318
        %v7341 = vpack.c.b16 %v7321, %v7320
        %v7342 = vpack.c.b16 %v7323, %v7322
        %v7343 = vpack.c.b16 %v7325, %v7324
        %v7363 = vsel %vm1560, %v7164, 0
        %v7366 = vsel %vm1560, %v7167, 0
        %v7369 = vsel %vm1560, %v7170, 0
        %v7372 = vsel %vm1560, %v7173, 0
        %v7375 = vsel %vm1560, %v7176, 0
        %v7378 = vsel %vm1560, %v7179, 0
        %v7381 = vsel %vm1560, %v7182, 0
        %v7384 = vsel %vm1560, %v7185, 0
        %v7387 = vsel %vm1560, %v7188, 0
        %v7390 = vsel %vm1560, %v7191, 0
        %v7393 = vsel %vm1560, %v7194, 0
        %v7396 = vsel %vm1560, %v7197, 0
        %v7399 = vsel %vm1560, %v7200, 0
        %v7402 = vsel %vm1560, %v7203, 0
        %v7405 = vsel %vm1560, %v7206, 0
        %v7408 = vsel %vm1560, %v7209, 0
        %7410 = vmatprep.subr.bf16.mxu0 0
        %7411 = vmatpush1.bf16.msra.mxu0 %v7326
        %7412 = vmatprep.subr.bf16.mxu0 0
        %7413 = vmatpush1.bf16.msra.mxu0 %v7327
        %7414 = vmatprep.subr.bf16.mxu0 0
        %7415 = vmatpush1.bf16.msra.mxu0 %v7328
        %7416 = vmatprep.subr.bf16.mxu0 0
        %7417 = vmatpush1.bf16.msra.mxu0 %v7329
        %7418 = vmatprep.subr.bf16.mxu0 0
        %7419 = vmatpush1.bf16.msra.mxu0 %v7330
        %7420 = vmatprep.subr.bf16.mxu0 0
        %7421 = vmatpush1.bf16.msra.mxu0 %v7331
        %7422 = vmatprep.subr.bf16.mxu0 0
        %7423 = vmatpush1.bf16.msra.mxu0 %v7332
        %7424 = vmatprep.subr.bf16.mxu0 0
        %7425 = vmatpush1.bf16.msra.mxu0 %v7333
        %7426 = vmatprep.subr.bf16.mxu0 0
        %7427 = vmatpush1.bf16.msra.mxu0 %v7334
        %7428 = vmatprep.subr.bf16.mxu0 0
        %7429 = vmatpush1.bf16.msra.mxu0 %v7335
        %7430 = vmatprep.subr.bf16.mxu0 0
        %7431 = vmatpush1.bf16.msra.mxu0 %v7336
        %7432 = vmatprep.subr.bf16.mxu0 0
        %7433 = vmatpush1.bf16.msra.mxu0 %v7337
        %7434 = vmatprep.subr.bf16.mxu0 0
        %7435 = vmatpush1.bf16.msra.mxu0 %v7338
        %7436 = vmatprep.subr.bf16.mxu0 0
        %7437 = vmatpush1.bf16.msra.mxu0 %v7339
        %7438 = vmatprep.subr.bf16.mxu0 0
        %7439 = vmatpush1.bf16.msra.mxu0 %v7340
        %7440 = vmatprep.subr.bf16.mxu0 0
        %7441 = vmatpush1.bf16.msra.mxu0 %v7341
        %7442 = vmatprep.mubr.bf16.mxu0 %v7163
        %7443 = vmatmul.mubr.bf16.gmra.mrb[0].mxu0 %v7162
        %v7444 = vpop.f32.mrb[0].mxu0
        %v7445 = vadd.f32 %v7252, %v7444
        %v7446 = vpop.f32.mrb[0].mxu0
        %v7447 = vpop.f32.mrb[0].mxu0
        %v7448 = vadd.f32 %v7252, %v7447
        %v7449 = vpop.f32.mrb[0].mxu0
        %7450 = vmatprep.mubr.bf16.mxu0 %v7166
        %7451 = vmatmul.mubr.bf16.gmra.mrb[0].mxu0 %v7165
        %v7452 = vpop.f32.mrb[0].mxu0
        %v7453 = vadd.f32 %v7252, %v7452
        %v7454 = vpop.f32.mrb[0].mxu0
        %v7455 = vpop.f32.mrb[0].mxu0
        %v7456 = vadd.f32 %v7252, %v7455
        %v7457 = vpop.f32.mrb[0].mxu0
        %7458 = vmatprep.mubr.bf16.mxu0 %v7169
        %7459 = vmatmul.mubr.bf16.gmra.mrb[0].mxu0 %v7168
        %v7460 = vpop.f32.mrb[0].mxu0
        %v7461 = vadd.f32 %v7252, %v7460
        %v7462 = vpop.f32.mrb[0].mxu0
        %v7463 = vpop.f32.mrb[0].mxu0
        %v7464 = vadd.f32 %v7252, %v7463
        %v7465 = vpop.f32.mrb[0].mxu0
        %7466 = vmatprep.mubr.bf16.mxu0 %v7172
        %7467 = vmatmul.mubr.bf16.gmra.mrb[0].mxu0 %v7171
        %v7468 = vpop.f32.mrb[0].mxu0
        %v7469 = vadd.f32 %v7252, %v7468
        %v7470 = vpop.f32.mrb[0].mxu0
        %v7471 = vpop.f32.mrb[0].mxu0
        %v7472 = vadd.f32 %v7252, %v7471
        %v7473 = vpop.f32.mrb[0].mxu0
        %7474 = vmatprep.mubr.bf16.mxu0 %v7175
        %7475 = vmatmul.mubr.bf16.gmra.mrb[0].mxu0 %v7174
        %v7476 = vpop.f32.mrb[0].mxu0
        %v7477 = vadd.f32 %v7252, %v7476
        %v7478 = vpop.f32.mrb[0].mxu0
        %v7479 = vpop.f32.mrb[0].mxu0
        %v7480 = vadd.f32 %v7252, %v7479
        %v7481 = vpop.f32.mrb[0].mxu0
        %7482 = vmatprep.mubr.bf16.mxu0 %v7178
        %7483 = vmatmul.mubr.bf16.gmra.mrb[0].mxu0 %v7177
        %v7484 = vpop.f32.mrb[0].mxu0
        %v7485 = vadd.f32 %v7252, %v7484
        %v7486 = vpop.f32.mrb[0].mxu0
        %v7487 = vpop.f32.mrb[0].mxu0
        %v7488 = vadd.f32 %v7252, %v7487
        %v7489 = vpop.f32.mrb[0].mxu0
        %7490 = vmatprep.mubr.bf16.mxu0 %v7181
        %7491 = vmatmul.mubr.bf16.gmra.mrb[0].mxu0 %v7180
        %v7492 = vpop.f32.mrb[0].mxu0
        %v7493 = vadd.f32 %v7252, %v7492
        %v7494 = vpop.f32.mrb[0].mxu0
        %v7495 = vpop.f32.mrb[0].mxu0
        %v7496 = vadd.f32 %v7252, %v7495
        %v7497 = vpop.f32.mrb[0].mxu0
        %7498 = vmatprep.mubr.bf16.mxu0 %v7184
        %7499 = vmatmul.mubr.bf16.gmra.mrb[0].mxu0 %v7183
        %v7500 = vpop.f32.mrb[0].mxu0
        %v7501 = vadd.f32 %v7252, %v7500
        %v7502 = vpop.f32.mrb[0].mxu0
        %v7503 = vpop.f32.mrb[0].mxu0
        %v7504 = vadd.f32 %v7252, %v7503
        %v7505 = vpop.f32.mrb[0].mxu0
        %7506 = vmatprep.mubr.bf16.mxu0 %v7187
        %7507 = vmatmul.mubr.bf16.gmra.mrb[0].mxu0 %v7186
        %v7508 = vpop.f32.mrb[0].mxu0
        %v7509 = vadd.f32 %v7252, %v7508
        %v7510 = vpop.f32.mrb[0].mxu0
        %v7511 = vpop.f32.mrb[0].mxu0
        %v7512 = vadd.f32 %v7252, %v7511
        %v7513 = vpop.f32.mrb[0].mxu0
        %7514 = vmatprep.mubr.bf16.mxu0 %v7190
        %7515 = vmatmul.mubr.bf16.gmra.mrb[0].mxu0 %v7189
        %v7516 = vpop.f32.mrb[0].mxu0
        %v7517 = vadd.f32 %v7252, %v7516
        %v7518 = vpop.f32.mrb[0].mxu0
        %v7519 = vpop.f32.mrb[0].mxu0
        %v7520 = vadd.f32 %v7252, %v7519
        %v7521 = vpop.f32.mrb[0].mxu0
        %7522 = vmatprep.mubr.bf16.mxu0 %v7193
        %7523 = vmatmul.mubr.bf16.gmra.mrb[0].mxu0 %v7192
        %v7524 = vpop.f32.mrb[0].mxu0
        %v7525 = vadd.f32 %v7252, %v7524
        %v7526 = vpop.f32.mrb[0].mxu0
        %v7527 = vpop.f32.mrb[0].mxu0
        %v7528 = vadd.f32 %v7252, %v7527
        %v7529 = vpop.f32.mrb[0].mxu0
        %7530 = vmatprep.mubr.bf16.mxu0 %v7196
        %7531 = vmatmul.mubr.bf16.gmra.mrb[0].mxu0 %v7195
        %v7532 = vpop.f32.mrb[0].mxu0
        %v7533 = vadd.f32 %v7252, %v7532
        %v7534 = vpop.f32.mrb[0].mxu0
        %v7535 = vpop.f32.mrb[0].mxu0
        %v7536 = vadd.f32 %v7252, %v7535
        %v7537 = vpop.f32.mrb[0].mxu0
        %7538 = vmatprep.mubr.bf16.mxu0 %v7199
        %7539 = vmatmul.mubr.bf16.gmra.mrb[0].mxu0 %v7198
        %v7540 = vpop.f32.mrb[0].mxu0
        %v7541 = vadd.f32 %v7252, %v7540
        %v7542 = vpop.f32.mrb[0].mxu0
        %v7543 = vpop.f32.mrb[0].mxu0
        %v7544 = vadd.f32 %v7252, %v7543
        %v7545 = vpop.f32.mrb[0].mxu0
        %7546 = vmatprep.mubr.bf16.mxu0 %v7202
        %7547 = vmatmul.mubr.bf16.gmra.mrb[0].mxu0 %v7201
        %v7548 = vpop.f32.mrb[0].mxu0
        %v7549 = vadd.f32 %v7252, %v7548
        %v7550 = vpop.f32.mrb[0].mxu0
        %v7551 = vpop.f32.mrb[0].mxu0
        %v7552 = vadd.f32 %v7252, %v7551
        %v7553 = vpop.f32.mrb[0].mxu0
        %7554 = vmatprep.mubr.bf16.mxu0 %v7205
        %7555 = vmatmul.mubr.bf16.gmra.mrb[0].mxu0 %v7204
        %v7556 = vpop.f32.mrb[0].mxu0
        %v7557 = vadd.f32 %v7252, %v7556
        %v7558 = vpop.f32.mrb[0].mxu0
        %v7559 = vpop.f32.mrb[0].mxu0
        %v7560 = vadd.f32 %v7252, %v7559
        %v7561 = vpop.f32.mrb[0].mxu0
        %7562 = vmatprep.mubr.bf16.mxu0 %v7208
        %7563 = vmatmul.mubr.bf16.gmra.mrb[0].mxu0 %v7207
        %v7564 = vpop.f32.mrb[0].mxu0
        %v7565 = vadd.f32 %v7252, %v7564
        %v7566 = vpop.f32.mrb[0].mxu0
        %v7567 = vpop.f32.mrb[0].mxu0
        %v7568 = vadd.f32 %v7252, %v7567
        %v7569 = vpop.f32.mrb[0].mxu0
        %7570 = vdwg.mxu0
        %7571 = vmatprep.subr.bf16.mxu0 0
        %7572 = vmatpush1.bf16.msra.mxu0 %v7342
        %7573 = vmatprep.subr.bf16.mxu0 0
        %7574 = vmatpush1.bf16.msra.mxu0 %v7343
        %7575 = vmatprep.subr.bf16.mxu0 0
        %7576 = vmatpush1.bf16.msra.mxu0 0
        %7577 = vmatprep.subr.bf16.mxu0 0
        %7578 = vmatpush1.bf16.msra.mxu0 0
        %7579 = vmatprep.subr.bf16.mxu0 0
        %7580 = vmatpush1.bf16.msra.mxu0 0
        %7581 = vmatprep.subr.bf16.mxu0 0
        %7582 = vmatpush1.bf16.msra.mxu0 0
        %7583 = vmatprep.subr.bf16.mxu0 0
        %7584 = vmatpush1.bf16.msra.mxu0 0
        %7585 = vmatprep.subr.bf16.mxu0 0
        %7586 = vmatpush1.bf16.msra.mxu0 0
        %7587 = vmatprep.subr.bf16.mxu0 0
        %7588 = vmatpush1.bf16.msra.mxu0 0
        %7589 = vmatprep.subr.bf16.mxu0 0
        %7590 = vmatpush1.bf16.msra.mxu0 0
        %7591 = vmatprep.subr.bf16.mxu0 0
        %7592 = vmatpush1.bf16.msra.mxu0 0
        %7593 = vmatprep.subr.bf16.mxu0 0
        %7594 = vmatpush1.bf16.msra.mxu0 0
        %7595 = vmatprep.subr.bf16.mxu0 0
        %7596 = vmatpush1.bf16.msra.mxu0 0
        %7597 = vmatprep.subr.bf16.mxu0 0
        %7598 = vmatpush1.bf16.msra.mxu0 0
        %7599 = vmatprep.subr.bf16.mxu0 0
        %7600 = vmatpush1.bf16.msra.mxu0 0
        %7601 = vmatprep.subr.bf16.mxu0 0
        %7602 = vmatpush1.bf16.msra.mxu0 0
        %7603 = vmatprep.mubr.bf16.mxu0 0
        %7604 = vmatmul.mubr.bf16.gmra.mrb[0].mxu0 %v7363
        %v7605 = vpop.f32.mrb[0].mxu0
        %v7606 = vadd.f32 %v7445, %v7605
        %v7607 = vpop.f32.mrb[0].mxu0
        %v7608 = vpop.f32.mrb[0].mxu0
        %v7609 = vadd.f32 %v7448, %v7608
        %v7610 = vpop.f32.mrb[0].mxu0
        %7611 = vmatprep.mubr.bf16.mxu0 0
        %7612 = vmatmul.mubr.bf16.gmra.mrb[0].mxu0 %v7366
        %v7613 = vpop.f32.mrb[0].mxu0
        %v7614 = vadd.f32 %v7453, %v7613
        %v7615 = vpop.f32.mrb[0].mxu0
        %v7616 = vpop.f32.mrb[0].mxu0
        %v7617 = vadd.f32 %v7456, %v7616
        %v7618 = vpop.f32.mrb[0].mxu0
        %7619 = vmatprep.mubr.bf16.mxu0 0
        %7620 = vmatmul.mubr.bf16.gmra.mrb[0].mxu0 %v7369
        %v7621 = vpop.f32.mrb[0].mxu0
        %v7622 = vadd.f32 %v7461, %v7621
        %v7623 = vpop.f32.mrb[0].mxu0
        %v7624 = vpop.f32.mrb[0].mxu0
        %v7625 = vadd.f32 %v7464, %v7624
        %v7626 = vpop.f32.mrb[0].mxu0
        %7627 = vmatprep.mubr.bf16.mxu0 0
        %7628 = vmatmul.mubr.bf16.gmra.mrb[0].mxu0 %v7372
        %v7629 = vpop.f32.mrb[0].mxu0
        %v7630 = vadd.f32 %v7469, %v7629
        %v7631 = vpop.f32.mrb[0].mxu0
        %v7632 = vpop.f32.mrb[0].mxu0
        %v7633 = vadd.f32 %v7472, %v7632
        %v7634 = vpop.f32.mrb[0].mxu0
        %7635 = vmatprep.mubr.bf16.mxu0 0
        %7636 = vmatmul.mubr.bf16.gmra.mrb[0].mxu0 %v7375
        %v7637 = vpop.f32.mrb[0].mxu0
        %v7638 = vadd.f32 %v7477, %v7637
        %v7639 = vpop.f32.mrb[0].mxu0
        %v7640 = vpop.f32.mrb[0].mxu0
        %v7641 = vadd.f32 %v7480, %v7640
        %v7642 = vpop.f32.mrb[0].mxu0
        %7643 = vmatprep.mubr.bf16.mxu0 0
        %7644 = vmatmul.mubr.bf16.gmra.mrb[0].mxu0 %v7378
        %v7645 = vpop.f32.mrb[0].mxu0
        %v7646 = vadd.f32 %v7485, %v7645
        %v7647 = vpop.f32.mrb[0].mxu0
        %v7648 = vpop.f32.mrb[0].mxu0
        %v7649 = vadd.f32 %v7488, %v7648
        %v7650 = vpop.f32.mrb[0].mxu0
        %7651 = vmatprep.mubr.bf16.mxu0 0
        %7652 = vmatmul.mubr.bf16.gmra.mrb[0].mxu0 %v7381
        %v7653 = vpop.f32.mrb[0].mxu0
        %v7654 = vadd.f32 %v7493, %v7653
        %v7655 = vpop.f32.mrb[0].mxu0
        %v7656 = vpop.f32.mrb[0].mxu0
        %v7657 = vadd.f32 %v7496, %v7656
        %v7658 = vpop.f32.mrb[0].mxu0
        %7659 = vmatprep.mubr.bf16.mxu0 0
        %7660 = vmatmul.mubr.bf16.gmra.mrb[0].mxu0 %v7384
        %v7661 = vpop.f32.mrb[0].mxu0
        %v7662 = vadd.f32 %v7501, %v7661
        %v7663 = vpop.f32.mrb[0].mxu0
        %v7664 = vpop.f32.mrb[0].mxu0
        %v7665 = vadd.f32 %v7504, %v7664
        %v7666 = vpop.f32.mrb[0].mxu0
        %7667 = vmatprep.mubr.bf16.mxu0 0
        %7668 = vmatmul.mubr.bf16.gmra.mrb[0].mxu0 %v7387
        %v7669 = vpop.f32.mrb[0].mxu0
        %v7670 = vadd.f32 %v7509, %v7669
        %v7671 = vpop.f32.mrb[0].mxu0
        %v7672 = vpop.f32.mrb[0].mxu0
        %v7673 = vadd.f32 %v7512, %v7672
        %v7674 = vpop.f32.mrb[0].mxu0
        %7675 = vmatprep.mubr.bf16.mxu0 0
        %7676 = vmatmul.mubr.bf16.gmra.mrb[0].mxu0 %v7390
        %v7677 = vpop.f32.mrb[0].mxu0
        %v7678 = vadd.f32 %v7517, %v7677
        %v7679 = vpop.f32.mrb[0].mxu0
        %v7680 = vpop.f32.mrb[0].mxu0
        %v7681 = vadd.f32 %v7520, %v7680
        %v7682 = vpop.f32.mrb[0].mxu0
        %7683 = vmatprep.mubr.bf16.mxu0 0
        %7684 = vmatmul.mubr.bf16.gmra.mrb[0].mxu0 %v7393
        %v7685 = vpop.f32.mrb[0].mxu0
        %v7686 = vadd.f32 %v7525, %v7685
        %v7687 = vpop.f32.mrb[0].mxu0
        %v7688 = vpop.f32.mrb[0].mxu0
        %v7689 = vadd.f32 %v7528, %v7688
        %v7690 = vpop.f32.mrb[0].mxu0
        %7691 = vmatprep.mubr.bf16.mxu0 0
        %7692 = vmatmul.mubr.bf16.gmra.mrb[0].mxu0 %v7396
        %v7693 = vpop.f32.mrb[0].mxu0
        %v7694 = vadd.f32 %v7533, %v7693
        %v7695 = vpop.f32.mrb[0].mxu0
        %v7696 = vpop.f32.mrb[0].mxu0
        %v7697 = vadd.f32 %v7536, %v7696
        %v7698 = vpop.f32.mrb[0].mxu0
        %7699 = vmatprep.mubr.bf16.mxu0 0
        %7700 = vmatmul.mubr.bf16.gmra.mrb[0].mxu0 %v7399
        %v7701 = vpop.f32.mrb[0].mxu0
        %v7702 = vadd.f32 %v7541, %v7701
        %v7703 = vpop.f32.mrb[0].mxu0
        %v7704 = vpop.f32.mrb[0].mxu0
        %v7705 = vadd.f32 %v7544, %v7704
        %v7706 = vpop.f32.mrb[0].mxu0
        %7707 = vmatprep.mubr.bf16.mxu0 0
        %7708 = vmatmul.mubr.bf16.gmra.mrb[0].mxu0 %v7402
        %v7709 = vpop.f32.mrb[0].mxu0
        %v7710 = vadd.f32 %v7549, %v7709
        %v7711 = vpop.f32.mrb[0].mxu0
        %v7712 = vpop.f32.mrb[0].mxu0
        %v7713 = vadd.f32 %v7552, %v7712
        %v7714 = vpop.f32.mrb[0].mxu0
        %7715 = vmatprep.mubr.bf16.mxu0 0
        %7716 = vmatmul.mubr.bf16.gmra.mrb[0].mxu0 %v7405
        %v7717 = vpop.f32.mrb[0].mxu0
        %v7718 = vadd.f32 %v7557, %v7717
        %v7719 = vpop.f32.mrb[0].mxu0
        %v7720 = vpop.f32.mrb[0].mxu0
        %v7721 = vadd.f32 %v7560, %v7720
        %v7722 = vpop.f32.mrb[0].mxu0
        %7723 = vmatprep.mubr.bf16.mxu0 0
        %7724 = vmatmul.mubr.bf16.gmra.mrb[0].mxu0 %v7408
        %v7725 = vpop.f32.mrb[0].mxu0
        %v7726 = vadd.f32 %v7565, %v7725
        %v7727 = vpop.f32.mrb[0].mxu0
        %v7728 = vpop.f32.mrb[0].mxu0
        %v7729 = vadd.f32 %v7568, %v7728
        %v7730 = vpop.f32.mrb[0].mxu0
        %7731 = vdwg.mxu0
        %v7732 = vmax.f32 %v7606, 0.0
        %v7733 = vmax.f32 %v7609, 0.0
        %v7734 = vmax.f32 %v7614, 0.0
        %v7735 = vmax.f32 %v7617, 0.0
        %v7736 = vmax.f32 %v7622, 0.0
        %v7737 = vmax.f32 %v7625, 0.0
        %v7738 = vmax.f32 %v7630, 0.0
        %v7739 = vmax.f32 %v7633, 0.0
        %v7740 = vmax.f32 %v7638, 0.0
        %v7741 = vmax.f32 %v7641, 0.0
        %v7742 = vmax.f32 %v7646, 0.0
        %v7743 = vmax.f32 %v7649, 0.0
        %v7744 = vmax.f32 %v7654, 0.0
        %v7745 = vmax.f32 %v7657, 0.0
        %v7746 = vmax.f32 %v7662, 0.0
        %v7747 = vmax.f32 %v7665, 0.0
        %v7748 = vmax.f32 %v7670, 0.0
        %v7749 = vmax.f32 %v7673, 0.0
        %v7750 = vmax.f32 %v7678, 0.0
        %v7751 = vmax.f32 %v7681, 0.0
        %v7752 = vmax.f32 %v7686, 0.0
        %v7753 = vmax.f32 %v7689, 0.0
        %v7754 = vmax.f32 %v7694, 0.0
        %v7755 = vmax.f32 %v7697, 0.0
        %v7756 = vmax.f32 %v7702, 0.0
        %v7757 = vmax.f32 %v7705, 0.0
        %v7758 = vmax.f32 %v7710, 0.0
        %v7759 = vmax.f32 %v7713, 0.0
        %v7760 = vmax.f32 %v7718, 0.0
        %v7761 = vmax.f32 %v7721, 0.0
        %v7762 = vmax.f32 %v7726, 0.0
        %v7763 = vmax.f32 %v7729, 0.0
        %v7764 = vpack.c.bf16 %v7733, %v7732
        %v7765 = vpack.c.bf16 %v7735, %v7734
        %v7766 = vpack.c.bf16 %v7737, %v7736
        %v7767 = vpack.c.bf16 %v7739, %v7738
        %v7768 = vpack.c.bf16 %v7741, %v7740
        %v7769 = vpack.c.bf16 %v7743, %v7742
        %v7770 = vpack.c.bf16 %v7745, %v7744
        %v7771 = vpack.c.bf16 %v7747, %v7746
        %v7772 = vpack.c.bf16 %v7749, %v7748
        %v7773 = vpack.c.bf16 %v7751, %v7750
        %v7774 = vpack.c.bf16 %v7753, %v7752
        %v7775 = vpack.c.bf16 %v7755, %v7754
        %v7776 = vpack.c.bf16 %v7757, %v7756
        %v7777 = vpack.c.bf16 %v7759, %v7758
        %v7778 = vpack.c.bf16 %v7761, %v7760
        %v7779 = vpack.c.bf16 %v7763, %v7762
        %s7780 = scalar_lea.vmem %s8, 64
        %v7781 = vld [vmem:[%s7780] sm:$0xf]
        %v7782 = vld [vmem:[%s7780 + $0x4] sm:$0xf]
        %v7783 = vld [vmem:[%s7780 + $0x8] sm:$0xf]
        %v7784 = vld [vmem:[%s7780 + $0xc] sm:$0xf]
        %v7785 = vld [vmem:[%s7780 + $0x10] sm:$0xf]
        %v7786 = vld [vmem:[%s7780 + $0x14] sm:$0xf]
        %v7787 = vld [vmem:[%s7780 + $0x18] sm:$0xf]
        %v7788 = vld [vmem:[%s7780 + $0x1c] sm:$0xf]
        %v7789 = vld [vmem:[%s7780 + $0x20] sm:$0xf]
        %v7790 = vld [vmem:[%s7780 + $0x24] sm:$0xf]
        %v7791 = vld [vmem:[%s7780 + $0x28] sm:$0xf]
        %v7792 = vld [vmem:[%s7780 + $0x2c] sm:$0xf]
        %v7793 = vld [vmem:[%s7780 + $0x30] sm:$0xf]
        %v7794 = vld [vmem:[%s7780 + $0x34] sm:$0xf]
        %v7795 = vld [vmem:[%s7780 + $0x38] sm:$0xf]
        %v7796 = vld [vmem:[%s7780 + $0x3c] sm:$0xf]
        %s7797 = scalar_lea.vmem [#allocation11], 1
        %v7798 = vld [vmem:[%s7797] sm:$0x1]
        %v7800 = vlaneseq
        %v7801 = vshrl.u32 %v7800, 7
        %v7802 = vsub.s32 0, %v7801
        %v7803 = vrot.slane %v7798, %v7802
        %v7821 = vunpack.c.l.b16 %v7781
        %v7822 = vunpack.c.l.b16 %v7782
        %v7823 = vunpack.c.l.b16 %v7783
        %v7824 = vunpack.c.l.b16 %v7784
        %v7825 = vunpack.c.l.b16 %v7785
        %v7826 = vunpack.c.l.b16 %v7786
        %v7827 = vunpack.c.l.b16 %v7787
        %v7828 = vunpack.c.l.b16 %v7788
        %v7829 = vunpack.c.l.b16 %v7789
        %v7830 = vunpack.c.l.b16 %v7790
        %v7831 = vunpack.c.l.b16 %v7791
        %v7832 = vunpack.c.l.b16 %v7792
        %v7833 = vunpack.c.l.b16 %v7793
        %v7834 = vunpack.c.l.b16 %v7794
        %v7835 = vunpack.c.l.b16 %v7795
        %v7836 = vunpack.c.l.b16 %v7796
        %v7837 = vpack.c.b16 %v7822, %v7821
        %v7838 = vpack.c.b16 %v7824, %v7823
        %v7839 = vpack.c.b16 %v7826, %v7825
        %v7840 = vpack.c.b16 %v7828, %v7827
        %v7841 = vpack.c.b16 %v7830, %v7829
        %v7842 = vpack.c.b16 %v7832, %v7831
        %v7843 = vpack.c.b16 %v7834, %v7833
        %v7844 = vpack.c.b16 %v7836, %v7835
        %7853 = vmatprep.subr.bf16.mxu0 0
        %7854 = vmatpush1.bf16.msra.mxu0 %v7837
        %7855 = vmatprep.subr.bf16.mxu0 0
        %7856 = vmatpush1.bf16.msra.mxu0 %v7838
        %7857 = vmatprep.subr.bf16.mxu0 0
        %7858 = vmatpush1.bf16.msra.mxu0 %v7839
        %7859 = vmatprep.subr.bf16.mxu0 0
        %7860 = vmatpush1.bf16.msra.mxu0 %v7840
        %7861 = vmatprep.subr.bf16.mxu0 0
        %7862 = vmatpush1.bf16.msra.mxu0 %v7841
        %7863 = vmatprep.subr.bf16.mxu0 0
        %7864 = vmatpush1.bf16.msra.mxu0 %v7842
        %7865 = vmatprep.subr.bf16.mxu0 0
        %7866 = vmatpush1.bf16.msra.mxu0 %v7843
        %7867 = vmatprep.subr.bf16.mxu0 0
        %7868 = vmatpush1.bf16.msra.mxu0 %v7844
        %7869 = vmatprep.subr.bf16.mxu0 0
        %7870 = vmatpush1.bf16.msra.mxu0 0
        %7871 = vmatprep.subr.bf16.mxu0 0
        %7872 = vmatpush1.bf16.msra.mxu0 0
        %7873 = vmatprep.subr.bf16.mxu0 0
        %7874 = vmatpush1.bf16.msra.mxu0 0
        %7875 = vmatprep.subr.bf16.mxu0 0
        %7876 = vmatpush1.bf16.msra.mxu0 0
        %7877 = vmatprep.subr.bf16.mxu0 0
        %7878 = vmatpush1.bf16.msra.mxu0 0
        %7879 = vmatprep.subr.bf16.mxu0 0
        %7880 = vmatpush1.bf16.msra.mxu0 0
        %7881 = vmatprep.subr.bf16.mxu0 0
        %7882 = vmatpush1.bf16.msra.mxu0 0
        %7883 = vmatprep.subr.bf16.mxu0 0
        %7884 = vmatpush1.bf16.msra.mxu0 0
        %7885 = vmatprep.mubr.bf16.mxu0 0
        %7886 = vmatmul.mubr.bf16.gmra.mrb[0].mxu0 %v7764
        %v7887 = vpop.f32.mrb[0].mxu0
        %v7888 = vadd.f32 %v7803, %v7887
        %v7889 = vpop.f32.mrb[0].mxu0
        %v7890 = vpop.f32.mrb[0].mxu0
        %v7891 = vadd.f32 %v7803, %v7890
        %v7892 = vpop.f32.mrb[0].mxu0
        %7893 = vmatprep.mubr.bf16.mxu0 0
        %7894 = vmatmul.mubr.bf16.gmra.mrb[0].mxu0 %v7765
        %v7895 = vpop.f32.mrb[0].mxu0
        %v7896 = vadd.f32 %v7803, %v7895
        %v7897 = vpop.f32.mrb[0].mxu0
        %v7898 = vpop.f32.mrb[0].mxu0
        %v7899 = vadd.f32 %v7803, %v7898
        %v7900 = vpop.f32.mrb[0].mxu0
        %7901 = vmatprep.mubr.bf16.mxu0 0
        %7902 = vmatmul.mubr.bf16.gmra.mrb[0].mxu0 %v7766
        %v7903 = vpop.f32.mrb[0].mxu0
        %v7904 = vadd.f32 %v7803, %v7903
        %v7905 = vpop.f32.mrb[0].mxu0
        %v7906 = vpop.f32.mrb[0].mxu0
        %v7907 = vadd.f32 %v7803, %v7906
        %v7908 = vpop.f32.mrb[0].mxu0
        %7909 = vmatprep.mubr.bf16.mxu0 0
        %7910 = vmatmul.mubr.bf16.gmra.mrb[0].mxu0 %v7767
        %v7911 = vpop.f32.mrb[0].mxu0
        %v7912 = vadd.f32 %v7803, %v7911
        %v7913 = vpop.f32.mrb[0].mxu0
        %v7914 = vpop.f32.mrb[0].mxu0
        %v7915 = vadd.f32 %v7803, %v7914
        %v7916 = vpop.f32.mrb[0].mxu0
        %7917 = vmatprep.mubr.bf16.mxu0 0
        %7918 = vmatmul.mubr.bf16.gmra.mrb[0].mxu0 %v7768
        %v7919 = vpop.f32.mrb[0].mxu0
        %v7920 = vadd.f32 %v7803, %v7919
        %v7921 = vpop.f32.mrb[0].mxu0
        %v7922 = vpop.f32.mrb[0].mxu0
        %v7923 = vadd.f32 %v7803, %v7922
        %v7924 = vpop.f32.mrb[0].mxu0
        %7925 = vmatprep.mubr.bf16.mxu0 0
        %7926 = vmatmul.mubr.bf16.gmra.mrb[0].mxu0 %v7769
        %v7927 = vpop.f32.mrb[0].mxu0
        %v7928 = vadd.f32 %v7803, %v7927
        %v7929 = vpop.f32.mrb[0].mxu0
        %v7930 = vpop.f32.mrb[0].mxu0
        %v7931 = vadd.f32 %v7803, %v7930
        %v7932 = vpop.f32.mrb[0].mxu0
        %7933 = vmatprep.mubr.bf16.mxu0 0
        %7934 = vmatmul.mubr.bf16.gmra.mrb[0].mxu0 %v7770
        %v7935 = vpop.f32.mrb[0].mxu0
        %v7936 = vadd.f32 %v7803, %v7935
        %v7937 = vpop.f32.mrb[0].mxu0
        %v7938 = vpop.f32.mrb[0].mxu0
        %v7939 = vadd.f32 %v7803, %v7938
        %v7940 = vpop.f32.mrb[0].mxu0
        %7941 = vmatprep.mubr.bf16.mxu0 0
        %7942 = vmatmul.mubr.bf16.gmra.mrb[0].mxu0 %v7771
        %v7943 = vpop.f32.mrb[0].mxu0
        %v7944 = vadd.f32 %v7803, %v7943
        %v7945 = vpop.f32.mrb[0].mxu0
        %v7946 = vpop.f32.mrb[0].mxu0
        %v7947 = vadd.f32 %v7803, %v7946
        %v7948 = vpop.f32.mrb[0].mxu0
        %7949 = vmatprep.mubr.bf16.mxu0 0
        %7950 = vmatmul.mubr.bf16.gmra.mrb[0].mxu0 %v7772
        %v7951 = vpop.f32.mrb[0].mxu0
        %v7952 = vadd.f32 %v7803, %v7951
        %v7953 = vpop.f32.mrb[0].mxu0
        %v7954 = vpop.f32.mrb[0].mxu0
        %v7955 = vadd.f32 %v7803, %v7954
        %v7956 = vpop.f32.mrb[0].mxu0
        %7957 = vmatprep.mubr.bf16.mxu0 0
        %7958 = vmatmul.mubr.bf16.gmra.mrb[0].mxu0 %v7773
        %v7959 = vpop.f32.mrb[0].mxu0
        %v7960 = vadd.f32 %v7803, %v7959
        %v7961 = vpop.f32.mrb[0].mxu0
        %v7962 = vpop.f32.mrb[0].mxu0
        %v7963 = vadd.f32 %v7803, %v7962
        %v7964 = vpop.f32.mrb[0].mxu0
        %7965 = vmatprep.mubr.bf16.mxu0 0
        %7966 = vmatmul.mubr.bf16.gmra.mrb[0].mxu0 %v7774
        %v7967 = vpop.f32.mrb[0].mxu0
        %v7968 = vadd.f32 %v7803, %v7967
        %v7969 = vpop.f32.mrb[0].mxu0
        %v7970 = vpop.f32.mrb[0].mxu0
        %v7971 = vadd.f32 %v7803, %v7970
        %v7972 = vpop.f32.mrb[0].mxu0
        %7973 = vmatprep.mubr.bf16.mxu0 0
        %7974 = vmatmul.mubr.bf16.gmra.mrb[0].mxu0 %v7775
        %v7975 = vpop.f32.mrb[0].mxu0
        %v7976 = vadd.f32 %v7803, %v7975
        %v7977 = vpop.f32.mrb[0].mxu0
        %v7978 = vpop.f32.mrb[0].mxu0
        %v7979 = vadd.f32 %v7803, %v7978
        %v7980 = vpop.f32.mrb[0].mxu0
        %7981 = vmatprep.mubr.bf16.mxu0 0
        %7982 = vmatmul.mubr.bf16.gmra.mrb[0].mxu0 %v7776
        %v7983 = vpop.f32.mrb[0].mxu0
        %v7984 = vadd.f32 %v7803, %v7983
        %v7985 = vpop.f32.mrb[0].mxu0
        %v7986 = vpop.f32.mrb[0].mxu0
        %v7987 = vadd.f32 %v7803, %v7986
        %v7988 = vpop.f32.mrb[0].mxu0
        %7989 = vmatprep.mubr.bf16.mxu0 0
        %7990 = vmatmul.mubr.bf16.gmra.mrb[0].mxu0 %v7777
        %v7991 = vpop.f32.mrb[0].mxu0
        %v7992 = vadd.f32 %v7803, %v7991
        %v7993 = vpop.f32.mrb[0].mxu0
        %v7994 = vpop.f32.mrb[0].mxu0
        %v7995 = vadd.f32 %v7803, %v7994
        %v7996 = vpop.f32.mrb[0].mxu0
        %7997 = vmatprep.mubr.bf16.mxu0 0
        %7998 = vmatmul.mubr.bf16.gmra.mrb[0].mxu0 %v7778
        %v7999 = vpop.f32.mrb[0].mxu0
        %v8000 = vadd.f32 %v7803, %v7999
        %v8001 = vpop.f32.mrb[0].mxu0
        %v8002 = vpop.f32.mrb[0].mxu0
        %v8003 = vadd.f32 %v7803, %v8002
        %v8004 = vpop.f32.mrb[0].mxu0
        %8005 = vmatprep.mubr.bf16.mxu0 0
        %8006 = vmatmul.mubr.bf16.gmra.mrb[0].mxu0 %v7779
        %v8007 = vpop.f32.mrb[0].mxu0
        %v8008 = vadd.f32 %v7803, %v8007
        %v8009 = vpop.f32.mrb[0].mxu0
        %v8010 = vpop.f32.mrb[0].mxu0
        %v8011 = vadd.f32 %v7803, %v8010
        %v8012 = vpop.f32.mrb[0].mxu0
        %8013 = vdwg.mxu0
        %v8014 = vmax.f32 %v7888, 0.0
        %v8015 = vmax.f32 %v7891, 0.0
        %v8016 = vmax.f32 %v7896, 0.0
        %v8017 = vmax.f32 %v7899, 0.0
        %v8018 = vmax.f32 %v7904, 0.0
        %v8019 = vmax.f32 %v7907, 0.0
        %v8020 = vmax.f32 %v7912, 0.0
        %v8021 = vmax.f32 %v7915, 0.0
        %v8022 = vmax.f32 %v7920, 0.0
        %v8023 = vmax.f32 %v7923, 0.0
        %v8024 = vmax.f32 %v7928, 0.0
        %v8025 = vmax.f32 %v7931, 0.0
        %v8026 = vmax.f32 %v7936, 0.0
        %v8027 = vmax.f32 %v7939, 0.0
        %v8028 = vmax.f32 %v7944, 0.0
        %v8029 = vmax.f32 %v7947, 0.0
        %v8030 = vmax.f32 %v7952, 0.0
        %v8031 = vmax.f32 %v7955, 0.0
        %v8032 = vmax.f32 %v7960, 0.0
        %v8033 = vmax.f32 %v7963, 0.0
        %v8034 = vmax.f32 %v7968, 0.0
        %v8035 = vmax.f32 %v7971, 0.0
        %v8036 = vmax.f32 %v7976, 0.0
        %v8037 = vmax.f32 %v7979, 0.0
        %v8038 = vmax.f32 %v7984, 0.0
        %v8039 = vmax.f32 %v7987, 0.0
        %v8040 = vmax.f32 %v7992, 0.0
        %v8041 = vmax.f32 %v7995, 0.0
        %v8042 = vmax.f32 %v8000, 0.0
        %v8043 = vmax.f32 %v8003, 0.0
        %v8044 = vmax.f32 %v8008, 0.0
        %v8045 = vmax.f32 %v8011, 0.0
        %v8046 = vpack.c.bf16 %v8015, %v8014
        %v8047 = vpack.c.bf16 %v8017, %v8016
        %v8048 = vpack.c.bf16 %v8019, %v8018
        %v8049 = vpack.c.bf16 %v8021, %v8020
        %v8050 = vpack.c.bf16 %v8023, %v8022
        %v8051 = vpack.c.bf16 %v8025, %v8024
        %v8052 = vpack.c.bf16 %v8027, %v8026
        %v8053 = vpack.c.bf16 %v8029, %v8028
        %v8054 = vpack.c.bf16 %v8031, %v8030
        %v8055 = vpack.c.bf16 %v8033, %v8032
        %v8056 = vpack.c.bf16 %v8035, %v8034
        %v8057 = vpack.c.bf16 %v8037, %v8036
        %v8058 = vpack.c.bf16 %v8039, %v8038
        %v8059 = vpack.c.bf16 %v8041, %v8040
        %v8060 = vpack.c.bf16 %v8043, %v8042
        %v8061 = vpack.c.bf16 %v8045, %v8044
        %s8062 = scalar_lea.vmem %s10, 64
        %v8063 = vld [vmem:[%s8062] sm:$0xf]
        %v8064 = vld [vmem:[%s8062 + $0x4] sm:$0xf]
        %v8065 = vld [vmem:[%s8062 + $0x8] sm:$0xf]
        %v8066 = vld [vmem:[%s8062 + $0xc] sm:$0xf]
        %v8067 = vld [vmem:[%s8062 + $0x10] sm:$0xf]
        %v8068 = vld [vmem:[%s8062 + $0x14] sm:$0xf]
        %v8069 = vld [vmem:[%s8062 + $0x18] sm:$0xf]
        %v8070 = vld [vmem:[%s8062 + $0x1c] sm:$0xf]
        %v8071 = vld [vmem:[%s8062 + $0x20] sm:$0xf]
        %v8072 = vld [vmem:[%s8062 + $0x24] sm:$0xf]
        %v8073 = vld [vmem:[%s8062 + $0x28] sm:$0xf]
        %v8074 = vld [vmem:[%s8062 + $0x2c] sm:$0xf]
        %v8075 = vld [vmem:[%s8062 + $0x30] sm:$0xf]
        %v8076 = vld [vmem:[%s8062 + $0x34] sm:$0xf]
        %v8077 = vld [vmem:[%s8062 + $0x38] sm:$0xf]
        %v8078 = vld [vmem:[%s8062 + $0x3c] sm:$0xf]
        %s8079 = scalar_lea.vmem [#allocation12], 1
        %v8080 = vld [vmem:[%s8079] sm:$0x1]
        %v8082 = vlaneseq
        %v8083 = vshrl.u32 %v8082, 7
        %v8084 = vsub.s32 0, %v8083
        %v8085 = vrot.slane %v8080, %v8084
        %v8103 = vunpack.c.l.b16 %v8063
        %v8104 = vunpack.c.l.b16 %v8064
        %v8105 = vunpack.c.l.b16 %v8065
        %v8106 = vunpack.c.l.b16 %v8066
        %v8107 = vunpack.c.l.b16 %v8067
        %v8108 = vunpack.c.l.b16 %v8068
        %v8109 = vunpack.c.l.b16 %v8069
        %v8110 = vunpack.c.l.b16 %v8070
        %v8111 = vunpack.c.l.b16 %v8071
        %v8112 = vunpack.c.l.b16 %v8072
        %v8113 = vunpack.c.l.b16 %v8073
        %v8114 = vunpack.c.l.b16 %v8074
        %v8115 = vunpack.c.l.b16 %v8075
        %v8116 = vunpack.c.l.b16 %v8076
        %v8117 = vunpack.c.l.b16 %v8077
        %v8118 = vunpack.c.l.b16 %v8078
        %v8119 = vpack.c.b16 %v8104, %v8103
        %v8120 = vpack.c.b16 %v8106, %v8105
        %v8121 = vpack.c.b16 %v8108, %v8107
        %v8122 = vpack.c.b16 %v8110, %v8109
        %v8123 = vpack.c.b16 %v8112, %v8111
        %v8124 = vpack.c.b16 %v8114, %v8113
        %v8125 = vpack.c.b16 %v8116, %v8115
        %v8126 = vpack.c.b16 %v8118, %v8117
        %8135 = vmatprep.subr.bf16.mxu0 0
        %8136 = vmatpush1.bf16.msra.mxu0 %v8119
        %8137 = vmatprep.subr.bf16.mxu0 0
        %8138 = vmatpush1.bf16.msra.mxu0 %v8120
        %8139 = vmatprep.subr.bf16.mxu0 0
        %8140 = vmatpush1.bf16.msra.mxu0 %v8121
        %8141 = vmatprep.subr.bf16.mxu0 0
        %8142 = vmatpush1.bf16.msra.mxu0 %v8122
        %8143 = vmatprep.subr.bf16.mxu0 0
        %8144 = vmatpush1.bf16.msra.mxu0 %v8123
        %8145 = vmatprep.subr.bf16.mxu0 0
        %8146 = vmatpush1.bf16.msra.mxu0 %v8124
        %8147 = vmatprep.subr.bf16.mxu0 0
        %8148 = vmatpush1.bf16.msra.mxu0 %v8125
        %8149 = vmatprep.subr.bf16.mxu0 0
        %8150 = vmatpush1.bf16.msra.mxu0 %v8126
        %8151 = vmatprep.subr.bf16.mxu0 0
        %8152 = vmatpush1.bf16.msra.mxu0 0
        %8153 = vmatprep.subr.bf16.mxu0 0
        %8154 = vmatpush1.bf16.msra.mxu0 0
        %8155 = vmatprep.subr.bf16.mxu0 0
        %8156 = vmatpush1.bf16.msra.mxu0 0
        %8157 = vmatprep.subr.bf16.mxu0 0
        %8158 = vmatpush1.bf16.msra.mxu0 0
        %8159 = vmatprep.subr.bf16.mxu0 0
        %8160 = vmatpush1.bf16.msra.mxu0 0
        %8161 = vmatprep.subr.bf16.mxu0 0
        %8162 = vmatpush1.bf16.msra.mxu0 0
        %8163 = vmatprep.subr.bf16.mxu0 0
        %8164 = vmatpush1.bf16.msra.mxu0 0
        %8165 = vmatprep.subr.bf16.mxu0 0
        %8166 = vmatpush1.bf16.msra.mxu0 0
        %8167 = vmatprep.mubr.bf16.mxu0 0
        %8168 = vmatmul.mubr.bf16.gmra.mrb[0].mxu0 %v8046
        %v8169 = vpop.f32.mrb[0].mxu0
        %v8170 = vadd.f32 %v8085, %v8169
        %v8171 = vpop.f32.mrb[0].mxu0
        %v8172 = vpop.f32.mrb[0].mxu0
        %v8173 = vadd.f32 %v8085, %v8172
        %v8174 = vpop.f32.mrb[0].mxu0
        %8175 = vmatprep.mubr.bf16.mxu0 0
        %8176 = vmatmul.mubr.bf16.gmra.mrb[0].mxu0 %v8047
        %v8177 = vpop.f32.mrb[0].mxu0
        %v8178 = vadd.f32 %v8085, %v8177
        %v8179 = vpop.f32.mrb[0].mxu0
        %v8180 = vpop.f32.mrb[0].mxu0
        %v8181 = vadd.f32 %v8085, %v8180
        %v8182 = vpop.f32.mrb[0].mxu0
        %8183 = vmatprep.mubr.bf16.mxu0 0
        %8184 = vmatmul.mubr.bf16.gmra.mrb[0].mxu0 %v8048
        %v8185 = vpop.f32.mrb[0].mxu0
        %v8186 = vadd.f32 %v8085, %v8185
        %v8187 = vpop.f32.mrb[0].mxu0
        %v8188 = vpop.f32.mrb[0].mxu0
        %v8189 = vadd.f32 %v8085, %v8188
        %v8190 = vpop.f32.mrb[0].mxu0
        %8191 = vmatprep.mubr.bf16.mxu0 0
        %8192 = vmatmul.mubr.bf16.gmra.mrb[0].mxu0 %v8049
        %v8193 = vpop.f32.mrb[0].mxu0
        %v8194 = vadd.f32 %v8085, %v8193
        %v8195 = vpop.f32.mrb[0].mxu0
        %v8196 = vpop.f32.mrb[0].mxu0
        %v8197 = vadd.f32 %v8085, %v8196
        %v8198 = vpop.f32.mrb[0].mxu0
        %8199 = vmatprep.mubr.bf16.mxu0 0
        %8200 = vmatmul.mubr.bf16.gmra.mrb[0].mxu0 %v8050
        %v8201 = vpop.f32.mrb[0].mxu0
        %v8202 = vadd.f32 %v8085, %v8201
        %v8203 = vpop.f32.mrb[0].mxu0
        %v8204 = vpop.f32.mrb[0].mxu0
        %v8205 = vadd.f32 %v8085, %v8204
        %v8206 = vpop.f32.mrb[0].mxu0
        %8207 = vmatprep.mubr.bf16.mxu0 0
        %8208 = vmatmul.mubr.bf16.gmra.mrb[0].mxu0 %v8051
        %v8209 = vpop.f32.mrb[0].mxu0
        %v8210 = vadd.f32 %v8085, %v8209
        %v8211 = vpop.f32.mrb[0].mxu0
        %v8212 = vpop.f32.mrb[0].mxu0
        %v8213 = vadd.f32 %v8085, %v8212
        %v8214 = vpop.f32.mrb[0].mxu0
        %8215 = vmatprep.mubr.bf16.mxu0 0
        %8216 = vmatmul.mubr.bf16.gmra.mrb[0].mxu0 %v8052
        %v8217 = vpop.f32.mrb[0].mxu0
        %v8218 = vadd.f32 %v8085, %v8217
        %v8219 = vpop.f32.mrb[0].mxu0
        %v8220 = vpop.f32.mrb[0].mxu0
        %v8221 = vadd.f32 %v8085, %v8220
        %v8222 = vpop.f32.mrb[0].mxu0
        %8223 = vmatprep.mubr.bf16.mxu0 0
        %8224 = vmatmul.mubr.bf16.gmra.mrb[0].mxu0 %v8053
        %v8225 = vpop.f32.mrb[0].mxu0
        %v8226 = vadd.f32 %v8085, %v8225
        %v8227 = vpop.f32.mrb[0].mxu0
        %v8228 = vpop.f32.mrb[0].mxu0
        %v8229 = vadd.f32 %v8085, %v8228
        %v8230 = vpop.f32.mrb[0].mxu0
        %8231 = vmatprep.mubr.bf16.mxu0 0
        %8232 = vmatmul.mubr.bf16.gmra.mrb[0].mxu0 %v8054
        %v8233 = vpop.f32.mrb[0].mxu0
        %v8234 = vadd.f32 %v8085, %v8233
        %v8235 = vpop.f32.mrb[0].mxu0
        %v8236 = vpop.f32.mrb[0].mxu0
        %v8237 = vadd.f32 %v8085, %v8236
        %v8238 = vpop.f32.mrb[0].mxu0
        %8239 = vmatprep.mubr.bf16.mxu0 0
        %8240 = vmatmul.mubr.bf16.gmra.mrb[0].mxu0 %v8055
        %v8241 = vpop.f32.mrb[0].mxu0
        %v8242 = vadd.f32 %v8085, %v8241
        %v8243 = vpop.f32.mrb[0].mxu0
        %v8244 = vpop.f32.mrb[0].mxu0
        %v8245 = vadd.f32 %v8085, %v8244
        %v8246 = vpop.f32.mrb[0].mxu0
        %8247 = vmatprep.mubr.bf16.mxu0 0
        %8248 = vmatmul.mubr.bf16.gmra.mrb[0].mxu0 %v8056
        %v8249 = vpop.f32.mrb[0].mxu0
        %v8250 = vadd.f32 %v8085, %v8249
        %v8251 = vpop.f32.mrb[0].mxu0
        %v8252 = vpop.f32.mrb[0].mxu0
        %v8253 = vadd.f32 %v8085, %v8252
        %v8254 = vpop.f32.mrb[0].mxu0
        %8255 = vmatprep.mubr.bf16.mxu0 0
        %8256 = vmatmul.mubr.bf16.gmra.mrb[0].mxu0 %v8057
        %v8257 = vpop.f32.mrb[0].mxu0
        %v8258 = vadd.f32 %v8085, %v8257
        %v8259 = vpop.f32.mrb[0].mxu0
        %v8260 = vpop.f32.mrb[0].mxu0
        %v8261 = vadd.f32 %v8085, %v8260
        %v8262 = vpop.f32.mrb[0].mxu0
        %8263 = vmatprep.mubr.bf16.mxu0 0
        %8264 = vmatmul.mubr.bf16.gmra.mrb[0].mxu0 %v8058
        %v8265 = vpop.f32.mrb[0].mxu0
        %v8266 = vadd.f32 %v8085, %v8265
        %v8267 = vpop.f32.mrb[0].mxu0
        %v8268 = vpop.f32.mrb[0].mxu0
        %v8269 = vadd.f32 %v8085, %v8268
        %v8270 = vpop.f32.mrb[0].mxu0
        %8271 = vmatprep.mubr.bf16.mxu0 0
        %8272 = vmatmul.mubr.bf16.gmra.mrb[0].mxu0 %v8059
        %v8273 = vpop.f32.mrb[0].mxu0
        %v8274 = vadd.f32 %v8085, %v8273
        %v8275 = vpop.f32.mrb[0].mxu0
        %v8276 = vpop.f32.mrb[0].mxu0
        %v8277 = vadd.f32 %v8085, %v8276
        %v8278 = vpop.f32.mrb[0].mxu0
        %8279 = vmatprep.mubr.bf16.mxu0 0
        %8280 = vmatmul.mubr.bf16.gmra.mrb[0].mxu0 %v8060
        %v8281 = vpop.f32.mrb[0].mxu0
        %v8282 = vadd.f32 %v8085, %v8281
        %v8283 = vpop.f32.mrb[0].mxu0
        %v8284 = vpop.f32.mrb[0].mxu0
        %v8285 = vadd.f32 %v8085, %v8284
        %v8286 = vpop.f32.mrb[0].mxu0
        %8287 = vmatprep.mubr.bf16.mxu0 0
        %8288 = vmatmul.mubr.bf16.gmra.mrb[0].mxu0 %v8061
        %v8289 = vpop.f32.mrb[0].mxu0
        %v8290 = vadd.f32 %v8085, %v8289
        %v8291 = vpop.f32.mrb[0].mxu0
        %v8292 = vpop.f32.mrb[0].mxu0
        %v8293 = vadd.f32 %v8085, %v8292
        %v8294 = vpop.f32.mrb[0].mxu0
        %8295 = vdwg.mxu0
        %v8296 = vld [vmem:[%s501] sm:$0xff]
        %v8297 = vld [vmem:[%s501 + $0x8] sm:$0xff]
        %v8298 = vld [vmem:[%s501 + $0x10] sm:$0xff]
        %v8299 = vld [vmem:[%s501 + $0x18] sm:$0xff]
        %v8300 = vld [vmem:[%s501 + $0x20] sm:$0xff]
        %v8301 = vld [vmem:[%s501 + $0x28] sm:$0xff]
        %v8302 = vld [vmem:[%s501 + $0x30] sm:$0xff]
        %v8303 = vld [vmem:[%s501 + $0x38] sm:$0xff]
        %v8304 = vld [vmem:[%s501 + $0x40] sm:$0xff]
        %v8305 = vld [vmem:[%s501 + $0x48] sm:$0xff]
        %v8306 = vld [vmem:[%s501 + $0x50] sm:$0xff]
        %v8307 = vld [vmem:[%s501 + $0x58] sm:$0xff]
        %v8308 = vld [vmem:[%s501 + $0x60] sm:$0xff]
        %v8309 = vld [vmem:[%s501 + $0x68] sm:$0xff]
        %v8310 = vld [vmem:[%s501 + $0x70] sm:$0xff]
        %v8311 = vld [vmem:[%s501 + $0x78] sm:$0xff]
        %v8312 = vld [vmem:[%s501 + $0x80] sm:$0xff]
        %v8313 = vld [vmem:[%s501 + $0x88] sm:$0xff]
        %v8314 = vld [vmem:[%s501 + $0x90] sm:$0xff]
        %v8315 = vld [vmem:[%s501 + $0x98] sm:$0xff]
        %v8316 = vld [vmem:[%s501 + $0xa0] sm:$0xff]
        %v8317 = vld [vmem:[%s501 + $0xa8] sm:$0xff]
        %v8318 = vld [vmem:[%s501 + $0xb0] sm:$0xff]
        %v8319 = vld [vmem:[%s501 + $0xb8] sm:$0xff]
        %v8320 = vld [vmem:[%s501 + $0xc0] sm:$0xff]
        %v8321 = vld [vmem:[%s501 + $0xc8] sm:$0xff]
        %v8322 = vld [vmem:[%s501 + $0xd0] sm:$0xff]
        %v8323 = vld [vmem:[%s501 + $0xd8] sm:$0xff]
        %v8324 = vld [vmem:[%s501 + $0xe0] sm:$0xff]
        %v8325 = vld [vmem:[%s501 + $0xe8] sm:$0xff]
        %v8326 = vld [vmem:[%s501 + $0xf0] sm:$0xff]
        %v8327 = vld [vmem:[%s501 + $0xf8] sm:$0xff]
        %v8328 = vadd.f32 %v8296, %v8170
        %v8329 = vadd.f32 %v8297, %v8173
        %v8330 = vadd.f32 %v8298, %v8178
        %v8331 = vadd.f32 %v8299, %v8181
        %v8332 = vadd.f32 %v8300, %v8186
        %v8333 = vadd.f32 %v8301, %v8189
        %v8334 = vadd.f32 %v8302, %v8194
        %v8335 = vadd.f32 %v8303, %v8197
        %v8336 = vadd.f32 %v8304, %v8202
        %v8337 = vadd.f32 %v8305, %v8205
        %v8338 = vadd.f32 %v8306, %v8210
        %v8339 = vadd.f32 %v8307, %v8213
        %v8340 = vadd.f32 %v8308, %v8218
        %v8341 = vadd.f32 %v8309, %v8221
        %v8342 = vadd.f32 %v8310, %v8226
        %v8343 = vadd.f32 %v8311, %v8229
        %v8344 = vadd.f32 %v8312, %v8234
        %v8345 = vadd.f32 %v8313, %v8237
        %v8346 = vadd.f32 %v8314, %v8242
        %v8347 = vadd.f32 %v8315, %v8245
        %v8348 = vadd.f32 %v8316, %v8250
        %v8349 = vadd.f32 %v8317, %v8253
        %v8350 = vadd.f32 %v8318, %v8258
        %v8351 = vadd.f32 %v8319, %v8261
        %v8352 = vadd.f32 %v8320, %v8266
        %v8353 = vadd.f32 %v8321, %v8269
        %v8354 = vadd.f32 %v8322, %v8274
        %v8355 = vadd.f32 %v8323, %v8277
        %v8356 = vadd.f32 %v8324, %v8282
        %v8357 = vadd.f32 %v8325, %v8285
        %v8358 = vadd.f32 %v8326, %v8290
        %v8359 = vadd.f32 %v8327, %v8293
        %8360 = vst [vmem:[%s501] sm:$0xff] %v8328
        %8361 = vst [vmem:[%s501 + $0x8] sm:$0xff] %v8329
        %8362 = vst [vmem:[%s501 + $0x10] sm:$0xff] %v8330
        %8363 = vst [vmem:[%s501 + $0x18] sm:$0xff] %v8331
        %8364 = vst [vmem:[%s501 + $0x20] sm:$0xff] %v8332
        %8365 = vst [vmem:[%s501 + $0x28] sm:$0xff] %v8333
        %8366 = vst [vmem:[%s501 + $0x30] sm:$0xff] %v8334
        %8367 = vst [vmem:[%s501 + $0x38] sm:$0xff] %v8335
        %8368 = vst [vmem:[%s501 + $0x40] sm:$0xff] %v8336
        %8369 = vst [vmem:[%s501 + $0x48] sm:$0xff] %v8337
        %8370 = vst [vmem:[%s501 + $0x50] sm:$0xff] %v8338
        %8371 = vst [vmem:[%s501 + $0x58] sm:$0xff] %v8339
        %8372 = vst [vmem:[%s501 + $0x60] sm:$0xff] %v8340
        %8373 = vst [vmem:[%s501 + $0x68] sm:$0xff] %v8341
        %8374 = vst [vmem:[%s501 + $0x70] sm:$0xff] %v8342
        %8375 = vst [vmem:[%s501 + $0x78] sm:$0xff] %v8343
        %8376 = vst [vmem:[%s501 + $0x80] sm:$0xff] %v8344
        %8377 = vst [vmem:[%s501 + $0x88] sm:$0xff] %v8345
        %8378 = vst [vmem:[%s501 + $0x90] sm:$0xff] %v8346
        %8379 = vst [vmem:[%s501 + $0x98] sm:$0xff] %v8347
        %8380 = vst [vmem:[%s501 + $0xa0] sm:$0xff] %v8348
        %8381 = vst [vmem:[%s501 + $0xa8] sm:$0xff] %v8349
        %8382 = vst [vmem:[%s501 + $0xb0] sm:$0xff] %v8350
        %8383 = vst [vmem:[%s501 + $0xb8] sm:$0xff] %v8351
        %8384 = vst [vmem:[%s501 + $0xc0] sm:$0xff] %v8352
        %8385 = vst [vmem:[%s501 + $0xc8] sm:$0xff] %v8353
        %8386 = vst [vmem:[%s501 + $0xd0] sm:$0xff] %v8354
        %8387 = vst [vmem:[%s501 + $0xd8] sm:$0xff] %v8355
        %8388 = vst [vmem:[%s501 + $0xe0] sm:$0xff] %v8356
        %8389 = vst [vmem:[%s501 + $0xe8] sm:$0xff] %v8357
        %8390 = vst [vmem:[%s501 + $0xf0] sm:$0xff] %v8358
        %8391 = vst [vmem:[%s501 + $0xf8] sm:$0xff] %v8359
        %v8392 = vld [vmem:[#allocation6] sm:$0xf]
        %v8393 = vld [vmem:[#allocation6 + $0x4] sm:$0xf]
        %v8394 = vld [vmem:[#allocation6 + $0x8] sm:$0xf]
        %v8395 = vld [vmem:[#allocation6 + $0xc] sm:$0xf]
        %s8396 = scalar_lea.vmem [#allocation9], 2
        %v8397 = vld [vmem:[%s8396] sm:$0x1]
        %v8399 = vlaneseq
        %v8400 = vshrl.u32 %v8399, 7
        %v8401 = vsub.s32 0, %v8400
        %v8402 = vrot.slane %v8397, %v8401
        %v8408 = vunpack.c.l.b16 %v8392
        %v8409 = vunpack.c.l.b16 %v8393
        %v8410 = vunpack.c.l.b16 %v8394
        %v8411 = vunpack.c.l.b16 %v8395
        %v8412 = vpack.c.b16 %v8409, %v8408
        %v8413 = vpack.c.b16 %v8411, %v8410
        %v8417 = vsel %vm1560, %v805, 0
        %v8420 = vsel %vm1560, %v806, 0
        %v8423 = vsel %vm1560, %v807, 0
        %v8426 = vsel %vm1560, %v808, 0
        %v8429 = vsel %vm1560, %v809, 0
        %v8432 = vsel %vm1560, %v810, 0
        %v8435 = vsel %vm1560, %v811, 0
        %v8438 = vsel %vm1560, %v812, 0
        %v8441 = vsel %vm1560, %v813, 0
        %v8444 = vsel %vm1560, %v814, 0
        %v8447 = vsel %vm1560, %v815, 0
        %v8450 = vsel %vm1560, %v816, 0
        %v8453 = vsel %vm1560, %v817, 0
        %v8456 = vsel %vm1560, %v818, 0
        %v8459 = vsel %vm1560, %v819, 0
        %v8462 = vsel %vm1560, %v820, 0
        %8464 = vmatprep.subr.bf16.mxu0 0
        %8465 = vmatpush1.bf16.msra.mxu0 %v8412
        %8466 = vmatprep.subr.bf16.mxu0 0
        %8467 = vmatpush1.bf16.msra.mxu0 %v8413
        %8468 = vmatprep.subr.bf16.mxu0 0
        %8469 = vmatpush1.bf16.msra.mxu0 0
        %8470 = vmatprep.subr.bf16.mxu0 0
        %8471 = vmatpush1.bf16.msra.mxu0 0
        %8472 = vmatprep.subr.bf16.mxu0 0
        %8473 = vmatpush1.bf16.msra.mxu0 0
        %8474 = vmatprep.subr.bf16.mxu0 0
        %8475 = vmatpush1.bf16.msra.mxu0 0
        %8476 = vmatprep.subr.bf16.mxu0 0
        %8477 = vmatpush1.bf16.msra.mxu0 0
        %8478 = vmatprep.subr.bf16.mxu0 0
        %8479 = vmatpush1.bf16.msra.mxu0 0
        %8480 = vmatprep.subr.bf16.mxu0 0
        %8481 = vmatpush1.bf16.msra.mxu0 0
        %8482 = vmatprep.subr.bf16.mxu0 0
        %8483 = vmatpush1.bf16.msra.mxu0 0
        %8484 = vmatprep.subr.bf16.mxu0 0
        %8485 = vmatpush1.bf16.msra.mxu0 0
        %8486 = vmatprep.subr.bf16.mxu0 0
        %8487 = vmatpush1.bf16.msra.mxu0 0
        %8488 = vmatprep.subr.bf16.mxu0 0
        %8489 = vmatpush1.bf16.msra.mxu0 0
        %8490 = vmatprep.subr.bf16.mxu0 0
        %8491 = vmatpush1.bf16.msra.mxu0 0
        %8492 = vmatprep.subr.bf16.mxu0 0
        %8493 = vmatpush1.bf16.msra.mxu0 0
        %8494 = vmatprep.subr.bf16.mxu0 0
        %8495 = vmatpush1.bf16.msra.mxu0 0
        %8496 = vmatprep.mubr.bf16.mxu0 0
        %8497 = vmatmul.mubr.bf16.gmra.mrb[0].mxu0 %v8417
        %v8498 = vpop.f32.mrb[0].mxu0
        %v8499 = vadd.f32 %v8402, %v8498
        %v8500 = vpop.f32.mrb[0].mxu0
        %v8501 = vpop.f32.mrb[0].mxu0
        %v8502 = vadd.f32 %v8402, %v8501
        %v8503 = vpop.f32.mrb[0].mxu0
        %8504 = vmatprep.mubr.bf16.mxu0 0
        %8505 = vmatmul.mubr.bf16.gmra.mrb[0].mxu0 %v8420
        %v8506 = vpop.f32.mrb[0].mxu0
        %v8507 = vadd.f32 %v8402, %v8506
        %v8508 = vpop.f32.mrb[0].mxu0
        %v8509 = vpop.f32.mrb[0].mxu0
        %v8510 = vadd.f32 %v8402, %v8509
        %v8511 = vpop.f32.mrb[0].mxu0
        %8512 = vmatprep.mubr.bf16.mxu0 0
        %8513 = vmatmul.mubr.bf16.gmra.mrb[0].mxu0 %v8423
        %v8514 = vpop.f32.mrb[0].mxu0
        %v8515 = vadd.f32 %v8402, %v8514
        %v8516 = vpop.f32.mrb[0].mxu0
        %v8517 = vpop.f32.mrb[0].mxu0
        %v8518 = vadd.f32 %v8402, %v8517
        %v8519 = vpop.f32.mrb[0].mxu0
        %8520 = vmatprep.mubr.bf16.mxu0 0
        %8521 = vmatmul.mubr.bf16.gmra.mrb[0].mxu0 %v8426
        %v8522 = vpop.f32.mrb[0].mxu0
        %v8523 = vadd.f32 %v8402, %v8522
        %v8524 = vpop.f32.mrb[0].mxu0
        %v8525 = vpop.f32.mrb[0].mxu0
        %v8526 = vadd.f32 %v8402, %v8525
        %v8527 = vpop.f32.mrb[0].mxu0
        %8528 = vmatprep.mubr.bf16.mxu0 0
        %8529 = vmatmul.mubr.bf16.gmra.mrb[0].mxu0 %v8429
        %v8530 = vpop.f32.mrb[0].mxu0
        %v8531 = vadd.f32 %v8402, %v8530
        %v8532 = vpop.f32.mrb[0].mxu0
        %v8533 = vpop.f32.mrb[0].mxu0
        %v8534 = vadd.f32 %v8402, %v8533
        %v8535 = vpop.f32.mrb[0].mxu0
        %8536 = vmatprep.mubr.bf16.mxu0 0
        %8537 = vmatmul.mubr.bf16.gmra.mrb[0].mxu0 %v8432
        %v8538 = vpop.f32.mrb[0].mxu0
        %v8539 = vadd.f32 %v8402, %v8538
        %v8540 = vpop.f32.mrb[0].mxu0
        %v8541 = vpop.f32.mrb[0].mxu0
        %v8542 = vadd.f32 %v8402, %v8541
        %v8543 = vpop.f32.mrb[0].mxu0
        %8544 = vmatprep.mubr.bf16.mxu0 0
        %8545 = vmatmul.mubr.bf16.gmra.mrb[0].mxu0 %v8435
        %v8546 = vpop.f32.mrb[0].mxu0
        %v8547 = vadd.f32 %v8402, %v8546
        %v8548 = vpop.f32.mrb[0].mxu0
        %v8549 = vpop.f32.mrb[0].mxu0
        %v8550 = vadd.f32 %v8402, %v8549
        %v8551 = vpop.f32.mrb[0].mxu0
        %8552 = vmatprep.mubr.bf16.mxu0 0
        %8553 = vmatmul.mubr.bf16.gmra.mrb[0].mxu0 %v8438
        %v8554 = vpop.f32.mrb[0].mxu0
        %v8555 = vadd.f32 %v8402, %v8554
        %v8556 = vpop.f32.mrb[0].mxu0
        %v8557 = vpop.f32.mrb[0].mxu0
        %v8558 = vadd.f32 %v8402, %v8557
        %v8559 = vpop.f32.mrb[0].mxu0
        %8560 = vmatprep.mubr.bf16.mxu0 0
        %8561 = vmatmul.mubr.bf16.gmra.mrb[0].mxu0 %v8441
        %v8562 = vpop.f32.mrb[0].mxu0
        %v8563 = vadd.f32 %v8402, %v8562
        %v8564 = vpop.f32.mrb[0].mxu0
        %v8565 = vpop.f32.mrb[0].mxu0
        %v8566 = vadd.f32 %v8402, %v8565
        %v8567 = vpop.f32.mrb[0].mxu0
        %8568 = vmatprep.mubr.bf16.mxu0 0
        %8569 = vmatmul.mubr.bf16.gmra.mrb[0].mxu0 %v8444
        %v8570 = vpop.f32.mrb[0].mxu0
        %v8571 = vadd.f32 %v8402, %v8570
        %v8572 = vpop.f32.mrb[0].mxu0
        %v8573 = vpop.f32.mrb[0].mxu0
        %v8574 = vadd.f32 %v8402, %v8573
        %v8575 = vpop.f32.mrb[0].mxu0
        %8576 = vmatprep.mubr.bf16.mxu0 0
        %8577 = vmatmul.mubr.bf16.gmra.mrb[0].mxu0 %v8447
        %v8578 = vpop.f32.mrb[0].mxu0
        %v8579 = vadd.f32 %v8402, %v8578
        %v8580 = vpop.f32.mrb[0].mxu0
        %v8581 = vpop.f32.mrb[0].mxu0
        %v8582 = vadd.f32 %v8402, %v8581
        %v8583 = vpop.f32.mrb[0].mxu0
        %8584 = vmatprep.mubr.bf16.mxu0 0
        %8585 = vmatmul.mubr.bf16.gmra.mrb[0].mxu0 %v8450
        %v8586 = vpop.f32.mrb[0].mxu0
        %v8587 = vadd.f32 %v8402, %v8586
        %v8588 = vpop.f32.mrb[0].mxu0
        %v8589 = vpop.f32.mrb[0].mxu0
        %v8590 = vadd.f32 %v8402, %v8589
        %v8591 = vpop.f32.mrb[0].mxu0
        %8592 = vmatprep.mubr.bf16.mxu0 0
        %8593 = vmatmul.mubr.bf16.gmra.mrb[0].mxu0 %v8453
        %v8594 = vpop.f32.mrb[0].mxu0
        %v8595 = vadd.f32 %v8402, %v8594
        %v8596 = vpop.f32.mrb[0].mxu0
        %v8597 = vpop.f32.mrb[0].mxu0
        %v8598 = vadd.f32 %v8402, %v8597
        %v8599 = vpop.f32.mrb[0].mxu0
        %8600 = vmatprep.mubr.bf16.mxu0 0
        %8601 = vmatmul.mubr.bf16.gmra.mrb[0].mxu0 %v8456
        %v8602 = vpop.f32.mrb[0].mxu0
        %v8603 = vadd.f32 %v8402, %v8602
        %v8604 = vpop.f32.mrb[0].mxu0
        %v8605 = vpop.f32.mrb[0].mxu0
        %v8606 = vadd.f32 %v8402, %v8605
        %v8607 = vpop.f32.mrb[0].mxu0
        %8608 = vmatprep.mubr.bf16.mxu0 0
        %8609 = vmatmul.mubr.bf16.gmra.mrb[0].mxu0 %v8459
        %v8610 = vpop.f32.mrb[0].mxu0
        %v8611 = vadd.f32 %v8402, %v8610
        %v8612 = vpop.f32.mrb[0].mxu0
        %v8613 = vpop.f32.mrb[0].mxu0
        %v8614 = vadd.f32 %v8402, %v8613
        %v8615 = vpop.f32.mrb[0].mxu0
        %8616 = vmatprep.mubr.bf16.mxu0 0
        %8617 = vmatmul.mubr.bf16.gmra.mrb[0].mxu0 %v8462
        %v8618 = vpop.f32.mrb[0].mxu0
        %v8619 = vadd.f32 %v8402, %v8618
        %v8620 = vpop.f32.mrb[0].mxu0
        %v8621 = vpop.f32.mrb[0].mxu0
        %v8622 = vadd.f32 %v8402, %v8621
        %v8623 = vpop.f32.mrb[0].mxu0
        %8624 = vdwg.mxu0
        %v8625 = vmax.f32 %v8499, 0.0
        %v8626 = vmax.f32 %v8502, 0.0
        %v8627 = vmax.f32 %v8507, 0.0
        %v8628 = vmax.f32 %v8510, 0.0
        %v8629 = vmax.f32 %v8515, 0.0
        %v8630 = vmax.f32 %v8518, 0.0
        %v8631 = vmax.f32 %v8523, 0.0
        %v8632 = vmax.f32 %v8526, 0.0
        %v8633 = vmax.f32 %v8531, 0.0
        %v8634 = vmax.f32 %v8534, 0.0
        %v8635 = vmax.f32 %v8539, 0.0
        %v8636 = vmax.f32 %v8542, 0.0
        %v8637 = vmax.f32 %v8547, 0.0
        %v8638 = vmax.f32 %v8550, 0.0
        %v8639 = vmax.f32 %v8555, 0.0
        %v8640 = vmax.f32 %v8558, 0.0
        %v8641 = vmax.f32 %v8563, 0.0
        %v8642 = vmax.f32 %v8566, 0.0
        %v8643 = vmax.f32 %v8571, 0.0
        %v8644 = vmax.f32 %v8574, 0.0
        %v8645 = vmax.f32 %v8579, 0.0
        %v8646 = vmax.f32 %v8582, 0.0
        %v8647 = vmax.f32 %v8587, 0.0
        %v8648 = vmax.f32 %v8590, 0.0
        %v8649 = vmax.f32 %v8595, 0.0
        %v8650 = vmax.f32 %v8598, 0.0
        %v8651 = vmax.f32 %v8603, 0.0
        %v8652 = vmax.f32 %v8606, 0.0
        %v8653 = vmax.f32 %v8611, 0.0
        %v8654 = vmax.f32 %v8614, 0.0
        %v8655 = vmax.f32 %v8619, 0.0
        %v8656 = vmax.f32 %v8622, 0.0
        %v8657 = vpack.c.bf16 %v8626, %v8625
        %v8658 = vpack.c.bf16 %v8628, %v8627
        %v8659 = vpack.c.bf16 %v8630, %v8629
        %v8660 = vpack.c.bf16 %v8632, %v8631
        %v8661 = vpack.c.bf16 %v8634, %v8633
        %v8662 = vpack.c.bf16 %v8636, %v8635
        %v8663 = vpack.c.bf16 %v8638, %v8637
        %v8664 = vpack.c.bf16 %v8640, %v8639
        %v8665 = vpack.c.bf16 %v8642, %v8641
        %v8666 = vpack.c.bf16 %v8644, %v8643
        %v8667 = vpack.c.bf16 %v8646, %v8645
        %v8668 = vpack.c.bf16 %v8648, %v8647
        %v8669 = vpack.c.bf16 %v8650, %v8649
        %v8670 = vpack.c.bf16 %v8652, %v8651
        %v8671 = vpack.c.bf16 %v8654, %v8653
        %v8672 = vpack.c.bf16 %v8656, %v8655
        %s8673 = scalar_lea.vmem %s8, 128
        %v8674 = vld [vmem:[%s8673] sm:$0xf]
        %v8675 = vld [vmem:[%s8673 + $0x4] sm:$0xf]
        %v8676 = vld [vmem:[%s8673 + $0x8] sm:$0xf]
        %v8677 = vld [vmem:[%s8673 + $0xc] sm:$0xf]
        %v8678 = vld [vmem:[%s8673 + $0x10] sm:$0xf]
        %v8679 = vld [vmem:[%s8673 + $0x14] sm:$0xf]
        %v8680 = vld [vmem:[%s8673 + $0x18] sm:$0xf]
        %v8681 = vld [vmem:[%s8673 + $0x1c] sm:$0xf]
        %v8682 = vld [vmem:[%s8673 + $0x20] sm:$0xf]
        %v8683 = vld [vmem:[%s8673 + $0x24] sm:$0xf]
        %v8684 = vld [vmem:[%s8673 + $0x28] sm:$0xf]
        %v8685 = vld [vmem:[%s8673 + $0x2c] sm:$0xf]
        %v8686 = vld [vmem:[%s8673 + $0x30] sm:$0xf]
        %v8687 = vld [vmem:[%s8673 + $0x34] sm:$0xf]
        %v8688 = vld [vmem:[%s8673 + $0x38] sm:$0xf]
        %v8689 = vld [vmem:[%s8673 + $0x3c] sm:$0xf]
        %s8690 = scalar_lea.vmem [#allocation11], 2
        %v8691 = vld [vmem:[%s8690] sm:$0x1]
        %v8693 = vlaneseq
        %v8694 = vshrl.u32 %v8693, 7
        %v8695 = vsub.s32 0, %v8694
        %v8696 = vrot.slane %v8691, %v8695
        %v8714 = vunpack.c.l.b16 %v8674
        %v8715 = vunpack.c.l.b16 %v8675
        %v8716 = vunpack.c.l.b16 %v8676
        %v8717 = vunpack.c.l.b16 %v8677
        %v8718 = vunpack.c.l.b16 %v8678
        %v8719 = vunpack.c.l.b16 %v8679
        %v8720 = vunpack.c.l.b16 %v8680
        %v8721 = vunpack.c.l.b16 %v8681
        %v8722 = vunpack.c.l.b16 %v8682
        %v8723 = vunpack.c.l.b16 %v8683
        %v8724 = vunpack.c.l.b16 %v8684
        %v8725 = vunpack.c.l.b16 %v8685
        %v8726 = vunpack.c.l.b16 %v8686
        %v8727 = vunpack.c.l.b16 %v8687
        %v8728 = vunpack.c.l.b16 %v8688
        %v8729 = vunpack.c.l.b16 %v8689
        %v8730 = vpack.c.b16 %v8715, %v8714
        %v8731 = vpack.c.b16 %v8717, %v8716
        %v8732 = vpack.c.b16 %v8719, %v8718
        %v8733 = vpack.c.b16 %v8721, %v8720
        %v8734 = vpack.c.b16 %v8723, %v8722
        %v8735 = vpack.c.b16 %v8725, %v8724
        %v8736 = vpack.c.b16 %v8727, %v8726
        %v8737 = vpack.c.b16 %v8729, %v8728
        %8746 = vmatprep.subr.bf16.mxu0 0
        %8747 = vmatpush1.bf16.msra.mxu0 %v8730
        %8748 = vmatprep.subr.bf16.mxu0 0
        %8749 = vmatpush1.bf16.msra.mxu0 %v8731
        %8750 = vmatprep.subr.bf16.mxu0 0
        %8751 = vmatpush1.bf16.msra.mxu0 %v8732
        %8752 = vmatprep.subr.bf16.mxu0 0
        %8753 = vmatpush1.bf16.msra.mxu0 %v8733
        %8754 = vmatprep.subr.bf16.mxu0 0
        %8755 = vmatpush1.bf16.msra.mxu0 %v8734
        %8756 = vmatprep.subr.bf16.mxu0 0
        %8757 = vmatpush1.bf16.msra.mxu0 %v8735
        %8758 = vmatprep.subr.bf16.mxu0 0
        %8759 = vmatpush1.bf16.msra.mxu0 %v8736
        %8760 = vmatprep.subr.bf16.mxu0 0
        %8761 = vmatpush1.bf16.msra.mxu0 %v8737
        %8762 = vmatprep.subr.bf16.mxu0 0
        %8763 = vmatpush1.bf16.msra.mxu0 0
        %8764 = vmatprep.subr.bf16.mxu0 0
        %8765 = vmatpush1.bf16.msra.mxu0 0
        %8766 = vmatprep.subr.bf16.mxu0 0
        %8767 = vmatpush1.bf16.msra.mxu0 0
        %8768 = vmatprep.subr.bf16.mxu0 0
        %8769 = vmatpush1.bf16.msra.mxu0 0
        %8770 = vmatprep.subr.bf16.mxu0 0
        %8771 = vmatpush1.bf16.msra.mxu0 0
        %8772 = vmatprep.subr.bf16.mxu0 0
        %8773 = vmatpush1.bf16.msra.mxu0 0
        %8774 = vmatprep.subr.bf16.mxu0 0
        %8775 = vmatpush1.bf16.msra.mxu0 0
        %8776 = vmatprep.subr.bf16.mxu0 0
        %8777 = vmatpush1.bf16.msra.mxu0 0
        %8778 = vmatprep.mubr.bf16.mxu0 0
        %8779 = vmatmul.mubr.bf16.gmra.mrb[0].mxu0 %v8657
        %v8780 = vpop.f32.mrb[0].mxu0
        %v8781 = vadd.f32 %v8696, %v8780
        %v8782 = vpop.f32.mrb[0].mxu0
        %v8783 = vpop.f32.mrb[0].mxu0
        %v8784 = vadd.f32 %v8696, %v8783
        %v8785 = vpop.f32.mrb[0].mxu0
        %8786 = vmatprep.mubr.bf16.mxu0 0
        %8787 = vmatmul.mubr.bf16.gmra.mrb[0].mxu0 %v8658
        %v8788 = vpop.f32.mrb[0].mxu0
        %v8789 = vadd.f32 %v8696, %v8788
        %v8790 = vpop.f32.mrb[0].mxu0
        %v8791 = vpop.f32.mrb[0].mxu0
        %v8792 = vadd.f32 %v8696, %v8791
        %v8793 = vpop.f32.mrb[0].mxu0
        %8794 = vmatprep.mubr.bf16.mxu0 0
        %8795 = vmatmul.mubr.bf16.gmra.mrb[0].mxu0 %v8659
        %v8796 = vpop.f32.mrb[0].mxu0
        %v8797 = vadd.f32 %v8696, %v8796
        %v8798 = vpop.f32.mrb[0].mxu0
        %v8799 = vpop.f32.mrb[0].mxu0
        %v8800 = vadd.f32 %v8696, %v8799
        %v8801 = vpop.f32.mrb[0].mxu0
        %8802 = vmatprep.mubr.bf16.mxu0 0
        %8803 = vmatmul.mubr.bf16.gmra.mrb[0].mxu0 %v8660
        %v8804 = vpop.f32.mrb[0].mxu0
        %v8805 = vadd.f32 %v8696, %v8804
        %v8806 = vpop.f32.mrb[0].mxu0
        %v8807 = vpop.f32.mrb[0].mxu0
        %v8808 = vadd.f32 %v8696, %v8807
        %v8809 = vpop.f32.mrb[0].mxu0
        %8810 = vmatprep.mubr.bf16.mxu0 0
        %8811 = vmatmul.mubr.bf16.gmra.mrb[0].mxu0 %v8661
        %v8812 = vpop.f32.mrb[0].mxu0
        %v8813 = vadd.f32 %v8696, %v8812
        %v8814 = vpop.f32.mrb[0].mxu0
        %v8815 = vpop.f32.mrb[0].mxu0
        %v8816 = vadd.f32 %v8696, %v8815
        %v8817 = vpop.f32.mrb[0].mxu0
        %8818 = vmatprep.mubr.bf16.mxu0 0
        %8819 = vmatmul.mubr.bf16.gmra.mrb[0].mxu0 %v8662
        %v8820 = vpop.f32.mrb[0].mxu0
        %v8821 = vadd.f32 %v8696, %v8820
        %v8822 = vpop.f32.mrb[0].mxu0
        %v8823 = vpop.f32.mrb[0].mxu0
        %v8824 = vadd.f32 %v8696, %v8823
        %v8825 = vpop.f32.mrb[0].mxu0
        %8826 = vmatprep.mubr.bf16.mxu0 0
        %8827 = vmatmul.mubr.bf16.gmra.mrb[0].mxu0 %v8663
        %v8828 = vpop.f32.mrb[0].mxu0
        %v8829 = vadd.f32 %v8696, %v8828
        %v8830 = vpop.f32.mrb[0].mxu0
        %v8831 = vpop.f32.mrb[0].mxu0
        %v8832 = vadd.f32 %v8696, %v8831
        %v8833 = vpop.f32.mrb[0].mxu0
        %8834 = vmatprep.mubr.bf16.mxu0 0
        %8835 = vmatmul.mubr.bf16.gmra.mrb[0].mxu0 %v8664
        %v8836 = vpop.f32.mrb[0].mxu0
        %v8837 = vadd.f32 %v8696, %v8836
        %v8838 = vpop.f32.mrb[0].mxu0
        %v8839 = vpop.f32.mrb[0].mxu0
        %v8840 = vadd.f32 %v8696, %v8839
        %v8841 = vpop.f32.mrb[0].mxu0
        %8842 = vmatprep.mubr.bf16.mxu0 0
        %8843 = vmatmul.mubr.bf16.gmra.mrb[0].mxu0 %v8665
        %v8844 = vpop.f32.mrb[0].mxu0
        %v8845 = vadd.f32 %v8696, %v8844
        %v8846 = vpop.f32.mrb[0].mxu0
        %v8847 = vpop.f32.mrb[0].mxu0
        %v8848 = vadd.f32 %v8696, %v8847
        %v8849 = vpop.f32.mrb[0].mxu0
        %8850 = vmatprep.mubr.bf16.mxu0 0
        %8851 = vmatmul.mubr.bf16.gmra.mrb[0].mxu0 %v8666
        %v8852 = vpop.f32.mrb[0].mxu0
        %v8853 = vadd.f32 %v8696, %v8852
        %v8854 = vpop.f32.mrb[0].mxu0
        %v8855 = vpop.f32.mrb[0].mxu0
        %v8856 = vadd.f32 %v8696, %v8855
        %v8857 = vpop.f32.mrb[0].mxu0
        %8858 = vmatprep.mubr.bf16.mxu0 0
        %8859 = vmatmul.mubr.bf16.gmra.mrb[0].mxu0 %v8667
        %v8860 = vpop.f32.mrb[0].mxu0
        %v8861 = vadd.f32 %v8696, %v8860
        %v8862 = vpop.f32.mrb[0].mxu0
        %v8863 = vpop.f32.mrb[0].mxu0
        %v8864 = vadd.f32 %v8696, %v8863
        %v8865 = vpop.f32.mrb[0].mxu0
        %8866 = vmatprep.mubr.bf16.mxu0 0
        %8867 = vmatmul.mubr.bf16.gmra.mrb[0].mxu0 %v8668
        %v8868 = vpop.f32.mrb[0].mxu0
        %v8869 = vadd.f32 %v8696, %v8868
        %v8870 = vpop.f32.mrb[0].mxu0
        %v8871 = vpop.f32.mrb[0].mxu0
        %v8872 = vadd.f32 %v8696, %v8871
        %v8873 = vpop.f32.mrb[0].mxu0
        %8874 = vmatprep.mubr.bf16.mxu0 0
        %8875 = vmatmul.mubr.bf16.gmra.mrb[0].mxu0 %v8669
        %v8876 = vpop.f32.mrb[0].mxu0
        %v8877 = vadd.f32 %v8696, %v8876
        %v8878 = vpop.f32.mrb[0].mxu0
        %v8879 = vpop.f32.mrb[0].mxu0
        %v8880 = vadd.f32 %v8696, %v8879
        %v8881 = vpop.f32.mrb[0].mxu0
        %8882 = vmatprep.mubr.bf16.mxu0 0
        %8883 = vmatmul.mubr.bf16.gmra.mrb[0].mxu0 %v8670
        %v8884 = vpop.f32.mrb[0].mxu0
        %v8885 = vadd.f32 %v8696, %v8884
        %v8886 = vpop.f32.mrb[0].mxu0
        %v8887 = vpop.f32.mrb[0].mxu0
        %v8888 = vadd.f32 %v8696, %v8887
        %v8889 = vpop.f32.mrb[0].mxu0
        %8890 = vmatprep.mubr.bf16.mxu0 0
        %8891 = vmatmul.mubr.bf16.gmra.mrb[0].mxu0 %v8671
        %v8892 = vpop.f32.mrb[0].mxu0
        %v8893 = vadd.f32 %v8696, %v8892
        %v8894 = vpop.f32.mrb[0].mxu0
        %v8895 = vpop.f32.mrb[0].mxu0
        %v8896 = vadd.f32 %v8696, %v8895
        %v8897 = vpop.f32.mrb[0].mxu0
        %8898 = vmatprep.mubr.bf16.mxu0 0
        %8899 = vmatmul.mubr.bf16.gmra.mrb[0].mxu0 %v8672
        %v8900 = vpop.f32.mrb[0].mxu0
        %v8901 = vadd.f32 %v8696, %v8900
        %v8902 = vpop.f32.mrb[0].mxu0
        %v8903 = vpop.f32.mrb[0].mxu0
        %v8904 = vadd.f32 %v8696, %v8903
        %v8905 = vpop.f32.mrb[0].mxu0
        %8906 = vdwg.mxu0
        %v8907 = vmax.f32 %v8781, 0.0
        %v8908 = vmax.f32 %v8784, 0.0
        %v8909 = vmax.f32 %v8789, 0.0
        %v8910 = vmax.f32 %v8792, 0.0
        %v8911 = vmax.f32 %v8797, 0.0
        %v8912 = vmax.f32 %v8800, 0.0
        %v8913 = vmax.f32 %v8805, 0.0
        %v8914 = vmax.f32 %v8808, 0.0
        %v8915 = vmax.f32 %v8813, 0.0
        %v8916 = vmax.f32 %v8816, 0.0
        %v8917 = vmax.f32 %v8821, 0.0
        %v8918 = vmax.f32 %v8824, 0.0
        %v8919 = vmax.f32 %v8829, 0.0
        %v8920 = vmax.f32 %v8832, 0.0
        %v8921 = vmax.f32 %v8837, 0.0
        %v8922 = vmax.f32 %v8840, 0.0
        %v8923 = vmax.f32 %v8845, 0.0
        %v8924 = vmax.f32 %v8848, 0.0
        %v8925 = vmax.f32 %v8853, 0.0
        %v8926 = vmax.f32 %v8856, 0.0
        %v8927 = vmax.f32 %v8861, 0.0
        %v8928 = vmax.f32 %v8864, 0.0
        %v8929 = vmax.f32 %v8869, 0.0
        %v8930 = vmax.f32 %v8872, 0.0
        %v8931 = vmax.f32 %v8877, 0.0
        %v8932 = vmax.f32 %v8880, 0.0
        %v8933 = vmax.f32 %v8885, 0.0
        %v8934 = vmax.f32 %v8888, 0.0
        %v8935 = vmax.f32 %v8893, 0.0
        %v8936 = vmax.f32 %v8896, 0.0
        %v8937 = vmax.f32 %v8901, 0.0
        %v8938 = vmax.f32 %v8904, 0.0
        %v8939 = vpack.c.bf16 %v8908, %v8907
        %v8940 = vpack.c.bf16 %v8910, %v8909
        %v8941 = vpack.c.bf16 %v8912, %v8911
        %v8942 = vpack.c.bf16 %v8914, %v8913
        %v8943 = vpack.c.bf16 %v8916, %v8915
        %v8944 = vpack.c.bf16 %v8918, %v8917
        %v8945 = vpack.c.bf16 %v8920, %v8919
        %v8946 = vpack.c.bf16 %v8922, %v8921
        %v8947 = vpack.c.bf16 %v8924, %v8923
        %v8948 = vpack.c.bf16 %v8926, %v8925
        %v8949 = vpack.c.bf16 %v8928, %v8927
        %v8950 = vpack.c.bf16 %v8930, %v8929
        %v8951 = vpack.c.bf16 %v8932, %v8931
        %v8952 = vpack.c.bf16 %v8934, %v8933
        %v8953 = vpack.c.bf16 %v8936, %v8935
        %v8954 = vpack.c.bf16 %v8938, %v8937
        %s8955 = scalar_lea.vmem %s10, 128
        %v8956 = vld [vmem:[%s8955] sm:$0xf]
        %v8957 = vld [vmem:[%s8955 + $0x4] sm:$0xf]
        %v8958 = vld [vmem:[%s8955 + $0x8] sm:$0xf]
        %v8959 = vld [vmem:[%s8955 + $0xc] sm:$0xf]
        %v8960 = vld [vmem:[%s8955 + $0x10] sm:$0xf]
        %v8961 = vld [vmem:[%s8955 + $0x14] sm:$0xf]
        %v8962 = vld [vmem:[%s8955 + $0x18] sm:$0xf]
        %v8963 = vld [vmem:[%s8955 + $0x1c] sm:$0xf]
        %v8964 = vld [vmem:[%s8955 + $0x20] sm:$0xf]
        %v8965 = vld [vmem:[%s8955 + $0x24] sm:$0xf]
        %v8966 = vld [vmem:[%s8955 + $0x28] sm:$0xf]
        %v8967 = vld [vmem:[%s8955 + $0x2c] sm:$0xf]
        %v8968 = vld [vmem:[%s8955 + $0x30] sm:$0xf]
        %v8969 = vld [vmem:[%s8955 + $0x34] sm:$0xf]
        %v8970 = vld [vmem:[%s8955 + $0x38] sm:$0xf]
        %v8971 = vld [vmem:[%s8955 + $0x3c] sm:$0xf]
        %s8972 = scalar_lea.vmem [#allocation12], 2
        %v8973 = vld [vmem:[%s8972] sm:$0x1]
        %v8975 = vlaneseq
        %v8976 = vshrl.u32 %v8975, 7
        %v8977 = vsub.s32 0, %v8976
        %v8978 = vrot.slane %v8973, %v8977
        %v8996 = vunpack.c.l.b16 %v8956
        %v8997 = vunpack.c.l.b16 %v8957
        %v8998 = vunpack.c.l.b16 %v8958
        %v8999 = vunpack.c.l.b16 %v8959
        %v9000 = vunpack.c.l.b16 %v8960
        %v9001 = vunpack.c.l.b16 %v8961
        %v9002 = vunpack.c.l.b16 %v8962
        %v9003 = vunpack.c.l.b16 %v8963
        %v9004 = vunpack.c.l.b16 %v8964
        %v9005 = vunpack.c.l.b16 %v8965
        %v9006 = vunpack.c.l.b16 %v8966
        %v9007 = vunpack.c.l.b16 %v8967
        %v9008 = vunpack.c.l.b16 %v8968
        %v9009 = vunpack.c.l.b16 %v8969
        %v9010 = vunpack.c.l.b16 %v8970
        %v9011 = vunpack.c.l.b16 %v8971
        %v9012 = vpack.c.b16 %v8997, %v8996
        %v9013 = vpack.c.b16 %v8999, %v8998
        %v9014 = vpack.c.b16 %v9001, %v9000
        %v9015 = vpack.c.b16 %v9003, %v9002
        %v9016 = vpack.c.b16 %v9005, %v9004
        %v9017 = vpack.c.b16 %v9007, %v9006
        %v9018 = vpack.c.b16 %v9009, %v9008
        %v9019 = vpack.c.b16 %v9011, %v9010
        %9028 = vmatprep.subr.bf16.mxu0 0
        %9029 = vmatpush1.bf16.msra.mxu0 %v9012
        %9030 = vmatprep.subr.bf16.mxu0 0
        %9031 = vmatpush1.bf16.msra.mxu0 %v9013
        %9032 = vmatprep.subr.bf16.mxu0 0
        %9033 = vmatpush1.bf16.msra.mxu0 %v9014
        %9034 = vmatprep.subr.bf16.mxu0 0
        %9035 = vmatpush1.bf16.msra.mxu0 %v9015
        %9036 = vmatprep.subr.bf16.mxu0 0
        %9037 = vmatpush1.bf16.msra.mxu0 %v9016
        %9038 = vmatprep.subr.bf16.mxu0 0
        %9039 = vmatpush1.bf16.msra.mxu0 %v9017
        %9040 = vmatprep.subr.bf16.mxu0 0
        %9041 = vmatpush1.bf16.msra.mxu0 %v9018
        %9042 = vmatprep.subr.bf16.mxu0 0
        %9043 = vmatpush1.bf16.msra.mxu0 %v9019
        %9044 = vmatprep.subr.bf16.mxu0 0
        %9045 = vmatpush1.bf16.msra.mxu0 0
        %9046 = vmatprep.subr.bf16.mxu0 0
        %9047 = vmatpush1.bf16.msra.mxu0 0
        %9048 = vmatprep.subr.bf16.mxu0 0
        %9049 = vmatpush1.bf16.msra.mxu0 0
        %9050 = vmatprep.subr.bf16.mxu0 0
        %9051 = vmatpush1.bf16.msra.mxu0 0
        %9052 = vmatprep.subr.bf16.mxu0 0
        %9053 = vmatpush1.bf16.msra.mxu0 0
        %9054 = vmatprep.subr.bf16.mxu0 0
        %9055 = vmatpush1.bf16.msra.mxu0 0
        %9056 = vmatprep.subr.bf16.mxu0 0
        %9057 = vmatpush1.bf16.msra.mxu0 0
        %9058 = vmatprep.subr.bf16.mxu0 0
        %9059 = vmatpush1.bf16.msra.mxu0 0
        %9060 = vmatprep.mubr.bf16.mxu0 0
        %9061 = vmatmul.mubr.bf16.gmra.mrb[0].mxu0 %v8939
        %v9062 = vpop.f32.mrb[0].mxu0
        %v9063 = vadd.f32 %v8978, %v9062
        %v9064 = vpop.f32.mrb[0].mxu0
        %v9065 = vpop.f32.mrb[0].mxu0
        %v9066 = vadd.f32 %v8978, %v9065
        %v9067 = vpop.f32.mrb[0].mxu0
        %9068 = vmatprep.mubr.bf16.mxu0 0
        %9069 = vmatmul.mubr.bf16.gmra.mrb[0].mxu0 %v8940
        %v9070 = vpop.f32.mrb[0].mxu0
        %v9071 = vadd.f32 %v8978, %v9070
        %v9072 = vpop.f32.mrb[0].mxu0
        %v9073 = vpop.f32.mrb[0].mxu0
        %v9074 = vadd.f32 %v8978, %v9073
        %v9075 = vpop.f32.mrb[0].mxu0
        %9076 = vmatprep.mubr.bf16.mxu0 0
        %9077 = vmatmul.mubr.bf16.gmra.mrb[0].mxu0 %v8941
        %v9078 = vpop.f32.mrb[0].mxu0
        %v9079 = vadd.f32 %v8978, %v9078
        %v9080 = vpop.f32.mrb[0].mxu0
        %v9081 = vpop.f32.mrb[0].mxu0
        %v9082 = vadd.f32 %v8978, %v9081
        %v9083 = vpop.f32.mrb[0].mxu0
        %9084 = vmatprep.mubr.bf16.mxu0 0
        %9085 = vmatmul.mubr.bf16.gmra.mrb[0].mxu0 %v8942
        %v9086 = vpop.f32.mrb[0].mxu0
        %v9087 = vadd.f32 %v8978, %v9086
        %v9088 = vpop.f32.mrb[0].mxu0
        %v9089 = vpop.f32.mrb[0].mxu0
        %v9090 = vadd.f32 %v8978, %v9089
        %v9091 = vpop.f32.mrb[0].mxu0
        %9092 = vmatprep.mubr.bf16.mxu0 0
        %9093 = vmatmul.mubr.bf16.gmra.mrb[0].mxu0 %v8943
        %v9094 = vpop.f32.mrb[0].mxu0
        %v9095 = vadd.f32 %v8978, %v9094
        %v9096 = vpop.f32.mrb[0].mxu0
        %v9097 = vpop.f32.mrb[0].mxu0
        %v9098 = vadd.f32 %v8978, %v9097
        %v9099 = vpop.f32.mrb[0].mxu0
        %9100 = vmatprep.mubr.bf16.mxu0 0
        %9101 = vmatmul.mubr.bf16.gmra.mrb[0].mxu0 %v8944
        %v9102 = vpop.f32.mrb[0].mxu0
        %v9103 = vadd.f32 %v8978, %v9102
        %v9104 = vpop.f32.mrb[0].mxu0
        %v9105 = vpop.f32.mrb[0].mxu0
        %v9106 = vadd.f32 %v8978, %v9105
        %v9107 = vpop.f32.mrb[0].mxu0
        %9108 = vmatprep.mubr.bf16.mxu0 0
        %9109 = vmatmul.mubr.bf16.gmra.mrb[0].mxu0 %v8945
        %v9110 = vpop.f32.mrb[0].mxu0
        %v9111 = vadd.f32 %v8978, %v9110
        %v9112 = vpop.f32.mrb[0].mxu0
        %v9113 = vpop.f32.mrb[0].mxu0
        %v9114 = vadd.f32 %v8978, %v9113
        %v9115 = vpop.f32.mrb[0].mxu0
        %9116 = vmatprep.mubr.bf16.mxu0 0
        %9117 = vmatmul.mubr.bf16.gmra.mrb[0].mxu0 %v8946
        %v9118 = vpop.f32.mrb[0].mxu0
        %v9119 = vadd.f32 %v8978, %v9118
        %v9120 = vpop.f32.mrb[0].mxu0
        %v9121 = vpop.f32.mrb[0].mxu0
        %v9122 = vadd.f32 %v8978, %v9121
        %v9123 = vpop.f32.mrb[0].mxu0
        %9124 = vmatprep.mubr.bf16.mxu0 0
        %9125 = vmatmul.mubr.bf16.gmra.mrb[0].mxu0 %v8947
        %v9126 = vpop.f32.mrb[0].mxu0
        %v9127 = vadd.f32 %v8978, %v9126
        %v9128 = vpop.f32.mrb[0].mxu0
        %v9129 = vpop.f32.mrb[0].mxu0
        %v9130 = vadd.f32 %v8978, %v9129
        %v9131 = vpop.f32.mrb[0].mxu0
        %9132 = vmatprep.mubr.bf16.mxu0 0
        %9133 = vmatmul.mubr.bf16.gmra.mrb[0].mxu0 %v8948
        %v9134 = vpop.f32.mrb[0].mxu0
        %v9135 = vadd.f32 %v8978, %v9134
        %v9136 = vpop.f32.mrb[0].mxu0
        %v9137 = vpop.f32.mrb[0].mxu0
        %v9138 = vadd.f32 %v8978, %v9137
        %v9139 = vpop.f32.mrb[0].mxu0
        %9140 = vmatprep.mubr.bf16.mxu0 0
        %9141 = vmatmul.mubr.bf16.gmra.mrb[0].mxu0 %v8949
        %v9142 = vpop.f32.mrb[0].mxu0
        %v9143 = vadd.f32 %v8978, %v9142
        %v9144 = vpop.f32.mrb[0].mxu0
        %v9145 = vpop.f32.mrb[0].mxu0
        %v9146 = vadd.f32 %v8978, %v9145
        %v9147 = vpop.f32.mrb[0].mxu0
        %9148 = vmatprep.mubr.bf16.mxu0 0
        %9149 = vmatmul.mubr.bf16.gmra.mrb[0].mxu0 %v8950
        %v9150 = vpop.f32.mrb[0].mxu0
        %v9151 = vadd.f32 %v8978, %v9150
        %v9152 = vpop.f32.mrb[0].mxu0
        %v9153 = vpop.f32.mrb[0].mxu0
        %v9154 = vadd.f32 %v8978, %v9153
        %v9155 = vpop.f32.mrb[0].mxu0
        %9156 = vmatprep.mubr.bf16.mxu0 0
        %9157 = vmatmul.mubr.bf16.gmra.mrb[0].mxu0 %v8951
        %v9158 = vpop.f32.mrb[0].mxu0
        %v9159 = vadd.f32 %v8978, %v9158
        %v9160 = vpop.f32.mrb[0].mxu0
        %v9161 = vpop.f32.mrb[0].mxu0
        %v9162 = vadd.f32 %v8978, %v9161
        %v9163 = vpop.f32.mrb[0].mxu0
        %9164 = vmatprep.mubr.bf16.mxu0 0
        %9165 = vmatmul.mubr.bf16.gmra.mrb[0].mxu0 %v8952
        %v9166 = vpop.f32.mrb[0].mxu0
        %v9167 = vadd.f32 %v8978, %v9166
        %v9168 = vpop.f32.mrb[0].mxu0
        %v9169 = vpop.f32.mrb[0].mxu0
        %v9170 = vadd.f32 %v8978, %v9169
        %v9171 = vpop.f32.mrb[0].mxu0
        %9172 = vmatprep.mubr.bf16.mxu0 0
        %9173 = vmatmul.mubr.bf16.gmra.mrb[0].mxu0 %v8953
        %v9174 = vpop.f32.mrb[0].mxu0
        %v9175 = vadd.f32 %v8978, %v9174
        %v9176 = vpop.f32.mrb[0].mxu0
        %v9177 = vpop.f32.mrb[0].mxu0
        %v9178 = vadd.f32 %v8978, %v9177
        %v9179 = vpop.f32.mrb[0].mxu0
        %9180 = vmatprep.mubr.bf16.mxu0 0
        %9181 = vmatmul.mubr.bf16.gmra.mrb[0].mxu0 %v8954
        %v9182 = vpop.f32.mrb[0].mxu0
        %v9183 = vadd.f32 %v8978, %v9182
        %v9184 = vpop.f32.mrb[0].mxu0
        %v9185 = vpop.f32.mrb[0].mxu0
        %v9186 = vadd.f32 %v8978, %v9185
        %v9187 = vpop.f32.mrb[0].mxu0
        %9188 = vdwg.mxu0
        %v9189 = vld [vmem:[%s501] sm:$0xff]
        %v9190 = vld [vmem:[%s501 + $0x8] sm:$0xff]
        %v9191 = vld [vmem:[%s501 + $0x10] sm:$0xff]
        %v9192 = vld [vmem:[%s501 + $0x18] sm:$0xff]
        %v9193 = vld [vmem:[%s501 + $0x20] sm:$0xff]
        %v9194 = vld [vmem:[%s501 + $0x28] sm:$0xff]
        %v9195 = vld [vmem:[%s501 + $0x30] sm:$0xff]
        %v9196 = vld [vmem:[%s501 + $0x38] sm:$0xff]
        %v9197 = vld [vmem:[%s501 + $0x40] sm:$0xff]
        %v9198 = vld [vmem:[%s501 + $0x48] sm:$0xff]
        %v9199 = vld [vmem:[%s501 + $0x50] sm:$0xff]
        %v9200 = vld [vmem:[%s501 + $0x58] sm:$0xff]
        %v9201 = vld [vmem:[%s501 + $0x60] sm:$0xff]
        %v9202 = vld [vmem:[%s501 + $0x68] sm:$0xff]
        %v9203 = vld [vmem:[%s501 + $0x70] sm:$0xff]
        %v9204 = vld [vmem:[%s501 + $0x78] sm:$0xff]
        %v9205 = vld [vmem:[%s501 + $0x80] sm:$0xff]
        %v9206 = vld [vmem:[%s501 + $0x88] sm:$0xff]
        %v9207 = vld [vmem:[%s501 + $0x90] sm:$0xff]
        %v9208 = vld [vmem:[%s501 + $0x98] sm:$0xff]
        %v9209 = vld [vmem:[%s501 + $0xa0] sm:$0xff]
        %v9210 = vld [vmem:[%s501 + $0xa8] sm:$0xff]
        %v9211 = vld [vmem:[%s501 + $0xb0] sm:$0xff]
        %v9212 = vld [vmem:[%s501 + $0xb8] sm:$0xff]
        %v9213 = vld [vmem:[%s501 + $0xc0] sm:$0xff]
        %v9214 = vld [vmem:[%s501 + $0xc8] sm:$0xff]
        %v9215 = vld [vmem:[%s501 + $0xd0] sm:$0xff]
        %v9216 = vld [vmem:[%s501 + $0xd8] sm:$0xff]
        %v9217 = vld [vmem:[%s501 + $0xe0] sm:$0xff]
        %v9218 = vld [vmem:[%s501 + $0xe8] sm:$0xff]
        %v9219 = vld [vmem:[%s501 + $0xf0] sm:$0xff]
        %v9220 = vld [vmem:[%s501 + $0xf8] sm:$0xff]
        %v9221 = vadd.f32 %v9189, %v9063
        %v9222 = vadd.f32 %v9190, %v9066
        %v9223 = vadd.f32 %v9191, %v9071
        %v9224 = vadd.f32 %v9192, %v9074
        %v9225 = vadd.f32 %v9193, %v9079
        %v9226 = vadd.f32 %v9194, %v9082
        %v9227 = vadd.f32 %v9195, %v9087
        %v9228 = vadd.f32 %v9196, %v9090
        %v9229 = vadd.f32 %v9197, %v9095
        %v9230 = vadd.f32 %v9198, %v9098
        %v9231 = vadd.f32 %v9199, %v9103
        %v9232 = vadd.f32 %v9200, %v9106
        %v9233 = vadd.f32 %v9201, %v9111
        %v9234 = vadd.f32 %v9202, %v9114
        %v9235 = vadd.f32 %v9203, %v9119
        %v9236 = vadd.f32 %v9204, %v9122
        %v9237 = vadd.f32 %v9205, %v9127
        %v9238 = vadd.f32 %v9206, %v9130
        %v9239 = vadd.f32 %v9207, %v9135
        %v9240 = vadd.f32 %v9208, %v9138
        %v9241 = vadd.f32 %v9209, %v9143
        %v9242 = vadd.f32 %v9210, %v9146
        %v9243 = vadd.f32 %v9211, %v9151
        %v9244 = vadd.f32 %v9212, %v9154
        %v9245 = vadd.f32 %v9213, %v9159
        %v9246 = vadd.f32 %v9214, %v9162
        %v9247 = vadd.f32 %v9215, %v9167
        %v9248 = vadd.f32 %v9216, %v9170
        %v9249 = vadd.f32 %v9217, %v9175
        %v9250 = vadd.f32 %v9218, %v9178
        %v9251 = vadd.f32 %v9219, %v9183
        %v9252 = vadd.f32 %v9220, %v9186
        %9253 = vst [vmem:[%s501] sm:$0xff] %v9221
        %9254 = vst [vmem:[%s501 + $0x8] sm:$0xff] %v9222
        %9255 = vst [vmem:[%s501 + $0x10] sm:$0xff] %v9223
        %9256 = vst [vmem:[%s501 + $0x18] sm:$0xff] %v9224
        %9257 = vst [vmem:[%s501 + $0x20] sm:$0xff] %v9225
        %9258 = vst [vmem:[%s501 + $0x28] sm:$0xff] %v9226
        %9259 = vst [vmem:[%s501 + $0x30] sm:$0xff] %v9227
        %9260 = vst [vmem:[%s501 + $0x38] sm:$0xff] %v9228
        %9261 = vst [vmem:[%s501 + $0x40] sm:$0xff] %v9229
        %9262 = vst [vmem:[%s501 + $0x48] sm:$0xff] %v9230
        %9263 = vst [vmem:[%s501 + $0x50] sm:$0xff] %v9231
        %9264 = vst [vmem:[%s501 + $0x58] sm:$0xff] %v9232
        %9265 = vst [vmem:[%s501 + $0x60] sm:$0xff] %v9233
        %9266 = vst [vmem:[%s501 + $0x68] sm:$0xff] %v9234
        %9267 = vst [vmem:[%s501 + $0x70] sm:$0xff] %v9235
        %9268 = vst [vmem:[%s501 + $0x78] sm:$0xff] %v9236
        %9269 = vst [vmem:[%s501 + $0x80] sm:$0xff] %v9237
        %9270 = vst [vmem:[%s501 + $0x88] sm:$0xff] %v9238
        %9271 = vst [vmem:[%s501 + $0x90] sm:$0xff] %v9239
        %9272 = vst [vmem:[%s501 + $0x98] sm:$0xff] %v9240
        %9273 = vst [vmem:[%s501 + $0xa0] sm:$0xff] %v9241
        %9274 = vst [vmem:[%s501 + $0xa8] sm:$0xff] %v9242
        %9275 = vst [vmem:[%s501 + $0xb0] sm:$0xff] %v9243
        %9276 = vst [vmem:[%s501 + $0xb8] sm:$0xff] %v9244
        %9277 = vst [vmem:[%s501 + $0xc0] sm:$0xff] %v9245
        %9278 = vst [vmem:[%s501 + $0xc8] sm:$0xff] %v9246
        %9279 = vst [vmem:[%s501 + $0xd0] sm:$0xff] %v9247
        %9280 = vst [vmem:[%s501 + $0xd8] sm:$0xff] %v9248
        %9281 = vst [vmem:[%s501 + $0xe0] sm:$0xff] %v9249
        %9282 = vst [vmem:[%s501 + $0xe8] sm:$0xff] %v9250
        %9283 = vst [vmem:[%s501 + $0xf0] sm:$0xff] %v9251
        %9284 = vst [vmem:[%s501 + $0xf8] sm:$0xff] %v9252
        %v9285 = vld [vmem:[#allocation8] sm:$0xf]
        %v9286 = vld [vmem:[#allocation8 + $0x4] sm:$0xf]
        %v9287 = vld [vmem:[#allocation8 + $0x8] sm:$0xf]
        %v9288 = vld [vmem:[#allocation8 + $0xc] sm:$0xf]
        %s9289 = scalar_lea.vmem [#allocation9], 3
        %v9290 = vld [vmem:[%s9289] sm:$0x1]
        %v9292 = vlaneseq
        %v9293 = vshrl.u32 %v9292, 7
        %v9294 = vsub.s32 0, %v9293
        %v9295 = vrot.slane %v9290, %v9294
        %v9301 = vunpack.c.l.b16 %v9285
        %v9302 = vunpack.c.l.b16 %v9286
        %v9303 = vunpack.c.l.b16 %v9287
        %v9304 = vunpack.c.l.b16 %v9288
        %v9305 = vpack.c.b16 %v9302, %v9301
        %v9306 = vpack.c.b16 %v9304, %v9303
        %9309 = vmatprep.subr.bf16.mxu0 0
        %9310 = vmatpush1.bf16.msra.mxu0 %v9305
        %9311 = vmatprep.subr.bf16.mxu0 0
        %9312 = vmatpush1.bf16.msra.mxu0 %v9306
        %9313 = vmatprep.subr.bf16.mxu0 0
        %9314 = vmatpush1.bf16.msra.mxu0 0
        %9315 = vmatprep.subr.bf16.mxu0 0
        %9316 = vmatpush1.bf16.msra.mxu0 0
        %9317 = vmatprep.subr.bf16.mxu0 0
        %9318 = vmatpush1.bf16.msra.mxu0 0
        %9319 = vmatprep.subr.bf16.mxu0 0
        %9320 = vmatpush1.bf16.msra.mxu0 0
        %9321 = vmatprep.subr.bf16.mxu0 0
        %9322 = vmatpush1.bf16.msra.mxu0 0
        %9323 = vmatprep.subr.bf16.mxu0 0
        %9324 = vmatpush1.bf16.msra.mxu0 0
        %9325 = vmatprep.subr.bf16.mxu0 0
        %9326 = vmatpush1.bf16.msra.mxu0 0
        %9327 = vmatprep.subr.bf16.mxu0 0
        %9328 = vmatpush1.bf16.msra.mxu0 0
        %9329 = vmatprep.subr.bf16.mxu0 0
        %9330 = vmatpush1.bf16.msra.mxu0 0
        %9331 = vmatprep.subr.bf16.mxu0 0
        %9332 = vmatpush1.bf16.msra.mxu0 0
        %9333 = vmatprep.subr.bf16.mxu0 0
        %9334 = vmatpush1.bf16.msra.mxu0 0
        %9335 = vmatprep.subr.bf16.mxu0 0
        %9336 = vmatpush1.bf16.msra.mxu0 0
        %9337 = vmatprep.subr.bf16.mxu0 0
        %9338 = vmatpush1.bf16.msra.mxu0 0
        %9339 = vmatprep.subr.bf16.mxu0 0
        %9340 = vmatpush1.bf16.msra.mxu0 0
        %9341 = vmatprep.mubr.bf16.mxu0 0
        %9342 = vmatmul.mubr.bf16.gmra.mrb[0].mxu0 %v8417
        %v9343 = vpop.f32.mrb[0].mxu0
        %v9344 = vadd.f32 %v9295, %v9343
        %v9345 = vpop.f32.mrb[0].mxu0
        %v9346 = vpop.f32.mrb[0].mxu0
        %v9347 = vadd.f32 %v9295, %v9346
        %v9348 = vpop.f32.mrb[0].mxu0
        %9349 = vmatprep.mubr.bf16.mxu0 0
        %9350 = vmatmul.mubr.bf16.gmra.mrb[0].mxu0 %v8420
        %v9351 = vpop.f32.mrb[0].mxu0
        %v9352 = vadd.f32 %v9295, %v9351
        %v9353 = vpop.f32.mrb[0].mxu0
        %v9354 = vpop.f32.mrb[0].mxu0
        %v9355 = vadd.f32 %v9295, %v9354
        %v9356 = vpop.f32.mrb[0].mxu0
        %9357 = vmatprep.mubr.bf16.mxu0 0
        %9358 = vmatmul.mubr.bf16.gmra.mrb[0].mxu0 %v8423
        %v9359 = vpop.f32.mrb[0].mxu0
        %v9360 = vadd.f32 %v9295, %v9359
        %v9361 = vpop.f32.mrb[0].mxu0
        %v9362 = vpop.f32.mrb[0].mxu0
        %v9363 = vadd.f32 %v9295, %v9362
        %v9364 = vpop.f32.mrb[0].mxu0
        %9365 = vmatprep.mubr.bf16.mxu0 0
        %9366 = vmatmul.mubr.bf16.gmra.mrb[0].mxu0 %v8426
        %v9367 = vpop.f32.mrb[0].mxu0
        %v9368 = vadd.f32 %v9295, %v9367
        %v9369 = vpop.f32.mrb[0].mxu0
        %v9370 = vpop.f32.mrb[0].mxu0
        %v9371 = vadd.f32 %v9295, %v9370
        %v9372 = vpop.f32.mrb[0].mxu0
        %9373 = vmatprep.mubr.bf16.mxu0 0
        %9374 = vmatmul.mubr.bf16.gmra.mrb[0].mxu0 %v8429
        %v9375 = vpop.f32.mrb[0].mxu0
        %v9376 = vadd.f32 %v9295, %v9375
        %v9377 = vpop.f32.mrb[0].mxu0
        %v9378 = vpop.f32.mrb[0].mxu0
        %v9379 = vadd.f32 %v9295, %v9378
        %v9380 = vpop.f32.mrb[0].mxu0
        %9381 = vmatprep.mubr.bf16.mxu0 0
        %9382 = vmatmul.mubr.bf16.gmra.mrb[0].mxu0 %v8432
        %v9383 = vpop.f32.mrb[0].mxu0
        %v9384 = vadd.f32 %v9295, %v9383
        %v9385 = vpop.f32.mrb[0].mxu0
        %v9386 = vpop.f32.mrb[0].mxu0
        %v9387 = vadd.f32 %v9295, %v9386
        %v9388 = vpop.f32.mrb[0].mxu0
        %9389 = vmatprep.mubr.bf16.mxu0 0
        %9390 = vmatmul.mubr.bf16.gmra.mrb[0].mxu0 %v8435
        %v9391 = vpop.f32.mrb[0].mxu0
        %v9392 = vadd.f32 %v9295, %v9391
        %v9393 = vpop.f32.mrb[0].mxu0
        %v9394 = vpop.f32.mrb[0].mxu0
        %v9395 = vadd.f32 %v9295, %v9394
        %v9396 = vpop.f32.mrb[0].mxu0
        %9397 = vmatprep.mubr.bf16.mxu0 0
        %9398 = vmatmul.mubr.bf16.gmra.mrb[0].mxu0 %v8438
        %v9399 = vpop.f32.mrb[0].mxu0
        %v9400 = vadd.f32 %v9295, %v9399
        %v9401 = vpop.f32.mrb[0].mxu0
        %v9402 = vpop.f32.mrb[0].mxu0
        %v9403 = vadd.f32 %v9295, %v9402
        %v9404 = vpop.f32.mrb[0].mxu0
        %9405 = vmatprep.mubr.bf16.mxu0 0
        %9406 = vmatmul.mubr.bf16.gmra.mrb[0].mxu0 %v8441
        %v9407 = vpop.f32.mrb[0].mxu0
        %v9408 = vadd.f32 %v9295, %v9407
        %v9409 = vpop.f32.mrb[0].mxu0
        %v9410 = vpop.f32.mrb[0].mxu0
        %v9411 = vadd.f32 %v9295, %v9410
        %v9412 = vpop.f32.mrb[0].mxu0
        %9413 = vmatprep.mubr.bf16.mxu0 0
        %9414 = vmatmul.mubr.bf16.gmra.mrb[0].mxu0 %v8444
        %v9415 = vpop.f32.mrb[0].mxu0
        %v9416 = vadd.f32 %v9295, %v9415
        %v9417 = vpop.f32.mrb[0].mxu0
        %v9418 = vpop.f32.mrb[0].mxu0
        %v9419 = vadd.f32 %v9295, %v9418
        %v9420 = vpop.f32.mrb[0].mxu0
        %9421 = vmatprep.mubr.bf16.mxu0 0
        %9422 = vmatmul.mubr.bf16.gmra.mrb[0].mxu0 %v8447
        %v9423 = vpop.f32.mrb[0].mxu0
        %v9424 = vadd.f32 %v9295, %v9423
        %v9425 = vpop.f32.mrb[0].mxu0
        %v9426 = vpop.f32.mrb[0].mxu0
        %v9427 = vadd.f32 %v9295, %v9426
        %v9428 = vpop.f32.mrb[0].mxu0
        %9429 = vmatprep.mubr.bf16.mxu0 0
        %9430 = vmatmul.mubr.bf16.gmra.mrb[0].mxu0 %v8450
        %v9431 = vpop.f32.mrb[0].mxu0
        %v9432 = vadd.f32 %v9295, %v9431
        %v9433 = vpop.f32.mrb[0].mxu0
        %v9434 = vpop.f32.mrb[0].mxu0
        %v9435 = vadd.f32 %v9295, %v9434
        %v9436 = vpop.f32.mrb[0].mxu0
        %9437 = vmatprep.mubr.bf16.mxu0 0
        %9438 = vmatmul.mubr.bf16.gmra.mrb[0].mxu0 %v8453
        %v9439 = vpop.f32.mrb[0].mxu0
        %v9440 = vadd.f32 %v9295, %v9439
        %v9441 = vpop.f32.mrb[0].mxu0
        %v9442 = vpop.f32.mrb[0].mxu0
        %v9443 = vadd.f32 %v9295, %v9442
        %v9444 = vpop.f32.mrb[0].mxu0
        %9445 = vmatprep.mubr.bf16.mxu0 0
        %9446 = vmatmul.mubr.bf16.gmra.mrb[0].mxu0 %v8456
        %v9447 = vpop.f32.mrb[0].mxu0
        %v9448 = vadd.f32 %v9295, %v9447
        %v9449 = vpop.f32.mrb[0].mxu0
        %v9450 = vpop.f32.mrb[0].mxu0
        %v9451 = vadd.f32 %v9295, %v9450
        %v9452 = vpop.f32.mrb[0].mxu0
        %9453 = vmatprep.mubr.bf16.mxu0 0
        %9454 = vmatmul.mubr.bf16.gmra.mrb[0].mxu0 %v8459
        %v9455 = vpop.f32.mrb[0].mxu0
        %v9456 = vadd.f32 %v9295, %v9455
        %v9457 = vpop.f32.mrb[0].mxu0
        %v9458 = vpop.f32.mrb[0].mxu0
        %v9459 = vadd.f32 %v9295, %v9458
        %v9460 = vpop.f32.mrb[0].mxu0
        %9461 = vmatprep.mubr.bf16.mxu0 0
        %9462 = vmatmul.mubr.bf16.gmra.mrb[0].mxu0 %v8462
        %v9463 = vpop.f32.mrb[0].mxu0
        %v9464 = vadd.f32 %v9295, %v9463
        %v9465 = vpop.f32.mrb[0].mxu0
        %v9466 = vpop.f32.mrb[0].mxu0
        %v9467 = vadd.f32 %v9295, %v9466
        %v9468 = vpop.f32.mrb[0].mxu0
        %9469 = vdwg.mxu0
        %v9470 = vmax.f32 %v9344, 0.0
        %v9471 = vmax.f32 %v9347, 0.0
        %v9472 = vmax.f32 %v9352, 0.0
        %v9473 = vmax.f32 %v9355, 0.0
        %v9474 = vmax.f32 %v9360, 0.0
        %v9475 = vmax.f32 %v9363, 0.0
        %v9476 = vmax.f32 %v9368, 0.0
        %v9477 = vmax.f32 %v9371, 0.0
        %v9478 = vmax.f32 %v9376, 0.0
        %v9479 = vmax.f32 %v9379, 0.0
        %v9480 = vmax.f32 %v9384, 0.0
        %v9481 = vmax.f32 %v9387, 0.0
        %v9482 = vmax.f32 %v9392, 0.0
        %v9483 = vmax.f32 %v9395, 0.0
        %v9484 = vmax.f32 %v9400, 0.0
        %v9485 = vmax.f32 %v9403, 0.0
        %v9486 = vmax.f32 %v9408, 0.0
        %v9487 = vmax.f32 %v9411, 0.0
        %v9488 = vmax.f32 %v9416, 0.0
        %v9489 = vmax.f32 %v9419, 0.0
        %v9490 = vmax.f32 %v9424, 0.0
        %v9491 = vmax.f32 %v9427, 0.0
        %v9492 = vmax.f32 %v9432, 0.0
        %v9493 = vmax.f32 %v9435, 0.0
        %v9494 = vmax.f32 %v9440, 0.0
        %v9495 = vmax.f32 %v9443, 0.0
        %v9496 = vmax.f32 %v9448, 0.0
        %v9497 = vmax.f32 %v9451, 0.0
        %v9498 = vmax.f32 %v9456, 0.0
        %v9499 = vmax.f32 %v9459, 0.0
        %v9500 = vmax.f32 %v9464, 0.0
        %v9501 = vmax.f32 %v9467, 0.0
        %v9502 = vpack.c.bf16 %v9471, %v9470
        %v9503 = vpack.c.bf16 %v9473, %v9472
        %v9504 = vpack.c.bf16 %v9475, %v9474
        %v9505 = vpack.c.bf16 %v9477, %v9476
        %v9506 = vpack.c.bf16 %v9479, %v9478
        %v9507 = vpack.c.bf16 %v9481, %v9480
        %v9508 = vpack.c.bf16 %v9483, %v9482
        %v9509 = vpack.c.bf16 %v9485, %v9484
        %v9510 = vpack.c.bf16 %v9487, %v9486
        %v9511 = vpack.c.bf16 %v9489, %v9488
        %v9512 = vpack.c.bf16 %v9491, %v9490
        %v9513 = vpack.c.bf16 %v9493, %v9492
        %v9514 = vpack.c.bf16 %v9495, %v9494
        %v9515 = vpack.c.bf16 %v9497, %v9496
        %v9516 = vpack.c.bf16 %v9499, %v9498
        %v9517 = vpack.c.bf16 %v9501, %v9500
        %s9518 = scalar_lea.vmem %s8, 192
        %v9519 = vld [vmem:[%s9518] sm:$0xf]
        %v9520 = vld [vmem:[%s9518 + $0x4] sm:$0xf]
        %v9521 = vld [vmem:[%s9518 + $0x8] sm:$0xf]
        %v9522 = vld [vmem:[%s9518 + $0xc] sm:$0xf]
        %v9523 = vld [vmem:[%s9518 + $0x10] sm:$0xf]
        %v9524 = vld [vmem:[%s9518 + $0x14] sm:$0xf]
        %v9525 = vld [vmem:[%s9518 + $0x18] sm:$0xf]
        %v9526 = vld [vmem:[%s9518 + $0x1c] sm:$0xf]
        %v9527 = vld [vmem:[%s9518 + $0x20] sm:$0xf]
        %v9528 = vld [vmem:[%s9518 + $0x24] sm:$0xf]
        %v9529 = vld [vmem:[%s9518 + $0x28] sm:$0xf]
        %v9530 = vld [vmem:[%s9518 + $0x2c] sm:$0xf]
        %v9531 = vld [vmem:[%s9518 + $0x30] sm:$0xf]
        %v9532 = vld [vmem:[%s9518 + $0x34] sm:$0xf]
        %v9533 = vld [vmem:[%s9518 + $0x38] sm:$0xf]
        %v9534 = vld [vmem:[%s9518 + $0x3c] sm:$0xf]
        %s9535 = scalar_lea.vmem [#allocation11], 3
        %v9536 = vld [vmem:[%s9535] sm:$0x1]
        %v9538 = vlaneseq
        %v9539 = vshrl.u32 %v9538, 7
        %v9540 = vsub.s32 0, %v9539
        %v9541 = vrot.slane %v9536, %v9540
        %v9559 = vunpack.c.l.b16 %v9519
        %v9560 = vunpack.c.l.b16 %v9520
        %v9561 = vunpack.c.l.b16 %v9521
        %v9562 = vunpack.c.l.b16 %v9522
        %v9563 = vunpack.c.l.b16 %v9523
        %v9564 = vunpack.c.l.b16 %v9524
        %v9565 = vunpack.c.l.b16 %v9525
        %v9566 = vunpack.c.l.b16 %v9526
        %v9567 = vunpack.c.l.b16 %v9527
        %v9568 = vunpack.c.l.b16 %v9528
        %v9569 = vunpack.c.l.b16 %v9529
        %v9570 = vunpack.c.l.b16 %v9530
        %v9571 = vunpack.c.l.b16 %v9531
        %v9572 = vunpack.c.l.b16 %v9532
        %v9573 = vunpack.c.l.b16 %v9533
        %v9574 = vunpack.c.l.b16 %v9534
        %v9575 = vpack.c.b16 %v9560, %v9559
        %v9576 = vpack.c.b16 %v9562, %v9561
        %v9577 = vpack.c.b16 %v9564, %v9563
        %v9578 = vpack.c.b16 %v9566, %v9565
        %v9579 = vpack.c.b16 %v9568, %v9567
        %v9580 = vpack.c.b16 %v9570, %v9569
        %v9581 = vpack.c.b16 %v9572, %v9571
        %v9582 = vpack.c.b16 %v9574, %v9573
        %9591 = vmatprep.subr.bf16.mxu0 0
        %9592 = vmatpush1.bf16.msra.mxu0 %v9575
        %9593 = vmatprep.subr.bf16.mxu0 0
        %9594 = vmatpush1.bf16.msra.mxu0 %v9576
        %9595 = vmatprep.subr.bf16.mxu0 0
        %9596 = vmatpush1.bf16.msra.mxu0 %v9577
        %9597 = vmatprep.subr.bf16.mxu0 0
        %9598 = vmatpush1.bf16.msra.mxu0 %v9578
        %9599 = vmatprep.subr.bf16.mxu0 0
        %9600 = vmatpush1.bf16.msra.mxu0 %v9579
        %9601 = vmatprep.subr.bf16.mxu0 0
        %9602 = vmatpush1.bf16.msra.mxu0 %v9580
        %9603 = vmatprep.subr.bf16.mxu0 0
        %9604 = vmatpush1.bf16.msra.mxu0 %v9581
        %9605 = vmatprep.subr.bf16.mxu0 0
        %9606 = vmatpush1.bf16.msra.mxu0 %v9582
        %9607 = vmatprep.subr.bf16.mxu0 0
        %9608 = vmatpush1.bf16.msra.mxu0 0
        %9609 = vmatprep.subr.bf16.mxu0 0
        %9610 = vmatpush1.bf16.msra.mxu0 0
        %9611 = vmatprep.subr.bf16.mxu0 0
        %9612 = vmatpush1.bf16.msra.mxu0 0
        %9613 = vmatprep.subr.bf16.mxu0 0
        %9614 = vmatpush1.bf16.msra.mxu0 0
        %9615 = vmatprep.subr.bf16.mxu0 0
        %9616 = vmatpush1.bf16.msra.mxu0 0
        %9617 = vmatprep.subr.bf16.mxu0 0
        %9618 = vmatpush1.bf16.msra.mxu0 0
        %9619 = vmatprep.subr.bf16.mxu0 0
        %9620 = vmatpush1.bf16.msra.mxu0 0
        %9621 = vmatprep.subr.bf16.mxu0 0
        %9622 = vmatpush1.bf16.msra.mxu0 0
        %9623 = vmatprep.mubr.bf16.mxu0 0
        %9624 = vmatmul.mubr.bf16.gmra.mrb[0].mxu0 %v9502
        %v9625 = vpop.f32.mrb[0].mxu0
        %v9626 = vadd.f32 %v9541, %v9625
        %v9627 = vpop.f32.mrb[0].mxu0
        %v9628 = vpop.f32.mrb[0].mxu0
        %v9629 = vadd.f32 %v9541, %v9628
        %v9630 = vpop.f32.mrb[0].mxu0
        %9631 = vmatprep.mubr.bf16.mxu0 0
        %9632 = vmatmul.mubr.bf16.gmra.mrb[0].mxu0 %v9503
        %v9633 = vpop.f32.mrb[0].mxu0
        %v9634 = vadd.f32 %v9541, %v9633
        %v9635 = vpop.f32.mrb[0].mxu0
        %v9636 = vpop.f32.mrb[0].mxu0
        %v9637 = vadd.f32 %v9541, %v9636
        %v9638 = vpop.f32.mrb[0].mxu0
        %9639 = vmatprep.mubr.bf16.mxu0 0
        %9640 = vmatmul.mubr.bf16.gmra.mrb[0].mxu0 %v9504
        %v9641 = vpop.f32.mrb[0].mxu0
        %v9642 = vadd.f32 %v9541, %v9641
        %v9643 = vpop.f32.mrb[0].mxu0
        %v9644 = vpop.f32.mrb[0].mxu0
        %v9645 = vadd.f32 %v9541, %v9644
        %v9646 = vpop.f32.mrb[0].mxu0
        %9647 = vmatprep.mubr.bf16.mxu0 0
        %9648 = vmatmul.mubr.bf16.gmra.mrb[0].mxu0 %v9505
        %v9649 = vpop.f32.mrb[0].mxu0
        %v9650 = vadd.f32 %v9541, %v9649
        %v9651 = vpop.f32.mrb[0].mxu0
        %v9652 = vpop.f32.mrb[0].mxu0
        %v9653 = vadd.f32 %v9541, %v9652
        %v9654 = vpop.f32.mrb[0].mxu0
        %9655 = vmatprep.mubr.bf16.mxu0 0
        %9656 = vmatmul.mubr.bf16.gmra.mrb[0].mxu0 %v9506
        %v9657 = vpop.f32.mrb[0].mxu0
        %v9658 = vadd.f32 %v9541, %v9657
        %v9659 = vpop.f32.mrb[0].mxu0
        %v9660 = vpop.f32.mrb[0].mxu0
        %v9661 = vadd.f32 %v9541, %v9660
        %v9662 = vpop.f32.mrb[0].mxu0
        %9663 = vmatprep.mubr.bf16.mxu0 0
        %9664 = vmatmul.mubr.bf16.gmra.mrb[0].mxu0 %v9507
        %v9665 = vpop.f32.mrb[0].mxu0
        %v9666 = vadd.f32 %v9541, %v9665
        %v9667 = vpop.f32.mrb[0].mxu0
        %v9668 = vpop.f32.mrb[0].mxu0
        %v9669 = vadd.f32 %v9541, %v9668
        %v9670 = vpop.f32.mrb[0].mxu0
        %9671 = vmatprep.mubr.bf16.mxu0 0
        %9672 = vmatmul.mubr.bf16.gmra.mrb[0].mxu0 %v9508
        %v9673 = vpop.f32.mrb[0].mxu0
        %v9674 = vadd.f32 %v9541, %v9673
        %v9675 = vpop.f32.mrb[0].mxu0
        %v9676 = vpop.f32.mrb[0].mxu0
        %v9677 = vadd.f32 %v9541, %v9676
        %v9678 = vpop.f32.mrb[0].mxu0
        %9679 = vmatprep.mubr.bf16.mxu0 0
        %9680 = vmatmul.mubr.bf16.gmra.mrb[0].mxu0 %v9509
        %v9681 = vpop.f32.mrb[0].mxu0
        %v9682 = vadd.f32 %v9541, %v9681
        %v9683 = vpop.f32.mrb[0].mxu0
        %v9684 = vpop.f32.mrb[0].mxu0
        %v9685 = vadd.f32 %v9541, %v9684
        %v9686 = vpop.f32.mrb[0].mxu0
        %9687 = vmatprep.mubr.bf16.mxu0 0
        %9688 = vmatmul.mubr.bf16.gmra.mrb[0].mxu0 %v9510
        %v9689 = vpop.f32.mrb[0].mxu0
        %v9690 = vadd.f32 %v9541, %v9689
        %v9691 = vpop.f32.mrb[0].mxu0
        %v9692 = vpop.f32.mrb[0].mxu0
        %v9693 = vadd.f32 %v9541, %v9692
        %v9694 = vpop.f32.mrb[0].mxu0
        %9695 = vmatprep.mubr.bf16.mxu0 0
        %9696 = vmatmul.mubr.bf16.gmra.mrb[0].mxu0 %v9511
        %v9697 = vpop.f32.mrb[0].mxu0
        %v9698 = vadd.f32 %v9541, %v9697
        %v9699 = vpop.f32.mrb[0].mxu0
        %v9700 = vpop.f32.mrb[0].mxu0
        %v9701 = vadd.f32 %v9541, %v9700
        %v9702 = vpop.f32.mrb[0].mxu0
        %9703 = vmatprep.mubr.bf16.mxu0 0
        %9704 = vmatmul.mubr.bf16.gmra.mrb[0].mxu0 %v9512
        %v9705 = vpop.f32.mrb[0].mxu0
        %v9706 = vadd.f32 %v9541, %v9705
        %v9707 = vpop.f32.mrb[0].mxu0
        %v9708 = vpop.f32.mrb[0].mxu0
        %v9709 = vadd.f32 %v9541, %v9708
        %v9710 = vpop.f32.mrb[0].mxu0
        %9711 = vmatprep.mubr.bf16.mxu0 0
        %9712 = vmatmul.mubr.bf16.gmra.mrb[0].mxu0 %v9513
        %v9713 = vpop.f32.mrb[0].mxu0
        %v9714 = vadd.f32 %v9541, %v9713
        %v9715 = vpop.f32.mrb[0].mxu0
        %v9716 = vpop.f32.mrb[0].mxu0
        %v9717 = vadd.f32 %v9541, %v9716
        %v9718 = vpop.f32.mrb[0].mxu0
        %9719 = vmatprep.mubr.bf16.mxu0 0
        %9720 = vmatmul.mubr.bf16.gmra.mrb[0].mxu0 %v9514
        %v9721 = vpop.f32.mrb[0].mxu0
        %v9722 = vadd.f32 %v9541, %v9721
        %v9723 = vpop.f32.mrb[0].mxu0
        %v9724 = vpop.f32.mrb[0].mxu0
        %v9725 = vadd.f32 %v9541, %v9724
        %v9726 = vpop.f32.mrb[0].mxu0
        %9727 = vmatprep.mubr.bf16.mxu0 0
        %9728 = vmatmul.mubr.bf16.gmra.mrb[0].mxu0 %v9515
        %v9729 = vpop.f32.mrb[0].mxu0
        %v9730 = vadd.f32 %v9541, %v9729
        %v9731 = vpop.f32.mrb[0].mxu0
        %v9732 = vpop.f32.mrb[0].mxu0
        %v9733 = vadd.f32 %v9541, %v9732
        %v9734 = vpop.f32.mrb[0].mxu0
        %9735 = vmatprep.mubr.bf16.mxu0 0
        %9736 = vmatmul.mubr.bf16.gmra.mrb[0].mxu0 %v9516
        %v9737 = vpop.f32.mrb[0].mxu0
        %v9738 = vadd.f32 %v9541, %v9737
        %v9739 = vpop.f32.mrb[0].mxu0
        %v9740 = vpop.f32.mrb[0].mxu0
        %v9741 = vadd.f32 %v9541, %v9740
        %v9742 = vpop.f32.mrb[0].mxu0
        %9743 = vmatprep.mubr.bf16.mxu0 0
        %9744 = vmatmul.mubr.bf16.gmra.mrb[0].mxu0 %v9517
        %v9745 = vpop.f32.mrb[0].mxu0
        %v9746 = vadd.f32 %v9541, %v9745
        %v9747 = vpop.f32.mrb[0].mxu0
        %v9748 = vpop.f32.mrb[0].mxu0
        %v9749 = vadd.f32 %v9541, %v9748
        %v9750 = vpop.f32.mrb[0].mxu0
        %9751 = vdwg.mxu0
        %v9752 = vmax.f32 %v9626, 0.0
        %v9753 = vmax.f32 %v9629, 0.0
        %v9754 = vmax.f32 %v9634, 0.0
        %v9755 = vmax.f32 %v9637, 0.0
        %v9756 = vmax.f32 %v9642, 0.0
        %v9757 = vmax.f32 %v9645, 0.0
        %v9758 = vmax.f32 %v9650, 0.0
        %v9759 = vmax.f32 %v9653, 0.0
        %v9760 = vmax.f32 %v9658, 0.0
        %v9761 = vmax.f32 %v9661, 0.0
        %v9762 = vmax.f32 %v9666, 0.0
        %v9763 = vmax.f32 %v9669, 0.0
        %v9764 = vmax.f32 %v9674, 0.0
        %v9765 = vmax.f32 %v9677, 0.0
        %v9766 = vmax.f32 %v9682, 0.0
        %v9767 = vmax.f32 %v9685, 0.0
        %v9768 = vmax.f32 %v9690, 0.0
        %v9769 = vmax.f32 %v9693, 0.0
        %v9770 = vmax.f32 %v9698, 0.0
        %v9771 = vmax.f32 %v9701, 0.0
        %v9772 = vmax.f32 %v9706, 0.0
        %v9773 = vmax.f32 %v9709, 0.0
        %v9774 = vmax.f32 %v9714, 0.0
        %v9775 = vmax.f32 %v9717, 0.0
        %v9776 = vmax.f32 %v9722, 0.0
        %v9777 = vmax.f32 %v9725, 0.0
        %v9778 = vmax.f32 %v9730, 0.0
        %v9779 = vmax.f32 %v9733, 0.0
        %v9780 = vmax.f32 %v9738, 0.0
        %v9781 = vmax.f32 %v9741, 0.0
        %v9782 = vmax.f32 %v9746, 0.0
        %v9783 = vmax.f32 %v9749, 0.0
        %v9784 = vpack.c.bf16 %v9753, %v9752
        %v9785 = vpack.c.bf16 %v9755, %v9754
        %v9786 = vpack.c.bf16 %v9757, %v9756
        %v9787 = vpack.c.bf16 %v9759, %v9758
        %v9788 = vpack.c.bf16 %v9761, %v9760
        %v9789 = vpack.c.bf16 %v9763, %v9762
        %v9790 = vpack.c.bf16 %v9765, %v9764
        %v9791 = vpack.c.bf16 %v9767, %v9766
        %v9792 = vpack.c.bf16 %v9769, %v9768
        %v9793 = vpack.c.bf16 %v9771, %v9770
        %v9794 = vpack.c.bf16 %v9773, %v9772
        %v9795 = vpack.c.bf16 %v9775, %v9774
        %v9796 = vpack.c.bf16 %v9777, %v9776
        %v9797 = vpack.c.bf16 %v9779, %v9778
        %v9798 = vpack.c.bf16 %v9781, %v9780
        %v9799 = vpack.c.bf16 %v9783, %v9782
        %s9800 = scalar_lea.vmem %s10, 192
        %v9801 = vld [vmem:[%s9800] sm:$0xf]
        %v9802 = vld [vmem:[%s9800 + $0x4] sm:$0xf]
        %v9803 = vld [vmem:[%s9800 + $0x8] sm:$0xf]
        %v9804 = vld [vmem:[%s9800 + $0xc] sm:$0xf]
        %v9805 = vld [vmem:[%s9800 + $0x10] sm:$0xf]
        %v9806 = vld [vmem:[%s9800 + $0x14] sm:$0xf]
        %v9807 = vld [vmem:[%s9800 + $0x18] sm:$0xf]
        %v9808 = vld [vmem:[%s9800 + $0x1c] sm:$0xf]
        %v9809 = vld [vmem:[%s9800 + $0x20] sm:$0xf]
        %v9810 = vld [vmem:[%s9800 + $0x24] sm:$0xf]
        %v9811 = vld [vmem:[%s9800 + $0x28] sm:$0xf]
        %v9812 = vld [vmem:[%s9800 + $0x2c] sm:$0xf]
        %v9813 = vld [vmem:[%s9800 + $0x30] sm:$0xf]
        %v9814 = vld [vmem:[%s9800 + $0x34] sm:$0xf]
        %v9815 = vld [vmem:[%s9800 + $0x38] sm:$0xf]
        %v9816 = vld [vmem:[%s9800 + $0x3c] sm:$0xf]
        %s9817 = scalar_lea.vmem [#allocation12], 3
        %v9818 = vld [vmem:[%s9817] sm:$0x1]
        %v9820 = vlaneseq
        %v9821 = vshrl.u32 %v9820, 7
        %v9822 = vsub.s32 0, %v9821
        %v9823 = vrot.slane %v9818, %v9822
        %v9841 = vunpack.c.l.b16 %v9801
        %v9842 = vunpack.c.l.b16 %v9802
        %v9843 = vunpack.c.l.b16 %v9803
        %v9844 = vunpack.c.l.b16 %v9804
        %v9845 = vunpack.c.l.b16 %v9805
        %v9846 = vunpack.c.l.b16 %v9806
        %v9847 = vunpack.c.l.b16 %v9807
        %v9848 = vunpack.c.l.b16 %v9808
        %v9849 = vunpack.c.l.b16 %v9809
        %v9850 = vunpack.c.l.b16 %v9810
        %v9851 = vunpack.c.l.b16 %v9811
        %v9852 = vunpack.c.l.b16 %v9812
        %v9853 = vunpack.c.l.b16 %v9813
        %v9854 = vunpack.c.l.b16 %v9814
        %v9855 = vunpack.c.l.b16 %v9815
        %v9856 = vunpack.c.l.b16 %v9816
        %v9857 = vpack.c.b16 %v9842, %v9841
        %v9858 = vpack.c.b16 %v9844, %v9843
        %v9859 = vpack.c.b16 %v9846, %v9845
        %v9860 = vpack.c.b16 %v9848, %v9847
        %v9861 = vpack.c.b16 %v9850, %v9849
        %v9862 = vpack.c.b16 %v9852, %v9851
        %v9863 = vpack.c.b16 %v9854, %v9853
        %v9864 = vpack.c.b16 %v9856, %v9855
        %9873 = vmatprep.subr.bf16.mxu0 0
        %9874 = vmatpush1.bf16.msra.mxu0 %v9857
        %9875 = vmatprep.subr.bf16.mxu0 0
        %9876 = vmatpush1.bf16.msra.mxu0 %v9858
        %9877 = vmatprep.subr.bf16.mxu0 0
        %9878 = vmatpush1.bf16.msra.mxu0 %v9859
        %9879 = vmatprep.subr.bf16.mxu0 0
        %9880 = vmatpush1.bf16.msra.mxu0 %v9860
        %9881 = vmatprep.subr.bf16.mxu0 0
        %9882 = vmatpush1.bf16.msra.mxu0 %v9861
        %9883 = vmatprep.subr.bf16.mxu0 0
        %9884 = vmatpush1.bf16.msra.mxu0 %v9862
        %9885 = vmatprep.subr.bf16.mxu0 0
        %9886 = vmatpush1.bf16.msra.mxu0 %v9863
        %9887 = vmatprep.subr.bf16.mxu0 0
        %9888 = vmatpush1.bf16.msra.mxu0 %v9864
        %9889 = vmatprep.subr.bf16.mxu0 0
        %9890 = vmatpush1.bf16.msra.mxu0 0
        %9891 = vmatprep.subr.bf16.mxu0 0
        %9892 = vmatpush1.bf16.msra.mxu0 0
        %9893 = vmatprep.subr.bf16.mxu0 0
        %9894 = vmatpush1.bf16.msra.mxu0 0
        %9895 = vmatprep.subr.bf16.mxu0 0
        %9896 = vmatpush1.bf16.msra.mxu0 0
        %9897 = vmatprep.subr.bf16.mxu0 0
        %9898 = vmatpush1.bf16.msra.mxu0 0
        %9899 = vmatprep.subr.bf16.mxu0 0
        %9900 = vmatpush1.bf16.msra.mxu0 0
        %9901 = vmatprep.subr.bf16.mxu0 0
        %9902 = vmatpush1.bf16.msra.mxu0 0
        %9903 = vmatprep.subr.bf16.mxu0 0
        %9904 = vmatpush1.bf16.msra.mxu0 0
        %9905 = vmatprep.mubr.bf16.mxu0 0
        %9906 = vmatmul.mubr.bf16.gmra.mrb[0].mxu0 %v9784
        %v9907 = vpop.f32.mrb[0].mxu0
        %v9908 = vadd.f32 %v9823, %v9907
        %v9909 = vpop.f32.mrb[0].mxu0
        %v9910 = vpop.f32.mrb[0].mxu0
        %v9911 = vadd.f32 %v9823, %v9910
        %v9912 = vpop.f32.mrb[0].mxu0
        %9913 = vmatprep.mubr.bf16.mxu0 0
        %9914 = vmatmul.mubr.bf16.gmra.mrb[0].mxu0 %v9785
        %v9915 = vpop.f32.mrb[0].mxu0
        %v9916 = vadd.f32 %v9823, %v9915
        %v9917 = vpop.f32.mrb[0].mxu0
        %v9918 = vpop.f32.mrb[0].mxu0
        %v9919 = vadd.f32 %v9823, %v9918
        %v9920 = vpop.f32.mrb[0].mxu0
        %9921 = vmatprep.mubr.bf16.mxu0 0
        %9922 = vmatmul.mubr.bf16.gmra.mrb[0].mxu0 %v9786
        %v9923 = vpop.f32.mrb[0].mxu0
        %v9924 = vadd.f32 %v9823, %v9923
        %v9925 = vpop.f32.mrb[0].mxu0
        %v9926 = vpop.f32.mrb[0].mxu0
        %v9927 = vadd.f32 %v9823, %v9926
        %v9928 = vpop.f32.mrb[0].mxu0
        %9929 = vmatprep.mubr.bf16.mxu0 0
        %9930 = vmatmul.mubr.bf16.gmra.mrb[0].mxu0 %v9787
        %v9931 = vpop.f32.mrb[0].mxu0
        %v9932 = vadd.f32 %v9823, %v9931
        %v9933 = vpop.f32.mrb[0].mxu0
        %v9934 = vpop.f32.mrb[0].mxu0
        %v9935 = vadd.f32 %v9823, %v9934
        %v9936 = vpop.f32.mrb[0].mxu0
        %9937 = vmatprep.mubr.bf16.mxu0 0
        %9938 = vmatmul.mubr.bf16.gmra.mrb[0].mxu0 %v9788
        %v9939 = vpop.f32.mrb[0].mxu0
        %v9940 = vadd.f32 %v9823, %v9939
        %v9941 = vpop.f32.mrb[0].mxu0
        %v9942 = vpop.f32.mrb[0].mxu0
        %v9943 = vadd.f32 %v9823, %v9942
        %v9944 = vpop.f32.mrb[0].mxu0
        %9945 = vmatprep.mubr.bf16.mxu0 0
        %9946 = vmatmul.mubr.bf16.gmra.mrb[0].mxu0 %v9789
        %v9947 = vpop.f32.mrb[0].mxu0
        %v9948 = vadd.f32 %v9823, %v9947
        %v9949 = vpop.f32.mrb[0].mxu0
        %v9950 = vpop.f32.mrb[0].mxu0
        %v9951 = vadd.f32 %v9823, %v9950
        %v9952 = vpop.f32.mrb[0].mxu0
        %9953 = vmatprep.mubr.bf16.mxu0 0
        %9954 = vmatmul.mubr.bf16.gmra.mrb[0].mxu0 %v9790
        %v9955 = vpop.f32.mrb[0].mxu0
        %v9956 = vadd.f32 %v9823, %v9955
        %v9957 = vpop.f32.mrb[0].mxu0
        %v9958 = vpop.f32.mrb[0].mxu0
        %v9959 = vadd.f32 %v9823, %v9958
        %v9960 = vpop.f32.mrb[0].mxu0
        %9961 = vmatprep.mubr.bf16.mxu0 0
        %9962 = vmatmul.mubr.bf16.gmra.mrb[0].mxu0 %v9791
        %v9963 = vpop.f32.mrb[0].mxu0
        %v9964 = vadd.f32 %v9823, %v9963
        %v9965 = vpop.f32.mrb[0].mxu0
        %v9966 = vpop.f32.mrb[0].mxu0
        %v9967 = vadd.f32 %v9823, %v9966
        %v9968 = vpop.f32.mrb[0].mxu0
        %9969 = vmatprep.mubr.bf16.mxu0 0
        %9970 = vmatmul.mubr.bf16.gmra.mrb[0].mxu0 %v9792
        %v9971 = vpop.f32.mrb[0].mxu0
        %v9972 = vadd.f32 %v9823, %v9971
        %v9973 = vpop.f32.mrb[0].mxu0
        %v9974 = vpop.f32.mrb[0].mxu0
        %v9975 = vadd.f32 %v9823, %v9974
        %v9976 = vpop.f32.mrb[0].mxu0
        %9977 = vmatprep.mubr.bf16.mxu0 0
        %9978 = vmatmul.mubr.bf16.gmra.mrb[0].mxu0 %v9793
        %v9979 = vpop.f32.mrb[0].mxu0
        %v9980 = vadd.f32 %v9823, %v9979
        %v9981 = vpop.f32.mrb[0].mxu0
        %v9982 = vpop.f32.mrb[0].mxu0
        %v9983 = vadd.f32 %v9823, %v9982
        %v9984 = vpop.f32.mrb[0].mxu0
        %9985 = vmatprep.mubr.bf16.mxu0 0
        %9986 = vmatmul.mubr.bf16.gmra.mrb[0].mxu0 %v9794
        %v9987 = vpop.f32.mrb[0].mxu0
        %v9988 = vadd.f32 %v9823, %v9987
        %v9989 = vpop.f32.mrb[0].mxu0
        %v9990 = vpop.f32.mrb[0].mxu0
        %v9991 = vadd.f32 %v9823, %v9990
        %v9992 = vpop.f32.mrb[0].mxu0
        %9993 = vmatprep.mubr.bf16.mxu0 0
        %9994 = vmatmul.mubr.bf16.gmra.mrb[0].mxu0 %v9795
        %v9995 = vpop.f32.mrb[0].mxu0
        %v9996 = vadd.f32 %v9823, %v9995
        %v9997 = vpop.f32.mrb[0].mxu0
        %v9998 = vpop.f32.mrb[0].mxu0
        %v9999 = vadd.f32 %v9823, %v9998
        %v10000 = vpop.f32.mrb[0].mxu0
        %10001 = vmatprep.mubr.bf16.mxu0 0
        %10002 = vmatmul.mubr.bf16.gmra.mrb[0].mxu0 %v9796
        %v10003 = vpop.f32.mrb[0].mxu0
        %v10004 = vadd.f32 %v9823, %v10003
        %v10005 = vpop.f32.mrb[0].mxu0
        %v10006 = vpop.f32.mrb[0].mxu0
        %v10007 = vadd.f32 %v9823, %v10006
        %v10008 = vpop.f32.mrb[0].mxu0
        %10009 = vmatprep.mubr.bf16.mxu0 0
        %10010 = vmatmul.mubr.bf16.gmra.mrb[0].mxu0 %v9797
        %v10011 = vpop.f32.mrb[0].mxu0
        %v10012 = vadd.f32 %v9823, %v10011
        %v10013 = vpop.f32.mrb[0].mxu0
        %v10014 = vpop.f32.mrb[0].mxu0
        %v10015 = vadd.f32 %v9823, %v10014
        %v10016 = vpop.f32.mrb[0].mxu0
        %10017 = vmatprep.mubr.bf16.mxu0 0
        %10018 = vmatmul.mubr.bf16.gmra.mrb[0].mxu0 %v9798
        %v10019 = vpop.f32.mrb[0].mxu0
        %v10020 = vadd.f32 %v9823, %v10019
        %v10021 = vpop.f32.mrb[0].mxu0
        %v10022 = vpop.f32.mrb[0].mxu0
        %v10023 = vadd.f32 %v9823, %v10022
        %v10024 = vpop.f32.mrb[0].mxu0
        %10025 = vmatprep.mubr.bf16.mxu0 0
        %10026 = vmatmul.mubr.bf16.gmra.mrb[0].mxu0 %v9799
        %v10027 = vpop.f32.mrb[0].mxu0
        %v10028 = vadd.f32 %v9823, %v10027
        %v10029 = vpop.f32.mrb[0].mxu0
        %v10030 = vpop.f32.mrb[0].mxu0
        %v10031 = vadd.f32 %v9823, %v10030
        %v10032 = vpop.f32.mrb[0].mxu0
        %10033 = vdwg.mxu0
        %v10034 = vld [vmem:[%s501] sm:$0xff]
        %v10035 = vld [vmem:[%s501 + $0x8] sm:$0xff]
        %v10036 = vld [vmem:[%s501 + $0x10] sm:$0xff]
        %v10037 = vld [vmem:[%s501 + $0x18] sm:$0xff]
        %v10038 = vld [vmem:[%s501 + $0x20] sm:$0xff]
        %v10039 = vld [vmem:[%s501 + $0x28] sm:$0xff]
        %v10040 = vld [vmem:[%s501 + $0x30] sm:$0xff]
        %v10041 = vld [vmem:[%s501 + $0x38] sm:$0xff]
        %v10042 = vld [vmem:[%s501 + $0x40] sm:$0xff]
        %v10043 = vld [vmem:[%s501 + $0x48] sm:$0xff]
        %v10044 = vld [vmem:[%s501 + $0x50] sm:$0xff]
        %v10045 = vld [vmem:[%s501 + $0x58] sm:$0xff]
        %v10046 = vld [vmem:[%s501 + $0x60] sm:$0xff]
        %v10047 = vld [vmem:[%s501 + $0x68] sm:$0xff]
        %v10048 = vld [vmem:[%s501 + $0x70] sm:$0xff]
        %v10049 = vld [vmem:[%s501 + $0x78] sm:$0xff]
        %v10050 = vld [vmem:[%s501 + $0x80] sm:$0xff]
        %v10051 = vld [vmem:[%s501 + $0x88] sm:$0xff]
        %v10052 = vld [vmem:[%s501 + $0x90] sm:$0xff]
        %v10053 = vld [vmem:[%s501 + $0x98] sm:$0xff]
        %v10054 = vld [vmem:[%s501 + $0xa0] sm:$0xff]
        %v10055 = vld [vmem:[%s501 + $0xa8] sm:$0xff]
        %v10056 = vld [vmem:[%s501 + $0xb0] sm:$0xff]
        %v10057 = vld [vmem:[%s501 + $0xb8] sm:$0xff]
        %v10058 = vld [vmem:[%s501 + $0xc0] sm:$0xff]
        %v10059 = vld [vmem:[%s501 + $0xc8] sm:$0xff]
        %v10060 = vld [vmem:[%s501 + $0xd0] sm:$0xff]
        %v10061 = vld [vmem:[%s501 + $0xd8] sm:$0xff]
        %v10062 = vld [vmem:[%s501 + $0xe0] sm:$0xff]
        %v10063 = vld [vmem:[%s501 + $0xe8] sm:$0xff]
        %v10064 = vld [vmem:[%s501 + $0xf0] sm:$0xff]
        %v10065 = vld [vmem:[%s501 + $0xf8] sm:$0xff]
        %v10066 = vadd.f32 %v10034, %v9908
        %v10067 = vadd.f32 %v10035, %v9911
        %v10068 = vadd.f32 %v10036, %v9916
        %v10069 = vadd.f32 %v10037, %v9919
        %v10070 = vadd.f32 %v10038, %v9924
        %v10071 = vadd.f32 %v10039, %v9927
        %v10072 = vadd.f32 %v10040, %v9932
        %v10073 = vadd.f32 %v10041, %v9935
        %v10074 = vadd.f32 %v10042, %v9940
        %v10075 = vadd.f32 %v10043, %v9943
        %v10076 = vadd.f32 %v10044, %v9948
        %v10077 = vadd.f32 %v10045, %v9951
        %v10078 = vadd.f32 %v10046, %v9956
        %v10079 = vadd.f32 %v10047, %v9959
        %v10080 = vadd.f32 %v10048, %v9964
        %v10081 = vadd.f32 %v10049, %v9967
        %v10082 = vadd.f32 %v10050, %v9972
        %v10083 = vadd.f32 %v10051, %v9975
        %v10084 = vadd.f32 %v10052, %v9980
        %v10085 = vadd.f32 %v10053, %v9983
        %v10086 = vadd.f32 %v10054, %v9988
        %v10087 = vadd.f32 %v10055, %v9991
        %v10088 = vadd.f32 %v10056, %v9996
        %v10089 = vadd.f32 %v10057, %v9999
        %v10090 = vadd.f32 %v10058, %v10004
        %v10091 = vadd.f32 %v10059, %v10007
        %v10092 = vadd.f32 %v10060, %v10012
        %v10093 = vadd.f32 %v10061, %v10015
        %v10094 = vadd.f32 %v10062, %v10020
        %v10095 = vadd.f32 %v10063, %v10023
        %v10096 = vadd.f32 %v10064, %v10028
        %v10097 = vadd.f32 %v10065, %v10031
        %10098 = vst [vmem:[%s501] sm:$0xff] %v10066
        %10099 = vst [vmem:[%s501 + $0x8] sm:$0xff] %v10067
        %10100 = vst [vmem:[%s501 + $0x10] sm:$0xff] %v10068
        %10101 = vst [vmem:[%s501 + $0x18] sm:$0xff] %v10069
        %10102 = vst [vmem:[%s501 + $0x20] sm:$0xff] %v10070
        %10103 = vst [vmem:[%s501 + $0x28] sm:$0xff] %v10071
        %10104 = vst [vmem:[%s501 + $0x30] sm:$0xff] %v10072
        %10105 = vst [vmem:[%s501 + $0x38] sm:$0xff] %v10073
        %10106 = vst [vmem:[%s501 + $0x40] sm:$0xff] %v10074
        %10107 = vst [vmem:[%s501 + $0x48] sm:$0xff] %v10075
        %10108 = vst [vmem:[%s501 + $0x50] sm:$0xff] %v10076
        %10109 = vst [vmem:[%s501 + $0x58] sm:$0xff] %v10077
        %10110 = vst [vmem:[%s501 + $0x60] sm:$0xff] %v10078
        %10111 = vst [vmem:[%s501 + $0x68] sm:$0xff] %v10079
        %10112 = vst [vmem:[%s501 + $0x70] sm:$0xff] %v10080
        %10113 = vst [vmem:[%s501 + $0x78] sm:$0xff] %v10081
        %10114 = vst [vmem:[%s501 + $0x80] sm:$0xff] %v10082
        %10115 = vst [vmem:[%s501 + $0x88] sm:$0xff] %v10083
        %10116 = vst [vmem:[%s501 + $0x90] sm:$0xff] %v10084
        %10117 = vst [vmem:[%s501 + $0x98] sm:$0xff] %v10085
        %10118 = vst [vmem:[%s501 + $0xa0] sm:$0xff] %v10086
        %10119 = vst [vmem:[%s501 + $0xa8] sm:$0xff] %v10087
        %10120 = vst [vmem:[%s501 + $0xb0] sm:$0xff] %v10088
        %10121 = vst [vmem:[%s501 + $0xb8] sm:$0xff] %v10089
        %10122 = vst [vmem:[%s501 + $0xc0] sm:$0xff] %v10090
        %10123 = vst [vmem:[%s501 + $0xc8] sm:$0xff] %v10091
        %10124 = vst [vmem:[%s501 + $0xd0] sm:$0xff] %v10092
        %10125 = vst [vmem:[%s501 + $0xd8] sm:$0xff] %v10093
        %10126 = vst [vmem:[%s501 + $0xe0] sm:$0xff] %v10094
        %10127 = vst [vmem:[%s501 + $0xe8] sm:$0xff] %v10095
        %10128 = vst [vmem:[%s501 + $0xf0] sm:$0xff] %v10096
        %10129 = vst [vmem:[%s501 + $0xf8] sm:$0xff] %v10097
        %p10130 = scmp.lt.s32.totalorder %s27, 1
        %s10131 = scalar_select %p10130, %s27, 1
        %s10132 = smul.addr %s10131, 32
        %s10133 = smul.addr %s10132, 8
        %s10134 = scalar_lea.vmem %s12, %s10133
        // Predicated region
        $region93: #{mtl_forward.1} parent=67 // pred_check
          %p10135 = pneg %p302
        $region94: #{mtl_forward.1} parent=67 // pred_check_branch
          %10137 = sbr.rel (%p10135) target = $region96
        $region95: #{mtl_forward.1} parent=67 // pred_region
          _
        $region96: #{mtl_forward.1} parent=67 // pred_fallthru
          _
      $region68: #{mtl_forward.1} parent=5 // pred_fallthru
        _
      %p10138 = scmp.le.s32.totalorder 2, %s22
      // Predicated region
      $region97: #{mtl_forward.1} parent=5 // pred_check
        %p10139 = pneg %p10138
      $region98: #{mtl_forward.1} parent=5 // pred_check_branch
        %10141 = sbr.rel (%p10139) target = $region100
      $region99: #{mtl_forward.1} parent=5 // pred_region
        %s10142 = ssub.s32 %s22, 2
        // Predicated region
        $region101: #{mtl_forward.1} parent=99 // pred_check
          %p10143 = pneg %p308
        $region102: #{mtl_forward.1} parent=99 // pred_check_branch
          %10145 = sbr.rel (%p10143) target = $region104
        $region103: #{mtl_forward.1} parent=99 // pred_region
          %p10146 = scmp.lt.s32.totalorder %s28, 1
          %s10147 = scalar_select %p10146, %s28, 1
          %s10148 = smul.addr %s10147, 32
          %s10149 = smul.addr %s10148, 8
          %s10150 = scalar_lea.vmem %s12, %s10149
        $region104: #{mtl_forward.1} parent=99 // pred_fallthru
          _
      $region100: #{mtl_forward.1} parent=5 // pred_fallthru
        _
    $region6: #{mtl_forward.1} parent=1 // loop_footer
      %s26 = sadd.s32 1, %s22
    $region7: #{mtl_forward.1} parent=1 // loop_footer_branch
      %21 = sbr.rel target = $region3
    $region8: #{mtl_forward.1} parent=1 // loop_exit
      _
    %10151 = vsyncpa [#allocation5], 1
    %s10152 = scalar_lea.sflag [#allocation5], 1
    %10153 = vsyncpa %s10152, 1
    %10154 = vsyncpa [#allocation7], 1
    %10155 = vsyncpa [#allocation10], 1
    %10156 = vsyncpa [#allocation13], 1

</llo_original>
